<compile_context>
chip_gen: v7x
topology: tpu7x:2x2x1
jax: 0.10.0
libtpu: 0.0.40
codegen_flags: <defaults>
</compile_context>

<pallas_src>
import functools

import jax
import jax.numpy as jnp
from jax.experimental import pallas as pl
from jax.experimental.pallas import tpu as pltpu

HIDDEN = 1024 * 2  # 2048, as in the PyTorch module


def _mlp_kernel(x_ref, w1_ref, b1_ref, w2_ref, b2_ref, w3_ref, o_ref, acc_ref):
    """Grid = (hidden_shards, k_chunks); axis 1 is the fc2 reduction axis."""
    k = pl.program_id(1)

    @pl.when(k == 0)
    def _():
        acc_ref[...] = jnp.zeros_like(acc_ref)

    # fc1 for this K-chunk of the hidden dim: (B, S) @ (S, TK) + b1 -> relu
    h1 = jnp.dot(x_ref[...], w1_ref[...], preferred_element_type=jnp.float32)
    h1 = jnp.maximum(h1 + b1_ref[...], 0.0).astype(w2_ref.dtype)

    # fc2 partial: (B, TK) @ (TK, H_shard), accumulated in f32 VMEM scratch.
    acc_ref[...] += jnp.dot(h1, w2_ref[...], preferred_element_type=jnp.float32)

    @pl.when(k == pl.num_programs(1) - 1)
    def _():
        # bias + relu on this hidden shard, then the output GEMM partial.
        h2 = jnp.maximum(acc_ref[...] + b2_ref[...], 0.0).astype(w3_ref.dtype)
        o_ref[...] = jnp.dot(h2, w3_ref[...], preferred_element_type=jnp.float32)


@functools.partial(jax.jit, static_argnames=("tk", "num_shards"))
def diagnosis_forward(x, params, *, tk=2048, num_shards=2):
    """x: (B, state_size) float32. params: dict of f32 weights/biases."""
    # bf16 weights / activations (MXU-native); biases stay f32.
    w1 = params["w1"].astype(jnp.bfloat16)
    w2 = params["w2"].astype(jnp.bfloat16)
    w3 = params["w3"].astype(jnp.bfloat16)
    b1 = params["b1"].astype(jnp.float32).reshape(1, -1)
    b2 = params["b2"].astype(jnp.float32).reshape(1, -1)
    b3 = params["b3"].astype(jnp.float32)

    B, S = x.shape
    H = w1.shape[1]
    D = w3.shape[1]

    # Pad output features to a lane-dense multiple of 128 (zero columns).
    d_pad = max(128, pl.cdiv(D, 128) * 128)
    if d_pad != D:
        w3 = jnp.pad(w3, ((0, 0), (0, d_pad - D)))

    assert H % num_shards == 0
    hs = H // num_shards                # hidden columns per shard
    tk = min(tk, H)
    assert H % tk == 0
    k_chunks = H // tk                  # fc2 reduction chunks

    x_bf = x.astype(jnp.bfloat16)

    flops = 2 * B * (S * H + H * H + H * d_pad)
    bytes_accessed = (
        x_bf.size * 2 + w1.size * 2 + w2.size * 2 + w3.size * 2
        + b1.size * 4 + b2.size * 4 + num_shards * B * d_pad * 4
    )

    partials = pl.pallas_call(
        _mlp_kernel,
        out_shape=jax.ShapeDtypeStruct((num_shards, B, d_pad), jnp.float32),
        grid=(num_shards, k_chunks),
        in_specs=[
            pl.BlockSpec((B, S), lambda c, k: (0, 0)),        # x (resident)
            pl.BlockSpec((S, tk), lambda c, k: (0, k)),       # w1 column chunk
            pl.BlockSpec((1, tk), lambda c, k: (0, k)),       # b1 chunk
            pl.BlockSpec((tk, hs), lambda c, k: (k, c)),      # w2 tile
            pl.BlockSpec((1, hs), lambda c, k: (0, c)),       # b2 shard
            pl.BlockSpec((hs, d_pad), lambda c, k: (c, 0)),   # w3 row shard
        ],
        out_specs=pl.BlockSpec((None, B, d_pad), lambda c, k: (c, 0, 0)),
        scratch_shapes=[pltpu.VMEM((B, hs), jnp.float32)],    # fc2 accumulator
        compiler_params=pltpu.CompilerParams(
            dimension_semantics=("parallel", "arbitrary"),
            vmem_limit_bytes=32 * 1024 * 1024,
        ),
        cost_estimate=pl.CostEstimate(
            flops=flops, transcendentals=0, bytes_accessed=bytes_accessed
        ),
    )(x_bf, w1, b1, w2, b2, w3)

    # Sum the per-shard partials, add the final bias, drop lane padding.
    out = partials.sum(axis=0)[:, :D] + b3[None, :]
    return out


def init_params(key, state_size, disease_size):
    """Deterministic synthetic init (PyTorch-Linear-like uniform fan-in)."""
    ks = jax.random.split(key, 6)

    def uinit(k, shape, fan_in):
        bound = 1.0 / jnp.sqrt(float(fan_in))
        return jax.random.uniform(k, shape, jnp.float32, -bound, bound)

    return {
        # stored as (in, out) = PyTorch weight transposed
        "w1": uinit(ks[0], (state_size, HIDDEN), state_size),
        "b1": uinit(ks[1], (HIDDEN,), state_size),
        "w2": uinit(ks[2], (HIDDEN, HIDDEN), HIDDEN),
        "b2": uinit(ks[3], (HIDDEN,), HIDDEN),
        "w3": uinit(ks[4], (HIDDEN, disease_size), HIDDEN),
        "b3": uinit(ks[5], (disease_size,), HIDDEN),
    }


def _reference(x, p):
    # Use bf16-rounded weights (promoted to f32) so the comparison isolates
    # the kernel's activation rounding only.
    w1 = p["w1"].astype(jnp.bfloat16).astype(jnp.float32)
    w2 = p["w2"].astype(jnp.bfloat16).astype(jnp.float32)
    w3 = p["w3"].astype(jnp.bfloat16).astype(jnp.float32)
    h = jnp.maximum(x @ w1 + p["b1"][None, :], 0.0)
    h = jnp.maximum(h @ w2 + p["b2"][None, :], 0.0)
    return h @ w3 + p["b3"][None, :]


if __name__ == "__main__":
    state_size = 32     # input feature dim (symptom state vector)
    disease_size = 16   # number of diseases
    batch = 8

    key = jax.random.PRNGKey(0)
    k_x, k_p = jax.random.split(key)

    x = jax.random.normal(k_x, (batch, state_size), dtype=jnp.float32)
    params = init_params(k_p, state_size, disease_size)

    out = diagnosis_forward(x, params)
    out = jax.block_until_ready(out)

    ref = _reference(x, params)
    assert out.shape == (batch, disease_size)
    assert jnp.allclose(out, ref, atol=2e-2, rtol=2e-2), "mismatch vs reference"

    # Exercise a K-chunked configuration too (same kernel, smaller tiles).
    out_tiled = jax.block_until_ready(diagnosis_forward(x, params, tk=512))
    assert jnp.allclose(out_tiled, ref, atol=2e-2, rtol=2e-2), "tiled mismatch"

    print("KERNEL_OK")
</pallas_src>

<mosaic_0001>
module attributes {stable_mosaic.version = 11 : i64} {
  func.func @_mlp_kernel(%arg0: i32, %arg1: i32, %arg2: memref<8x32xbf16, #tpu.memory_space<vmem>>, %arg3: memref<32x2048xbf16, #tpu.memory_space<vmem>>, %arg4: memref<1x2048xf32, #tpu.memory_space<vmem>>, %arg5: memref<2048x1024xbf16, #tpu.memory_space<vmem>>, %arg6: memref<1x1024xf32, #tpu.memory_space<vmem>>, %arg7: memref<1024x128xbf16, #tpu.memory_space<vmem>>, %arg8: memref<1x8x128xf32, #tpu.memory_space<vmem>>, %arg9: memref<8x1024xf32, #tpu.memory_space<vmem>>) attributes {dimension_semantics = [#tpu.dimension_semantics<parallel>, #tpu.dimension_semantics<arbitrary>], iteration_bounds = array<i64: 2, 1>, scalar_prefetch = 0 : i64, scratch_operands = 1 : i64, tpu.core_type = #tpu.core_type<tc>, window_params = [{pipeline_mode = #tpu.pipeline_mode<synchronous>, transform_indices = @transform_0, window_bounds = array<i64: 8, 32>}, {transform_indices = @transform_1, window_bounds = array<i64: 32, 2048>}, {transform_indices = @transform_2, window_bounds = array<i64: 1, 2048>}, {transform_indices = @transform_3, window_bounds = array<i64: 2048, 1024>}, {transform_indices = @transform_4, window_bounds = array<i64: 1, 1024>}, {transform_indices = @transform_5, window_bounds = array<i64: 1024, 128>}, {transform_indices = @transform_6, window_bounds = array<i64: 1, 8, 128>}]} {
    %c0_i32 = arith.constant 0 : i32
    %0 = arith.cmpi eq, %arg1, %c0_i32 : i32
    %1 = arith.extui %0 : i1 to i32
    %c0_i32_0 = arith.constant 0 : i32
    %2 = arith.cmpi ne, %1, %c0_i32_0 : i32
    scf.if %2 {
      %cst_16 = arith.constant 0.000000e+00 : f32
      %20 = vector.broadcast %cst_16 : f32 to vector<8x1024xf32>
      %c0_17 = arith.constant 0 : index
      %c0_18 = arith.constant 0 : index
      %21 = vector.load %arg9[%c0_17, %c0_18] : memref<8x1024xf32, #tpu.memory_space<vmem>>, vector<8x1024xf32>
      tpu.vector_store %arg9[%c0_17, %c0_18], %20 {strides = array<i32>} : memref<8x1024xf32, #tpu.memory_space<vmem>>, vector<8x1024xf32>,
    } else {
    }
    %c0 = arith.constant 0 : index
    %c0_1 = arith.constant 0 : index
    %3 = vector.load %arg2[%c0, %c0_1] : memref<8x32xbf16, #tpu.memory_space<vmem>>, vector<8x32xbf16>
    %c0_2 = arith.constant 0 : index
    %c0_3 = arith.constant 0 : index
    %4 = vector.load %arg3[%c0_2, %c0_3] : memref<32x2048xbf16, #tpu.memory_space<vmem>>, vector<32x2048xbf16>
    %cst = arith.constant dense<0.000000e+00> : vector<8x2048xf32>
    %5 = tpu.matmul %3, %4, %cst {dimension_numbers = #tpu.dot_dimension_numbers<[1], [0], [0], [1], [0, 0, 1, 1], [], []>} : vector<8x32xbf16>, vector<32x2048xbf16>, vector<8x2048xf32> -> vector<8x2048xf32>
    %c0_4 = arith.constant 0 : index
    %c0_5 = arith.constant 0 : index
    %6 = vector.load %arg4[%c0_4, %c0_5] : memref<1x2048xf32, #tpu.memory_space<vmem>>, vector<1x2048xf32>
    %7 = vector.broadcast %6 : vector<1x2048xf32> to vector<8x2048xf32>
    %8 = arith.addf %5, %7 : vector<8x2048xf32>
    %cst_6 = arith.constant 0.000000e+00 : f32
    %9 = vector.broadcast %cst_6 : f32 to vector<8x2048xf32>
    %10 = arith.maximumf %8, %9 : vector<8x2048xf32>
    %11 = arith.truncf %10 : vector<8x2048xf32> to vector<8x2048xbf16>
    %c0_7 = arith.constant 0 : index
    %c0_8 = arith.constant 0 : index
    %12 = vector.load %arg9[%c0_7, %c0_8] : memref<8x1024xf32, #tpu.memory_space<vmem>>, vector<8x1024xf32>
    %c0_9 = arith.constant 0 : index
    %c0_10 = arith.constant 0 : index
    %13 = vector.load %arg5[%c0_9, %c0_10] : memref<2048x1024xbf16, #tpu.memory_space<vmem>>, vector<2048x1024xbf16>
    %cst_11 = arith.constant dense<0.000000e+00> : vector<8x1024xf32>
    %14 = tpu.matmul %11, %13, %cst_11 {dimension_numbers = #tpu.dot_dimension_numbers<[1], [0], [0], [1], [0, 0, 1, 1], [], []>} : vector<8x2048xbf16>, vector<2048x1024xbf16>, vector<8x1024xf32> -> vector<8x1024xf32>
    %15 = arith.addf %12, %14 : vector<8x1024xf32>
    %c0_12 = arith.constant 0 : index
    %c0_13 = arith.constant 0 : index
    %16 = vector.load %arg9[%c0_12, %c0_13] : memref<8x1024xf32, #tpu.memory_space<vmem>>, vector<8x1024xf32>
    tpu.vector_store %arg9[%c0_12, %c0_13], %15 {strides = array<i32>} : memref<8x1024xf32, #tpu.memory_space<vmem>>, vector<8x1024xf32>,
    %c0_i32_14 = arith.constant 0 : i32
    %17 = arith.cmpi eq, %arg1, %c0_i32_14 : i32
    %18 = arith.extui %17 : i1 to i32
    %c0_i32_15 = arith.constant 0 : i32
    %19 = arith.cmpi ne, %18, %c0_i32_15 : i32
    scf.if %19 {
      %c0_16 = arith.constant 0 : index
      %c0_17 = arith.constant 0 : index
      %20 = vector.load %arg9[%c0_16, %c0_17] : memref<8x1024xf32, #tpu.memory_space<vmem>>, vector<8x1024xf32>
      %c0_18 = arith.constant 0 : index
      %c0_19 = arith.constant 0 : index
      %21 = vector.load %arg6[%c0_18, %c0_19] : memref<1x1024xf32, #tpu.memory_space<vmem>>, vector<1x1024xf32>
      %22 = vector.broadcast %21 : vector<1x1024xf32> to vector<8x1024xf32>
      %23 = arith.addf %20, %22 : vector<8x1024xf32>
      %cst_20 = arith.constant 0.000000e+00 : f32
      %24 = vector.broadcast %cst_20 : f32 to vector<8x1024xf32>
      %25 = arith.maximumf %23, %24 : vector<8x1024xf32>
      %26 = arith.truncf %25 : vector<8x1024xf32> to vector<8x1024xbf16>
      %c0_21 = arith.constant 0 : index
      %c0_22 = arith.constant 0 : index
      %27 = vector.load %arg7[%c0_21, %c0_22] : memref<1024x128xbf16, #tpu.memory_space<vmem>>, vector<1024x128xbf16>
      %cst_23 = arith.constant dense<0.000000e+00> : vector<8x128xf32>
      %28 = tpu.matmul %26, %27, %cst_23 {dimension_numbers = #tpu.dot_dimension_numbers<[1], [0], [0], [1], [0, 0, 1, 1], [], []>} : vector<8x1024xbf16>, vector<1024x128xbf16>, vector<8x128xf32> -> vector<8x128xf32>
      %c0_24 = arith.constant 0 : index
      %c0_25 = arith.constant 0 : index
      %c0_26 = arith.constant 0 : index
      %29 = vector.load %arg8[%c0_24, %c0_25, %c0_26] : memref<1x8x128xf32, #tpu.memory_space<vmem>>, vector<1x8x128xf32>
      %30 = vector.shape_cast %29 : vector<1x8x128xf32> to vector<8x128xf32>
      %31 = vector.shape_cast %28 : vector<8x128xf32> to vector<1x8x128xf32>
      tpu.vector_store %arg8[%c0_24, %c0_25, %c0_26], %31 {strides = array<i32>} : memref<1x8x128xf32, #tpu.memory_space<vmem>>, vector<1x8x128xf32>,
    } else {
    }
    return
  }
  func.func @transform_0(%arg0: i32, %arg1: i32) -> (i32, i32) {
    %c0_i32 = arith.constant 0 : i32
    %c0_i32_0 = arith.constant 0 : i32
    %c0_i32_1 = arith.constant 0 : i32
    return %c0_i32, %c0_i32_0 : i32, i32
  }
  func.func @transform_1(%arg0: i32, %arg1: i32) -> (i32, i32) {
    %c0_i32 = arith.constant 0 : i32
    %c0_i32_0 = arith.constant 0 : i32
    return %c0_i32, %arg1 : i32, i32
  }
  func.func @transform_2(%arg0: i32, %arg1: i32) -> (i32, i32) {
    %c0_i32 = arith.constant 0 : i32
    %c0_i32_0 = arith.constant 0 : i32
    return %c0_i32, %arg1 : i32, i32
  }
  func.func @transform_3(%arg0: i32, %arg1: i32) -> (i32, i32) {
    %c0_i32 = arith.constant 0 : i32
    return %arg1, %arg0 : i32, i32
  }
  func.func @transform_4(%arg0: i32, %arg1: i32) -> (i32, i32) {
    %c0_i32 = arith.constant 0 : i32
    %c0_i32_0 = arith.constant 0 : i32
    return %c0_i32, %arg0 : i32, i32
  }
  func.func @transform_5(%arg0: i32, %arg1: i32) -> (i32, i32) {
    %c0_i32 = arith.constant 0 : i32
    %c0_i32_0 = arith.constant 0 : i32
    return %arg0, %c0_i32 : i32, i32
  }
  func.func @transform_6(%arg0: i32, %arg1: i32) -> (i32, i32, i32) {
    %c0_i32 = arith.constant 0 : i32
    %c0_i32_0 = arith.constant 0 : i32
    %c0_i32_1 = arith.constant 0 : i32
    return %arg0, %c0_i32, %c0_i32_0 : i32, i32, i32
  }
}

</mosaic_0001>

<llo_original>
// kernel: diagnosis_forward.1
$region0: #{diagnosis_forward.1}
  #allocation0 [shape = 'u32[]', space=smem, size = 0x4, offset = 0x4, fixed_abs, tag = 'smem constant byte address 0x4 - core index']
  #allocation1 [shape = 'u32[144,128]{1,0:T(1,128)}', space=vmem, size = 0x12000, scoped, tag = 'internal scratch']
  #allocation2 [shape = 'f32[8,1024]{1,0:T(8,128)}', space=vmem, size = 0x8000, scoped, tag = 'scratch operand']
  %s0 = inlined_call_operand.vmem [shape: bf16[8,32], index: 0, kind: input, shape index: {}]
  %s1 = inlined_call_operand.vmem [shape: bf16[32,2048], index: 1, kind: input, shape index: {}]
  %s2 = inlined_call_operand.vmem [shape: f32[1,2048], index: 2, kind: input, shape index: {}]
  %s3 = inlined_call_operand.vmem [shape: bf16[2048,2048], index: 3, kind: input, shape index: {}]
  %s4 = inlined_call_operand.vmem [shape: f32[1,2048], index: 4, kind: input, shape index: {}]
  %s5 = inlined_call_operand.vmem [shape: bf16[2048,128], index: 5, kind: input, shape index: {}]
  %s6 = inlined_call_operand.vmem [shape: f32[2,8,128], index: 6, kind: output, shape index: {}]
  %s7 = sld [smem:[#allocation0]]
  $region88: #{diagnosis_forward.1} parent=0
    _
  %s9 = ssub.s32 1, %s7
  %s10 = scalar_select 0, %s9, %s7
  $region1: #{diagnosis_forward.1} parent=0
    #allocation3 [shape = 'u8[8388608]{0}', space=vmem, size = 0x800000, scoped, tag = 'input window, operand 3']
    loop: start=0, step=1, limit=4
    $region2: #{diagnosis_forward.1} parent=1 // loop_pre_header
      _
    $region3: #{diagnosis_forward.1} parent=1 // loop_header
      %s12 = sphi 0, %s16
      %p13 = scmp.ge.s32.totalorder %s12, 4
      %s19 = sphi 0, %s31
      %s20 = sphi 0, %s27
      %s21 = sphi 0, %s19
      %s22 = sphi 0, %s20
      %s23 = sphi 0, %s21
      %s24 = sphi 0, %s22
      %s32 = sphi 0, %s32
      %s34 = sphi 0, %s32
      %s35 = sphi 0, %s34
      %s49 = sphi 0, %s35
      %s55 = sphi 0, %s57
      %s58 = sphi 0, %s55
      %s59 = sphi 0, %s58
      %s75 = sphi 0, %s59
      %s81 = sphi 0, %s83
      %s84 = sphi 0, %s81
      %s85 = sphi 0, %s84
      %s101 = sphi 0, %s85
      %s109 = sphi 0, %s111
      %s112 = sphi 0, %s109
      %s113 = sphi 0, %s112
      %s129 = sphi 0, %s113
      %s135 = sphi 0, %s137
      %s138 = sphi 0, %s135
      %s139 = sphi 0, %s138
      %s155 = sphi 0, %s139
      %s161 = sphi 0, %s163
      %s164 = sphi 0, %s161
      %s165 = sphi 0, %s164
      %s181 = sphi 0, %s165
      %s187 = sphi 0, %s189
      %s190 = sphi 0, %s187
      %s191 = sphi 0, %s190
      %s207 = sphi 0, %s191
    $region4: #{diagnosis_forward.1} parent=1 // loop_header_branch
      %15 = sbr.rel (%p13) target = $region8
    $region5: #{diagnosis_forward.1} parent=1 // loop_body
      %s17 = ssub.s32 %s12, 1
      %s18 = ssub.s32 %s12, 2
      %s25 = sadd.s32 1, %s20
      %p26 = scmp.ge.s32.totalorder %s25, 1
      %s27 = scalar_select %p26, 0, %s25
      %s28 = sadd.s32 1, %s19
      %s29 = scalar_select %p26, %s28, %s19
      %p30 = scmp.ge.s32.totalorder %s29, 2
      %s31 = scalar_select %p30, 0, %s29
      %s33 = sadd.s32 %s32, 1
      %p36 = scmp.eq.s32.totalorder %s12, 1
      %p37 = scmp.ne.s32.totalorder %s32, %s34
      %p38 = scmp.eq.s32.totalorder %s12, 0
      %p39 = por %p37, %p38
      %p40 = scmp.ne.s32.totalorder %s32, %s34
      %p41 = scmp.eq.s32.totalorder %s17, 1
      %p42 = por %p40, %p41
      %p43 = scmp.ne.s32.totalorder %s34, %s35
      %p44 = scmp.eq.s32.totalorder %s17, 0
      %p45 = por %p43, %p44
      %p46 = scmp.ne.s32.totalorder %s34, %s35
      %p47 = scmp.eq.s32.totalorder %s18, 1
      %p48 = por %p46, %p47
      %p50 = scmp.ne.s32.totalorder %s35, %s49
      %p51 = scmp.eq.s32.totalorder %s18, 0
      %p52 = por %p50, %p51
      %s53 = ssub.s32 %s20, %s27
      %p54 = scmp.eq.s32.totalorder %s53, 0
      %s56 = sadd.s32 %s55, 1
      %s57 = scalar_select %p54, %s55, %s56
      %p60 = pneg %p54
      %p61 = scmp.eq.s32.totalorder %s12, 1
      %p62 = por %p60, %p61
      %p63 = scmp.ne.s32.totalorder %s55, %s58
      %p64 = scmp.eq.s32.totalorder %s12, 0
      %p65 = por %p63, %p64
      %p66 = scmp.ne.s32.totalorder %s55, %s58
      %p67 = scmp.eq.s32.totalorder %s17, 1
      %p68 = por %p66, %p67
      %p69 = scmp.ne.s32.totalorder %s58, %s59
      %p70 = scmp.eq.s32.totalorder %s17, 0
      %p71 = por %p69, %p70
      %p72 = scmp.ne.s32.totalorder %s58, %s59
      %p73 = scmp.eq.s32.totalorder %s18, 1
      %p74 = por %p72, %p73
      %p76 = scmp.ne.s32.totalorder %s59, %s75
      %p77 = scmp.eq.s32.totalorder %s18, 0
      %p78 = por %p76, %p77
      %s79 = ssub.s32 %s20, %s27
      %p80 = scmp.eq.s32.totalorder %s79, 0
      %s82 = sadd.s32 %s81, 1
      %s83 = scalar_select %p80, %s81, %s82
      %p86 = pneg %p80
      %p87 = scmp.eq.s32.totalorder %s12, 1
      %p88 = por %p86, %p87
      %p89 = scmp.ne.s32.totalorder %s81, %s84
      %p90 = scmp.eq.s32.totalorder %s12, 0
      %p91 = por %p89, %p90
      %p92 = scmp.ne.s32.totalorder %s81, %s84
      %p93 = scmp.eq.s32.totalorder %s17, 1
      %p94 = por %p92, %p93
      %p95 = scmp.ne.s32.totalorder %s84, %s85
      %p96 = scmp.eq.s32.totalorder %s17, 0
      %p97 = por %p95, %p96
      %p98 = scmp.ne.s32.totalorder %s84, %s85
      %p99 = scmp.eq.s32.totalorder %s18, 1
      %p100 = por %p98, %p99
      %p102 = scmp.ne.s32.totalorder %s85, %s101
      %p103 = scmp.eq.s32.totalorder %s18, 0
      %p104 = por %p102, %p103
      %s105 = ssub.s32 %s20, %s27
      %s106 = ssub.s32 %s19, %s31
      %s107 = sor.u32 %s105, %s106
      %p108 = scmp.eq.s32.totalorder %s107, 0
      %s110 = sadd.s32 %s109, 1
      %s111 = scalar_select %p108, %s109, %s110
      %p114 = pneg %p108
      %p115 = scmp.eq.s32.totalorder %s12, 1
      %p116 = por %p114, %p115
      %p117 = scmp.ne.s32.totalorder %s109, %s112
      %p118 = scmp.eq.s32.totalorder %s12, 0
      %p119 = por %p117, %p118
      %p120 = scmp.ne.s32.totalorder %s109, %s112
      %p121 = scmp.eq.s32.totalorder %s17, 1
      %p122 = por %p120, %p121
      %p123 = scmp.ne.s32.totalorder %s112, %s113
      %p124 = scmp.eq.s32.totalorder %s17, 0
      %p125 = por %p123, %p124
      %p126 = scmp.ne.s32.totalorder %s112, %s113
      %p127 = scmp.eq.s32.totalorder %s18, 1
      %p128 = por %p126, %p127
      %p130 = scmp.ne.s32.totalorder %s113, %s129
      %p131 = scmp.eq.s32.totalorder %s18, 0
      %p132 = por %p130, %p131
      %s133 = ssub.s32 %s19, %s31
      %p134 = scmp.eq.s32.totalorder %s133, 0
      %s136 = sadd.s32 %s135, 1
      %s137 = scalar_select %p134, %s135, %s136
      %p140 = pneg %p134
      %p141 = scmp.eq.s32.totalorder %s12, 1
      %p142 = por %p140, %p141
      %p143 = scmp.ne.s32.totalorder %s135, %s138
      %p144 = scmp.eq.s32.totalorder %s12, 0
      %p145 = por %p143, %p144
      %p146 = scmp.ne.s32.totalorder %s135, %s138
      %p147 = scmp.eq.s32.totalorder %s17, 1
      %p148 = por %p146, %p147
      %p149 = scmp.ne.s32.totalorder %s138, %s139
      %p150 = scmp.eq.s32.totalorder %s17, 0
      %p151 = por %p149, %p150
      %p152 = scmp.ne.s32.totalorder %s138, %s139
      %p153 = scmp.eq.s32.totalorder %s18, 1
      %p154 = por %p152, %p153
      %p156 = scmp.ne.s32.totalorder %s139, %s155
      %p157 = scmp.eq.s32.totalorder %s18, 0
      %p158 = por %p156, %p157
      %s159 = ssub.s32 %s19, %s31
      %p160 = scmp.eq.s32.totalorder %s159, 0
      %s162 = sadd.s32 %s161, 1
      %s163 = scalar_select %p160, %s161, %s162
      %p166 = pneg %p160
      %p167 = scmp.eq.s32.totalorder %s12, 1
      %p168 = por %p166, %p167
      %p169 = scmp.ne.s32.totalorder %s161, %s164
      %p170 = scmp.eq.s32.totalorder %s12, 0
      %p171 = por %p169, %p170
      %p172 = scmp.ne.s32.totalorder %s161, %s164
      %p173 = scmp.eq.s32.totalorder %s17, 1
      %p174 = por %p172, %p173
      %p175 = scmp.ne.s32.totalorder %s164, %s165
      %p176 = scmp.eq.s32.totalorder %s17, 0
      %p177 = por %p175, %p176
      %p178 = scmp.ne.s32.totalorder %s164, %s165
      %p179 = scmp.eq.s32.totalorder %s18, 1
      %p180 = por %p178, %p179
      %p182 = scmp.ne.s32.totalorder %s165, %s181
      %p183 = scmp.eq.s32.totalorder %s18, 0
      %p184 = por %p182, %p183
      %s185 = ssub.s32 %s19, %s31
      %p186 = scmp.eq.s32.totalorder %s185, 0
      %s188 = sadd.s32 %s187, 1
      %s189 = scalar_select %p186, %s187, %s188
      %p192 = pneg %p186
      %p193 = scmp.eq.s32.totalorder %s12, 1
      %p194 = por %p192, %p193
      %p195 = scmp.ne.s32.totalorder %s187, %s190
      %p196 = scmp.eq.s32.totalorder %s12, 0
      %p197 = por %p195, %p196
      %p198 = scmp.ne.s32.totalorder %s187, %s190
      %p199 = scmp.eq.s32.totalorder %s17, 1
      %p200 = por %p198, %p199
      %p201 = scmp.ne.s32.totalorder %s190, %s191
      %p202 = scmp.eq.s32.totalorder %s17, 0
      %p203 = por %p201, %p202
      %p204 = scmp.ne.s32.totalorder %s190, %s191
      %p205 = scmp.eq.s32.totalorder %s18, 1
      %p206 = por %p204, %p205
      %p208 = scmp.ne.s32.totalorder %s191, %s207
      %p209 = scmp.eq.s32.totalorder %s18, 0
      %p210 = por %p208, %p209
      %p211 = scmp.le.s32.totalorder 1, %s12
      %p212 = scmp.lt.s32.totalorder %s12, 3
      %p213 = pnand %p211, %p212
      %p214 = pneg %p213
      // Predicated region
      $region9: #{diagnosis_forward.1} parent=5 // pred_check
        _
      $region10: #{diagnosis_forward.1} parent=5 // pred_check_branch
        %216 = sbr.rel (%p213) target = $region12
      $region11: #{diagnosis_forward.1} parent=5 // pred_region
        %s217 = ssub.s32 %s12, 1
        // Predicated region
        $region13: #{diagnosis_forward.1} parent=11 // pred_check
          %p218 = pneg %p45
        $region14: #{diagnosis_forward.1} parent=11 // pred_check_branch
          %220 = sbr.rel (%p218) target = $region16
        $region15: #{diagnosis_forward.1} parent=11 // pred_region
          _
        $region16: #{diagnosis_forward.1} parent=11 // pred_fallthru
          _
        // Predicated region
        $region17: #{diagnosis_forward.1} parent=11 // pred_check
          %p221 = pneg %p71
        $region18: #{diagnosis_forward.1} parent=11 // pred_check_branch
          %223 = sbr.rel (%p221) target = $region20
        $region19: #{diagnosis_forward.1} parent=11 // pred_region
          %s224 = smul.u32 16, %s22
          %p225 = scmp.lt.s32.totalorder %s224, 15
          %s226 = scalar_select %p225, %s224, 15
          %s227 = smul.addr %s226, 4
          %s228 = scalar_lea.vmem %s1, %s227
          %s229 = smul.u32 16, %s22
        $region20: #{diagnosis_forward.1} parent=11 // pred_fallthru
          _
        // Predicated region
        $region21: #{diagnosis_forward.1} parent=11 // pred_check
          %p230 = pneg %p97
        $region22: #{diagnosis_forward.1} parent=11 // pred_check_branch
          %232 = sbr.rel (%p230) target = $region24
        $region23: #{diagnosis_forward.1} parent=11 // pred_region
          %s233 = smul.u32 16, %s22
          %p234 = scmp.lt.s32.totalorder %s233, 15
          %s235 = scalar_select %p234, %s233, 15
          %s236 = scalar_lea.vmem %s2, %s235
          %s237 = smul.u32 16, %s22
        $region24: #{diagnosis_forward.1} parent=11 // pred_fallthru
          _
      $region12: #{diagnosis_forward.1} parent=5 // pred_fallthru
        _
      %p238 = scmp.lt.s32.totalorder %s12, 2
      // Predicated region
      $region25: #{diagnosis_forward.1} parent=5 // pred_check
        %p239 = pneg %p238
      $region26: #{diagnosis_forward.1} parent=5 // pred_check_branch
        %241 = sbr.rel (%p239) target = $region28
      $region27: #{diagnosis_forward.1} parent=5 // pred_region
        // Predicated region
        $region29: #{diagnosis_forward.1} parent=27 // pred_check
          %p242 = pneg %p119
        $region30: #{diagnosis_forward.1} parent=27 // pred_check_branch
          %244 = sbr.rel (%p242) target = $region32
        $region31: #{diagnosis_forward.1} parent=27 // pred_region
          %s245 = sand.u32 %s109, 1
          %s246 = sand.u32 %s109, 1
          %s247 = smul.addr %s246, 8192
          %s248 = scalar_lea.vmem [#allocation3], %s247
          %s249 = smul.u32 256, %s20
          %s250 = smul.u32 8, %s19
          %s251 = smul.addr %s249, 16
          %s252 = sadd.s32 %s250, %s251
          %s253 = smul.addr %s252, 4
          %s254 = scalar_lea.vmem %s3, %s253
          // Predicated region
          $region33: #{diagnosis_forward.1} parent=31 // pred_check
            _
          $region34: #{diagnosis_forward.1} parent=31 // pred_check_branch
            %256 = sbr.rel (0) target = $region36
          $region35: #{diagnosis_forward.1} parent=31 // pred_region
            // Predicated region
            $region37: #{diagnosis_forward.1} parent=35 // pred_check
              _
            $region38: #{diagnosis_forward.1} parent=35 // pred_check_branch
              %258 = sbr.rel (0) target = $region40
            $region39: #{diagnosis_forward.1} parent=35 // pred_region
              loop: start=0, step=1, limit=1
              $region41: #{diagnosis_forward.1} parent=39 // loop_pre_header
                _
              $region42: #{diagnosis_forward.1} parent=39 // loop_header
                %s260 = sphi 0, %s264
                %p261 = scmp.ge.s32.totalorder %s260, 1
                %s265 = sphi %s254, %s254
                %s266 = sphi %s248, %s248
              $region43: #{diagnosis_forward.1} parent=39 // loop_header_branch
                %263 = sbr.rel (%p261) target = $region47
              $region44: #{diagnosis_forward.1} parent=39 // loop_body
                %v267 = vld [vmem:[%s265] sm:$0xff]
                %268 = vst [vmem:[%s266] sm:$0xff] %v267
                %v269 = vld [vmem:[%s265 + $0x8] sm:$0xff]
                %270 = vst [vmem:[%s266 + $0x8] sm:$0xff] %v269
                %v271 = vld [vmem:[%s265 + $0x10] sm:$0xff]
                %272 = vst [vmem:[%s266 + $0x10] sm:$0xff] %v271
                %v273 = vld [vmem:[%s265 + $0x18] sm:$0xff]
                %274 = vst [vmem:[%s266 + $0x18] sm:$0xff] %v273
                %v275 = vld [vmem:[%s265 + $0x40] sm:$0xff]
                %276 = vst [vmem:[%s266 + $0x20] sm:$0xff] %v275
                %v277 = vld [vmem:[%s265 + $0x48] sm:$0xff]
                %278 = vst [vmem:[%s266 + $0x28] sm:$0xff] %v277
                %v279 = vld [vmem:[%s265 + $0x50] sm:$0xff]
                %280 = vst [vmem:[%s266 + $0x30] sm:$0xff] %v279
                %v281 = vld [vmem:[%s265 + $0x58] sm:$0xff]
                %282 = vst [vmem:[%s266 + $0x38] sm:$0xff] %v281
                %v283 = vld [vmem:[%s265 + $0x80] sm:$0xff]
                %284 = vst [vmem:[%s266 + $0x40] sm:$0xff] %v283
                %v285 = vld [vmem:[%s265 + $0x88] sm:$0xff]
                %286 = vst [vmem:[%s266 + $0x48] sm:$0xff] %v285
                %v287 = vld [vmem:[%s265 + $0x90] sm:$0xff]
                %288 = vst [vmem:[%s266 + $0x50] sm:$0xff] %v287
                %v289 = vld [vmem:[%s265 + $0x98] sm:$0xff]
                %290 = vst [vmem:[%s266 + $0x58] sm:$0xff] %v289
                %v291 = vld [vmem:[%s265 + $0xc0] sm:$0xff]
                %292 = vst [vmem:[%s266 + $0x60] sm:$0xff] %v291
                %v293 = vld [vmem:[%s265 + $0xc8] sm:$0xff]
                %294 = vst [vmem:[%s266 + $0x68] sm:$0xff] %v293
                %v295 = vld [vmem:[%s265 + $0xd0] sm:$0xff]
                %296 = vst [vmem:[%s266 + $0x70] sm:$0xff] %v295
                %v297 = vld [vmem:[%s265 + $0xd8] sm:$0xff]
                %298 = vst [vmem:[%s266 + $0x78] sm:$0xff] %v297
                %v299 = vld [vmem:[%s265 + $0x100] sm:$0xff]
                %300 = vst [vmem:[%s266 + $0x80] sm:$0xff] %v299
                %v301 = vld [vmem:[%s265 + $0x108] sm:$0xff]
                %302 = vst [vmem:[%s266 + $0x88] sm:$0xff] %v301
                %v303 = vld [vmem:[%s265 + $0x110] sm:$0xff]
                %304 = vst [vmem:[%s266 + $0x90] sm:$0xff] %v303
                %v305 = vld [vmem:[%s265 + $0x118] sm:$0xff]
                %306 = vst [vmem:[%s266 + $0x98] sm:$0xff] %v305
                %v307 = vld [vmem:[%s265 + $0x140] sm:$0xff]
                %308 = vst [vmem:[%s266 + $0xa0] sm:$0xff] %v307
                %v309 = vld [vmem:[%s265 + $0x148] sm:$0xff]
                %310 = vst [vmem:[%s266 + $0xa8] sm:$0xff] %v309
                %v311 = vld [vmem:[%s265 + $0x150] sm:$0xff]
                %312 = vst [vmem:[%s266 + $0xb0] sm:$0xff] %v311
                %v313 = vld [vmem:[%s265 + $0x158] sm:$0xff]
                %314 = vst [vmem:[%s266 + $0xb8] sm:$0xff] %v313
                %v315 = vld [vmem:[%s265 + $0x180] sm:$0xff]
                %316 = vst [vmem:[%s266 + $0xc0] sm:$0xff] %v315
                %v317 = vld [vmem:[%s265 + $0x188] sm:$0xff]
                %318 = vst [vmem:[%s266 + $0xc8] sm:$0xff] %v317
                %v319 = vld [vmem:[%s265 + $0x190] sm:$0xff]
                %320 = vst [vmem:[%s266 + $0xd0] sm:$0xff] %v319
                %v321 = vld [vmem:[%s265 + $0x198] sm:$0xff]
                %322 = vst [vmem:[%s266 + $0xd8] sm:$0xff] %v321
                %v323 = vld [vmem:[%s265 + $0x1c0] sm:$0xff]
                %324 = vst [vmem:[%s266 + $0xe0] sm:$0xff] %v323
                %v325 = vld [vmem:[%s265 + $0x1c8] sm:$0xff]
                %326 = vst [vmem:[%s266 + $0xe8] sm:$0xff] %v325
                %v327 = vld [vmem:[%s265 + $0x1d0] sm:$0xff]
                %328 = vst [vmem:[%s266 + $0xf0] sm:$0xff] %v327
                %v329 = vld [vmem:[%s265 + $0x1d8] sm:$0xff]
                %330 = vst [vmem:[%s266 + $0xf8] sm:$0xff] %v329
                %v331 = vld [vmem:[%s265 + $0x200] sm:$0xff]
                %332 = vst [vmem:[%s266 + $0x100] sm:$0xff] %v331
                %v333 = vld [vmem:[%s265 + $0x208] sm:$0xff]
                %334 = vst [vmem:[%s266 + $0x108] sm:$0xff] %v333
                %v335 = vld [vmem:[%s265 + $0x210] sm:$0xff]
                %336 = vst [vmem:[%s266 + $0x110] sm:$0xff] %v335
                %v337 = vld [vmem:[%s265 + $0x218] sm:$0xff]
                %338 = vst [vmem:[%s266 + $0x118] sm:$0xff] %v337
                %v339 = vld [vmem:[%s265 + $0x240] sm:$0xff]
                %340 = vst [vmem:[%s266 + $0x120] sm:$0xff] %v339
                %v341 = vld [vmem:[%s265 + $0x248] sm:$0xff]
                %342 = vst [vmem:[%s266 + $0x128] sm:$0xff] %v341
                %v343 = vld [vmem:[%s265 + $0x250] sm:$0xff]
                %344 = vst [vmem:[%s266 + $0x130] sm:$0xff] %v343
                %v345 = vld [vmem:[%s265 + $0x258] sm:$0xff]
                %346 = vst [vmem:[%s266 + $0x138] sm:$0xff] %v345
                %v347 = vld [vmem:[%s265 + $0x280] sm:$0xff]
                %348 = vst [vmem:[%s266 + $0x140] sm:$0xff] %v347
                %v349 = vld [vmem:[%s265 + $0x288] sm:$0xff]
                %350 = vst [vmem:[%s266 + $0x148] sm:$0xff] %v349
                %v351 = vld [vmem:[%s265 + $0x290] sm:$0xff]
                %352 = vst [vmem:[%s266 + $0x150] sm:$0xff] %v351
                %v353 = vld [vmem:[%s265 + $0x298] sm:$0xff]
                %354 = vst [vmem:[%s266 + $0x158] sm:$0xff] %v353
                %v355 = vld [vmem:[%s265 + $0x2c0] sm:$0xff]
                %356 = vst [vmem:[%s266 + $0x160] sm:$0xff] %v355
                %v357 = vld [vmem:[%s265 + $0x2c8] sm:$0xff]
                %358 = vst [vmem:[%s266 + $0x168] sm:$0xff] %v357
                %v359 = vld [vmem:[%s265 + $0x2d0] sm:$0xff]
                %360 = vst [vmem:[%s266 + $0x170] sm:$0xff] %v359
                %v361 = vld [vmem:[%s265 + $0x2d8] sm:$0xff]
                %362 = vst [vmem:[%s266 + $0x178] sm:$0xff] %v361
                %v363 = vld [vmem:[%s265 + $0x300] sm:$0xff]
                %364 = vst [vmem:[%s266 + $0x180] sm:$0xff] %v363
                %v365 = vld [vmem:[%s265 + $0x308] sm:$0xff]
                %366 = vst [vmem:[%s266 + $0x188] sm:$0xff] %v365
                %v367 = vld [vmem:[%s265 + $0x310] sm:$0xff]
                %368 = vst [vmem:[%s266 + $0x190] sm:$0xff] %v367
                %v369 = vld [vmem:[%s265 + $0x318] sm:$0xff]
                %370 = vst [vmem:[%s266 + $0x198] sm:$0xff] %v369
                %v371 = vld [vmem:[%s265 + $0x340] sm:$0xff]
                %372 = vst [vmem:[%s266 + $0x1a0] sm:$0xff] %v371
                %v373 = vld [vmem:[%s265 + $0x348] sm:$0xff]
                %374 = vst [vmem:[%s266 + $0x1a8] sm:$0xff] %v373
                %v375 = vld [vmem:[%s265 + $0x350] sm:$0xff]
                %376 = vst [vmem:[%s266 + $0x1b0] sm:$0xff] %v375
                %v377 = vld [vmem:[%s265 + $0x358] sm:$0xff]
                %378 = vst [vmem:[%s266 + $0x1b8] sm:$0xff] %v377
                %v379 = vld [vmem:[%s265 + $0x380] sm:$0xff]
                %380 = vst [vmem:[%s266 + $0x1c0] sm:$0xff] %v379
                %v381 = vld [vmem:[%s265 + $0x388] sm:$0xff]
                %382 = vst [vmem:[%s266 + $0x1c8] sm:$0xff] %v381
                %v383 = vld [vmem:[%s265 + $0x390] sm:$0xff]
                %384 = vst [vmem:[%s266 + $0x1d0] sm:$0xff] %v383
                %v385 = vld [vmem:[%s265 + $0x398] sm:$0xff]
                %386 = vst [vmem:[%s266 + $0x1d8] sm:$0xff] %v385
                %v387 = vld [vmem:[%s265 + $0x3c0] sm:$0xff]
                %388 = vst [vmem:[%s266 + $0x1e0] sm:$0xff] %v387
                %v389 = vld [vmem:[%s265 + $0x3c8] sm:$0xff]
                %390 = vst [vmem:[%s266 + $0x1e8] sm:$0xff] %v389
                %v391 = vld [vmem:[%s265 + $0x3d0] sm:$0xff]
                %392 = vst [vmem:[%s266 + $0x1f0] sm:$0xff] %v391
                %v393 = vld [vmem:[%s265 + $0x3d8] sm:$0xff]
                %394 = vst [vmem:[%s266 + $0x1f8] sm:$0xff] %v393
                %v395 = vld [vmem:[%s265 + $0x400] sm:$0xff]
                %396 = vst [vmem:[%s266 + $0x200] sm:$0xff] %v395
                %v397 = vld [vmem:[%s265 + $0x408] sm:$0xff]
                %398 = vst [vmem:[%s266 + $0x208] sm:$0xff] %v397
                %v399 = vld [vmem:[%s265 + $0x410] sm:$0xff]
                %400 = vst [vmem:[%s266 + $0x210] sm:$0xff] %v399
                %v401 = vld [vmem:[%s265 + $0x418] sm:$0xff]
                %402 = vst [vmem:[%s266 + $0x218] sm:$0xff] %v401
                %v403 = vld [vmem:[%s265 + $0x440] sm:$0xff]
                %404 = vst [vmem:[%s266 + $0x220] sm:$0xff] %v403
                %v405 = vld [vmem:[%s265 + $0x448] sm:$0xff]
                %406 = vst [vmem:[%s266 + $0x228] sm:$0xff] %v405
                %v407 = vld [vmem:[%s265 + $0x450] sm:$0xff]
                %408 = vst [vmem:[%s266 + $0x230] sm:$0xff] %v407
                %v409 = vld [vmem:[%s265 + $0x458] sm:$0xff]
                %410 = vst [vmem:[%s266 + $0x238] sm:$0xff] %v409
                %v411 = vld [vmem:[%s265 + $0x480] sm:$0xff]
                %412 = vst [vmem:[%s266 + $0x240] sm:$0xff] %v411
                %v413 = vld [vmem:[%s265 + $0x488] sm:$0xff]
                %414 = vst [vmem:[%s266 + $0x248] sm:$0xff] %v413
                %v415 = vld [vmem:[%s265 + $0x490] sm:$0xff]
                %416 = vst [vmem:[%s266 + $0x250] sm:$0xff] %v415
                %v417 = vld [vmem:[%s265 + $0x498] sm:$0xff]
                %418 = vst [vmem:[%s266 + $0x258] sm:$0xff] %v417
                %v419 = vld [vmem:[%s265 + $0x4c0] sm:$0xff]
                %420 = vst [vmem:[%s266 + $0x260] sm:$0xff] %v419
                %v421 = vld [vmem:[%s265 + $0x4c8] sm:$0xff]
                %422 = vst [vmem:[%s266 + $0x268] sm:$0xff] %v421
                %v423 = vld [vmem:[%s265 + $0x4d0] sm:$0xff]
                %424 = vst [vmem:[%s266 + $0x270] sm:$0xff] %v423
                %v425 = vld [vmem:[%s265 + $0x4d8] sm:$0xff]
                %426 = vst [vmem:[%s266 + $0x278] sm:$0xff] %v425
                %v427 = vld [vmem:[%s265 + $0x500] sm:$0xff]
                %428 = vst [vmem:[%s266 + $0x280] sm:$0xff] %v427
                %v429 = vld [vmem:[%s265 + $0x508] sm:$0xff]
                %430 = vst [vmem:[%s266 + $0x288] sm:$0xff] %v429
                %v431 = vld [vmem:[%s265 + $0x510] sm:$0xff]
                %432 = vst [vmem:[%s266 + $0x290] sm:$0xff] %v431
                %v433 = vld [vmem:[%s265 + $0x518] sm:$0xff]
                %434 = vst [vmem:[%s266 + $0x298] sm:$0xff] %v433
                %v435 = vld [vmem:[%s265 + $0x540] sm:$0xff]
                %436 = vst [vmem:[%s266 + $0x2a0] sm:$0xff] %v435
                %v437 = vld [vmem:[%s265 + $0x548] sm:$0xff]
                %438 = vst [vmem:[%s266 + $0x2a8] sm:$0xff] %v437
                %v439 = vld [vmem:[%s265 + $0x550] sm:$0xff]
                %440 = vst [vmem:[%s266 + $0x2b0] sm:$0xff] %v439
                %v441 = vld [vmem:[%s265 + $0x558] sm:$0xff]
                %442 = vst [vmem:[%s266 + $0x2b8] sm:$0xff] %v441
                %v443 = vld [vmem:[%s265 + $0x580] sm:$0xff]
                %444 = vst [vmem:[%s266 + $0x2c0] sm:$0xff] %v443
                %v445 = vld [vmem:[%s265 + $0x588] sm:$0xff]
                %446 = vst [vmem:[%s266 + $0x2c8] sm:$0xff] %v445
                %v447 = vld [vmem:[%s265 + $0x590] sm:$0xff]
                %448 = vst [vmem:[%s266 + $0x2d0] sm:$0xff] %v447
                %v449 = vld [vmem:[%s265 + $0x598] sm:$0xff]
                %450 = vst [vmem:[%s266 + $0x2d8] sm:$0xff] %v449
                %v451 = vld [vmem:[%s265 + $0x5c0] sm:$0xff]
                %452 = vst [vmem:[%s266 + $0x2e0] sm:$0xff] %v451
                %v453 = vld [vmem:[%s265 + $0x5c8] sm:$0xff]
                %454 = vst [vmem:[%s266 + $0x2e8] sm:$0xff] %v453
                %v455 = vld [vmem:[%s265 + $0x5d0] sm:$0xff]
                %456 = vst [vmem:[%s266 + $0x2f0] sm:$0xff] %v455
                %v457 = vld [vmem:[%s265 + $0x5d8] sm:$0xff]
                %458 = vst [vmem:[%s266 + $0x2f8] sm:$0xff] %v457
                %v459 = vld [vmem:[%s265 + $0x600] sm:$0xff]
                %460 = vst [vmem:[%s266 + $0x300] sm:$0xff] %v459
                %v461 = vld [vmem:[%s265 + $0x608] sm:$0xff]
                %462 = vst [vmem:[%s266 + $0x308] sm:$0xff] %v461
                %v463 = vld [vmem:[%s265 + $0x610] sm:$0xff]
                %464 = vst [vmem:[%s266 + $0x310] sm:$0xff] %v463
                %v465 = vld [vmem:[%s265 + $0x618] sm:$0xff]
                %466 = vst [vmem:[%s266 + $0x318] sm:$0xff] %v465
                %v467 = vld [vmem:[%s265 + $0x640] sm:$0xff]
                %468 = vst [vmem:[%s266 + $0x320] sm:$0xff] %v467
                %v469 = vld [vmem:[%s265 + $0x648] sm:$0xff]
                %470 = vst [vmem:[%s266 + $0x328] sm:$0xff] %v469
                %v471 = vld [vmem:[%s265 + $0x650] sm:$0xff]
                %472 = vst [vmem:[%s266 + $0x330] sm:$0xff] %v471
                %v473 = vld [vmem:[%s265 + $0x658] sm:$0xff]
                %474 = vst [vmem:[%s266 + $0x338] sm:$0xff] %v473
                %v475 = vld [vmem:[%s265 + $0x680] sm:$0xff]
                %476 = vst [vmem:[%s266 + $0x340] sm:$0xff] %v475
                %v477 = vld [vmem:[%s265 + $0x688] sm:$0xff]
                %478 = vst [vmem:[%s266 + $0x348] sm:$0xff] %v477
                %v479 = vld [vmem:[%s265 + $0x690] sm:$0xff]
                %480 = vst [vmem:[%s266 + $0x350] sm:$0xff] %v479
                %v481 = vld [vmem:[%s265 + $0x698] sm:$0xff]
                %482 = vst [vmem:[%s266 + $0x358] sm:$0xff] %v481
                %v483 = vld [vmem:[%s265 + $0x6c0] sm:$0xff]
                %484 = vst [vmem:[%s266 + $0x360] sm:$0xff] %v483
                %v485 = vld [vmem:[%s265 + $0x6c8] sm:$0xff]
                %486 = vst [vmem:[%s266 + $0x368] sm:$0xff] %v485
                %v487 = vld [vmem:[%s265 + $0x6d0] sm:$0xff]
                %488 = vst [vmem:[%s266 + $0x370] sm:$0xff] %v487
                %v489 = vld [vmem:[%s265 + $0x6d8] sm:$0xff]
                %490 = vst [vmem:[%s266 + $0x378] sm:$0xff] %v489
                %v491 = vld [vmem:[%s265 + $0x700] sm:$0xff]
                %492 = vst [vmem:[%s266 + $0x380] sm:$0xff] %v491
                %v493 = vld [vmem:[%s265 + $0x708] sm:$0xff]
                %494 = vst [vmem:[%s266 + $0x388] sm:$0xff] %v493
                %v495 = vld [vmem:[%s265 + $0x710] sm:$0xff]
                %496 = vst [vmem:[%s266 + $0x390] sm:$0xff] %v495
                %v497 = vld [vmem:[%s265 + $0x718] sm:$0xff]
                %498 = vst [vmem:[%s266 + $0x398] sm:$0xff] %v497
                %v499 = vld [vmem:[%s265 + $0x740] sm:$0xff]
                %500 = vst [vmem:[%s266 + $0x3a0] sm:$0xff] %v499
                %v501 = vld [vmem:[%s265 + $0x748] sm:$0xff]
                %502 = vst [vmem:[%s266 + $0x3a8] sm:$0xff] %v501
                %v503 = vld [vmem:[%s265 + $0x750] sm:$0xff]
                %504 = vst [vmem:[%s266 + $0x3b0] sm:$0xff] %v503
                %v505 = vld [vmem:[%s265 + $0x758] sm:$0xff]
                %506 = vst [vmem:[%s266 + $0x3b8] sm:$0xff] %v505
                %v507 = vld [vmem:[%s265 + $0x780] sm:$0xff]
                %508 = vst [vmem:[%s266 + $0x3c0] sm:$0xff] %v507
                %v509 = vld [vmem:[%s265 + $0x788] sm:$0xff]
                %510 = vst [vmem:[%s266 + $0x3c8] sm:$0xff] %v509
                %v511 = vld [vmem:[%s265 + $0x790] sm:$0xff]
                %512 = vst [vmem:[%s266 + $0x3d0] sm:$0xff] %v511
                %v513 = vld [vmem:[%s265 + $0x798] sm:$0xff]
                %514 = vst [vmem:[%s266 + $0x3d8] sm:$0xff] %v513
                %v515 = vld [vmem:[%s265 + $0x7c0] sm:$0xff]
                %516 = vst [vmem:[%s266 + $0x3e0] sm:$0xff] %v515
                %v517 = vld [vmem:[%s265 + $0x7c8] sm:$0xff]
                %518 = vst [vmem:[%s266 + $0x3e8] sm:$0xff] %v517
                %v519 = vld [vmem:[%s265 + $0x7d0] sm:$0xff]
                %520 = vst [vmem:[%s266 + $0x3f0] sm:$0xff] %v519
                %v521 = vld [vmem:[%s265 + $0x7d8] sm:$0xff]
                %522 = vst [vmem:[%s266 + $0x3f8] sm:$0xff] %v521
                %v523 = vld [vmem:[%s265 + $0x800] sm:$0xff]
                %524 = vst [vmem:[%s266 + $0x400] sm:$0xff] %v523
                %v525 = vld [vmem:[%s265 + $0x808] sm:$0xff]
                %526 = vst [vmem:[%s266 + $0x408] sm:$0xff] %v525
                %v527 = vld [vmem:[%s265 + $0x810] sm:$0xff]
                %528 = vst [vmem:[%s266 + $0x410] sm:$0xff] %v527
                %v529 = vld [vmem:[%s265 + $0x818] sm:$0xff]
                %530 = vst [vmem:[%s266 + $0x418] sm:$0xff] %v529
                %v531 = vld [vmem:[%s265 + $0x840] sm:$0xff]
                %532 = vst [vmem:[%s266 + $0x420] sm:$0xff] %v531
                %v533 = vld [vmem:[%s265 + $0x848] sm:$0xff]
                %534 = vst [vmem:[%s266 + $0x428] sm:$0xff] %v533
                %v535 = vld [vmem:[%s265 + $0x850] sm:$0xff]
                %536 = vst [vmem:[%s266 + $0x430] sm:$0xff] %v535
                %v537 = vld [vmem:[%s265 + $0x858] sm:$0xff]
                %538 = vst [vmem:[%s266 + $0x438] sm:$0xff] %v537
                %v539 = vld [vmem:[%s265 + $0x880] sm:$0xff]
                %540 = vst [vmem:[%s266 + $0x440] sm:$0xff] %v539
                %v541 = vld [vmem:[%s265 + $0x888] sm:$0xff]
                %542 = vst [vmem:[%s266 + $0x448] sm:$0xff] %v541
                %v543 = vld [vmem:[%s265 + $0x890] sm:$0xff]
                %544 = vst [vmem:[%s266 + $0x450] sm:$0xff] %v543
                %v545 = vld [vmem:[%s265 + $0x898] sm:$0xff]
                %546 = vst [vmem:[%s266 + $0x458] sm:$0xff] %v545
                %v547 = vld [vmem:[%s265 + $0x8c0] sm:$0xff]
                %548 = vst [vmem:[%s266 + $0x460] sm:$0xff] %v547
                %v549 = vld [vmem:[%s265 + $0x8c8] sm:$0xff]
                %550 = vst [vmem:[%s266 + $0x468] sm:$0xff] %v549
                %v551 = vld [vmem:[%s265 + $0x8d0] sm:$0xff]
                %552 = vst [vmem:[%s266 + $0x470] sm:$0xff] %v551
                %v553 = vld [vmem:[%s265 + $0x8d8] sm:$0xff]
                %554 = vst [vmem:[%s266 + $0x478] sm:$0xff] %v553
                %v555 = vld [vmem:[%s265 + $0x900] sm:$0xff]
                %556 = vst [vmem:[%s266 + $0x480] sm:$0xff] %v555
                %v557 = vld [vmem:[%s265 + $0x908] sm:$0xff]
                %558 = vst [vmem:[%s266 + $0x488] sm:$0xff] %v557
                %v559 = vld [vmem:[%s265 + $0x910] sm:$0xff]
                %560 = vst [vmem:[%s266 + $0x490] sm:$0xff] %v559
                %v561 = vld [vmem:[%s265 + $0x918] sm:$0xff]
                %562 = vst [vmem:[%s266 + $0x498] sm:$0xff] %v561
                %v563 = vld [vmem:[%s265 + $0x940] sm:$0xff]
                %564 = vst [vmem:[%s266 + $0x4a0] sm:$0xff] %v563
                %v565 = vld [vmem:[%s265 + $0x948] sm:$0xff]
                %566 = vst [vmem:[%s266 + $0x4a8] sm:$0xff] %v565
                %v567 = vld [vmem:[%s265 + $0x950] sm:$0xff]
                %568 = vst [vmem:[%s266 + $0x4b0] sm:$0xff] %v567
                %v569 = vld [vmem:[%s265 + $0x958] sm:$0xff]
                %570 = vst [vmem:[%s266 + $0x4b8] sm:$0xff] %v569
                %v571 = vld [vmem:[%s265 + $0x980] sm:$0xff]
                %572 = vst [vmem:[%s266 + $0x4c0] sm:$0xff] %v571
                %v573 = vld [vmem:[%s265 + $0x988] sm:$0xff]
                %574 = vst [vmem:[%s266 + $0x4c8] sm:$0xff] %v573
                %v575 = vld [vmem:[%s265 + $0x990] sm:$0xff]
                %576 = vst [vmem:[%s266 + $0x4d0] sm:$0xff] %v575
                %v577 = vld [vmem:[%s265 + $0x998] sm:$0xff]
                %578 = vst [vmem:[%s266 + $0x4d8] sm:$0xff] %v577
                %v579 = vld [vmem:[%s265 + $0x9c0] sm:$0xff]
                %580 = vst [vmem:[%s266 + $0x4e0] sm:$0xff] %v579
                %v581 = vld [vmem:[%s265 + $0x9c8] sm:$0xff]
                %582 = vst [vmem:[%s266 + $0x4e8] sm:$0xff] %v581
                %v583 = vld [vmem:[%s265 + $0x9d0] sm:$0xff]
                %584 = vst [vmem:[%s266 + $0x4f0] sm:$0xff] %v583
                %v585 = vld [vmem:[%s265 + $0x9d8] sm:$0xff]
                %586 = vst [vmem:[%s266 + $0x4f8] sm:$0xff] %v585
                %v587 = vld [vmem:[%s265 + $0xa00] sm:$0xff]
                %588 = vst [vmem:[%s266 + $0x500] sm:$0xff] %v587
                %v589 = vld [vmem:[%s265 + $0xa08] sm:$0xff]
                %590 = vst [vmem:[%s266 + $0x508] sm:$0xff] %v589
                %v591 = vld [vmem:[%s265 + $0xa10] sm:$0xff]
                %592 = vst [vmem:[%s266 + $0x510] sm:$0xff] %v591
                %v593 = vld [vmem:[%s265 + $0xa18] sm:$0xff]
                %594 = vst [vmem:[%s266 + $0x518] sm:$0xff] %v593
                %v595 = vld [vmem:[%s265 + $0xa40] sm:$0xff]
                %596 = vst [vmem:[%s266 + $0x520] sm:$0xff] %v595
                %v597 = vld [vmem:[%s265 + $0xa48] sm:$0xff]
                %598 = vst [vmem:[%s266 + $0x528] sm:$0xff] %v597
                %v599 = vld [vmem:[%s265 + $0xa50] sm:$0xff]
                %600 = vst [vmem:[%s266 + $0x530] sm:$0xff] %v599
                %v601 = vld [vmem:[%s265 + $0xa58] sm:$0xff]
                %602 = vst [vmem:[%s266 + $0x538] sm:$0xff] %v601
                %v603 = vld [vmem:[%s265 + $0xa80] sm:$0xff]
                %604 = vst [vmem:[%s266 + $0x540] sm:$0xff] %v603
                %v605 = vld [vmem:[%s265 + $0xa88] sm:$0xff]
                %606 = vst [vmem:[%s266 + $0x548] sm:$0xff] %v605
                %v607 = vld [vmem:[%s265 + $0xa90] sm:$0xff]
                %608 = vst [vmem:[%s266 + $0x550] sm:$0xff] %v607
                %v609 = vld [vmem:[%s265 + $0xa98] sm:$0xff]
                %610 = vst [vmem:[%s266 + $0x558] sm:$0xff] %v609
                %v611 = vld [vmem:[%s265 + $0xac0] sm:$0xff]
                %612 = vst [vmem:[%s266 + $0x560] sm:$0xff] %v611
                %v613 = vld [vmem:[%s265 + $0xac8] sm:$0xff]
                %614 = vst [vmem:[%s266 + $0x568] sm:$0xff] %v613
                %v615 = vld [vmem:[%s265 + $0xad0] sm:$0xff]
                %616 = vst [vmem:[%s266 + $0x570] sm:$0xff] %v615
                %v617 = vld [vmem:[%s265 + $0xad8] sm:$0xff]
                %618 = vst [vmem:[%s266 + $0x578] sm:$0xff] %v617
                %v619 = vld [vmem:[%s265 + $0xb00] sm:$0xff]
                %620 = vst [vmem:[%s266 + $0x580] sm:$0xff] %v619
                %v621 = vld [vmem:[%s265 + $0xb08] sm:$0xff]
                %622 = vst [vmem:[%s266 + $0x588] sm:$0xff] %v621
                %v623 = vld [vmem:[%s265 + $0xb10] sm:$0xff]
                %624 = vst [vmem:[%s266 + $0x590] sm:$0xff] %v623
                %v625 = vld [vmem:[%s265 + $0xb18] sm:$0xff]
                %626 = vst [vmem:[%s266 + $0x598] sm:$0xff] %v625
                %v627 = vld [vmem:[%s265 + $0xb40] sm:$0xff]
                %628 = vst [vmem:[%s266 + $0x5a0] sm:$0xff] %v627
                %v629 = vld [vmem:[%s265 + $0xb48] sm:$0xff]
                %630 = vst [vmem:[%s266 + $0x5a8] sm:$0xff] %v629
                %v631 = vld [vmem:[%s265 + $0xb50] sm:$0xff]
                %632 = vst [vmem:[%s266 + $0x5b0] sm:$0xff] %v631
                %v633 = vld [vmem:[%s265 + $0xb58] sm:$0xff]
                %634 = vst [vmem:[%s266 + $0x5b8] sm:$0xff] %v633
                %v635 = vld [vmem:[%s265 + $0xb80] sm:$0xff]
                %636 = vst [vmem:[%s266 + $0x5c0] sm:$0xff] %v635
                %v637 = vld [vmem:[%s265 + $0xb88] sm:$0xff]
                %638 = vst [vmem:[%s266 + $0x5c8] sm:$0xff] %v637
                %v639 = vld [vmem:[%s265 + $0xb90] sm:$0xff]
                %640 = vst [vmem:[%s266 + $0x5d0] sm:$0xff] %v639
                %v641 = vld [vmem:[%s265 + $0xb98] sm:$0xff]
                %642 = vst [vmem:[%s266 + $0x5d8] sm:$0xff] %v641
                %v643 = vld [vmem:[%s265 + $0xbc0] sm:$0xff]
                %644 = vst [vmem:[%s266 + $0x5e0] sm:$0xff] %v643
                %v645 = vld [vmem:[%s265 + $0xbc8] sm:$0xff]
                %646 = vst [vmem:[%s266 + $0x5e8] sm:$0xff] %v645
                %v647 = vld [vmem:[%s265 + $0xbd0] sm:$0xff]
                %648 = vst [vmem:[%s266 + $0x5f0] sm:$0xff] %v647
                %v649 = vld [vmem:[%s265 + $0xbd8] sm:$0xff]
                %650 = vst [vmem:[%s266 + $0x5f8] sm:$0xff] %v649
                %v651 = vld [vmem:[%s265 + $0xc00] sm:$0xff]
                %652 = vst [vmem:[%s266 + $0x600] sm:$0xff] %v651
                %v653 = vld [vmem:[%s265 + $0xc08] sm:$0xff]
                %654 = vst [vmem:[%s266 + $0x608] sm:$0xff] %v653
                %v655 = vld [vmem:[%s265 + $0xc10] sm:$0xff]
                %656 = vst [vmem:[%s266 + $0x610] sm:$0xff] %v655
                %v657 = vld [vmem:[%s265 + $0xc18] sm:$0xff]
                %658 = vst [vmem:[%s266 + $0x618] sm:$0xff] %v657
                %v659 = vld [vmem:[%s265 + $0xc40] sm:$0xff]
                %660 = vst [vmem:[%s266 + $0x620] sm:$0xff] %v659
                %v661 = vld [vmem:[%s265 + $0xc48] sm:$0xff]
                %662 = vst [vmem:[%s266 + $0x628] sm:$0xff] %v661
                %v663 = vld [vmem:[%s265 + $0xc50] sm:$0xff]
                %664 = vst [vmem:[%s266 + $0x630] sm:$0xff] %v663
                %v665 = vld [vmem:[%s265 + $0xc58] sm:$0xff]
                %666 = vst [vmem:[%s266 + $0x638] sm:$0xff] %v665
                %v667 = vld [vmem:[%s265 + $0xc80] sm:$0xff]
                %668 = vst [vmem:[%s266 + $0x640] sm:$0xff] %v667
                %v669 = vld [vmem:[%s265 + $0xc88] sm:$0xff]
                %670 = vst [vmem:[%s266 + $0x648] sm:$0xff] %v669
                %v671 = vld [vmem:[%s265 + $0xc90] sm:$0xff]
                %672 = vst [vmem:[%s266 + $0x650] sm:$0xff] %v671
                %v673 = vld [vmem:[%s265 + $0xc98] sm:$0xff]
                %674 = vst [vmem:[%s266 + $0x658] sm:$0xff] %v673
                %v675 = vld [vmem:[%s265 + $0xcc0] sm:$0xff]
                %676 = vst [vmem:[%s266 + $0x660] sm:$0xff] %v675
                %v677 = vld [vmem:[%s265 + $0xcc8] sm:$0xff]
                %678 = vst [vmem:[%s266 + $0x668] sm:$0xff] %v677
                %v679 = vld [vmem:[%s265 + $0xcd0] sm:$0xff]
                %680 = vst [vmem:[%s266 + $0x670] sm:$0xff] %v679
                %v681 = vld [vmem:[%s265 + $0xcd8] sm:$0xff]
                %682 = vst [vmem:[%s266 + $0x678] sm:$0xff] %v681
                %v683 = vld [vmem:[%s265 + $0xd00] sm:$0xff]
                %684 = vst [vmem:[%s266 + $0x680] sm:$0xff] %v683
                %v685 = vld [vmem:[%s265 + $0xd08] sm:$0xff]
                %686 = vst [vmem:[%s266 + $0x688] sm:$0xff] %v685
                %v687 = vld [vmem:[%s265 + $0xd10] sm:$0xff]
                %688 = vst [vmem:[%s266 + $0x690] sm:$0xff] %v687
                %v689 = vld [vmem:[%s265 + $0xd18] sm:$0xff]
                %690 = vst [vmem:[%s266 + $0x698] sm:$0xff] %v689
                %v691 = vld [vmem:[%s265 + $0xd40] sm:$0xff]
                %692 = vst [vmem:[%s266 + $0x6a0] sm:$0xff] %v691
                %v693 = vld [vmem:[%s265 + $0xd48] sm:$0xff]
                %694 = vst [vmem:[%s266 + $0x6a8] sm:$0xff] %v693
                %v695 = vld [vmem:[%s265 + $0xd50] sm:$0xff]
                %696 = vst [vmem:[%s266 + $0x6b0] sm:$0xff] %v695
                %v697 = vld [vmem:[%s265 + $0xd58] sm:$0xff]
                %698 = vst [vmem:[%s266 + $0x6b8] sm:$0xff] %v697
                %v699 = vld [vmem:[%s265 + $0xd80] sm:$0xff]
                %700 = vst [vmem:[%s266 + $0x6c0] sm:$0xff] %v699
                %v701 = vld [vmem:[%s265 + $0xd88] sm:$0xff]
                %702 = vst [vmem:[%s266 + $0x6c8] sm:$0xff] %v701
                %v703 = vld [vmem:[%s265 + $0xd90] sm:$0xff]
                %704 = vst [vmem:[%s266 + $0x6d0] sm:$0xff] %v703
                %v705 = vld [vmem:[%s265 + $0xd98] sm:$0xff]
                %706 = vst [vmem:[%s266 + $0x6d8] sm:$0xff] %v705
                %v707 = vld [vmem:[%s265 + $0xdc0] sm:$0xff]
                %708 = vst [vmem:[%s266 + $0x6e0] sm:$0xff] %v707
                %v709 = vld [vmem:[%s265 + $0xdc8] sm:$0xff]
                %710 = vst [vmem:[%s266 + $0x6e8] sm:$0xff] %v709
                %v711 = vld [vmem:[%s265 + $0xdd0] sm:$0xff]
                %712 = vst [vmem:[%s266 + $0x6f0] sm:$0xff] %v711
                %v713 = vld [vmem:[%s265 + $0xdd8] sm:$0xff]
                %714 = vst [vmem:[%s266 + $0x6f8] sm:$0xff] %v713
                %v715 = vld [vmem:[%s265 + $0xe00] sm:$0xff]
                %716 = vst [vmem:[%s266 + $0x700] sm:$0xff] %v715
                %v717 = vld [vmem:[%s265 + $0xe08] sm:$0xff]
                %718 = vst [vmem:[%s266 + $0x708] sm:$0xff] %v717
                %v719 = vld [vmem:[%s265 + $0xe10] sm:$0xff]
                %720 = vst [vmem:[%s266 + $0x710] sm:$0xff] %v719
                %v721 = vld [vmem:[%s265 + $0xe18] sm:$0xff]
                %722 = vst [vmem:[%s266 + $0x718] sm:$0xff] %v721
                %v723 = vld [vmem:[%s265 + $0xe40] sm:$0xff]
                %724 = vst [vmem:[%s266 + $0x720] sm:$0xff] %v723
                %v725 = vld [vmem:[%s265 + $0xe48] sm:$0xff]
                %726 = vst [vmem:[%s266 + $0x728] sm:$0xff] %v725
                %v727 = vld [vmem:[%s265 + $0xe50] sm:$0xff]
                %728 = vst [vmem:[%s266 + $0x730] sm:$0xff] %v727
                %v729 = vld [vmem:[%s265 + $0xe58] sm:$0xff]
                %730 = vst [vmem:[%s266 + $0x738] sm:$0xff] %v729
                %v731 = vld [vmem:[%s265 + $0xe80] sm:$0xff]
                %732 = vst [vmem:[%s266 + $0x740] sm:$0xff] %v731
                %v733 = vld [vmem:[%s265 + $0xe88] sm:$0xff]
                %734 = vst [vmem:[%s266 + $0x748] sm:$0xff] %v733
                %v735 = vld [vmem:[%s265 + $0xe90] sm:$0xff]
                %736 = vst [vmem:[%s266 + $0x750] sm:$0xff] %v735
                %v737 = vld [vmem:[%s265 + $0xe98] sm:$0xff]
                %738 = vst [vmem:[%s266 + $0x758] sm:$0xff] %v737
                %v739 = vld [vmem:[%s265 + $0xec0] sm:$0xff]
                %740 = vst [vmem:[%s266 + $0x760] sm:$0xff] %v739
                %v741 = vld [vmem:[%s265 + $0xec8] sm:$0xff]
                %742 = vst [vmem:[%s266 + $0x768] sm:$0xff] %v741
                %v743 = vld [vmem:[%s265 + $0xed0] sm:$0xff]
                %744 = vst [vmem:[%s266 + $0x770] sm:$0xff] %v743
                %v745 = vld [vmem:[%s265 + $0xed8] sm:$0xff]
                %746 = vst [vmem:[%s266 + $0x778] sm:$0xff] %v745
                %v747 = vld [vmem:[%s265 + $0xf00] sm:$0xff]
                %748 = vst [vmem:[%s266 + $0x780] sm:$0xff] %v747
                %v749 = vld [vmem:[%s265 + $0xf08] sm:$0xff]
                %750 = vst [vmem:[%s266 + $0x788] sm:$0xff] %v749
                %v751 = vld [vmem:[%s265 + $0xf10] sm:$0xff]
                %752 = vst [vmem:[%s266 + $0x790] sm:$0xff] %v751
                %v753 = vld [vmem:[%s265 + $0xf18] sm:$0xff]
                %754 = vst [vmem:[%s266 + $0x798] sm:$0xff] %v753
                %v755 = vld [vmem:[%s265 + $0xf40] sm:$0xff]
                %756 = vst [vmem:[%s266 + $0x7a0] sm:$0xff] %v755
                %v757 = vld [vmem:[%s265 + $0xf48] sm:$0xff]
                %758 = vst [vmem:[%s266 + $0x7a8] sm:$0xff] %v757
                %v759 = vld [vmem:[%s265 + $0xf50] sm:$0xff]
                %760 = vst [vmem:[%s266 + $0x7b0] sm:$0xff] %v759
                %v761 = vld [vmem:[%s265 + $0xf58] sm:$0xff]
                %762 = vst [vmem:[%s266 + $0x7b8] sm:$0xff] %v761
                %v763 = vld [vmem:[%s265 + $0xf80] sm:$0xff]
                %764 = vst [vmem:[%s266 + $0x7c0] sm:$0xff] %v763
                %v765 = vld [vmem:[%s265 + $0xf88] sm:$0xff]
                %766 = vst [vmem:[%s266 + $0x7c8] sm:$0xff] %v765
                %v767 = vld [vmem:[%s265 + $0xf90] sm:$0xff]
                %768 = vst [vmem:[%s266 + $0x7d0] sm:$0xff] %v767
                %v769 = vld [vmem:[%s265 + $0xf98] sm:$0xff]
                %770 = vst [vmem:[%s266 + $0x7d8] sm:$0xff] %v769
                %v771 = vld [vmem:[%s265 + $0xfc0] sm:$0xff]
                %772 = vst [vmem:[%s266 + $0x7e0] sm:$0xff] %v771
                %v773 = vld [vmem:[%s265 + $0xfc8] sm:$0xff]
                %774 = vst [vmem:[%s266 + $0x7e8] sm:$0xff] %v773
                %v775 = vld [vmem:[%s265 + $0xfd0] sm:$0xff]
                %776 = vst [vmem:[%s266 + $0x7f0] sm:$0xff] %v775
                %v777 = vld [vmem:[%s265 + $0xfd8] sm:$0xff]
                %778 = vst [vmem:[%s266 + $0x7f8] sm:$0xff] %v777
                %v779 = vld [vmem:[%s265 + $0x1000] sm:$0xff]
                %780 = vst [vmem:[%s266 + $0x800] sm:$0xff] %v779
                %v781 = vld [vmem:[%s265 + $0x1008] sm:$0xff]
                %782 = vst [vmem:[%s266 + $0x808] sm:$0xff] %v781
                %v783 = vld [vmem:[%s265 + $0x1010] sm:$0xff]
                %784 = vst [vmem:[%s266 + $0x810] sm:$0xff] %v783
                %v785 = vld [vmem:[%s265 + $0x1018] sm:$0xff]
                %786 = vst [vmem:[%s266 + $0x818] sm:$0xff] %v785
                %v787 = vld [vmem:[%s265 + $0x1040] sm:$0xff]
                %788 = vst [vmem:[%s266 + $0x820] sm:$0xff] %v787
                %v789 = vld [vmem:[%s265 + $0x1048] sm:$0xff]
                %790 = vst [vmem:[%s266 + $0x828] sm:$0xff] %v789
                %v791 = vld [vmem:[%s265 + $0x1050] sm:$0xff]
                %792 = vst [vmem:[%s266 + $0x830] sm:$0xff] %v791
                %v793 = vld [vmem:[%s265 + $0x1058] sm:$0xff]
                %794 = vst [vmem:[%s266 + $0x838] sm:$0xff] %v793
                %v795 = vld [vmem:[%s265 + $0x1080] sm:$0xff]
                %796 = vst [vmem:[%s266 + $0x840] sm:$0xff] %v795
                %v797 = vld [vmem:[%s265 + $0x1088] sm:$0xff]
                %798 = vst [vmem:[%s266 + $0x848] sm:$0xff] %v797
                %v799 = vld [vmem:[%s265 + $0x1090] sm:$0xff]
                %800 = vst [vmem:[%s266 + $0x850] sm:$0xff] %v799
                %v801 = vld [vmem:[%s265 + $0x1098] sm:$0xff]
                %802 = vst [vmem:[%s266 + $0x858] sm:$0xff] %v801
                %v803 = vld [vmem:[%s265 + $0x10c0] sm:$0xff]
                %804 = vst [vmem:[%s266 + $0x860] sm:$0xff] %v803
                %v805 = vld [vmem:[%s265 + $0x10c8] sm:$0xff]
                %806 = vst [vmem:[%s266 + $0x868] sm:$0xff] %v805
                %v807 = vld [vmem:[%s265 + $0x10d0] sm:$0xff]
                %808 = vst [vmem:[%s266 + $0x870] sm:$0xff] %v807
                %v809 = vld [vmem:[%s265 + $0x10d8] sm:$0xff]
                %810 = vst [vmem:[%s266 + $0x878] sm:$0xff] %v809
                %v811 = vld [vmem:[%s265 + $0x1100] sm:$0xff]
                %812 = vst [vmem:[%s266 + $0x880] sm:$0xff] %v811
                %v813 = vld [vmem:[%s265 + $0x1108] sm:$0xff]
                %814 = vst [vmem:[%s266 + $0x888] sm:$0xff] %v813
                %v815 = vld [vmem:[%s265 + $0x1110] sm:$0xff]
                %816 = vst [vmem:[%s266 + $0x890] sm:$0xff] %v815
                %v817 = vld [vmem:[%s265 + $0x1118] sm:$0xff]
                %818 = vst [vmem:[%s266 + $0x898] sm:$0xff] %v817
                %v819 = vld [vmem:[%s265 + $0x1140] sm:$0xff]
                %820 = vst [vmem:[%s266 + $0x8a0] sm:$0xff] %v819
                %v821 = vld [vmem:[%s265 + $0x1148] sm:$0xff]
                %822 = vst [vmem:[%s266 + $0x8a8] sm:$0xff] %v821
                %v823 = vld [vmem:[%s265 + $0x1150] sm:$0xff]
                %824 = vst [vmem:[%s266 + $0x8b0] sm:$0xff] %v823
                %v825 = vld [vmem:[%s265 + $0x1158] sm:$0xff]
                %826 = vst [vmem:[%s266 + $0x8b8] sm:$0xff] %v825
                %v827 = vld [vmem:[%s265 + $0x1180] sm:$0xff]
                %828 = vst [vmem:[%s266 + $0x8c0] sm:$0xff] %v827
                %v829 = vld [vmem:[%s265 + $0x1188] sm:$0xff]
                %830 = vst [vmem:[%s266 + $0x8c8] sm:$0xff] %v829
                %v831 = vld [vmem:[%s265 + $0x1190] sm:$0xff]
                %832 = vst [vmem:[%s266 + $0x8d0] sm:$0xff] %v831
                %v833 = vld [vmem:[%s265 + $0x1198] sm:$0xff]
                %834 = vst [vmem:[%s266 + $0x8d8] sm:$0xff] %v833
                %v835 = vld [vmem:[%s265 + $0x11c0] sm:$0xff]
                %836 = vst [vmem:[%s266 + $0x8e0] sm:$0xff] %v835
                %v837 = vld [vmem:[%s265 + $0x11c8] sm:$0xff]
                %838 = vst [vmem:[%s266 + $0x8e8] sm:$0xff] %v837
                %v839 = vld [vmem:[%s265 + $0x11d0] sm:$0xff]
                %840 = vst [vmem:[%s266 + $0x8f0] sm:$0xff] %v839
                %v841 = vld [vmem:[%s265 + $0x11d8] sm:$0xff]
                %842 = vst [vmem:[%s266 + $0x8f8] sm:$0xff] %v841
                %v843 = vld [vmem:[%s265 + $0x1200] sm:$0xff]
                %844 = vst [vmem:[%s266 + $0x900] sm:$0xff] %v843
                %v845 = vld [vmem:[%s265 + $0x1208] sm:$0xff]
                %846 = vst [vmem:[%s266 + $0x908] sm:$0xff] %v845
                %v847 = vld [vmem:[%s265 + $0x1210] sm:$0xff]
                %848 = vst [vmem:[%s266 + $0x910] sm:$0xff] %v847
                %v849 = vld [vmem:[%s265 + $0x1218] sm:$0xff]
                %850 = vst [vmem:[%s266 + $0x918] sm:$0xff] %v849
                %v851 = vld [vmem:[%s265 + $0x1240] sm:$0xff]
                %852 = vst [vmem:[%s266 + $0x920] sm:$0xff] %v851
                %v853 = vld [vmem:[%s265 + $0x1248] sm:$0xff]
                %854 = vst [vmem:[%s266 + $0x928] sm:$0xff] %v853
                %v855 = vld [vmem:[%s265 + $0x1250] sm:$0xff]
                %856 = vst [vmem:[%s266 + $0x930] sm:$0xff] %v855
                %v857 = vld [vmem:[%s265 + $0x1258] sm:$0xff]
                %858 = vst [vmem:[%s266 + $0x938] sm:$0xff] %v857
                %v859 = vld [vmem:[%s265 + $0x1280] sm:$0xff]
                %860 = vst [vmem:[%s266 + $0x940] sm:$0xff] %v859
                %v861 = vld [vmem:[%s265 + $0x1288] sm:$0xff]
                %862 = vst [vmem:[%s266 + $0x948] sm:$0xff] %v861
                %v863 = vld [vmem:[%s265 + $0x1290] sm:$0xff]
                %864 = vst [vmem:[%s266 + $0x950] sm:$0xff] %v863
                %v865 = vld [vmem:[%s265 + $0x1298] sm:$0xff]
                %866 = vst [vmem:[%s266 + $0x958] sm:$0xff] %v865
                %v867 = vld [vmem:[%s265 + $0x12c0] sm:$0xff]
                %868 = vst [vmem:[%s266 + $0x960] sm:$0xff] %v867
                %v869 = vld [vmem:[%s265 + $0x12c8] sm:$0xff]
                %870 = vst [vmem:[%s266 + $0x968] sm:$0xff] %v869
                %v871 = vld [vmem:[%s265 + $0x12d0] sm:$0xff]
                %872 = vst [vmem:[%s266 + $0x970] sm:$0xff] %v871
                %v873 = vld [vmem:[%s265 + $0x12d8] sm:$0xff]
                %874 = vst [vmem:[%s266 + $0x978] sm:$0xff] %v873
                %v875 = vld [vmem:[%s265 + $0x1300] sm:$0xff]
                %876 = vst [vmem:[%s266 + $0x980] sm:$0xff] %v875
                %v877 = vld [vmem:[%s265 + $0x1308] sm:$0xff]
                %878 = vst [vmem:[%s266 + $0x988] sm:$0xff] %v877
                %v879 = vld [vmem:[%s265 + $0x1310] sm:$0xff]
                %880 = vst [vmem:[%s266 + $0x990] sm:$0xff] %v879
                %v881 = vld [vmem:[%s265 + $0x1318] sm:$0xff]
                %882 = vst [vmem:[%s266 + $0x998] sm:$0xff] %v881
                %v883 = vld [vmem:[%s265 + $0x1340] sm:$0xff]
                %884 = vst [vmem:[%s266 + $0x9a0] sm:$0xff] %v883
                %v885 = vld [vmem:[%s265 + $0x1348] sm:$0xff]
                %886 = vst [vmem:[%s266 + $0x9a8] sm:$0xff] %v885
                %v887 = vld [vmem:[%s265 + $0x1350] sm:$0xff]
                %888 = vst [vmem:[%s266 + $0x9b0] sm:$0xff] %v887
                %v889 = vld [vmem:[%s265 + $0x1358] sm:$0xff]
                %890 = vst [vmem:[%s266 + $0x9b8] sm:$0xff] %v889
                %v891 = vld [vmem:[%s265 + $0x1380] sm:$0xff]
                %892 = vst [vmem:[%s266 + $0x9c0] sm:$0xff] %v891
                %v893 = vld [vmem:[%s265 + $0x1388] sm:$0xff]
                %894 = vst [vmem:[%s266 + $0x9c8] sm:$0xff] %v893
                %v895 = vld [vmem:[%s265 + $0x1390] sm:$0xff]
                %896 = vst [vmem:[%s266 + $0x9d0] sm:$0xff] %v895
                %v897 = vld [vmem:[%s265 + $0x1398] sm:$0xff]
                %898 = vst [vmem:[%s266 + $0x9d8] sm:$0xff] %v897
                %v899 = vld [vmem:[%s265 + $0x13c0] sm:$0xff]
                %900 = vst [vmem:[%s266 + $0x9e0] sm:$0xff] %v899
                %v901 = vld [vmem:[%s265 + $0x13c8] sm:$0xff]
                %902 = vst [vmem:[%s266 + $0x9e8] sm:$0xff] %v901
                %v903 = vld [vmem:[%s265 + $0x13d0] sm:$0xff]
                %904 = vst [vmem:[%s266 + $0x9f0] sm:$0xff] %v903
                %v905 = vld [vmem:[%s265 + $0x13d8] sm:$0xff]
                %906 = vst [vmem:[%s266 + $0x9f8] sm:$0xff] %v905
                %v907 = vld [vmem:[%s265 + $0x1400] sm:$0xff]
                %908 = vst [vmem:[%s266 + $0xa00] sm:$0xff] %v907
                %v909 = vld [vmem:[%s265 + $0x1408] sm:$0xff]
                %910 = vst [vmem:[%s266 + $0xa08] sm:$0xff] %v909
                %v911 = vld [vmem:[%s265 + $0x1410] sm:$0xff]
                %912 = vst [vmem:[%s266 + $0xa10] sm:$0xff] %v911
                %v913 = vld [vmem:[%s265 + $0x1418] sm:$0xff]
                %914 = vst [vmem:[%s266 + $0xa18] sm:$0xff] %v913
                %v915 = vld [vmem:[%s265 + $0x1440] sm:$0xff]
                %916 = vst [vmem:[%s266 + $0xa20] sm:$0xff] %v915
                %v917 = vld [vmem:[%s265 + $0x1448] sm:$0xff]
                %918 = vst [vmem:[%s266 + $0xa28] sm:$0xff] %v917
                %v919 = vld [vmem:[%s265 + $0x1450] sm:$0xff]
                %920 = vst [vmem:[%s266 + $0xa30] sm:$0xff] %v919
                %v921 = vld [vmem:[%s265 + $0x1458] sm:$0xff]
                %922 = vst [vmem:[%s266 + $0xa38] sm:$0xff] %v921
                %v923 = vld [vmem:[%s265 + $0x1480] sm:$0xff]
                %924 = vst [vmem:[%s266 + $0xa40] sm:$0xff] %v923
                %v925 = vld [vmem:[%s265 + $0x1488] sm:$0xff]
                %926 = vst [vmem:[%s266 + $0xa48] sm:$0xff] %v925
                %v927 = vld [vmem:[%s265 + $0x1490] sm:$0xff]
                %928 = vst [vmem:[%s266 + $0xa50] sm:$0xff] %v927
                %v929 = vld [vmem:[%s265 + $0x1498] sm:$0xff]
                %930 = vst [vmem:[%s266 + $0xa58] sm:$0xff] %v929
                %v931 = vld [vmem:[%s265 + $0x14c0] sm:$0xff]
                %932 = vst [vmem:[%s266 + $0xa60] sm:$0xff] %v931
                %v933 = vld [vmem:[%s265 + $0x14c8] sm:$0xff]
                %934 = vst [vmem:[%s266 + $0xa68] sm:$0xff] %v933
                %v935 = vld [vmem:[%s265 + $0x14d0] sm:$0xff]
                %936 = vst [vmem:[%s266 + $0xa70] sm:$0xff] %v935
                %v937 = vld [vmem:[%s265 + $0x14d8] sm:$0xff]
                %938 = vst [vmem:[%s266 + $0xa78] sm:$0xff] %v937
                %v939 = vld [vmem:[%s265 + $0x1500] sm:$0xff]
                %940 = vst [vmem:[%s266 + $0xa80] sm:$0xff] %v939
                %v941 = vld [vmem:[%s265 + $0x1508] sm:$0xff]
                %942 = vst [vmem:[%s266 + $0xa88] sm:$0xff] %v941
                %v943 = vld [vmem:[%s265 + $0x1510] sm:$0xff]
                %944 = vst [vmem:[%s266 + $0xa90] sm:$0xff] %v943
                %v945 = vld [vmem:[%s265 + $0x1518] sm:$0xff]
                %946 = vst [vmem:[%s266 + $0xa98] sm:$0xff] %v945
                %v947 = vld [vmem:[%s265 + $0x1540] sm:$0xff]
                %948 = vst [vmem:[%s266 + $0xaa0] sm:$0xff] %v947
                %v949 = vld [vmem:[%s265 + $0x1548] sm:$0xff]
                %950 = vst [vmem:[%s266 + $0xaa8] sm:$0xff] %v949
                %v951 = vld [vmem:[%s265 + $0x1550] sm:$0xff]
                %952 = vst [vmem:[%s266 + $0xab0] sm:$0xff] %v951
                %v953 = vld [vmem:[%s265 + $0x1558] sm:$0xff]
                %954 = vst [vmem:[%s266 + $0xab8] sm:$0xff] %v953
                %v955 = vld [vmem:[%s265 + $0x1580] sm:$0xff]
                %956 = vst [vmem:[%s266 + $0xac0] sm:$0xff] %v955
                %v957 = vld [vmem:[%s265 + $0x1588] sm:$0xff]
                %958 = vst [vmem:[%s266 + $0xac8] sm:$0xff] %v957
                %v959 = vld [vmem:[%s265 + $0x1590] sm:$0xff]
                %960 = vst [vmem:[%s266 + $0xad0] sm:$0xff] %v959
                %v961 = vld [vmem:[%s265 + $0x1598] sm:$0xff]
                %962 = vst [vmem:[%s266 + $0xad8] sm:$0xff] %v961
                %v963 = vld [vmem:[%s265 + $0x15c0] sm:$0xff]
                %964 = vst [vmem:[%s266 + $0xae0] sm:$0xff] %v963
                %v965 = vld [vmem:[%s265 + $0x15c8] sm:$0xff]
                %966 = vst [vmem:[%s266 + $0xae8] sm:$0xff] %v965
                %v967 = vld [vmem:[%s265 + $0x15d0] sm:$0xff]
                %968 = vst [vmem:[%s266 + $0xaf0] sm:$0xff] %v967
                %v969 = vld [vmem:[%s265 + $0x15d8] sm:$0xff]
                %970 = vst [vmem:[%s266 + $0xaf8] sm:$0xff] %v969
                %v971 = vld [vmem:[%s265 + $0x1600] sm:$0xff]
                %972 = vst [vmem:[%s266 + $0xb00] sm:$0xff] %v971
                %v973 = vld [vmem:[%s265 + $0x1608] sm:$0xff]
                %974 = vst [vmem:[%s266 + $0xb08] sm:$0xff] %v973
                %v975 = vld [vmem:[%s265 + $0x1610] sm:$0xff]
                %976 = vst [vmem:[%s266 + $0xb10] sm:$0xff] %v975
                %v977 = vld [vmem:[%s265 + $0x1618] sm:$0xff]
                %978 = vst [vmem:[%s266 + $0xb18] sm:$0xff] %v977
                %v979 = vld [vmem:[%s265 + $0x1640] sm:$0xff]
                %980 = vst [vmem:[%s266 + $0xb20] sm:$0xff] %v979
                %v981 = vld [vmem:[%s265 + $0x1648] sm:$0xff]
                %982 = vst [vmem:[%s266 + $0xb28] sm:$0xff] %v981
                %v983 = vld [vmem:[%s265 + $0x1650] sm:$0xff]
                %984 = vst [vmem:[%s266 + $0xb30] sm:$0xff] %v983
                %v985 = vld [vmem:[%s265 + $0x1658] sm:$0xff]
                %986 = vst [vmem:[%s266 + $0xb38] sm:$0xff] %v985
                %v987 = vld [vmem:[%s265 + $0x1680] sm:$0xff]
                %988 = vst [vmem:[%s266 + $0xb40] sm:$0xff] %v987
                %v989 = vld [vmem:[%s265 + $0x1688] sm:$0xff]
                %990 = vst [vmem:[%s266 + $0xb48] sm:$0xff] %v989
                %v991 = vld [vmem:[%s265 + $0x1690] sm:$0xff]
                %992 = vst [vmem:[%s266 + $0xb50] sm:$0xff] %v991
                %v993 = vld [vmem:[%s265 + $0x1698] sm:$0xff]
                %994 = vst [vmem:[%s266 + $0xb58] sm:$0xff] %v993
                %v995 = vld [vmem:[%s265 + $0x16c0] sm:$0xff]
                %996 = vst [vmem:[%s266 + $0xb60] sm:$0xff] %v995
                %v997 = vld [vmem:[%s265 + $0x16c8] sm:$0xff]
                %998 = vst [vmem:[%s266 + $0xb68] sm:$0xff] %v997
                %v999 = vld [vmem:[%s265 + $0x16d0] sm:$0xff]
                %1000 = vst [vmem:[%s266 + $0xb70] sm:$0xff] %v999
                %v1001 = vld [vmem:[%s265 + $0x16d8] sm:$0xff]
                %1002 = vst [vmem:[%s266 + $0xb78] sm:$0xff] %v1001
                %v1003 = vld [vmem:[%s265 + $0x1700] sm:$0xff]
                %1004 = vst [vmem:[%s266 + $0xb80] sm:$0xff] %v1003
                %v1005 = vld [vmem:[%s265 + $0x1708] sm:$0xff]
                %1006 = vst [vmem:[%s266 + $0xb88] sm:$0xff] %v1005
                %v1007 = vld [vmem:[%s265 + $0x1710] sm:$0xff]
                %1008 = vst [vmem:[%s266 + $0xb90] sm:$0xff] %v1007
                %v1009 = vld [vmem:[%s265 + $0x1718] sm:$0xff]
                %1010 = vst [vmem:[%s266 + $0xb98] sm:$0xff] %v1009
                %v1011 = vld [vmem:[%s265 + $0x1740] sm:$0xff]
                %1012 = vst [vmem:[%s266 + $0xba0] sm:$0xff] %v1011
                %v1013 = vld [vmem:[%s265 + $0x1748] sm:$0xff]
                %1014 = vst [vmem:[%s266 + $0xba8] sm:$0xff] %v1013
                %v1015 = vld [vmem:[%s265 + $0x1750] sm:$0xff]
                %1016 = vst [vmem:[%s266 + $0xbb0] sm:$0xff] %v1015
                %v1017 = vld [vmem:[%s265 + $0x1758] sm:$0xff]
                %1018 = vst [vmem:[%s266 + $0xbb8] sm:$0xff] %v1017
                %v1019 = vld [vmem:[%s265 + $0x1780] sm:$0xff]
                %1020 = vst [vmem:[%s266 + $0xbc0] sm:$0xff] %v1019
                %v1021 = vld [vmem:[%s265 + $0x1788] sm:$0xff]
                %1022 = vst [vmem:[%s266 + $0xbc8] sm:$0xff] %v1021
                %v1023 = vld [vmem:[%s265 + $0x1790] sm:$0xff]
                %1024 = vst [vmem:[%s266 + $0xbd0] sm:$0xff] %v1023
                %v1025 = vld [vmem:[%s265 + $0x1798] sm:$0xff]
                %1026 = vst [vmem:[%s266 + $0xbd8] sm:$0xff] %v1025
                %v1027 = vld [vmem:[%s265 + $0x17c0] sm:$0xff]
                %1028 = vst [vmem:[%s266 + $0xbe0] sm:$0xff] %v1027
                %v1029 = vld [vmem:[%s265 + $0x17c8] sm:$0xff]
                %1030 = vst [vmem:[%s266 + $0xbe8] sm:$0xff] %v1029
                %v1031 = vld [vmem:[%s265 + $0x17d0] sm:$0xff]
                %1032 = vst [vmem:[%s266 + $0xbf0] sm:$0xff] %v1031
                %v1033 = vld [vmem:[%s265 + $0x17d8] sm:$0xff]
                %1034 = vst [vmem:[%s266 + $0xbf8] sm:$0xff] %v1033
                %v1035 = vld [vmem:[%s265 + $0x1800] sm:$0xff]
                %1036 = vst [vmem:[%s266 + $0xc00] sm:$0xff] %v1035
                %v1037 = vld [vmem:[%s265 + $0x1808] sm:$0xff]
                %1038 = vst [vmem:[%s266 + $0xc08] sm:$0xff] %v1037
                %v1039 = vld [vmem:[%s265 + $0x1810] sm:$0xff]
                %1040 = vst [vmem:[%s266 + $0xc10] sm:$0xff] %v1039
                %v1041 = vld [vmem:[%s265 + $0x1818] sm:$0xff]
                %1042 = vst [vmem:[%s266 + $0xc18] sm:$0xff] %v1041
                %v1043 = vld [vmem:[%s265 + $0x1840] sm:$0xff]
                %1044 = vst [vmem:[%s266 + $0xc20] sm:$0xff] %v1043
                %v1045 = vld [vmem:[%s265 + $0x1848] sm:$0xff]
                %1046 = vst [vmem:[%s266 + $0xc28] sm:$0xff] %v1045
                %v1047 = vld [vmem:[%s265 + $0x1850] sm:$0xff]
                %1048 = vst [vmem:[%s266 + $0xc30] sm:$0xff] %v1047
                %v1049 = vld [vmem:[%s265 + $0x1858] sm:$0xff]
                %1050 = vst [vmem:[%s266 + $0xc38] sm:$0xff] %v1049
                %v1051 = vld [vmem:[%s265 + $0x1880] sm:$0xff]
                %1052 = vst [vmem:[%s266 + $0xc40] sm:$0xff] %v1051
                %v1053 = vld [vmem:[%s265 + $0x1888] sm:$0xff]
                %1054 = vst [vmem:[%s266 + $0xc48] sm:$0xff] %v1053
                %v1055 = vld [vmem:[%s265 + $0x1890] sm:$0xff]
                %1056 = vst [vmem:[%s266 + $0xc50] sm:$0xff] %v1055
                %v1057 = vld [vmem:[%s265 + $0x1898] sm:$0xff]
                %1058 = vst [vmem:[%s266 + $0xc58] sm:$0xff] %v1057
                %v1059 = vld [vmem:[%s265 + $0x18c0] sm:$0xff]
                %1060 = vst [vmem:[%s266 + $0xc60] sm:$0xff] %v1059
                %v1061 = vld [vmem:[%s265 + $0x18c8] sm:$0xff]
                %1062 = vst [vmem:[%s266 + $0xc68] sm:$0xff] %v1061
                %v1063 = vld [vmem:[%s265 + $0x18d0] sm:$0xff]
                %1064 = vst [vmem:[%s266 + $0xc70] sm:$0xff] %v1063
                %v1065 = vld [vmem:[%s265 + $0x18d8] sm:$0xff]
                %1066 = vst [vmem:[%s266 + $0xc78] sm:$0xff] %v1065
                %v1067 = vld [vmem:[%s265 + $0x1900] sm:$0xff]
                %1068 = vst [vmem:[%s266 + $0xc80] sm:$0xff] %v1067
                %v1069 = vld [vmem:[%s265 + $0x1908] sm:$0xff]
                %1070 = vst [vmem:[%s266 + $0xc88] sm:$0xff] %v1069
                %v1071 = vld [vmem:[%s265 + $0x1910] sm:$0xff]
                %1072 = vst [vmem:[%s266 + $0xc90] sm:$0xff] %v1071
                %v1073 = vld [vmem:[%s265 + $0x1918] sm:$0xff]
                %1074 = vst [vmem:[%s266 + $0xc98] sm:$0xff] %v1073
                %v1075 = vld [vmem:[%s265 + $0x1940] sm:$0xff]
                %1076 = vst [vmem:[%s266 + $0xca0] sm:$0xff] %v1075
                %v1077 = vld [vmem:[%s265 + $0x1948] sm:$0xff]
                %1078 = vst [vmem:[%s266 + $0xca8] sm:$0xff] %v1077
                %v1079 = vld [vmem:[%s265 + $0x1950] sm:$0xff]
                %1080 = vst [vmem:[%s266 + $0xcb0] sm:$0xff] %v1079
                %v1081 = vld [vmem:[%s265 + $0x1958] sm:$0xff]
                %1082 = vst [vmem:[%s266 + $0xcb8] sm:$0xff] %v1081
                %v1083 = vld [vmem:[%s265 + $0x1980] sm:$0xff]
                %1084 = vst [vmem:[%s266 + $0xcc0] sm:$0xff] %v1083
                %v1085 = vld [vmem:[%s265 + $0x1988] sm:$0xff]
                %1086 = vst [vmem:[%s266 + $0xcc8] sm:$0xff] %v1085
                %v1087 = vld [vmem:[%s265 + $0x1990] sm:$0xff]
                %1088 = vst [vmem:[%s266 + $0xcd0] sm:$0xff] %v1087
                %v1089 = vld [vmem:[%s265 + $0x1998] sm:$0xff]
                %1090 = vst [vmem:[%s266 + $0xcd8] sm:$0xff] %v1089
                %v1091 = vld [vmem:[%s265 + $0x19c0] sm:$0xff]
                %1092 = vst [vmem:[%s266 + $0xce0] sm:$0xff] %v1091
                %v1093 = vld [vmem:[%s265 + $0x19c8] sm:$0xff]
                %1094 = vst [vmem:[%s266 + $0xce8] sm:$0xff] %v1093
                %v1095 = vld [vmem:[%s265 + $0x19d0] sm:$0xff]
                %1096 = vst [vmem:[%s266 + $0xcf0] sm:$0xff] %v1095
                %v1097 = vld [vmem:[%s265 + $0x19d8] sm:$0xff]
                %1098 = vst [vmem:[%s266 + $0xcf8] sm:$0xff] %v1097
                %v1099 = vld [vmem:[%s265 + $0x1a00] sm:$0xff]
                %1100 = vst [vmem:[%s266 + $0xd00] sm:$0xff] %v1099
                %v1101 = vld [vmem:[%s265 + $0x1a08] sm:$0xff]
                %1102 = vst [vmem:[%s266 + $0xd08] sm:$0xff] %v1101
                %v1103 = vld [vmem:[%s265 + $0x1a10] sm:$0xff]
                %1104 = vst [vmem:[%s266 + $0xd10] sm:$0xff] %v1103
                %v1105 = vld [vmem:[%s265 + $0x1a18] sm:$0xff]
                %1106 = vst [vmem:[%s266 + $0xd18] sm:$0xff] %v1105
                %v1107 = vld [vmem:[%s265 + $0x1a40] sm:$0xff]
                %1108 = vst [vmem:[%s266 + $0xd20] sm:$0xff] %v1107
                %v1109 = vld [vmem:[%s265 + $0x1a48] sm:$0xff]
                %1110 = vst [vmem:[%s266 + $0xd28] sm:$0xff] %v1109
                %v1111 = vld [vmem:[%s265 + $0x1a50] sm:$0xff]
                %1112 = vst [vmem:[%s266 + $0xd30] sm:$0xff] %v1111
                %v1113 = vld [vmem:[%s265 + $0x1a58] sm:$0xff]
                %1114 = vst [vmem:[%s266 + $0xd38] sm:$0xff] %v1113
                %v1115 = vld [vmem:[%s265 + $0x1a80] sm:$0xff]
                %1116 = vst [vmem:[%s266 + $0xd40] sm:$0xff] %v1115
                %v1117 = vld [vmem:[%s265 + $0x1a88] sm:$0xff]
                %1118 = vst [vmem:[%s266 + $0xd48] sm:$0xff] %v1117
                %v1119 = vld [vmem:[%s265 + $0x1a90] sm:$0xff]
                %1120 = vst [vmem:[%s266 + $0xd50] sm:$0xff] %v1119
                %v1121 = vld [vmem:[%s265 + $0x1a98] sm:$0xff]
                %1122 = vst [vmem:[%s266 + $0xd58] sm:$0xff] %v1121
                %v1123 = vld [vmem:[%s265 + $0x1ac0] sm:$0xff]
                %1124 = vst [vmem:[%s266 + $0xd60] sm:$0xff] %v1123
                %v1125 = vld [vmem:[%s265 + $0x1ac8] sm:$0xff]
                %1126 = vst [vmem:[%s266 + $0xd68] sm:$0xff] %v1125
                %v1127 = vld [vmem:[%s265 + $0x1ad0] sm:$0xff]
                %1128 = vst [vmem:[%s266 + $0xd70] sm:$0xff] %v1127
                %v1129 = vld [vmem:[%s265 + $0x1ad8] sm:$0xff]
                %1130 = vst [vmem:[%s266 + $0xd78] sm:$0xff] %v1129
                %v1131 = vld [vmem:[%s265 + $0x1b00] sm:$0xff]
                %1132 = vst [vmem:[%s266 + $0xd80] sm:$0xff] %v1131
                %v1133 = vld [vmem:[%s265 + $0x1b08] sm:$0xff]
                %1134 = vst [vmem:[%s266 + $0xd88] sm:$0xff] %v1133
                %v1135 = vld [vmem:[%s265 + $0x1b10] sm:$0xff]
                %1136 = vst [vmem:[%s266 + $0xd90] sm:$0xff] %v1135
                %v1137 = vld [vmem:[%s265 + $0x1b18] sm:$0xff]
                %1138 = vst [vmem:[%s266 + $0xd98] sm:$0xff] %v1137
                %v1139 = vld [vmem:[%s265 + $0x1b40] sm:$0xff]
                %1140 = vst [vmem:[%s266 + $0xda0] sm:$0xff] %v1139
                %v1141 = vld [vmem:[%s265 + $0x1b48] sm:$0xff]
                %1142 = vst [vmem:[%s266 + $0xda8] sm:$0xff] %v1141
                %v1143 = vld [vmem:[%s265 + $0x1b50] sm:$0xff]
                %1144 = vst [vmem:[%s266 + $0xdb0] sm:$0xff] %v1143
                %v1145 = vld [vmem:[%s265 + $0x1b58] sm:$0xff]
                %1146 = vst [vmem:[%s266 + $0xdb8] sm:$0xff] %v1145
                %v1147 = vld [vmem:[%s265 + $0x1b80] sm:$0xff]
                %1148 = vst [vmem:[%s266 + $0xdc0] sm:$0xff] %v1147
                %v1149 = vld [vmem:[%s265 + $0x1b88] sm:$0xff]
                %1150 = vst [vmem:[%s266 + $0xdc8] sm:$0xff] %v1149
                %v1151 = vld [vmem:[%s265 + $0x1b90] sm:$0xff]
                %1152 = vst [vmem:[%s266 + $0xdd0] sm:$0xff] %v1151
                %v1153 = vld [vmem:[%s265 + $0x1b98] sm:$0xff]
                %1154 = vst [vmem:[%s266 + $0xdd8] sm:$0xff] %v1153
                %v1155 = vld [vmem:[%s265 + $0x1bc0] sm:$0xff]
                %1156 = vst [vmem:[%s266 + $0xde0] sm:$0xff] %v1155
                %v1157 = vld [vmem:[%s265 + $0x1bc8] sm:$0xff]
                %1158 = vst [vmem:[%s266 + $0xde8] sm:$0xff] %v1157
                %v1159 = vld [vmem:[%s265 + $0x1bd0] sm:$0xff]
                %1160 = vst [vmem:[%s266 + $0xdf0] sm:$0xff] %v1159
                %v1161 = vld [vmem:[%s265 + $0x1bd8] sm:$0xff]
                %1162 = vst [vmem:[%s266 + $0xdf8] sm:$0xff] %v1161
                %v1163 = vld [vmem:[%s265 + $0x1c00] sm:$0xff]
                %1164 = vst [vmem:[%s266 + $0xe00] sm:$0xff] %v1163
                %v1165 = vld [vmem:[%s265 + $0x1c08] sm:$0xff]
                %1166 = vst [vmem:[%s266 + $0xe08] sm:$0xff] %v1165
                %v1167 = vld [vmem:[%s265 + $0x1c10] sm:$0xff]
                %1168 = vst [vmem:[%s266 + $0xe10] sm:$0xff] %v1167
                %v1169 = vld [vmem:[%s265 + $0x1c18] sm:$0xff]
                %1170 = vst [vmem:[%s266 + $0xe18] sm:$0xff] %v1169
                %v1171 = vld [vmem:[%s265 + $0x1c40] sm:$0xff]
                %1172 = vst [vmem:[%s266 + $0xe20] sm:$0xff] %v1171
                %v1173 = vld [vmem:[%s265 + $0x1c48] sm:$0xff]
                %1174 = vst [vmem:[%s266 + $0xe28] sm:$0xff] %v1173
                %v1175 = vld [vmem:[%s265 + $0x1c50] sm:$0xff]
                %1176 = vst [vmem:[%s266 + $0xe30] sm:$0xff] %v1175
                %v1177 = vld [vmem:[%s265 + $0x1c58] sm:$0xff]
                %1178 = vst [vmem:[%s266 + $0xe38] sm:$0xff] %v1177
                %v1179 = vld [vmem:[%s265 + $0x1c80] sm:$0xff]
                %1180 = vst [vmem:[%s266 + $0xe40] sm:$0xff] %v1179
                %v1181 = vld [vmem:[%s265 + $0x1c88] sm:$0xff]
                %1182 = vst [vmem:[%s266 + $0xe48] sm:$0xff] %v1181
                %v1183 = vld [vmem:[%s265 + $0x1c90] sm:$0xff]
                %1184 = vst [vmem:[%s266 + $0xe50] sm:$0xff] %v1183
                %v1185 = vld [vmem:[%s265 + $0x1c98] sm:$0xff]
                %1186 = vst [vmem:[%s266 + $0xe58] sm:$0xff] %v1185
                %v1187 = vld [vmem:[%s265 + $0x1cc0] sm:$0xff]
                %1188 = vst [vmem:[%s266 + $0xe60] sm:$0xff] %v1187
                %v1189 = vld [vmem:[%s265 + $0x1cc8] sm:$0xff]
                %1190 = vst [vmem:[%s266 + $0xe68] sm:$0xff] %v1189
                %v1191 = vld [vmem:[%s265 + $0x1cd0] sm:$0xff]
                %1192 = vst [vmem:[%s266 + $0xe70] sm:$0xff] %v1191
                %v1193 = vld [vmem:[%s265 + $0x1cd8] sm:$0xff]
                %1194 = vst [vmem:[%s266 + $0xe78] sm:$0xff] %v1193
                %v1195 = vld [vmem:[%s265 + $0x1d00] sm:$0xff]
                %1196 = vst [vmem:[%s266 + $0xe80] sm:$0xff] %v1195
                %v1197 = vld [vmem:[%s265 + $0x1d08] sm:$0xff]
                %1198 = vst [vmem:[%s266 + $0xe88] sm:$0xff] %v1197
                %v1199 = vld [vmem:[%s265 + $0x1d10] sm:$0xff]
                %1200 = vst [vmem:[%s266 + $0xe90] sm:$0xff] %v1199
                %v1201 = vld [vmem:[%s265 + $0x1d18] sm:$0xff]
                %1202 = vst [vmem:[%s266 + $0xe98] sm:$0xff] %v1201
                %v1203 = vld [vmem:[%s265 + $0x1d40] sm:$0xff]
                %1204 = vst [vmem:[%s266 + $0xea0] sm:$0xff] %v1203
                %v1205 = vld [vmem:[%s265 + $0x1d48] sm:$0xff]
                %1206 = vst [vmem:[%s266 + $0xea8] sm:$0xff] %v1205
                %v1207 = vld [vmem:[%s265 + $0x1d50] sm:$0xff]
                %1208 = vst [vmem:[%s266 + $0xeb0] sm:$0xff] %v1207
                %v1209 = vld [vmem:[%s265 + $0x1d58] sm:$0xff]
                %1210 = vst [vmem:[%s266 + $0xeb8] sm:$0xff] %v1209
                %v1211 = vld [vmem:[%s265 + $0x1d80] sm:$0xff]
                %1212 = vst [vmem:[%s266 + $0xec0] sm:$0xff] %v1211
                %v1213 = vld [vmem:[%s265 + $0x1d88] sm:$0xff]
                %1214 = vst [vmem:[%s266 + $0xec8] sm:$0xff] %v1213
                %v1215 = vld [vmem:[%s265 + $0x1d90] sm:$0xff]
                %1216 = vst [vmem:[%s266 + $0xed0] sm:$0xff] %v1215
                %v1217 = vld [vmem:[%s265 + $0x1d98] sm:$0xff]
                %1218 = vst [vmem:[%s266 + $0xed8] sm:$0xff] %v1217
                %v1219 = vld [vmem:[%s265 + $0x1dc0] sm:$0xff]
                %1220 = vst [vmem:[%s266 + $0xee0] sm:$0xff] %v1219
                %v1221 = vld [vmem:[%s265 + $0x1dc8] sm:$0xff]
                %1222 = vst [vmem:[%s266 + $0xee8] sm:$0xff] %v1221
                %v1223 = vld [vmem:[%s265 + $0x1dd0] sm:$0xff]
                %1224 = vst [vmem:[%s266 + $0xef0] sm:$0xff] %v1223
                %v1225 = vld [vmem:[%s265 + $0x1dd8] sm:$0xff]
                %1226 = vst [vmem:[%s266 + $0xef8] sm:$0xff] %v1225
                %v1227 = vld [vmem:[%s265 + $0x1e00] sm:$0xff]
                %1228 = vst [vmem:[%s266 + $0xf00] sm:$0xff] %v1227
                %v1229 = vld [vmem:[%s265 + $0x1e08] sm:$0xff]
                %1230 = vst [vmem:[%s266 + $0xf08] sm:$0xff] %v1229
                %v1231 = vld [vmem:[%s265 + $0x1e10] sm:$0xff]
                %1232 = vst [vmem:[%s266 + $0xf10] sm:$0xff] %v1231
                %v1233 = vld [vmem:[%s265 + $0x1e18] sm:$0xff]
                %1234 = vst [vmem:[%s266 + $0xf18] sm:$0xff] %v1233
                %v1235 = vld [vmem:[%s265 + $0x1e40] sm:$0xff]
                %1236 = vst [vmem:[%s266 + $0xf20] sm:$0xff] %v1235
                %v1237 = vld [vmem:[%s265 + $0x1e48] sm:$0xff]
                %1238 = vst [vmem:[%s266 + $0xf28] sm:$0xff] %v1237
                %v1239 = vld [vmem:[%s265 + $0x1e50] sm:$0xff]
                %1240 = vst [vmem:[%s266 + $0xf30] sm:$0xff] %v1239
                %v1241 = vld [vmem:[%s265 + $0x1e58] sm:$0xff]
                %1242 = vst [vmem:[%s266 + $0xf38] sm:$0xff] %v1241
                %v1243 = vld [vmem:[%s265 + $0x1e80] sm:$0xff]
                %1244 = vst [vmem:[%s266 + $0xf40] sm:$0xff] %v1243
                %v1245 = vld [vmem:[%s265 + $0x1e88] sm:$0xff]
                %1246 = vst [vmem:[%s266 + $0xf48] sm:$0xff] %v1245
                %v1247 = vld [vmem:[%s265 + $0x1e90] sm:$0xff]
                %1248 = vst [vmem:[%s266 + $0xf50] sm:$0xff] %v1247
                %v1249 = vld [vmem:[%s265 + $0x1e98] sm:$0xff]
                %1250 = vst [vmem:[%s266 + $0xf58] sm:$0xff] %v1249
                %v1251 = vld [vmem:[%s265 + $0x1ec0] sm:$0xff]
                %1252 = vst [vmem:[%s266 + $0xf60] sm:$0xff] %v1251
                %v1253 = vld [vmem:[%s265 + $0x1ec8] sm:$0xff]
                %1254 = vst [vmem:[%s266 + $0xf68] sm:$0xff] %v1253
                %v1255 = vld [vmem:[%s265 + $0x1ed0] sm:$0xff]
                %1256 = vst [vmem:[%s266 + $0xf70] sm:$0xff] %v1255
                %v1257 = vld [vmem:[%s265 + $0x1ed8] sm:$0xff]
                %1258 = vst [vmem:[%s266 + $0xf78] sm:$0xff] %v1257
                %v1259 = vld [vmem:[%s265 + $0x1f00] sm:$0xff]
                %1260 = vst [vmem:[%s266 + $0xf80] sm:$0xff] %v1259
                %v1261 = vld [vmem:[%s265 + $0x1f08] sm:$0xff]
                %1262 = vst [vmem:[%s266 + $0xf88] sm:$0xff] %v1261
                %v1263 = vld [vmem:[%s265 + $0x1f10] sm:$0xff]
                %1264 = vst [vmem:[%s266 + $0xf90] sm:$0xff] %v1263
                %v1265 = vld [vmem:[%s265 + $0x1f18] sm:$0xff]
                %1266 = vst [vmem:[%s266 + $0xf98] sm:$0xff] %v1265
                %v1267 = vld [vmem:[%s265 + $0x1f40] sm:$0xff]
                %1268 = vst [vmem:[%s266 + $0xfa0] sm:$0xff] %v1267
                %v1269 = vld [vmem:[%s265 + $0x1f48] sm:$0xff]
                %1270 = vst [vmem:[%s266 + $0xfa8] sm:$0xff] %v1269
                %v1271 = vld [vmem:[%s265 + $0x1f50] sm:$0xff]
                %1272 = vst [vmem:[%s266 + $0xfb0] sm:$0xff] %v1271
                %v1273 = vld [vmem:[%s265 + $0x1f58] sm:$0xff]
                %1274 = vst [vmem:[%s266 + $0xfb8] sm:$0xff] %v1273
                %v1275 = vld [vmem:[%s265 + $0x1f80] sm:$0xff]
                %1276 = vst [vmem:[%s266 + $0xfc0] sm:$0xff] %v1275
                %v1277 = vld [vmem:[%s265 + $0x1f88] sm:$0xff]
                %1278 = vst [vmem:[%s266 + $0xfc8] sm:$0xff] %v1277
                %v1279 = vld [vmem:[%s265 + $0x1f90] sm:$0xff]
                %1280 = vst [vmem:[%s266 + $0xfd0] sm:$0xff] %v1279
                %v1281 = vld [vmem:[%s265 + $0x1f98] sm:$0xff]
                %1282 = vst [vmem:[%s266 + $0xfd8] sm:$0xff] %v1281
                %v1283 = vld [vmem:[%s265 + $0x1fc0] sm:$0xff]
                %1284 = vst [vmem:[%s266 + $0xfe0] sm:$0xff] %v1283
                %v1285 = vld [vmem:[%s265 + $0x1fc8] sm:$0xff]
                %1286 = vst [vmem:[%s266 + $0xfe8] sm:$0xff] %v1285
                %v1287 = vld [vmem:[%s265 + $0x1fd0] sm:$0xff]
                %1288 = vst [vmem:[%s266 + $0xff0] sm:$0xff] %v1287
                %v1289 = vld [vmem:[%s265 + $0x1fd8] sm:$0xff]
                %1290 = vst [vmem:[%s266 + $0xff8] sm:$0xff] %v1289
                %v1291 = vld [vmem:[%s265 + $0x2000] sm:$0xff]
                %1292 = vst [vmem:[%s266 + $0x1000] sm:$0xff] %v1291
                %v1293 = vld [vmem:[%s265 + $0x2008] sm:$0xff]
                %1294 = vst [vmem:[%s266 + $0x1008] sm:$0xff] %v1293
                %v1295 = vld [vmem:[%s265 + $0x2010] sm:$0xff]
                %1296 = vst [vmem:[%s266 + $0x1010] sm:$0xff] %v1295
                %v1297 = vld [vmem:[%s265 + $0x2018] sm:$0xff]
                %1298 = vst [vmem:[%s266 + $0x1018] sm:$0xff] %v1297
                %v1299 = vld [vmem:[%s265 + $0x2040] sm:$0xff]
                %1300 = vst [vmem:[%s266 + $0x1020] sm:$0xff] %v1299
                %v1301 = vld [vmem:[%s265 + $0x2048] sm:$0xff]
                %1302 = vst [vmem:[%s266 + $0x1028] sm:$0xff] %v1301
                %v1303 = vld [vmem:[%s265 + $0x2050] sm:$0xff]
                %1304 = vst [vmem:[%s266 + $0x1030] sm:$0xff] %v1303
                %v1305 = vld [vmem:[%s265 + $0x2058] sm:$0xff]
                %1306 = vst [vmem:[%s266 + $0x1038] sm:$0xff] %v1305
                %v1307 = vld [vmem:[%s265 + $0x2080] sm:$0xff]
                %1308 = vst [vmem:[%s266 + $0x1040] sm:$0xff] %v1307
                %v1309 = vld [vmem:[%s265 + $0x2088] sm:$0xff]
                %1310 = vst [vmem:[%s266 + $0x1048] sm:$0xff] %v1309
                %v1311 = vld [vmem:[%s265 + $0x2090] sm:$0xff]
                %1312 = vst [vmem:[%s266 + $0x1050] sm:$0xff] %v1311
                %v1313 = vld [vmem:[%s265 + $0x2098] sm:$0xff]
                %1314 = vst [vmem:[%s266 + $0x1058] sm:$0xff] %v1313
                %v1315 = vld [vmem:[%s265 + $0x20c0] sm:$0xff]
                %1316 = vst [vmem:[%s266 + $0x1060] sm:$0xff] %v1315
                %v1317 = vld [vmem:[%s265 + $0x20c8] sm:$0xff]
                %1318 = vst [vmem:[%s266 + $0x1068] sm:$0xff] %v1317
                %v1319 = vld [vmem:[%s265 + $0x20d0] sm:$0xff]
                %1320 = vst [vmem:[%s266 + $0x1070] sm:$0xff] %v1319
                %v1321 = vld [vmem:[%s265 + $0x20d8] sm:$0xff]
                %1322 = vst [vmem:[%s266 + $0x1078] sm:$0xff] %v1321
                %v1323 = vld [vmem:[%s265 + $0x2100] sm:$0xff]
                %1324 = vst [vmem:[%s266 + $0x1080] sm:$0xff] %v1323
                %v1325 = vld [vmem:[%s265 + $0x2108] sm:$0xff]
                %1326 = vst [vmem:[%s266 + $0x1088] sm:$0xff] %v1325
                %v1327 = vld [vmem:[%s265 + $0x2110] sm:$0xff]
                %1328 = vst [vmem:[%s266 + $0x1090] sm:$0xff] %v1327
                %v1329 = vld [vmem:[%s265 + $0x2118] sm:$0xff]
                %1330 = vst [vmem:[%s266 + $0x1098] sm:$0xff] %v1329
                %v1331 = vld [vmem:[%s265 + $0x2140] sm:$0xff]
                %1332 = vst [vmem:[%s266 + $0x10a0] sm:$0xff] %v1331
                %v1333 = vld [vmem:[%s265 + $0x2148] sm:$0xff]
                %1334 = vst [vmem:[%s266 + $0x10a8] sm:$0xff] %v1333
                %v1335 = vld [vmem:[%s265 + $0x2150] sm:$0xff]
                %1336 = vst [vmem:[%s266 + $0x10b0] sm:$0xff] %v1335
                %v1337 = vld [vmem:[%s265 + $0x2158] sm:$0xff]
                %1338 = vst [vmem:[%s266 + $0x10b8] sm:$0xff] %v1337
                %v1339 = vld [vmem:[%s265 + $0x2180] sm:$0xff]
                %1340 = vst [vmem:[%s266 + $0x10c0] sm:$0xff] %v1339
                %v1341 = vld [vmem:[%s265 + $0x2188] sm:$0xff]
                %1342 = vst [vmem:[%s266 + $0x10c8] sm:$0xff] %v1341
                %v1343 = vld [vmem:[%s265 + $0x2190] sm:$0xff]
                %1344 = vst [vmem:[%s266 + $0x10d0] sm:$0xff] %v1343
                %v1345 = vld [vmem:[%s265 + $0x2198] sm:$0xff]
                %1346 = vst [vmem:[%s266 + $0x10d8] sm:$0xff] %v1345
                %v1347 = vld [vmem:[%s265 + $0x21c0] sm:$0xff]
                %1348 = vst [vmem:[%s266 + $0x10e0] sm:$0xff] %v1347
                %v1349 = vld [vmem:[%s265 + $0x21c8] sm:$0xff]
                %1350 = vst [vmem:[%s266 + $0x10e8] sm:$0xff] %v1349
                %v1351 = vld [vmem:[%s265 + $0x21d0] sm:$0xff]
                %1352 = vst [vmem:[%s266 + $0x10f0] sm:$0xff] %v1351
                %v1353 = vld [vmem:[%s265 + $0x21d8] sm:$0xff]
                %1354 = vst [vmem:[%s266 + $0x10f8] sm:$0xff] %v1353
                %v1355 = vld [vmem:[%s265 + $0x2200] sm:$0xff]
                %1356 = vst [vmem:[%s266 + $0x1100] sm:$0xff] %v1355
                %v1357 = vld [vmem:[%s265 + $0x2208] sm:$0xff]
                %1358 = vst [vmem:[%s266 + $0x1108] sm:$0xff] %v1357
                %v1359 = vld [vmem:[%s265 + $0x2210] sm:$0xff]
                %1360 = vst [vmem:[%s266 + $0x1110] sm:$0xff] %v1359
                %v1361 = vld [vmem:[%s265 + $0x2218] sm:$0xff]
                %1362 = vst [vmem:[%s266 + $0x1118] sm:$0xff] %v1361
                %v1363 = vld [vmem:[%s265 + $0x2240] sm:$0xff]
                %1364 = vst [vmem:[%s266 + $0x1120] sm:$0xff] %v1363
                %v1365 = vld [vmem:[%s265 + $0x2248] sm:$0xff]
                %1366 = vst [vmem:[%s266 + $0x1128] sm:$0xff] %v1365
                %v1367 = vld [vmem:[%s265 + $0x2250] sm:$0xff]
                %1368 = vst [vmem:[%s266 + $0x1130] sm:$0xff] %v1367
                %v1369 = vld [vmem:[%s265 + $0x2258] sm:$0xff]
                %1370 = vst [vmem:[%s266 + $0x1138] sm:$0xff] %v1369
                %v1371 = vld [vmem:[%s265 + $0x2280] sm:$0xff]
                %1372 = vst [vmem:[%s266 + $0x1140] sm:$0xff] %v1371
                %v1373 = vld [vmem:[%s265 + $0x2288] sm:$0xff]
                %1374 = vst [vmem:[%s266 + $0x1148] sm:$0xff] %v1373
                %v1375 = vld [vmem:[%s265 + $0x2290] sm:$0xff]
                %1376 = vst [vmem:[%s266 + $0x1150] sm:$0xff] %v1375
                %v1377 = vld [vmem:[%s265 + $0x2298] sm:$0xff]
                %1378 = vst [vmem:[%s266 + $0x1158] sm:$0xff] %v1377
                %v1379 = vld [vmem:[%s265 + $0x22c0] sm:$0xff]
                %1380 = vst [vmem:[%s266 + $0x1160] sm:$0xff] %v1379
                %v1381 = vld [vmem:[%s265 + $0x22c8] sm:$0xff]
                %1382 = vst [vmem:[%s266 + $0x1168] sm:$0xff] %v1381
                %v1383 = vld [vmem:[%s265 + $0x22d0] sm:$0xff]
                %1384 = vst [vmem:[%s266 + $0x1170] sm:$0xff] %v1383
                %v1385 = vld [vmem:[%s265 + $0x22d8] sm:$0xff]
                %1386 = vst [vmem:[%s266 + $0x1178] sm:$0xff] %v1385
                %v1387 = vld [vmem:[%s265 + $0x2300] sm:$0xff]
                %1388 = vst [vmem:[%s266 + $0x1180] sm:$0xff] %v1387
                %v1389 = vld [vmem:[%s265 + $0x2308] sm:$0xff]
                %1390 = vst [vmem:[%s266 + $0x1188] sm:$0xff] %v1389
                %v1391 = vld [vmem:[%s265 + $0x2310] sm:$0xff]
                %1392 = vst [vmem:[%s266 + $0x1190] sm:$0xff] %v1391
                %v1393 = vld [vmem:[%s265 + $0x2318] sm:$0xff]
                %1394 = vst [vmem:[%s266 + $0x1198] sm:$0xff] %v1393
                %v1395 = vld [vmem:[%s265 + $0x2340] sm:$0xff]
                %1396 = vst [vmem:[%s266 + $0x11a0] sm:$0xff] %v1395
                %v1397 = vld [vmem:[%s265 + $0x2348] sm:$0xff]
                %1398 = vst [vmem:[%s266 + $0x11a8] sm:$0xff] %v1397
                %v1399 = vld [vmem:[%s265 + $0x2350] sm:$0xff]
                %1400 = vst [vmem:[%s266 + $0x11b0] sm:$0xff] %v1399
                %v1401 = vld [vmem:[%s265 + $0x2358] sm:$0xff]
                %1402 = vst [vmem:[%s266 + $0x11b8] sm:$0xff] %v1401
                %v1403 = vld [vmem:[%s265 + $0x2380] sm:$0xff]
                %1404 = vst [vmem:[%s266 + $0x11c0] sm:$0xff] %v1403
                %v1405 = vld [vmem:[%s265 + $0x2388] sm:$0xff]
                %1406 = vst [vmem:[%s266 + $0x11c8] sm:$0xff] %v1405
                %v1407 = vld [vmem:[%s265 + $0x2390] sm:$0xff]
                %1408 = vst [vmem:[%s266 + $0x11d0] sm:$0xff] %v1407
                %v1409 = vld [vmem:[%s265 + $0x2398] sm:$0xff]
                %1410 = vst [vmem:[%s266 + $0x11d8] sm:$0xff] %v1409
                %v1411 = vld [vmem:[%s265 + $0x23c0] sm:$0xff]
                %1412 = vst [vmem:[%s266 + $0x11e0] sm:$0xff] %v1411
                %v1413 = vld [vmem:[%s265 + $0x23c8] sm:$0xff]
                %1414 = vst [vmem:[%s266 + $0x11e8] sm:$0xff] %v1413
                %v1415 = vld [vmem:[%s265 + $0x23d0] sm:$0xff]
                %1416 = vst [vmem:[%s266 + $0x11f0] sm:$0xff] %v1415
                %v1417 = vld [vmem:[%s265 + $0x23d8] sm:$0xff]
                %1418 = vst [vmem:[%s266 + $0x11f8] sm:$0xff] %v1417
                %v1419 = vld [vmem:[%s265 + $0x2400] sm:$0xff]
                %1420 = vst [vmem:[%s266 + $0x1200] sm:$0xff] %v1419
                %v1421 = vld [vmem:[%s265 + $0x2408] sm:$0xff]
                %1422 = vst [vmem:[%s266 + $0x1208] sm:$0xff] %v1421
                %v1423 = vld [vmem:[%s265 + $0x2410] sm:$0xff]
                %1424 = vst [vmem:[%s266 + $0x1210] sm:$0xff] %v1423
                %v1425 = vld [vmem:[%s265 + $0x2418] sm:$0xff]
                %1426 = vst [vmem:[%s266 + $0x1218] sm:$0xff] %v1425
                %v1427 = vld [vmem:[%s265 + $0x2440] sm:$0xff]
                %1428 = vst [vmem:[%s266 + $0x1220] sm:$0xff] %v1427
                %v1429 = vld [vmem:[%s265 + $0x2448] sm:$0xff]
                %1430 = vst [vmem:[%s266 + $0x1228] sm:$0xff] %v1429
                %v1431 = vld [vmem:[%s265 + $0x2450] sm:$0xff]
                %1432 = vst [vmem:[%s266 + $0x1230] sm:$0xff] %v1431
                %v1433 = vld [vmem:[%s265 + $0x2458] sm:$0xff]
                %1434 = vst [vmem:[%s266 + $0x1238] sm:$0xff] %v1433
                %v1435 = vld [vmem:[%s265 + $0x2480] sm:$0xff]
                %1436 = vst [vmem:[%s266 + $0x1240] sm:$0xff] %v1435
                %v1437 = vld [vmem:[%s265 + $0x2488] sm:$0xff]
                %1438 = vst [vmem:[%s266 + $0x1248] sm:$0xff] %v1437
                %v1439 = vld [vmem:[%s265 + $0x2490] sm:$0xff]
                %1440 = vst [vmem:[%s266 + $0x1250] sm:$0xff] %v1439
                %v1441 = vld [vmem:[%s265 + $0x2498] sm:$0xff]
                %1442 = vst [vmem:[%s266 + $0x1258] sm:$0xff] %v1441
                %v1443 = vld [vmem:[%s265 + $0x24c0] sm:$0xff]
                %1444 = vst [vmem:[%s266 + $0x1260] sm:$0xff] %v1443
                %v1445 = vld [vmem:[%s265 + $0x24c8] sm:$0xff]
                %1446 = vst [vmem:[%s266 + $0x1268] sm:$0xff] %v1445
                %v1447 = vld [vmem:[%s265 + $0x24d0] sm:$0xff]
                %1448 = vst [vmem:[%s266 + $0x1270] sm:$0xff] %v1447
                %v1449 = vld [vmem:[%s265 + $0x24d8] sm:$0xff]
                %1450 = vst [vmem:[%s266 + $0x1278] sm:$0xff] %v1449
                %v1451 = vld [vmem:[%s265 + $0x2500] sm:$0xff]
                %1452 = vst [vmem:[%s266 + $0x1280] sm:$0xff] %v1451
                %v1453 = vld [vmem:[%s265 + $0x2508] sm:$0xff]
                %1454 = vst [vmem:[%s266 + $0x1288] sm:$0xff] %v1453
                %v1455 = vld [vmem:[%s265 + $0x2510] sm:$0xff]
                %1456 = vst [vmem:[%s266 + $0x1290] sm:$0xff] %v1455
                %v1457 = vld [vmem:[%s265 + $0x2518] sm:$0xff]
                %1458 = vst [vmem:[%s266 + $0x1298] sm:$0xff] %v1457
                %v1459 = vld [vmem:[%s265 + $0x2540] sm:$0xff]
                %1460 = vst [vmem:[%s266 + $0x12a0] sm:$0xff] %v1459
                %v1461 = vld [vmem:[%s265 + $0x2548] sm:$0xff]
                %1462 = vst [vmem:[%s266 + $0x12a8] sm:$0xff] %v1461
                %v1463 = vld [vmem:[%s265 + $0x2550] sm:$0xff]
                %1464 = vst [vmem:[%s266 + $0x12b0] sm:$0xff] %v1463
                %v1465 = vld [vmem:[%s265 + $0x2558] sm:$0xff]
                %1466 = vst [vmem:[%s266 + $0x12b8] sm:$0xff] %v1465
                %v1467 = vld [vmem:[%s265 + $0x2580] sm:$0xff]
                %1468 = vst [vmem:[%s266 + $0x12c0] sm:$0xff] %v1467
                %v1469 = vld [vmem:[%s265 + $0x2588] sm:$0xff]
                %1470 = vst [vmem:[%s266 + $0x12c8] sm:$0xff] %v1469
                %v1471 = vld [vmem:[%s265 + $0x2590] sm:$0xff]
                %1472 = vst [vmem:[%s266 + $0x12d0] sm:$0xff] %v1471
                %v1473 = vld [vmem:[%s265 + $0x2598] sm:$0xff]
                %1474 = vst [vmem:[%s266 + $0x12d8] sm:$0xff] %v1473
                %v1475 = vld [vmem:[%s265 + $0x25c0] sm:$0xff]
                %1476 = vst [vmem:[%s266 + $0x12e0] sm:$0xff] %v1475
                %v1477 = vld [vmem:[%s265 + $0x25c8] sm:$0xff]
                %1478 = vst [vmem:[%s266 + $0x12e8] sm:$0xff] %v1477
                %v1479 = vld [vmem:[%s265 + $0x25d0] sm:$0xff]
                %1480 = vst [vmem:[%s266 + $0x12f0] sm:$0xff] %v1479
                %v1481 = vld [vmem:[%s265 + $0x25d8] sm:$0xff]
                %1482 = vst [vmem:[%s266 + $0x12f8] sm:$0xff] %v1481
                %v1483 = vld [vmem:[%s265 + $0x2600] sm:$0xff]
                %1484 = vst [vmem:[%s266 + $0x1300] sm:$0xff] %v1483
                %v1485 = vld [vmem:[%s265 + $0x2608] sm:$0xff]
                %1486 = vst [vmem:[%s266 + $0x1308] sm:$0xff] %v1485
                %v1487 = vld [vmem:[%s265 + $0x2610] sm:$0xff]
                %1488 = vst [vmem:[%s266 + $0x1310] sm:$0xff] %v1487
                %v1489 = vld [vmem:[%s265 + $0x2618] sm:$0xff]
                %1490 = vst [vmem:[%s266 + $0x1318] sm:$0xff] %v1489
                %v1491 = vld [vmem:[%s265 + $0x2640] sm:$0xff]
                %1492 = vst [vmem:[%s266 + $0x1320] sm:$0xff] %v1491
                %v1493 = vld [vmem:[%s265 + $0x2648] sm:$0xff]
                %1494 = vst [vmem:[%s266 + $0x1328] sm:$0xff] %v1493
                %v1495 = vld [vmem:[%s265 + $0x2650] sm:$0xff]
                %1496 = vst [vmem:[%s266 + $0x1330] sm:$0xff] %v1495
                %v1497 = vld [vmem:[%s265 + $0x2658] sm:$0xff]
                %1498 = vst [vmem:[%s266 + $0x1338] sm:$0xff] %v1497
                %v1499 = vld [vmem:[%s265 + $0x2680] sm:$0xff]
                %1500 = vst [vmem:[%s266 + $0x1340] sm:$0xff] %v1499
                %v1501 = vld [vmem:[%s265 + $0x2688] sm:$0xff]
                %1502 = vst [vmem:[%s266 + $0x1348] sm:$0xff] %v1501
                %v1503 = vld [vmem:[%s265 + $0x2690] sm:$0xff]
                %1504 = vst [vmem:[%s266 + $0x1350] sm:$0xff] %v1503
                %v1505 = vld [vmem:[%s265 + $0x2698] sm:$0xff]
                %1506 = vst [vmem:[%s266 + $0x1358] sm:$0xff] %v1505
                %v1507 = vld [vmem:[%s265 + $0x26c0] sm:$0xff]
                %1508 = vst [vmem:[%s266 + $0x1360] sm:$0xff] %v1507
                %v1509 = vld [vmem:[%s265 + $0x26c8] sm:$0xff]
                %1510 = vst [vmem:[%s266 + $0x1368] sm:$0xff] %v1509
                %v1511 = vld [vmem:[%s265 + $0x26d0] sm:$0xff]
                %1512 = vst [vmem:[%s266 + $0x1370] sm:$0xff] %v1511
                %v1513 = vld [vmem:[%s265 + $0x26d8] sm:$0xff]
                %1514 = vst [vmem:[%s266 + $0x1378] sm:$0xff] %v1513
                %v1515 = vld [vmem:[%s265 + $0x2700] sm:$0xff]
                %1516 = vst [vmem:[%s266 + $0x1380] sm:$0xff] %v1515
                %v1517 = vld [vmem:[%s265 + $0x2708] sm:$0xff]
                %1518 = vst [vmem:[%s266 + $0x1388] sm:$0xff] %v1517
                %v1519 = vld [vmem:[%s265 + $0x2710] sm:$0xff]
                %1520 = vst [vmem:[%s266 + $0x1390] sm:$0xff] %v1519
                %v1521 = vld [vmem:[%s265 + $0x2718] sm:$0xff]
                %1522 = vst [vmem:[%s266 + $0x1398] sm:$0xff] %v1521
                %v1523 = vld [vmem:[%s265 + $0x2740] sm:$0xff]
                %1524 = vst [vmem:[%s266 + $0x13a0] sm:$0xff] %v1523
                %v1525 = vld [vmem:[%s265 + $0x2748] sm:$0xff]
                %1526 = vst [vmem:[%s266 + $0x13a8] sm:$0xff] %v1525
                %v1527 = vld [vmem:[%s265 + $0x2750] sm:$0xff]
                %1528 = vst [vmem:[%s266 + $0x13b0] sm:$0xff] %v1527
                %v1529 = vld [vmem:[%s265 + $0x2758] sm:$0xff]
                %1530 = vst [vmem:[%s266 + $0x13b8] sm:$0xff] %v1529
                %v1531 = vld [vmem:[%s265 + $0x2780] sm:$0xff]
                %1532 = vst [vmem:[%s266 + $0x13c0] sm:$0xff] %v1531
                %v1533 = vld [vmem:[%s265 + $0x2788] sm:$0xff]
                %1534 = vst [vmem:[%s266 + $0x13c8] sm:$0xff] %v1533
                %v1535 = vld [vmem:[%s265 + $0x2790] sm:$0xff]
                %1536 = vst [vmem:[%s266 + $0x13d0] sm:$0xff] %v1535
                %v1537 = vld [vmem:[%s265 + $0x2798] sm:$0xff]
                %1538 = vst [vmem:[%s266 + $0x13d8] sm:$0xff] %v1537
                %v1539 = vld [vmem:[%s265 + $0x27c0] sm:$0xff]
                %1540 = vst [vmem:[%s266 + $0x13e0] sm:$0xff] %v1539
                %v1541 = vld [vmem:[%s265 + $0x27c8] sm:$0xff]
                %1542 = vst [vmem:[%s266 + $0x13e8] sm:$0xff] %v1541
                %v1543 = vld [vmem:[%s265 + $0x27d0] sm:$0xff]
                %1544 = vst [vmem:[%s266 + $0x13f0] sm:$0xff] %v1543
                %v1545 = vld [vmem:[%s265 + $0x27d8] sm:$0xff]
                %1546 = vst [vmem:[%s266 + $0x13f8] sm:$0xff] %v1545
                %v1547 = vld [vmem:[%s265 + $0x2800] sm:$0xff]
                %1548 = vst [vmem:[%s266 + $0x1400] sm:$0xff] %v1547
                %v1549 = vld [vmem:[%s265 + $0x2808] sm:$0xff]
                %1550 = vst [vmem:[%s266 + $0x1408] sm:$0xff] %v1549
                %v1551 = vld [vmem:[%s265 + $0x2810] sm:$0xff]
                %1552 = vst [vmem:[%s266 + $0x1410] sm:$0xff] %v1551
                %v1553 = vld [vmem:[%s265 + $0x2818] sm:$0xff]
                %1554 = vst [vmem:[%s266 + $0x1418] sm:$0xff] %v1553
                %v1555 = vld [vmem:[%s265 + $0x2840] sm:$0xff]
                %1556 = vst [vmem:[%s266 + $0x1420] sm:$0xff] %v1555
                %v1557 = vld [vmem:[%s265 + $0x2848] sm:$0xff]
                %1558 = vst [vmem:[%s266 + $0x1428] sm:$0xff] %v1557
                %v1559 = vld [vmem:[%s265 + $0x2850] sm:$0xff]
                %1560 = vst [vmem:[%s266 + $0x1430] sm:$0xff] %v1559
                %v1561 = vld [vmem:[%s265 + $0x2858] sm:$0xff]
                %1562 = vst [vmem:[%s266 + $0x1438] sm:$0xff] %v1561
                %v1563 = vld [vmem:[%s265 + $0x2880] sm:$0xff]
                %1564 = vst [vmem:[%s266 + $0x1440] sm:$0xff] %v1563
                %v1565 = vld [vmem:[%s265 + $0x2888] sm:$0xff]
                %1566 = vst [vmem:[%s266 + $0x1448] sm:$0xff] %v1565
                %v1567 = vld [vmem:[%s265 + $0x2890] sm:$0xff]
                %1568 = vst [vmem:[%s266 + $0x1450] sm:$0xff] %v1567
                %v1569 = vld [vmem:[%s265 + $0x2898] sm:$0xff]
                %1570 = vst [vmem:[%s266 + $0x1458] sm:$0xff] %v1569
                %v1571 = vld [vmem:[%s265 + $0x28c0] sm:$0xff]
                %1572 = vst [vmem:[%s266 + $0x1460] sm:$0xff] %v1571
                %v1573 = vld [vmem:[%s265 + $0x28c8] sm:$0xff]
                %1574 = vst [vmem:[%s266 + $0x1468] sm:$0xff] %v1573
                %v1575 = vld [vmem:[%s265 + $0x28d0] sm:$0xff]
                %1576 = vst [vmem:[%s266 + $0x1470] sm:$0xff] %v1575
                %v1577 = vld [vmem:[%s265 + $0x28d8] sm:$0xff]
                %1578 = vst [vmem:[%s266 + $0x1478] sm:$0xff] %v1577
                %v1579 = vld [vmem:[%s265 + $0x2900] sm:$0xff]
                %1580 = vst [vmem:[%s266 + $0x1480] sm:$0xff] %v1579
                %v1581 = vld [vmem:[%s265 + $0x2908] sm:$0xff]
                %1582 = vst [vmem:[%s266 + $0x1488] sm:$0xff] %v1581
                %v1583 = vld [vmem:[%s265 + $0x2910] sm:$0xff]
                %1584 = vst [vmem:[%s266 + $0x1490] sm:$0xff] %v1583
                %v1585 = vld [vmem:[%s265 + $0x2918] sm:$0xff]
                %1586 = vst [vmem:[%s266 + $0x1498] sm:$0xff] %v1585
                %v1587 = vld [vmem:[%s265 + $0x2940] sm:$0xff]
                %1588 = vst [vmem:[%s266 + $0x14a0] sm:$0xff] %v1587
                %v1589 = vld [vmem:[%s265 + $0x2948] sm:$0xff]
                %1590 = vst [vmem:[%s266 + $0x14a8] sm:$0xff] %v1589
                %v1591 = vld [vmem:[%s265 + $0x2950] sm:$0xff]
                %1592 = vst [vmem:[%s266 + $0x14b0] sm:$0xff] %v1591
                %v1593 = vld [vmem:[%s265 + $0x2958] sm:$0xff]
                %1594 = vst [vmem:[%s266 + $0x14b8] sm:$0xff] %v1593
                %v1595 = vld [vmem:[%s265 + $0x2980] sm:$0xff]
                %1596 = vst [vmem:[%s266 + $0x14c0] sm:$0xff] %v1595
                %v1597 = vld [vmem:[%s265 + $0x2988] sm:$0xff]
                %1598 = vst [vmem:[%s266 + $0x14c8] sm:$0xff] %v1597
                %v1599 = vld [vmem:[%s265 + $0x2990] sm:$0xff]
                %1600 = vst [vmem:[%s266 + $0x14d0] sm:$0xff] %v1599
                %v1601 = vld [vmem:[%s265 + $0x2998] sm:$0xff]
                %1602 = vst [vmem:[%s266 + $0x14d8] sm:$0xff] %v1601
                %v1603 = vld [vmem:[%s265 + $0x29c0] sm:$0xff]
                %1604 = vst [vmem:[%s266 + $0x14e0] sm:$0xff] %v1603
                %v1605 = vld [vmem:[%s265 + $0x29c8] sm:$0xff]
                %1606 = vst [vmem:[%s266 + $0x14e8] sm:$0xff] %v1605
                %v1607 = vld [vmem:[%s265 + $0x29d0] sm:$0xff]
                %1608 = vst [vmem:[%s266 + $0x14f0] sm:$0xff] %v1607
                %v1609 = vld [vmem:[%s265 + $0x29d8] sm:$0xff]
                %1610 = vst [vmem:[%s266 + $0x14f8] sm:$0xff] %v1609
                %v1611 = vld [vmem:[%s265 + $0x2a00] sm:$0xff]
                %1612 = vst [vmem:[%s266 + $0x1500] sm:$0xff] %v1611
                %v1613 = vld [vmem:[%s265 + $0x2a08] sm:$0xff]
                %1614 = vst [vmem:[%s266 + $0x1508] sm:$0xff] %v1613
                %v1615 = vld [vmem:[%s265 + $0x2a10] sm:$0xff]
                %1616 = vst [vmem:[%s266 + $0x1510] sm:$0xff] %v1615
                %v1617 = vld [vmem:[%s265 + $0x2a18] sm:$0xff]
                %1618 = vst [vmem:[%s266 + $0x1518] sm:$0xff] %v1617
                %v1619 = vld [vmem:[%s265 + $0x2a40] sm:$0xff]
                %1620 = vst [vmem:[%s266 + $0x1520] sm:$0xff] %v1619
                %v1621 = vld [vmem:[%s265 + $0x2a48] sm:$0xff]
                %1622 = vst [vmem:[%s266 + $0x1528] sm:$0xff] %v1621
                %v1623 = vld [vmem:[%s265 + $0x2a50] sm:$0xff]
                %1624 = vst [vmem:[%s266 + $0x1530] sm:$0xff] %v1623
                %v1625 = vld [vmem:[%s265 + $0x2a58] sm:$0xff]
                %1626 = vst [vmem:[%s266 + $0x1538] sm:$0xff] %v1625
                %v1627 = vld [vmem:[%s265 + $0x2a80] sm:$0xff]
                %1628 = vst [vmem:[%s266 + $0x1540] sm:$0xff] %v1627
                %v1629 = vld [vmem:[%s265 + $0x2a88] sm:$0xff]
                %1630 = vst [vmem:[%s266 + $0x1548] sm:$0xff] %v1629
                %v1631 = vld [vmem:[%s265 + $0x2a90] sm:$0xff]
                %1632 = vst [vmem:[%s266 + $0x1550] sm:$0xff] %v1631
                %v1633 = vld [vmem:[%s265 + $0x2a98] sm:$0xff]
                %1634 = vst [vmem:[%s266 + $0x1558] sm:$0xff] %v1633
                %v1635 = vld [vmem:[%s265 + $0x2ac0] sm:$0xff]
                %1636 = vst [vmem:[%s266 + $0x1560] sm:$0xff] %v1635
                %v1637 = vld [vmem:[%s265 + $0x2ac8] sm:$0xff]
                %1638 = vst [vmem:[%s266 + $0x1568] sm:$0xff] %v1637
                %v1639 = vld [vmem:[%s265 + $0x2ad0] sm:$0xff]
                %1640 = vst [vmem:[%s266 + $0x1570] sm:$0xff] %v1639
                %v1641 = vld [vmem:[%s265 + $0x2ad8] sm:$0xff]
                %1642 = vst [vmem:[%s266 + $0x1578] sm:$0xff] %v1641
                %v1643 = vld [vmem:[%s265 + $0x2b00] sm:$0xff]
                %1644 = vst [vmem:[%s266 + $0x1580] sm:$0xff] %v1643
                %v1645 = vld [vmem:[%s265 + $0x2b08] sm:$0xff]
                %1646 = vst [vmem:[%s266 + $0x1588] sm:$0xff] %v1645
                %v1647 = vld [vmem:[%s265 + $0x2b10] sm:$0xff]
                %1648 = vst [vmem:[%s266 + $0x1590] sm:$0xff] %v1647
                %v1649 = vld [vmem:[%s265 + $0x2b18] sm:$0xff]
                %1650 = vst [vmem:[%s266 + $0x1598] sm:$0xff] %v1649
                %v1651 = vld [vmem:[%s265 + $0x2b40] sm:$0xff]
                %1652 = vst [vmem:[%s266 + $0x15a0] sm:$0xff] %v1651
                %v1653 = vld [vmem:[%s265 + $0x2b48] sm:$0xff]
                %1654 = vst [vmem:[%s266 + $0x15a8] sm:$0xff] %v1653
                %v1655 = vld [vmem:[%s265 + $0x2b50] sm:$0xff]
                %1656 = vst [vmem:[%s266 + $0x15b0] sm:$0xff] %v1655
                %v1657 = vld [vmem:[%s265 + $0x2b58] sm:$0xff]
                %1658 = vst [vmem:[%s266 + $0x15b8] sm:$0xff] %v1657
                %v1659 = vld [vmem:[%s265 + $0x2b80] sm:$0xff]
                %1660 = vst [vmem:[%s266 + $0x15c0] sm:$0xff] %v1659
                %v1661 = vld [vmem:[%s265 + $0x2b88] sm:$0xff]
                %1662 = vst [vmem:[%s266 + $0x15c8] sm:$0xff] %v1661
                %v1663 = vld [vmem:[%s265 + $0x2b90] sm:$0xff]
                %1664 = vst [vmem:[%s266 + $0x15d0] sm:$0xff] %v1663
                %v1665 = vld [vmem:[%s265 + $0x2b98] sm:$0xff]
                %1666 = vst [vmem:[%s266 + $0x15d8] sm:$0xff] %v1665
                %v1667 = vld [vmem:[%s265 + $0x2bc0] sm:$0xff]
                %1668 = vst [vmem:[%s266 + $0x15e0] sm:$0xff] %v1667
                %v1669 = vld [vmem:[%s265 + $0x2bc8] sm:$0xff]
                %1670 = vst [vmem:[%s266 + $0x15e8] sm:$0xff] %v1669
                %v1671 = vld [vmem:[%s265 + $0x2bd0] sm:$0xff]
                %1672 = vst [vmem:[%s266 + $0x15f0] sm:$0xff] %v1671
                %v1673 = vld [vmem:[%s265 + $0x2bd8] sm:$0xff]
                %1674 = vst [vmem:[%s266 + $0x15f8] sm:$0xff] %v1673
                %v1675 = vld [vmem:[%s265 + $0x2c00] sm:$0xff]
                %1676 = vst [vmem:[%s266 + $0x1600] sm:$0xff] %v1675
                %v1677 = vld [vmem:[%s265 + $0x2c08] sm:$0xff]
                %1678 = vst [vmem:[%s266 + $0x1608] sm:$0xff] %v1677
                %v1679 = vld [vmem:[%s265 + $0x2c10] sm:$0xff]
                %1680 = vst [vmem:[%s266 + $0x1610] sm:$0xff] %v1679
                %v1681 = vld [vmem:[%s265 + $0x2c18] sm:$0xff]
                %1682 = vst [vmem:[%s266 + $0x1618] sm:$0xff] %v1681
                %v1683 = vld [vmem:[%s265 + $0x2c40] sm:$0xff]
                %1684 = vst [vmem:[%s266 + $0x1620] sm:$0xff] %v1683
                %v1685 = vld [vmem:[%s265 + $0x2c48] sm:$0xff]
                %1686 = vst [vmem:[%s266 + $0x1628] sm:$0xff] %v1685
                %v1687 = vld [vmem:[%s265 + $0x2c50] sm:$0xff]
                %1688 = vst [vmem:[%s266 + $0x1630] sm:$0xff] %v1687
                %v1689 = vld [vmem:[%s265 + $0x2c58] sm:$0xff]
                %1690 = vst [vmem:[%s266 + $0x1638] sm:$0xff] %v1689
                %v1691 = vld [vmem:[%s265 + $0x2c80] sm:$0xff]
                %1692 = vst [vmem:[%s266 + $0x1640] sm:$0xff] %v1691
                %v1693 = vld [vmem:[%s265 + $0x2c88] sm:$0xff]
                %1694 = vst [vmem:[%s266 + $0x1648] sm:$0xff] %v1693
                %v1695 = vld [vmem:[%s265 + $0x2c90] sm:$0xff]
                %1696 = vst [vmem:[%s266 + $0x1650] sm:$0xff] %v1695
                %v1697 = vld [vmem:[%s265 + $0x2c98] sm:$0xff]
                %1698 = vst [vmem:[%s266 + $0x1658] sm:$0xff] %v1697
                %v1699 = vld [vmem:[%s265 + $0x2cc0] sm:$0xff]
                %1700 = vst [vmem:[%s266 + $0x1660] sm:$0xff] %v1699
                %v1701 = vld [vmem:[%s265 + $0x2cc8] sm:$0xff]
                %1702 = vst [vmem:[%s266 + $0x1668] sm:$0xff] %v1701
                %v1703 = vld [vmem:[%s265 + $0x2cd0] sm:$0xff]
                %1704 = vst [vmem:[%s266 + $0x1670] sm:$0xff] %v1703
                %v1705 = vld [vmem:[%s265 + $0x2cd8] sm:$0xff]
                %1706 = vst [vmem:[%s266 + $0x1678] sm:$0xff] %v1705
                %v1707 = vld [vmem:[%s265 + $0x2d00] sm:$0xff]
                %1708 = vst [vmem:[%s266 + $0x1680] sm:$0xff] %v1707
                %v1709 = vld [vmem:[%s265 + $0x2d08] sm:$0xff]
                %1710 = vst [vmem:[%s266 + $0x1688] sm:$0xff] %v1709
                %v1711 = vld [vmem:[%s265 + $0x2d10] sm:$0xff]
                %1712 = vst [vmem:[%s266 + $0x1690] sm:$0xff] %v1711
                %v1713 = vld [vmem:[%s265 + $0x2d18] sm:$0xff]
                %1714 = vst [vmem:[%s266 + $0x1698] sm:$0xff] %v1713
                %v1715 = vld [vmem:[%s265 + $0x2d40] sm:$0xff]
                %1716 = vst [vmem:[%s266 + $0x16a0] sm:$0xff] %v1715
                %v1717 = vld [vmem:[%s265 + $0x2d48] sm:$0xff]
                %1718 = vst [vmem:[%s266 + $0x16a8] sm:$0xff] %v1717
                %v1719 = vld [vmem:[%s265 + $0x2d50] sm:$0xff]
                %1720 = vst [vmem:[%s266 + $0x16b0] sm:$0xff] %v1719
                %v1721 = vld [vmem:[%s265 + $0x2d58] sm:$0xff]
                %1722 = vst [vmem:[%s266 + $0x16b8] sm:$0xff] %v1721
                %v1723 = vld [vmem:[%s265 + $0x2d80] sm:$0xff]
                %1724 = vst [vmem:[%s266 + $0x16c0] sm:$0xff] %v1723
                %v1725 = vld [vmem:[%s265 + $0x2d88] sm:$0xff]
                %1726 = vst [vmem:[%s266 + $0x16c8] sm:$0xff] %v1725
                %v1727 = vld [vmem:[%s265 + $0x2d90] sm:$0xff]
                %1728 = vst [vmem:[%s266 + $0x16d0] sm:$0xff] %v1727
                %v1729 = vld [vmem:[%s265 + $0x2d98] sm:$0xff]
                %1730 = vst [vmem:[%s266 + $0x16d8] sm:$0xff] %v1729
                %v1731 = vld [vmem:[%s265 + $0x2dc0] sm:$0xff]
                %1732 = vst [vmem:[%s266 + $0x16e0] sm:$0xff] %v1731
                %v1733 = vld [vmem:[%s265 + $0x2dc8] sm:$0xff]
                %1734 = vst [vmem:[%s266 + $0x16e8] sm:$0xff] %v1733
                %v1735 = vld [vmem:[%s265 + $0x2dd0] sm:$0xff]
                %1736 = vst [vmem:[%s266 + $0x16f0] sm:$0xff] %v1735
                %v1737 = vld [vmem:[%s265 + $0x2dd8] sm:$0xff]
                %1738 = vst [vmem:[%s266 + $0x16f8] sm:$0xff] %v1737
                %v1739 = vld [vmem:[%s265 + $0x2e00] sm:$0xff]
                %1740 = vst [vmem:[%s266 + $0x1700] sm:$0xff] %v1739
                %v1741 = vld [vmem:[%s265 + $0x2e08] sm:$0xff]
                %1742 = vst [vmem:[%s266 + $0x1708] sm:$0xff] %v1741
                %v1743 = vld [vmem:[%s265 + $0x2e10] sm:$0xff]
                %1744 = vst [vmem:[%s266 + $0x1710] sm:$0xff] %v1743
                %v1745 = vld [vmem:[%s265 + $0x2e18] sm:$0xff]
                %1746 = vst [vmem:[%s266 + $0x1718] sm:$0xff] %v1745
                %v1747 = vld [vmem:[%s265 + $0x2e40] sm:$0xff]
                %1748 = vst [vmem:[%s266 + $0x1720] sm:$0xff] %v1747
                %v1749 = vld [vmem:[%s265 + $0x2e48] sm:$0xff]
                %1750 = vst [vmem:[%s266 + $0x1728] sm:$0xff] %v1749
                %v1751 = vld [vmem:[%s265 + $0x2e50] sm:$0xff]
                %1752 = vst [vmem:[%s266 + $0x1730] sm:$0xff] %v1751
                %v1753 = vld [vmem:[%s265 + $0x2e58] sm:$0xff]
                %1754 = vst [vmem:[%s266 + $0x1738] sm:$0xff] %v1753
                %v1755 = vld [vmem:[%s265 + $0x2e80] sm:$0xff]
                %1756 = vst [vmem:[%s266 + $0x1740] sm:$0xff] %v1755
                %v1757 = vld [vmem:[%s265 + $0x2e88] sm:$0xff]
                %1758 = vst [vmem:[%s266 + $0x1748] sm:$0xff] %v1757
                %v1759 = vld [vmem:[%s265 + $0x2e90] sm:$0xff]
                %1760 = vst [vmem:[%s266 + $0x1750] sm:$0xff] %v1759
                %v1761 = vld [vmem:[%s265 + $0x2e98] sm:$0xff]
                %1762 = vst [vmem:[%s266 + $0x1758] sm:$0xff] %v1761
                %v1763 = vld [vmem:[%s265 + $0x2ec0] sm:$0xff]
                %1764 = vst [vmem:[%s266 + $0x1760] sm:$0xff] %v1763
                %v1765 = vld [vmem:[%s265 + $0x2ec8] sm:$0xff]
                %1766 = vst [vmem:[%s266 + $0x1768] sm:$0xff] %v1765
                %v1767 = vld [vmem:[%s265 + $0x2ed0] sm:$0xff]
                %1768 = vst [vmem:[%s266 + $0x1770] sm:$0xff] %v1767
                %v1769 = vld [vmem:[%s265 + $0x2ed8] sm:$0xff]
                %1770 = vst [vmem:[%s266 + $0x1778] sm:$0xff] %v1769
                %v1771 = vld [vmem:[%s265 + $0x2f00] sm:$0xff]
                %1772 = vst [vmem:[%s266 + $0x1780] sm:$0xff] %v1771
                %v1773 = vld [vmem:[%s265 + $0x2f08] sm:$0xff]
                %1774 = vst [vmem:[%s266 + $0x1788] sm:$0xff] %v1773
                %v1775 = vld [vmem:[%s265 + $0x2f10] sm:$0xff]
                %1776 = vst [vmem:[%s266 + $0x1790] sm:$0xff] %v1775
                %v1777 = vld [vmem:[%s265 + $0x2f18] sm:$0xff]
                %1778 = vst [vmem:[%s266 + $0x1798] sm:$0xff] %v1777
                %v1779 = vld [vmem:[%s265 + $0x2f40] sm:$0xff]
                %1780 = vst [vmem:[%s266 + $0x17a0] sm:$0xff] %v1779
                %v1781 = vld [vmem:[%s265 + $0x2f48] sm:$0xff]
                %1782 = vst [vmem:[%s266 + $0x17a8] sm:$0xff] %v1781
                %v1783 = vld [vmem:[%s265 + $0x2f50] sm:$0xff]
                %1784 = vst [vmem:[%s266 + $0x17b0] sm:$0xff] %v1783
                %v1785 = vld [vmem:[%s265 + $0x2f58] sm:$0xff]
                %1786 = vst [vmem:[%s266 + $0x17b8] sm:$0xff] %v1785
                %v1787 = vld [vmem:[%s265 + $0x2f80] sm:$0xff]
                %1788 = vst [vmem:[%s266 + $0x17c0] sm:$0xff] %v1787
                %v1789 = vld [vmem:[%s265 + $0x2f88] sm:$0xff]
                %1790 = vst [vmem:[%s266 + $0x17c8] sm:$0xff] %v1789
                %v1791 = vld [vmem:[%s265 + $0x2f90] sm:$0xff]
                %1792 = vst [vmem:[%s266 + $0x17d0] sm:$0xff] %v1791
                %v1793 = vld [vmem:[%s265 + $0x2f98] sm:$0xff]
                %1794 = vst [vmem:[%s266 + $0x17d8] sm:$0xff] %v1793
                %v1795 = vld [vmem:[%s265 + $0x2fc0] sm:$0xff]
                %1796 = vst [vmem:[%s266 + $0x17e0] sm:$0xff] %v1795
                %v1797 = vld [vmem:[%s265 + $0x2fc8] sm:$0xff]
                %1798 = vst [vmem:[%s266 + $0x17e8] sm:$0xff] %v1797
                %v1799 = vld [vmem:[%s265 + $0x2fd0] sm:$0xff]
                %1800 = vst [vmem:[%s266 + $0x17f0] sm:$0xff] %v1799
                %v1801 = vld [vmem:[%s265 + $0x2fd8] sm:$0xff]
                %1802 = vst [vmem:[%s266 + $0x17f8] sm:$0xff] %v1801
                %v1803 = vld [vmem:[%s265 + $0x3000] sm:$0xff]
                %1804 = vst [vmem:[%s266 + $0x1800] sm:$0xff] %v1803
                %v1805 = vld [vmem:[%s265 + $0x3008] sm:$0xff]
                %1806 = vst [vmem:[%s266 + $0x1808] sm:$0xff] %v1805
                %v1807 = vld [vmem:[%s265 + $0x3010] sm:$0xff]
                %1808 = vst [vmem:[%s266 + $0x1810] sm:$0xff] %v1807
                %v1809 = vld [vmem:[%s265 + $0x3018] sm:$0xff]
                %1810 = vst [vmem:[%s266 + $0x1818] sm:$0xff] %v1809
                %v1811 = vld [vmem:[%s265 + $0x3040] sm:$0xff]
                %1812 = vst [vmem:[%s266 + $0x1820] sm:$0xff] %v1811
                %v1813 = vld [vmem:[%s265 + $0x3048] sm:$0xff]
                %1814 = vst [vmem:[%s266 + $0x1828] sm:$0xff] %v1813
                %v1815 = vld [vmem:[%s265 + $0x3050] sm:$0xff]
                %1816 = vst [vmem:[%s266 + $0x1830] sm:$0xff] %v1815
                %v1817 = vld [vmem:[%s265 + $0x3058] sm:$0xff]
                %1818 = vst [vmem:[%s266 + $0x1838] sm:$0xff] %v1817
                %v1819 = vld [vmem:[%s265 + $0x3080] sm:$0xff]
                %1820 = vst [vmem:[%s266 + $0x1840] sm:$0xff] %v1819
                %v1821 = vld [vmem:[%s265 + $0x3088] sm:$0xff]
                %1822 = vst [vmem:[%s266 + $0x1848] sm:$0xff] %v1821
                %v1823 = vld [vmem:[%s265 + $0x3090] sm:$0xff]
                %1824 = vst [vmem:[%s266 + $0x1850] sm:$0xff] %v1823
                %v1825 = vld [vmem:[%s265 + $0x3098] sm:$0xff]
                %1826 = vst [vmem:[%s266 + $0x1858] sm:$0xff] %v1825
                %v1827 = vld [vmem:[%s265 + $0x30c0] sm:$0xff]
                %1828 = vst [vmem:[%s266 + $0x1860] sm:$0xff] %v1827
                %v1829 = vld [vmem:[%s265 + $0x30c8] sm:$0xff]
                %1830 = vst [vmem:[%s266 + $0x1868] sm:$0xff] %v1829
                %v1831 = vld [vmem:[%s265 + $0x30d0] sm:$0xff]
                %1832 = vst [vmem:[%s266 + $0x1870] sm:$0xff] %v1831
                %v1833 = vld [vmem:[%s265 + $0x30d8] sm:$0xff]
                %1834 = vst [vmem:[%s266 + $0x1878] sm:$0xff] %v1833
                %v1835 = vld [vmem:[%s265 + $0x3100] sm:$0xff]
                %1836 = vst [vmem:[%s266 + $0x1880] sm:$0xff] %v1835
                %v1837 = vld [vmem:[%s265 + $0x3108] sm:$0xff]
                %1838 = vst [vmem:[%s266 + $0x1888] sm:$0xff] %v1837
                %v1839 = vld [vmem:[%s265 + $0x3110] sm:$0xff]
                %1840 = vst [vmem:[%s266 + $0x1890] sm:$0xff] %v1839
                %v1841 = vld [vmem:[%s265 + $0x3118] sm:$0xff]
                %1842 = vst [vmem:[%s266 + $0x1898] sm:$0xff] %v1841
                %v1843 = vld [vmem:[%s265 + $0x3140] sm:$0xff]
                %1844 = vst [vmem:[%s266 + $0x18a0] sm:$0xff] %v1843
                %v1845 = vld [vmem:[%s265 + $0x3148] sm:$0xff]
                %1846 = vst [vmem:[%s266 + $0x18a8] sm:$0xff] %v1845
                %v1847 = vld [vmem:[%s265 + $0x3150] sm:$0xff]
                %1848 = vst [vmem:[%s266 + $0x18b0] sm:$0xff] %v1847
                %v1849 = vld [vmem:[%s265 + $0x3158] sm:$0xff]
                %1850 = vst [vmem:[%s266 + $0x18b8] sm:$0xff] %v1849
                %v1851 = vld [vmem:[%s265 + $0x3180] sm:$0xff]
                %1852 = vst [vmem:[%s266 + $0x18c0] sm:$0xff] %v1851
                %v1853 = vld [vmem:[%s265 + $0x3188] sm:$0xff]
                %1854 = vst [vmem:[%s266 + $0x18c8] sm:$0xff] %v1853
                %v1855 = vld [vmem:[%s265 + $0x3190] sm:$0xff]
                %1856 = vst [vmem:[%s266 + $0x18d0] sm:$0xff] %v1855
                %v1857 = vld [vmem:[%s265 + $0x3198] sm:$0xff]
                %1858 = vst [vmem:[%s266 + $0x18d8] sm:$0xff] %v1857
                %v1859 = vld [vmem:[%s265 + $0x31c0] sm:$0xff]
                %1860 = vst [vmem:[%s266 + $0x18e0] sm:$0xff] %v1859
                %v1861 = vld [vmem:[%s265 + $0x31c8] sm:$0xff]
                %1862 = vst [vmem:[%s266 + $0x18e8] sm:$0xff] %v1861
                %v1863 = vld [vmem:[%s265 + $0x31d0] sm:$0xff]
                %1864 = vst [vmem:[%s266 + $0x18f0] sm:$0xff] %v1863
                %v1865 = vld [vmem:[%s265 + $0x31d8] sm:$0xff]
                %1866 = vst [vmem:[%s266 + $0x18f8] sm:$0xff] %v1865
                %v1867 = vld [vmem:[%s265 + $0x3200] sm:$0xff]
                %1868 = vst [vmem:[%s266 + $0x1900] sm:$0xff] %v1867
                %v1869 = vld [vmem:[%s265 + $0x3208] sm:$0xff]
                %1870 = vst [vmem:[%s266 + $0x1908] sm:$0xff] %v1869
                %v1871 = vld [vmem:[%s265 + $0x3210] sm:$0xff]
                %1872 = vst [vmem:[%s266 + $0x1910] sm:$0xff] %v1871
                %v1873 = vld [vmem:[%s265 + $0x3218] sm:$0xff]
                %1874 = vst [vmem:[%s266 + $0x1918] sm:$0xff] %v1873
                %v1875 = vld [vmem:[%s265 + $0x3240] sm:$0xff]
                %1876 = vst [vmem:[%s266 + $0x1920] sm:$0xff] %v1875
                %v1877 = vld [vmem:[%s265 + $0x3248] sm:$0xff]
                %1878 = vst [vmem:[%s266 + $0x1928] sm:$0xff] %v1877
                %v1879 = vld [vmem:[%s265 + $0x3250] sm:$0xff]
                %1880 = vst [vmem:[%s266 + $0x1930] sm:$0xff] %v1879
                %v1881 = vld [vmem:[%s265 + $0x3258] sm:$0xff]
                %1882 = vst [vmem:[%s266 + $0x1938] sm:$0xff] %v1881
                %v1883 = vld [vmem:[%s265 + $0x3280] sm:$0xff]
                %1884 = vst [vmem:[%s266 + $0x1940] sm:$0xff] %v1883
                %v1885 = vld [vmem:[%s265 + $0x3288] sm:$0xff]
                %1886 = vst [vmem:[%s266 + $0x1948] sm:$0xff] %v1885
                %v1887 = vld [vmem:[%s265 + $0x3290] sm:$0xff]
                %1888 = vst [vmem:[%s266 + $0x1950] sm:$0xff] %v1887
                %v1889 = vld [vmem:[%s265 + $0x3298] sm:$0xff]
                %1890 = vst [vmem:[%s266 + $0x1958] sm:$0xff] %v1889
                %v1891 = vld [vmem:[%s265 + $0x32c0] sm:$0xff]
                %1892 = vst [vmem:[%s266 + $0x1960] sm:$0xff] %v1891
                %v1893 = vld [vmem:[%s265 + $0x32c8] sm:$0xff]
                %1894 = vst [vmem:[%s266 + $0x1968] sm:$0xff] %v1893
                %v1895 = vld [vmem:[%s265 + $0x32d0] sm:$0xff]
                %1896 = vst [vmem:[%s266 + $0x1970] sm:$0xff] %v1895
                %v1897 = vld [vmem:[%s265 + $0x32d8] sm:$0xff]
                %1898 = vst [vmem:[%s266 + $0x1978] sm:$0xff] %v1897
                %v1899 = vld [vmem:[%s265 + $0x3300] sm:$0xff]
                %1900 = vst [vmem:[%s266 + $0x1980] sm:$0xff] %v1899
                %v1901 = vld [vmem:[%s265 + $0x3308] sm:$0xff]
                %1902 = vst [vmem:[%s266 + $0x1988] sm:$0xff] %v1901
                %v1903 = vld [vmem:[%s265 + $0x3310] sm:$0xff]
                %1904 = vst [vmem:[%s266 + $0x1990] sm:$0xff] %v1903
                %v1905 = vld [vmem:[%s265 + $0x3318] sm:$0xff]
                %1906 = vst [vmem:[%s266 + $0x1998] sm:$0xff] %v1905
                %v1907 = vld [vmem:[%s265 + $0x3340] sm:$0xff]
                %1908 = vst [vmem:[%s266 + $0x19a0] sm:$0xff] %v1907
                %v1909 = vld [vmem:[%s265 + $0x3348] sm:$0xff]
                %1910 = vst [vmem:[%s266 + $0x19a8] sm:$0xff] %v1909
                %v1911 = vld [vmem:[%s265 + $0x3350] sm:$0xff]
                %1912 = vst [vmem:[%s266 + $0x19b0] sm:$0xff] %v1911
                %v1913 = vld [vmem:[%s265 + $0x3358] sm:$0xff]
                %1914 = vst [vmem:[%s266 + $0x19b8] sm:$0xff] %v1913
                %v1915 = vld [vmem:[%s265 + $0x3380] sm:$0xff]
                %1916 = vst [vmem:[%s266 + $0x19c0] sm:$0xff] %v1915
                %v1917 = vld [vmem:[%s265 + $0x3388] sm:$0xff]
                %1918 = vst [vmem:[%s266 + $0x19c8] sm:$0xff] %v1917
                %v1919 = vld [vmem:[%s265 + $0x3390] sm:$0xff]
                %1920 = vst [vmem:[%s266 + $0x19d0] sm:$0xff] %v1919
                %v1921 = vld [vmem:[%s265 + $0x3398] sm:$0xff]
                %1922 = vst [vmem:[%s266 + $0x19d8] sm:$0xff] %v1921
                %v1923 = vld [vmem:[%s265 + $0x33c0] sm:$0xff]
                %1924 = vst [vmem:[%s266 + $0x19e0] sm:$0xff] %v1923
                %v1925 = vld [vmem:[%s265 + $0x33c8] sm:$0xff]
                %1926 = vst [vmem:[%s266 + $0x19e8] sm:$0xff] %v1925
                %v1927 = vld [vmem:[%s265 + $0x33d0] sm:$0xff]
                %1928 = vst [vmem:[%s266 + $0x19f0] sm:$0xff] %v1927
                %v1929 = vld [vmem:[%s265 + $0x33d8] sm:$0xff]
                %1930 = vst [vmem:[%s266 + $0x19f8] sm:$0xff] %v1929
                %v1931 = vld [vmem:[%s265 + $0x3400] sm:$0xff]
                %1932 = vst [vmem:[%s266 + $0x1a00] sm:$0xff] %v1931
                %v1933 = vld [vmem:[%s265 + $0x3408] sm:$0xff]
                %1934 = vst [vmem:[%s266 + $0x1a08] sm:$0xff] %v1933
                %v1935 = vld [vmem:[%s265 + $0x3410] sm:$0xff]
                %1936 = vst [vmem:[%s266 + $0x1a10] sm:$0xff] %v1935
                %v1937 = vld [vmem:[%s265 + $0x3418] sm:$0xff]
                %1938 = vst [vmem:[%s266 + $0x1a18] sm:$0xff] %v1937
                %v1939 = vld [vmem:[%s265 + $0x3440] sm:$0xff]
                %1940 = vst [vmem:[%s266 + $0x1a20] sm:$0xff] %v1939
                %v1941 = vld [vmem:[%s265 + $0x3448] sm:$0xff]
                %1942 = vst [vmem:[%s266 + $0x1a28] sm:$0xff] %v1941
                %v1943 = vld [vmem:[%s265 + $0x3450] sm:$0xff]
                %1944 = vst [vmem:[%s266 + $0x1a30] sm:$0xff] %v1943
                %v1945 = vld [vmem:[%s265 + $0x3458] sm:$0xff]
                %1946 = vst [vmem:[%s266 + $0x1a38] sm:$0xff] %v1945
                %v1947 = vld [vmem:[%s265 + $0x3480] sm:$0xff]
                %1948 = vst [vmem:[%s266 + $0x1a40] sm:$0xff] %v1947
                %v1949 = vld [vmem:[%s265 + $0x3488] sm:$0xff]
                %1950 = vst [vmem:[%s266 + $0x1a48] sm:$0xff] %v1949
                %v1951 = vld [vmem:[%s265 + $0x3490] sm:$0xff]
                %1952 = vst [vmem:[%s266 + $0x1a50] sm:$0xff] %v1951
                %v1953 = vld [vmem:[%s265 + $0x3498] sm:$0xff]
                %1954 = vst [vmem:[%s266 + $0x1a58] sm:$0xff] %v1953
                %v1955 = vld [vmem:[%s265 + $0x34c0] sm:$0xff]
                %1956 = vst [vmem:[%s266 + $0x1a60] sm:$0xff] %v1955
                %v1957 = vld [vmem:[%s265 + $0x34c8] sm:$0xff]
                %1958 = vst [vmem:[%s266 + $0x1a68] sm:$0xff] %v1957
                %v1959 = vld [vmem:[%s265 + $0x34d0] sm:$0xff]
                %1960 = vst [vmem:[%s266 + $0x1a70] sm:$0xff] %v1959
                %v1961 = vld [vmem:[%s265 + $0x34d8] sm:$0xff]
                %1962 = vst [vmem:[%s266 + $0x1a78] sm:$0xff] %v1961
                %v1963 = vld [vmem:[%s265 + $0x3500] sm:$0xff]
                %1964 = vst [vmem:[%s266 + $0x1a80] sm:$0xff] %v1963
                %v1965 = vld [vmem:[%s265 + $0x3508] sm:$0xff]
                %1966 = vst [vmem:[%s266 + $0x1a88] sm:$0xff] %v1965
                %v1967 = vld [vmem:[%s265 + $0x3510] sm:$0xff]
                %1968 = vst [vmem:[%s266 + $0x1a90] sm:$0xff] %v1967
                %v1969 = vld [vmem:[%s265 + $0x3518] sm:$0xff]
                %1970 = vst [vmem:[%s266 + $0x1a98] sm:$0xff] %v1969
                %v1971 = vld [vmem:[%s265 + $0x3540] sm:$0xff]
                %1972 = vst [vmem:[%s266 + $0x1aa0] sm:$0xff] %v1971
                %v1973 = vld [vmem:[%s265 + $0x3548] sm:$0xff]
                %1974 = vst [vmem:[%s266 + $0x1aa8] sm:$0xff] %v1973
                %v1975 = vld [vmem:[%s265 + $0x3550] sm:$0xff]
                %1976 = vst [vmem:[%s266 + $0x1ab0] sm:$0xff] %v1975
                %v1977 = vld [vmem:[%s265 + $0x3558] sm:$0xff]
                %1978 = vst [vmem:[%s266 + $0x1ab8] sm:$0xff] %v1977
                %v1979 = vld [vmem:[%s265 + $0x3580] sm:$0xff]
                %1980 = vst [vmem:[%s266 + $0x1ac0] sm:$0xff] %v1979
                %v1981 = vld [vmem:[%s265 + $0x3588] sm:$0xff]
                %1982 = vst [vmem:[%s266 + $0x1ac8] sm:$0xff] %v1981
                %v1983 = vld [vmem:[%s265 + $0x3590] sm:$0xff]
                %1984 = vst [vmem:[%s266 + $0x1ad0] sm:$0xff] %v1983
                %v1985 = vld [vmem:[%s265 + $0x3598] sm:$0xff]
                %1986 = vst [vmem:[%s266 + $0x1ad8] sm:$0xff] %v1985
                %v1987 = vld [vmem:[%s265 + $0x35c0] sm:$0xff]
                %1988 = vst [vmem:[%s266 + $0x1ae0] sm:$0xff] %v1987
                %v1989 = vld [vmem:[%s265 + $0x35c8] sm:$0xff]
                %1990 = vst [vmem:[%s266 + $0x1ae8] sm:$0xff] %v1989
                %v1991 = vld [vmem:[%s265 + $0x35d0] sm:$0xff]
                %1992 = vst [vmem:[%s266 + $0x1af0] sm:$0xff] %v1991
                %v1993 = vld [vmem:[%s265 + $0x35d8] sm:$0xff]
                %1994 = vst [vmem:[%s266 + $0x1af8] sm:$0xff] %v1993
                %v1995 = vld [vmem:[%s265 + $0x3600] sm:$0xff]
                %1996 = vst [vmem:[%s266 + $0x1b00] sm:$0xff] %v1995
                %v1997 = vld [vmem:[%s265 + $0x3608] sm:$0xff]
                %1998 = vst [vmem:[%s266 + $0x1b08] sm:$0xff] %v1997
                %v1999 = vld [vmem:[%s265 + $0x3610] sm:$0xff]
                %2000 = vst [vmem:[%s266 + $0x1b10] sm:$0xff] %v1999
                %v2001 = vld [vmem:[%s265 + $0x3618] sm:$0xff]
                %2002 = vst [vmem:[%s266 + $0x1b18] sm:$0xff] %v2001
                %v2003 = vld [vmem:[%s265 + $0x3640] sm:$0xff]
                %2004 = vst [vmem:[%s266 + $0x1b20] sm:$0xff] %v2003
                %v2005 = vld [vmem:[%s265 + $0x3648] sm:$0xff]
                %2006 = vst [vmem:[%s266 + $0x1b28] sm:$0xff] %v2005
                %v2007 = vld [vmem:[%s265 + $0x3650] sm:$0xff]
                %2008 = vst [vmem:[%s266 + $0x1b30] sm:$0xff] %v2007
                %v2009 = vld [vmem:[%s265 + $0x3658] sm:$0xff]
                %2010 = vst [vmem:[%s266 + $0x1b38] sm:$0xff] %v2009
                %v2011 = vld [vmem:[%s265 + $0x3680] sm:$0xff]
                %2012 = vst [vmem:[%s266 + $0x1b40] sm:$0xff] %v2011
                %v2013 = vld [vmem:[%s265 + $0x3688] sm:$0xff]
                %2014 = vst [vmem:[%s266 + $0x1b48] sm:$0xff] %v2013
                %v2015 = vld [vmem:[%s265 + $0x3690] sm:$0xff]
                %2016 = vst [vmem:[%s266 + $0x1b50] sm:$0xff] %v2015
                %v2017 = vld [vmem:[%s265 + $0x3698] sm:$0xff]
                %2018 = vst [vmem:[%s266 + $0x1b58] sm:$0xff] %v2017
                %v2019 = vld [vmem:[%s265 + $0x36c0] sm:$0xff]
                %2020 = vst [vmem:[%s266 + $0x1b60] sm:$0xff] %v2019
                %v2021 = vld [vmem:[%s265 + $0x36c8] sm:$0xff]
                %2022 = vst [vmem:[%s266 + $0x1b68] sm:$0xff] %v2021
                %v2023 = vld [vmem:[%s265 + $0x36d0] sm:$0xff]
                %2024 = vst [vmem:[%s266 + $0x1b70] sm:$0xff] %v2023
                %v2025 = vld [vmem:[%s265 + $0x36d8] sm:$0xff]
                %2026 = vst [vmem:[%s266 + $0x1b78] sm:$0xff] %v2025
                %v2027 = vld [vmem:[%s265 + $0x3700] sm:$0xff]
                %2028 = vst [vmem:[%s266 + $0x1b80] sm:$0xff] %v2027
                %v2029 = vld [vmem:[%s265 + $0x3708] sm:$0xff]
                %2030 = vst [vmem:[%s266 + $0x1b88] sm:$0xff] %v2029
                %v2031 = vld [vmem:[%s265 + $0x3710] sm:$0xff]
                %2032 = vst [vmem:[%s266 + $0x1b90] sm:$0xff] %v2031
                %v2033 = vld [vmem:[%s265 + $0x3718] sm:$0xff]
                %2034 = vst [vmem:[%s266 + $0x1b98] sm:$0xff] %v2033
                %v2035 = vld [vmem:[%s265 + $0x3740] sm:$0xff]
                %2036 = vst [vmem:[%s266 + $0x1ba0] sm:$0xff] %v2035
                %v2037 = vld [vmem:[%s265 + $0x3748] sm:$0xff]
                %2038 = vst [vmem:[%s266 + $0x1ba8] sm:$0xff] %v2037
                %v2039 = vld [vmem:[%s265 + $0x3750] sm:$0xff]
                %2040 = vst [vmem:[%s266 + $0x1bb0] sm:$0xff] %v2039
                %v2041 = vld [vmem:[%s265 + $0x3758] sm:$0xff]
                %2042 = vst [vmem:[%s266 + $0x1bb8] sm:$0xff] %v2041
                %v2043 = vld [vmem:[%s265 + $0x3780] sm:$0xff]
                %2044 = vst [vmem:[%s266 + $0x1bc0] sm:$0xff] %v2043
                %v2045 = vld [vmem:[%s265 + $0x3788] sm:$0xff]
                %2046 = vst [vmem:[%s266 + $0x1bc8] sm:$0xff] %v2045
                %v2047 = vld [vmem:[%s265 + $0x3790] sm:$0xff]
                %2048 = vst [vmem:[%s266 + $0x1bd0] sm:$0xff] %v2047
                %v2049 = vld [vmem:[%s265 + $0x3798] sm:$0xff]
                %2050 = vst [vmem:[%s266 + $0x1bd8] sm:$0xff] %v2049
                %v2051 = vld [vmem:[%s265 + $0x37c0] sm:$0xff]
                %2052 = vst [vmem:[%s266 + $0x1be0] sm:$0xff] %v2051
                %v2053 = vld [vmem:[%s265 + $0x37c8] sm:$0xff]
                %2054 = vst [vmem:[%s266 + $0x1be8] sm:$0xff] %v2053
                %v2055 = vld [vmem:[%s265 + $0x37d0] sm:$0xff]
                %2056 = vst [vmem:[%s266 + $0x1bf0] sm:$0xff] %v2055
                %v2057 = vld [vmem:[%s265 + $0x37d8] sm:$0xff]
                %2058 = vst [vmem:[%s266 + $0x1bf8] sm:$0xff] %v2057
                %v2059 = vld [vmem:[%s265 + $0x3800] sm:$0xff]
                %2060 = vst [vmem:[%s266 + $0x1c00] sm:$0xff] %v2059
                %v2061 = vld [vmem:[%s265 + $0x3808] sm:$0xff]
                %2062 = vst [vmem:[%s266 + $0x1c08] sm:$0xff] %v2061
                %v2063 = vld [vmem:[%s265 + $0x3810] sm:$0xff]
                %2064 = vst [vmem:[%s266 + $0x1c10] sm:$0xff] %v2063
                %v2065 = vld [vmem:[%s265 + $0x3818] sm:$0xff]
                %2066 = vst [vmem:[%s266 + $0x1c18] sm:$0xff] %v2065
                %v2067 = vld [vmem:[%s265 + $0x3840] sm:$0xff]
                %2068 = vst [vmem:[%s266 + $0x1c20] sm:$0xff] %v2067
                %v2069 = vld [vmem:[%s265 + $0x3848] sm:$0xff]
                %2070 = vst [vmem:[%s266 + $0x1c28] sm:$0xff] %v2069
                %v2071 = vld [vmem:[%s265 + $0x3850] sm:$0xff]
                %2072 = vst [vmem:[%s266 + $0x1c30] sm:$0xff] %v2071
                %v2073 = vld [vmem:[%s265 + $0x3858] sm:$0xff]
                %2074 = vst [vmem:[%s266 + $0x1c38] sm:$0xff] %v2073
                %v2075 = vld [vmem:[%s265 + $0x3880] sm:$0xff]
                %2076 = vst [vmem:[%s266 + $0x1c40] sm:$0xff] %v2075
                %v2077 = vld [vmem:[%s265 + $0x3888] sm:$0xff]
                %2078 = vst [vmem:[%s266 + $0x1c48] sm:$0xff] %v2077
                %v2079 = vld [vmem:[%s265 + $0x3890] sm:$0xff]
                %2080 = vst [vmem:[%s266 + $0x1c50] sm:$0xff] %v2079
                %v2081 = vld [vmem:[%s265 + $0x3898] sm:$0xff]
                %2082 = vst [vmem:[%s266 + $0x1c58] sm:$0xff] %v2081
                %v2083 = vld [vmem:[%s265 + $0x38c0] sm:$0xff]
                %2084 = vst [vmem:[%s266 + $0x1c60] sm:$0xff] %v2083
                %v2085 = vld [vmem:[%s265 + $0x38c8] sm:$0xff]
                %2086 = vst [vmem:[%s266 + $0x1c68] sm:$0xff] %v2085
                %v2087 = vld [vmem:[%s265 + $0x38d0] sm:$0xff]
                %2088 = vst [vmem:[%s266 + $0x1c70] sm:$0xff] %v2087
                %v2089 = vld [vmem:[%s265 + $0x38d8] sm:$0xff]
                %2090 = vst [vmem:[%s266 + $0x1c78] sm:$0xff] %v2089
                %v2091 = vld [vmem:[%s265 + $0x3900] sm:$0xff]
                %2092 = vst [vmem:[%s266 + $0x1c80] sm:$0xff] %v2091
                %v2093 = vld [vmem:[%s265 + $0x3908] sm:$0xff]
                %2094 = vst [vmem:[%s266 + $0x1c88] sm:$0xff] %v2093
                %v2095 = vld [vmem:[%s265 + $0x3910] sm:$0xff]
                %2096 = vst [vmem:[%s266 + $0x1c90] sm:$0xff] %v2095
                %v2097 = vld [vmem:[%s265 + $0x3918] sm:$0xff]
                %2098 = vst [vmem:[%s266 + $0x1c98] sm:$0xff] %v2097
                %v2099 = vld [vmem:[%s265 + $0x3940] sm:$0xff]
                %2100 = vst [vmem:[%s266 + $0x1ca0] sm:$0xff] %v2099
                %v2101 = vld [vmem:[%s265 + $0x3948] sm:$0xff]
                %2102 = vst [vmem:[%s266 + $0x1ca8] sm:$0xff] %v2101
                %v2103 = vld [vmem:[%s265 + $0x3950] sm:$0xff]
                %2104 = vst [vmem:[%s266 + $0x1cb0] sm:$0xff] %v2103
                %v2105 = vld [vmem:[%s265 + $0x3958] sm:$0xff]
                %2106 = vst [vmem:[%s266 + $0x1cb8] sm:$0xff] %v2105
                %v2107 = vld [vmem:[%s265 + $0x3980] sm:$0xff]
                %2108 = vst [vmem:[%s266 + $0x1cc0] sm:$0xff] %v2107
                %v2109 = vld [vmem:[%s265 + $0x3988] sm:$0xff]
                %2110 = vst [vmem:[%s266 + $0x1cc8] sm:$0xff] %v2109
                %v2111 = vld [vmem:[%s265 + $0x3990] sm:$0xff]
                %2112 = vst [vmem:[%s266 + $0x1cd0] sm:$0xff] %v2111
                %v2113 = vld [vmem:[%s265 + $0x3998] sm:$0xff]
                %2114 = vst [vmem:[%s266 + $0x1cd8] sm:$0xff] %v2113
                %v2115 = vld [vmem:[%s265 + $0x39c0] sm:$0xff]
                %2116 = vst [vmem:[%s266 + $0x1ce0] sm:$0xff] %v2115
                %v2117 = vld [vmem:[%s265 + $0x39c8] sm:$0xff]
                %2118 = vst [vmem:[%s266 + $0x1ce8] sm:$0xff] %v2117
                %v2119 = vld [vmem:[%s265 + $0x39d0] sm:$0xff]
                %2120 = vst [vmem:[%s266 + $0x1cf0] sm:$0xff] %v2119
                %v2121 = vld [vmem:[%s265 + $0x39d8] sm:$0xff]
                %2122 = vst [vmem:[%s266 + $0x1cf8] sm:$0xff] %v2121
                %v2123 = vld [vmem:[%s265 + $0x3a00] sm:$0xff]
                %2124 = vst [vmem:[%s266 + $0x1d00] sm:$0xff] %v2123
                %v2125 = vld [vmem:[%s265 + $0x3a08] sm:$0xff]
                %2126 = vst [vmem:[%s266 + $0x1d08] sm:$0xff] %v2125
                %v2127 = vld [vmem:[%s265 + $0x3a10] sm:$0xff]
                %2128 = vst [vmem:[%s266 + $0x1d10] sm:$0xff] %v2127
                %v2129 = vld [vmem:[%s265 + $0x3a18] sm:$0xff]
                %2130 = vst [vmem:[%s266 + $0x1d18] sm:$0xff] %v2129
                %v2131 = vld [vmem:[%s265 + $0x3a40] sm:$0xff]
                %2132 = vst [vmem:[%s266 + $0x1d20] sm:$0xff] %v2131
                %v2133 = vld [vmem:[%s265 + $0x3a48] sm:$0xff]
                %2134 = vst [vmem:[%s266 + $0x1d28] sm:$0xff] %v2133
                %v2135 = vld [vmem:[%s265 + $0x3a50] sm:$0xff]
                %2136 = vst [vmem:[%s266 + $0x1d30] sm:$0xff] %v2135
                %v2137 = vld [vmem:[%s265 + $0x3a58] sm:$0xff]
                %2138 = vst [vmem:[%s266 + $0x1d38] sm:$0xff] %v2137
                %v2139 = vld [vmem:[%s265 + $0x3a80] sm:$0xff]
                %2140 = vst [vmem:[%s266 + $0x1d40] sm:$0xff] %v2139
                %v2141 = vld [vmem:[%s265 + $0x3a88] sm:$0xff]
                %2142 = vst [vmem:[%s266 + $0x1d48] sm:$0xff] %v2141
                %v2143 = vld [vmem:[%s265 + $0x3a90] sm:$0xff]
                %2144 = vst [vmem:[%s266 + $0x1d50] sm:$0xff] %v2143
                %v2145 = vld [vmem:[%s265 + $0x3a98] sm:$0xff]
                %2146 = vst [vmem:[%s266 + $0x1d58] sm:$0xff] %v2145
                %v2147 = vld [vmem:[%s265 + $0x3ac0] sm:$0xff]
                %2148 = vst [vmem:[%s266 + $0x1d60] sm:$0xff] %v2147
                %v2149 = vld [vmem:[%s265 + $0x3ac8] sm:$0xff]
                %2150 = vst [vmem:[%s266 + $0x1d68] sm:$0xff] %v2149
                %v2151 = vld [vmem:[%s265 + $0x3ad0] sm:$0xff]
                %2152 = vst [vmem:[%s266 + $0x1d70] sm:$0xff] %v2151
                %v2153 = vld [vmem:[%s265 + $0x3ad8] sm:$0xff]
                %2154 = vst [vmem:[%s266 + $0x1d78] sm:$0xff] %v2153
                %v2155 = vld [vmem:[%s265 + $0x3b00] sm:$0xff]
                %2156 = vst [vmem:[%s266 + $0x1d80] sm:$0xff] %v2155
                %v2157 = vld [vmem:[%s265 + $0x3b08] sm:$0xff]
                %2158 = vst [vmem:[%s266 + $0x1d88] sm:$0xff] %v2157
                %v2159 = vld [vmem:[%s265 + $0x3b10] sm:$0xff]
                %2160 = vst [vmem:[%s266 + $0x1d90] sm:$0xff] %v2159
                %v2161 = vld [vmem:[%s265 + $0x3b18] sm:$0xff]
                %2162 = vst [vmem:[%s266 + $0x1d98] sm:$0xff] %v2161
                %v2163 = vld [vmem:[%s265 + $0x3b40] sm:$0xff]
                %2164 = vst [vmem:[%s266 + $0x1da0] sm:$0xff] %v2163
                %v2165 = vld [vmem:[%s265 + $0x3b48] sm:$0xff]
                %2166 = vst [vmem:[%s266 + $0x1da8] sm:$0xff] %v2165
                %v2167 = vld [vmem:[%s265 + $0x3b50] sm:$0xff]
                %2168 = vst [vmem:[%s266 + $0x1db0] sm:$0xff] %v2167
                %v2169 = vld [vmem:[%s265 + $0x3b58] sm:$0xff]
                %2170 = vst [vmem:[%s266 + $0x1db8] sm:$0xff] %v2169
                %v2171 = vld [vmem:[%s265 + $0x3b80] sm:$0xff]
                %2172 = vst [vmem:[%s266 + $0x1dc0] sm:$0xff] %v2171
                %v2173 = vld [vmem:[%s265 + $0x3b88] sm:$0xff]
                %2174 = vst [vmem:[%s266 + $0x1dc8] sm:$0xff] %v2173
                %v2175 = vld [vmem:[%s265 + $0x3b90] sm:$0xff]
                %2176 = vst [vmem:[%s266 + $0x1dd0] sm:$0xff] %v2175
                %v2177 = vld [vmem:[%s265 + $0x3b98] sm:$0xff]
                %2178 = vst [vmem:[%s266 + $0x1dd8] sm:$0xff] %v2177
                %v2179 = vld [vmem:[%s265 + $0x3bc0] sm:$0xff]
                %2180 = vst [vmem:[%s266 + $0x1de0] sm:$0xff] %v2179
                %v2181 = vld [vmem:[%s265 + $0x3bc8] sm:$0xff]
                %2182 = vst [vmem:[%s266 + $0x1de8] sm:$0xff] %v2181
                %v2183 = vld [vmem:[%s265 + $0x3bd0] sm:$0xff]
                %2184 = vst [vmem:[%s266 + $0x1df0] sm:$0xff] %v2183
                %v2185 = vld [vmem:[%s265 + $0x3bd8] sm:$0xff]
                %2186 = vst [vmem:[%s266 + $0x1df8] sm:$0xff] %v2185
                %v2187 = vld [vmem:[%s265 + $0x3c00] sm:$0xff]
                %2188 = vst [vmem:[%s266 + $0x1e00] sm:$0xff] %v2187
                %v2189 = vld [vmem:[%s265 + $0x3c08] sm:$0xff]
                %2190 = vst [vmem:[%s266 + $0x1e08] sm:$0xff] %v2189
                %v2191 = vld [vmem:[%s265 + $0x3c10] sm:$0xff]
                %2192 = vst [vmem:[%s266 + $0x1e10] sm:$0xff] %v2191
                %v2193 = vld [vmem:[%s265 + $0x3c18] sm:$0xff]
                %2194 = vst [vmem:[%s266 + $0x1e18] sm:$0xff] %v2193
                %v2195 = vld [vmem:[%s265 + $0x3c40] sm:$0xff]
                %2196 = vst [vmem:[%s266 + $0x1e20] sm:$0xff] %v2195
                %v2197 = vld [vmem:[%s265 + $0x3c48] sm:$0xff]
                %2198 = vst [vmem:[%s266 + $0x1e28] sm:$0xff] %v2197
                %v2199 = vld [vmem:[%s265 + $0x3c50] sm:$0xff]
                %2200 = vst [vmem:[%s266 + $0x1e30] sm:$0xff] %v2199
                %v2201 = vld [vmem:[%s265 + $0x3c58] sm:$0xff]
                %2202 = vst [vmem:[%s266 + $0x1e38] sm:$0xff] %v2201
                %v2203 = vld [vmem:[%s265 + $0x3c80] sm:$0xff]
                %2204 = vst [vmem:[%s266 + $0x1e40] sm:$0xff] %v2203
                %v2205 = vld [vmem:[%s265 + $0x3c88] sm:$0xff]
                %2206 = vst [vmem:[%s266 + $0x1e48] sm:$0xff] %v2205
                %v2207 = vld [vmem:[%s265 + $0x3c90] sm:$0xff]
                %2208 = vst [vmem:[%s266 + $0x1e50] sm:$0xff] %v2207
                %v2209 = vld [vmem:[%s265 + $0x3c98] sm:$0xff]
                %2210 = vst [vmem:[%s266 + $0x1e58] sm:$0xff] %v2209
                %v2211 = vld [vmem:[%s265 + $0x3cc0] sm:$0xff]
                %2212 = vst [vmem:[%s266 + $0x1e60] sm:$0xff] %v2211
                %v2213 = vld [vmem:[%s265 + $0x3cc8] sm:$0xff]
                %2214 = vst [vmem:[%s266 + $0x1e68] sm:$0xff] %v2213
                %v2215 = vld [vmem:[%s265 + $0x3cd0] sm:$0xff]
                %2216 = vst [vmem:[%s266 + $0x1e70] sm:$0xff] %v2215
                %v2217 = vld [vmem:[%s265 + $0x3cd8] sm:$0xff]
                %2218 = vst [vmem:[%s266 + $0x1e78] sm:$0xff] %v2217
                %v2219 = vld [vmem:[%s265 + $0x3d00] sm:$0xff]
                %2220 = vst [vmem:[%s266 + $0x1e80] sm:$0xff] %v2219
                %v2221 = vld [vmem:[%s265 + $0x3d08] sm:$0xff]
                %2222 = vst [vmem:[%s266 + $0x1e88] sm:$0xff] %v2221
                %v2223 = vld [vmem:[%s265 + $0x3d10] sm:$0xff]
                %2224 = vst [vmem:[%s266 + $0x1e90] sm:$0xff] %v2223
                %v2225 = vld [vmem:[%s265 + $0x3d18] sm:$0xff]
                %2226 = vst [vmem:[%s266 + $0x1e98] sm:$0xff] %v2225
                %v2227 = vld [vmem:[%s265 + $0x3d40] sm:$0xff]
                %2228 = vst [vmem:[%s266 + $0x1ea0] sm:$0xff] %v2227
                %v2229 = vld [vmem:[%s265 + $0x3d48] sm:$0xff]
                %2230 = vst [vmem:[%s266 + $0x1ea8] sm:$0xff] %v2229
                %v2231 = vld [vmem:[%s265 + $0x3d50] sm:$0xff]
                %2232 = vst [vmem:[%s266 + $0x1eb0] sm:$0xff] %v2231
                %v2233 = vld [vmem:[%s265 + $0x3d58] sm:$0xff]
                %2234 = vst [vmem:[%s266 + $0x1eb8] sm:$0xff] %v2233
                %v2235 = vld [vmem:[%s265 + $0x3d80] sm:$0xff]
                %2236 = vst [vmem:[%s266 + $0x1ec0] sm:$0xff] %v2235
                %v2237 = vld [vmem:[%s265 + $0x3d88] sm:$0xff]
                %2238 = vst [vmem:[%s266 + $0x1ec8] sm:$0xff] %v2237
                %v2239 = vld [vmem:[%s265 + $0x3d90] sm:$0xff]
                %2240 = vst [vmem:[%s266 + $0x1ed0] sm:$0xff] %v2239
                %v2241 = vld [vmem:[%s265 + $0x3d98] sm:$0xff]
                %2242 = vst [vmem:[%s266 + $0x1ed8] sm:$0xff] %v2241
                %v2243 = vld [vmem:[%s265 + $0x3dc0] sm:$0xff]
                %2244 = vst [vmem:[%s266 + $0x1ee0] sm:$0xff] %v2243
                %v2245 = vld [vmem:[%s265 + $0x3dc8] sm:$0xff]
                %2246 = vst [vmem:[%s266 + $0x1ee8] sm:$0xff] %v2245
                %v2247 = vld [vmem:[%s265 + $0x3dd0] sm:$0xff]
                %2248 = vst [vmem:[%s266 + $0x1ef0] sm:$0xff] %v2247
                %v2249 = vld [vmem:[%s265 + $0x3dd8] sm:$0xff]
                %2250 = vst [vmem:[%s266 + $0x1ef8] sm:$0xff] %v2249
                %v2251 = vld [vmem:[%s265 + $0x3e00] sm:$0xff]
                %2252 = vst [vmem:[%s266 + $0x1f00] sm:$0xff] %v2251
                %v2253 = vld [vmem:[%s265 + $0x3e08] sm:$0xff]
                %2254 = vst [vmem:[%s266 + $0x1f08] sm:$0xff] %v2253
                %v2255 = vld [vmem:[%s265 + $0x3e10] sm:$0xff]
                %2256 = vst [vmem:[%s266 + $0x1f10] sm:$0xff] %v2255
                %v2257 = vld [vmem:[%s265 + $0x3e18] sm:$0xff]
                %2258 = vst [vmem:[%s266 + $0x1f18] sm:$0xff] %v2257
                %v2259 = vld [vmem:[%s265 + $0x3e40] sm:$0xff]
                %2260 = vst [vmem:[%s266 + $0x1f20] sm:$0xff] %v2259
                %v2261 = vld [vmem:[%s265 + $0x3e48] sm:$0xff]
                %2262 = vst [vmem:[%s266 + $0x1f28] sm:$0xff] %v2261
                %v2263 = vld [vmem:[%s265 + $0x3e50] sm:$0xff]
                %2264 = vst [vmem:[%s266 + $0x1f30] sm:$0xff] %v2263
                %v2265 = vld [vmem:[%s265 + $0x3e58] sm:$0xff]
                %2266 = vst [vmem:[%s266 + $0x1f38] sm:$0xff] %v2265
                %v2267 = vld [vmem:[%s265 + $0x3e80] sm:$0xff]
                %2268 = vst [vmem:[%s266 + $0x1f40] sm:$0xff] %v2267
                %v2269 = vld [vmem:[%s265 + $0x3e88] sm:$0xff]
                %2270 = vst [vmem:[%s266 + $0x1f48] sm:$0xff] %v2269
                %v2271 = vld [vmem:[%s265 + $0x3e90] sm:$0xff]
                %2272 = vst [vmem:[%s266 + $0x1f50] sm:$0xff] %v2271
                %v2273 = vld [vmem:[%s265 + $0x3e98] sm:$0xff]
                %2274 = vst [vmem:[%s266 + $0x1f58] sm:$0xff] %v2273
                %v2275 = vld [vmem:[%s265 + $0x3ec0] sm:$0xff]
                %2276 = vst [vmem:[%s266 + $0x1f60] sm:$0xff] %v2275
                %v2277 = vld [vmem:[%s265 + $0x3ec8] sm:$0xff]
                %2278 = vst [vmem:[%s266 + $0x1f68] sm:$0xff] %v2277
                %v2279 = vld [vmem:[%s265 + $0x3ed0] sm:$0xff]
                %2280 = vst [vmem:[%s266 + $0x1f70] sm:$0xff] %v2279
                %v2281 = vld [vmem:[%s265 + $0x3ed8] sm:$0xff]
                %2282 = vst [vmem:[%s266 + $0x1f78] sm:$0xff] %v2281
                %v2283 = vld [vmem:[%s265 + $0x3f00] sm:$0xff]
                %2284 = vst [vmem:[%s266 + $0x1f80] sm:$0xff] %v2283
                %v2285 = vld [vmem:[%s265 + $0x3f08] sm:$0xff]
                %2286 = vst [vmem:[%s266 + $0x1f88] sm:$0xff] %v2285
                %v2287 = vld [vmem:[%s265 + $0x3f10] sm:$0xff]
                %2288 = vst [vmem:[%s266 + $0x1f90] sm:$0xff] %v2287
                %v2289 = vld [vmem:[%s265 + $0x3f18] sm:$0xff]
                %2290 = vst [vmem:[%s266 + $0x1f98] sm:$0xff] %v2289
                %v2291 = vld [vmem:[%s265 + $0x3f40] sm:$0xff]
                %2292 = vst [vmem:[%s266 + $0x1fa0] sm:$0xff] %v2291
                %v2293 = vld [vmem:[%s265 + $0x3f48] sm:$0xff]
                %2294 = vst [vmem:[%s266 + $0x1fa8] sm:$0xff] %v2293
                %v2295 = vld [vmem:[%s265 + $0x3f50] sm:$0xff]
                %2296 = vst [vmem:[%s266 + $0x1fb0] sm:$0xff] %v2295
                %v2297 = vld [vmem:[%s265 + $0x3f58] sm:$0xff]
                %2298 = vst [vmem:[%s266 + $0x1fb8] sm:$0xff] %v2297
                %v2299 = vld [vmem:[%s265 + $0x3f80] sm:$0xff]
                %2300 = vst [vmem:[%s266 + $0x1fc0] sm:$0xff] %v2299
                %v2301 = vld [vmem:[%s265 + $0x3f88] sm:$0xff]
                %2302 = vst [vmem:[%s266 + $0x1fc8] sm:$0xff] %v2301
                %v2303 = vld [vmem:[%s265 + $0x3f90] sm:$0xff]
                %2304 = vst [vmem:[%s266 + $0x1fd0] sm:$0xff] %v2303
                %v2305 = vld [vmem:[%s265 + $0x3f98] sm:$0xff]
                %2306 = vst [vmem:[%s266 + $0x1fd8] sm:$0xff] %v2305
                %v2307 = vld [vmem:[%s265 + $0x3fc0] sm:$0xff]
                %2308 = vst [vmem:[%s266 + $0x1fe0] sm:$0xff] %v2307
                %v2309 = vld [vmem:[%s265 + $0x3fc8] sm:$0xff]
                %2310 = vst [vmem:[%s266 + $0x1fe8] sm:$0xff] %v2309
                %v2311 = vld [vmem:[%s265 + $0x3fd0] sm:$0xff]
                %2312 = vst [vmem:[%s266 + $0x1ff0] sm:$0xff] %v2311
                %v2313 = vld [vmem:[%s265 + $0x3fd8] sm:$0xff]
                %2314 = vst [vmem:[%s266 + $0x1ff8] sm:$0xff] %v2313
              $region45: #{diagnosis_forward.1} parent=39 // loop_footer
                %s264 = sadd.s32 1, %s260
              $region46: #{diagnosis_forward.1} parent=39 // loop_footer_branch
                %259 = sbr.rel target = $region42
              $region47: #{diagnosis_forward.1} parent=39 // loop_exit
                _
            $region40: #{diagnosis_forward.1} parent=35 // pred_fallthru
              _
            // Predicated region
            $region48: #{diagnosis_forward.1} parent=35 // pred_check
              _
            $region49: #{diagnosis_forward.1} parent=35 // pred_check_branch
              %2316 = sbr.rel target = $region51
            $region50: #{diagnosis_forward.1} parent=35 // pred_region
              _
            $region51: #{diagnosis_forward.1} parent=35 // pred_fallthru
              _
          $region36: #{diagnosis_forward.1} parent=31 // pred_fallthru
            _
          %2317 = vnop
        $region32: #{diagnosis_forward.1} parent=27 // pred_fallthru
          _
        // Predicated region
        $region52: #{diagnosis_forward.1} parent=27 // pred_check
          %p2318 = pneg %p145
        $region53: #{diagnosis_forward.1} parent=27 // pred_check_branch
          %2320 = sbr.rel (%p2318) target = $region55
        $region54: #{diagnosis_forward.1} parent=27 // pred_region
          %s2321 = smul.u32 8, %s19
          %p2322 = scmp.lt.s32.totalorder %s2321, 15
          %s2323 = scalar_select %p2322, %s2321, 15
          %s2324 = scalar_lea.vmem %s4, %s2323
          %s2325 = smul.u32 8, %s19
        $region55: #{diagnosis_forward.1} parent=27 // pred_fallthru
          _
        // Predicated region
        $region56: #{diagnosis_forward.1} parent=27 // pred_check
          %p2326 = pneg %p171
        $region57: #{diagnosis_forward.1} parent=27 // pred_check_branch
          %2328 = sbr.rel (%p2326) target = $region59
        $region58: #{diagnosis_forward.1} parent=27 // pred_region
          %s2329 = smul.u32 128, %s19
          %p2330 = scmp.lt.s32.totalorder %s2329, 255
          %s2331 = scalar_select %p2330, %s2329, 255
          %s2332 = smul.addr %s2331, 4
          %s2333 = scalar_lea.vmem %s5, %s2332
          %s2334 = smul.u32 128, %s19
        $region59: #{diagnosis_forward.1} parent=27 // pred_fallthru
          _
      $region28: #{diagnosis_forward.1} parent=5 // pred_fallthru
        _
      %p2335 = scmp.le.s32.totalorder 1, %s12
      %p2336 = scmp.lt.s32.totalorder %s12, 3
      %p2337 = pnand %p2335, %p2336
      %p2338 = pneg %p2337
      // Predicated region
      $region60: #{diagnosis_forward.1} parent=5 // pred_check
        _
      $region61: #{diagnosis_forward.1} parent=5 // pred_check_branch
        %2340 = sbr.rel (%p2337) target = $region63
      $region62: #{diagnosis_forward.1} parent=5 // pred_region
        %s2341 = ssub.s32 %s12, 1
        %s2342 = sand.u32 %s112, 1
        %s2343 = sand.u32 %s112, 1
        %s2344 = smul.addr %s2343, 8192
        %s2345 = scalar_lea.vmem [#allocation3], %s2344
        // Predicated region
        $region64: #{diagnosis_forward.1} parent=62 // pred_check
          %p2346 = pneg %p125
        $region65: #{diagnosis_forward.1} parent=62 // pred_check_branch
          %2348 = sbr.rel (%p2346) target = $region67
        $region66: #{diagnosis_forward.1} parent=62 // pred_region
          _
        $region67: #{diagnosis_forward.1} parent=62 // pred_fallthru
          _
        %p2349 = pneg %p45
        %p2350 = pneg %p42
        %s2351 = smul.u32 16, %s22
        %p2352 = scmp.lt.s32.totalorder %s2351, 15
        %s2353 = scalar_select %p2352, %s2351, 15
        %s2354 = smul.addr %s2353, 4
        %s2355 = scalar_lea.vmem %s1, %s2354
        %p2356 = pneg %p71
        %p2357 = pneg %p68
        %s2358 = smul.u32 16, %s22
        %p2359 = scmp.lt.s32.totalorder %s2358, 15
        %s2360 = scalar_select %p2359, %s2358, 15
        %s2361 = scalar_lea.vmem %s2, %s2360
        %p2362 = pneg %p97
        %p2363 = pneg %p94
        %s2364 = sand.u32 %s112, 1
        %s2365 = sand.u32 %s112, 1
        %s2366 = smul.addr %s2365, 8192
        %s2367 = scalar_lea.vmem [#allocation3], %s2366
        %p2368 = pneg %p125
        %p2369 = pneg %p122
        %s2370 = smul.u32 8, %s21
        %p2371 = scmp.lt.s32.totalorder %s2370, 15
        %s2372 = scalar_select %p2371, %s2370, 15
        %s2373 = scalar_lea.vmem %s4, %s2372
        %p2374 = pneg %p151
        %p2375 = pneg %p148
        %s2376 = smul.u32 128, %s21
        %p2377 = scmp.lt.s32.totalorder %s2376, 255
        %s2378 = scalar_select %p2377, %s2376, 255
        %s2379 = smul.addr %s2378, 4
        %s2380 = scalar_lea.vmem %s5, %s2379
        %p2381 = pneg %p177
        %p2382 = pneg %p174
        %p2383 = pneg %p203
        %p2384 = pneg %p200
        %p2385 = scmp.lt.s32.totalorder %s21, 1
        %s2386 = scalar_select %p2385, %s21, 1
        %s2387 = smul.addr %s2386, 8
        %s2388 = scalar_lea.vmem %s6, %s2387
        %s2389 = smul.u32 16, %s22
        %p2390 = scmp.lt.s32.totalorder %s2389, 15
        %s2391 = scalar_select %p2390, %s2389, 15
        %s2392 = smul.addr %s2391, 4
        %s2393 = scalar_lea.vmem %s1, %s2392
        %s2394 = smul.u32 16, %s22
        %s2395 = smul.u32 16, %s22
        %p2396 = scmp.lt.s32.totalorder %s2395, 15
        %s2397 = scalar_select %p2396, %s2395, 15
        %s2398 = scalar_lea.vmem %s2, %s2397
        %s2399 = smul.u32 16, %s22
        %s2400 = smul.u32 256, %s22
        %s2401 = smul.u32 8, %s21
        %s2402 = smul.u32 8, %s21
        %p2403 = scmp.lt.s32.totalorder %s2402, 15
        %s2404 = scalar_select %p2403, %s2402, 15
        %s2405 = scalar_lea.vmem %s4, %s2404
        %s2406 = smul.u32 8, %s21
        %s2407 = smul.u32 128, %s21
        %p2408 = scmp.lt.s32.totalorder %s2407, 255
        %s2409 = scalar_select %p2408, %s2407, 255
        %s2410 = smul.addr %s2409, 4
        %s2411 = scalar_lea.vmem %s5, %s2410
        %s2412 = smul.u32 128, %s21
        %p2413 = scmp.lt.s32.totalorder %s21, 1
        %s2414 = scalar_select %p2413, %s21, 1
        %s2415 = smul.addr %s2414, 8
        %s2416 = scalar_lea.vmem %s6, %s2415
        %p2418 = scmp.eq.s32.totalorder %s22, 0
        // Predicated region
        $region68: #{diagnosis_forward.1} parent=62 // pred_check
          %p2419 = pneg %p2418
        $region69: #{diagnosis_forward.1} parent=62 // pred_check_branch
          %2421 = sbr.rel (%p2419) target = $region71
        $region70: #{diagnosis_forward.1} parent=62 // pred_region
          %2422 = vst [vmem:[#allocation2] sm:$0xff] 0.0
          %2423 = vst [vmem:[#allocation2 + $0x8] sm:$0xff] 0.0
          %2424 = vst [vmem:[#allocation2 + $0x10] sm:$0xff] 0.0
          %2425 = vst [vmem:[#allocation2 + $0x18] sm:$0xff] 0.0
          %2426 = vst [vmem:[#allocation2 + $0x20] sm:$0xff] 0.0
          %2427 = vst [vmem:[#allocation2 + $0x28] sm:$0xff] 0.0
          %2428 = vst [vmem:[#allocation2 + $0x30] sm:$0xff] 0.0
          %2429 = vst [vmem:[#allocation2 + $0x38] sm:$0xff] 0.0
        $region71: #{diagnosis_forward.1} parent=62 // pred_fallthru
          _
        %v2430 = vld [vmem:[%s0] sm:$0xf]
        %v2431 = vld [vmem:[%s2393] sm:$0xff]
        %v2432 = vld [vmem:[%s2393 + $0x8] sm:$0xff]
        %v2433 = vld [vmem:[%s2393 + $0x10] sm:$0xff]
        %v2434 = vld [vmem:[%s2393 + $0x18] sm:$0xff]
        %v2435 = vld [vmem:[%s2393 + $0x20] sm:$0xff]
        %v2436 = vld [vmem:[%s2393 + $0x28] sm:$0xff]
        %v2437 = vld [vmem:[%s2393 + $0x30] sm:$0xff]
        %v2438 = vld [vmem:[%s2393 + $0x38] sm:$0xff]
        %v2439 = vld [vmem:[%s2393 + $0x40] sm:$0xff]
        %v2440 = vld [vmem:[%s2393 + $0x48] sm:$0xff]
        %v2441 = vld [vmem:[%s2393 + $0x50] sm:$0xff]
        %v2442 = vld [vmem:[%s2393 + $0x58] sm:$0xff]
        %v2443 = vld [vmem:[%s2393 + $0x60] sm:$0xff]
        %v2444 = vld [vmem:[%s2393 + $0x68] sm:$0xff]
        %v2445 = vld [vmem:[%s2393 + $0x70] sm:$0xff]
        %v2446 = vld [vmem:[%s2393 + $0x78] sm:$0xff]
        %v2447 = vld [vmem:[%s2393 + $0x80] sm:$0xff]
        %v2448 = vld [vmem:[%s2393 + $0x88] sm:$0xff]
        %v2449 = vld [vmem:[%s2393 + $0x90] sm:$0xff]
        %v2450 = vld [vmem:[%s2393 + $0x98] sm:$0xff]
        %v2451 = vld [vmem:[%s2393 + $0xa0] sm:$0xff]
        %v2452 = vld [vmem:[%s2393 + $0xa8] sm:$0xff]
        %v2453 = vld [vmem:[%s2393 + $0xb0] sm:$0xff]
        %v2454 = vld [vmem:[%s2393 + $0xb8] sm:$0xff]
        %v2455 = vld [vmem:[%s2393 + $0xc0] sm:$0xff]
        %v2456 = vld [vmem:[%s2393 + $0xc8] sm:$0xff]
        %v2457 = vld [vmem:[%s2393 + $0xd0] sm:$0xff]
        %v2458 = vld [vmem:[%s2393 + $0xd8] sm:$0xff]
        %v2459 = vld [vmem:[%s2393 + $0xe0] sm:$0xff]
        %v2460 = vld [vmem:[%s2393 + $0xe8] sm:$0xff]
        %v2461 = vld [vmem:[%s2393 + $0xf0] sm:$0xff]
        %v2462 = vld [vmem:[%s2393 + $0xf8] sm:$0xff]
        %v2463 = vld [vmem:[%s2398] sm:$0xff]
        %v2464 = vld [vmem:[%s2398 + $0x8] sm:$0xff]
        %v2467 = vlaneseq
        %v2468 = vshrl.u32 %v2467, 7
        %v2469 = vsub.s32 0, %v2468
        %v2470 = vrot.slane %v2463, %v2469
        %v2471 = vlaneseq
        %v2472 = vshrl.u32 %v2471, 7
        %v2473 = vsub.s32 1, %v2472
        %v2474 = vrot.slane %v2463, %v2473
        %v2475 = vlaneseq
        %v2476 = vshrl.u32 %v2475, 7
        %v2477 = vsub.s32 2, %v2476
        %v2478 = vrot.slane %v2463, %v2477
        %v2479 = vlaneseq
        %v2480 = vshrl.u32 %v2479, 7
        %v2481 = vsub.s32 3, %v2480
        %v2482 = vrot.slane %v2463, %v2481
        %v2483 = vlaneseq
        %v2484 = vshrl.u32 %v2483, 7
        %v2485 = vsub.s32 4, %v2484
        %v2486 = vrot.slane %v2463, %v2485
        %v2487 = vlaneseq
        %v2488 = vshrl.u32 %v2487, 7
        %v2489 = vsub.s32 5, %v2488
        %v2490 = vrot.slane %v2463, %v2489
        %v2491 = vlaneseq
        %v2492 = vshrl.u32 %v2491, 7
        %v2493 = vsub.s32 6, %v2492
        %v2494 = vrot.slane %v2463, %v2493
        %v2495 = vlaneseq
        %v2496 = vshrl.u32 %v2495, 7
        %v2497 = vsub.s32 7, %v2496
        %v2498 = vrot.slane %v2463, %v2497
        %v2499 = vlaneseq
        %v2500 = vshrl.u32 %v2499, 7
        %v2501 = vsub.s32 0, %v2500
        %v2502 = vrot.slane %v2464, %v2501
        %v2503 = vlaneseq
        %v2504 = vshrl.u32 %v2503, 7
        %v2505 = vsub.s32 1, %v2504
        %v2506 = vrot.slane %v2464, %v2505
        %v2507 = vlaneseq
        %v2508 = vshrl.u32 %v2507, 7
        %v2509 = vsub.s32 2, %v2508
        %v2510 = vrot.slane %v2464, %v2509
        %v2511 = vlaneseq
        %v2512 = vshrl.u32 %v2511, 7
        %v2513 = vsub.s32 3, %v2512
        %v2514 = vrot.slane %v2464, %v2513
        %v2515 = vlaneseq
        %v2516 = vshrl.u32 %v2515, 7
        %v2517 = vsub.s32 4, %v2516
        %v2518 = vrot.slane %v2464, %v2517
        %v2519 = vlaneseq
        %v2520 = vshrl.u32 %v2519, 7
        %v2521 = vsub.s32 5, %v2520
        %v2522 = vrot.slane %v2464, %v2521
        %v2523 = vlaneseq
        %v2524 = vshrl.u32 %v2523, 7
        %v2525 = vsub.s32 6, %v2524
        %v2526 = vrot.slane %v2464, %v2525
        %v2527 = vlaneseq
        %v2528 = vshrl.u32 %v2527, 7
        %v2529 = vsub.s32 7, %v2528
        %v2530 = vrot.slane %v2464, %v2529
        %v2579 = vunpack.c.l.b16 %v2431
        %v2580 = vunpack.c.h.b16 %v2431
        %v2581 = vunpack.c.l.b16 %v2432
        %v2582 = vunpack.c.h.b16 %v2432
        %v2583 = vunpack.c.l.b16 %v2433
        %v2584 = vunpack.c.h.b16 %v2433
        %v2585 = vunpack.c.l.b16 %v2434
        %v2586 = vunpack.c.h.b16 %v2434
        %v2587 = vunpack.c.l.b16 %v2435
        %v2588 = vunpack.c.h.b16 %v2435
        %v2589 = vunpack.c.l.b16 %v2436
        %v2590 = vunpack.c.h.b16 %v2436
        %v2591 = vunpack.c.l.b16 %v2437
        %v2592 = vunpack.c.h.b16 %v2437
        %v2593 = vunpack.c.l.b16 %v2438
        %v2594 = vunpack.c.h.b16 %v2438
        %v2595 = vunpack.c.l.b16 %v2439
        %v2596 = vunpack.c.h.b16 %v2439
        %v2597 = vunpack.c.l.b16 %v2440
        %v2598 = vunpack.c.h.b16 %v2440
        %v2599 = vunpack.c.l.b16 %v2441
        %v2600 = vunpack.c.h.b16 %v2441
        %v2601 = vunpack.c.l.b16 %v2442
        %v2602 = vunpack.c.h.b16 %v2442
        %v2603 = vunpack.c.l.b16 %v2443
        %v2604 = vunpack.c.h.b16 %v2443
        %v2605 = vunpack.c.l.b16 %v2444
        %v2606 = vunpack.c.h.b16 %v2444
        %v2607 = vunpack.c.l.b16 %v2445
        %v2608 = vunpack.c.h.b16 %v2445
        %v2609 = vunpack.c.l.b16 %v2446
        %v2610 = vunpack.c.h.b16 %v2446
        %v2611 = vunpack.c.l.b16 %v2447
        %v2612 = vunpack.c.h.b16 %v2447
        %v2613 = vunpack.c.l.b16 %v2448
        %v2614 = vunpack.c.h.b16 %v2448
        %v2615 = vunpack.c.l.b16 %v2449
        %v2616 = vunpack.c.h.b16 %v2449
        %v2617 = vunpack.c.l.b16 %v2450
        %v2618 = vunpack.c.h.b16 %v2450
        %v2619 = vunpack.c.l.b16 %v2451
        %v2620 = vunpack.c.h.b16 %v2451
        %v2621 = vunpack.c.l.b16 %v2452
        %v2622 = vunpack.c.h.b16 %v2452
        %v2623 = vunpack.c.l.b16 %v2453
        %v2624 = vunpack.c.h.b16 %v2453
        %v2625 = vunpack.c.l.b16 %v2454
        %v2626 = vunpack.c.h.b16 %v2454
        %v2627 = vunpack.c.l.b16 %v2455
        %v2628 = vunpack.c.h.b16 %v2455
        %v2629 = vunpack.c.l.b16 %v2456
        %v2630 = vunpack.c.h.b16 %v2456
        %v2631 = vunpack.c.l.b16 %v2457
        %v2632 = vunpack.c.h.b16 %v2457
        %v2633 = vunpack.c.l.b16 %v2458
        %v2634 = vunpack.c.h.b16 %v2458
        %v2635 = vunpack.c.l.b16 %v2459
        %v2636 = vunpack.c.h.b16 %v2459
        %v2637 = vunpack.c.l.b16 %v2460
        %v2638 = vunpack.c.h.b16 %v2460
        %v2639 = vunpack.c.l.b16 %v2461
        %v2640 = vunpack.c.h.b16 %v2461
        %v2641 = vunpack.c.l.b16 %v2462
        %v2642 = vunpack.c.h.b16 %v2462
        %v2643 = vpack.c.b16 %v2595, %v2579
        %v2644 = vpack.c.b16 %v2596, %v2580
        %v2645 = vpack.c.b16 %v2597, %v2581
        %v2646 = vpack.c.b16 %v2598, %v2582
        %v2647 = vpack.c.b16 %v2599, %v2583
        %v2648 = vpack.c.b16 %v2600, %v2584
        %v2649 = vpack.c.b16 %v2601, %v2585
        %v2650 = vpack.c.b16 %v2602, %v2586
        %v2651 = vpack.c.b16 %v2603, %v2587
        %v2652 = vpack.c.b16 %v2604, %v2588
        %v2653 = vpack.c.b16 %v2605, %v2589
        %v2654 = vpack.c.b16 %v2606, %v2590
        %v2655 = vpack.c.b16 %v2607, %v2591
        %v2656 = vpack.c.b16 %v2608, %v2592
        %v2657 = vpack.c.b16 %v2609, %v2593
        %v2658 = vpack.c.b16 %v2610, %v2594
        %v2659 = vpack.c.b16 %v2627, %v2611
        %v2660 = vpack.c.b16 %v2628, %v2612
        %v2661 = vpack.c.b16 %v2629, %v2613
        %v2662 = vpack.c.b16 %v2630, %v2614
        %v2663 = vpack.c.b16 %v2631, %v2615
        %v2664 = vpack.c.b16 %v2632, %v2616
        %v2665 = vpack.c.b16 %v2633, %v2617
        %v2666 = vpack.c.b16 %v2634, %v2618
        %v2667 = vpack.c.b16 %v2635, %v2619
        %v2668 = vpack.c.b16 %v2636, %v2620
        %v2669 = vpack.c.b16 %v2637, %v2621
        %v2670 = vpack.c.b16 %v2638, %v2622
        %v2671 = vpack.c.b16 %v2639, %v2623
        %v2672 = vpack.c.b16 %v2640, %v2624
        %v2673 = vpack.c.b16 %v2641, %v2625
        %v2674 = vpack.c.b16 %v2642, %v2626
        %vm2707 = vcmask 261120
        %v2709 = vsel %vm2707, %v2430, 0
        %2711 = vmatprep.subr.bf16.mxu0 %v2644
        %2712 = vmatpush1.bf16.msra.mxu0 %v2643
        %2713 = vmatprep.subr.bf16.mxu0 %v2660
        %2714 = vmatpush1.bf16.msra.mxu0 %v2659
        %2715 = vmatprep.subr.bf16.mxu0 0
        %2716 = vmatpush1.bf16.msra.mxu0 0
        %2717 = vmatprep.subr.bf16.mxu0 0
        %2718 = vmatpush1.bf16.msra.mxu0 0
        %2719 = vmatprep.subr.bf16.mxu0 0
        %2720 = vmatpush1.bf16.msra.mxu0 0
        %2721 = vmatprep.subr.bf16.mxu0 0
        %2722 = vmatpush1.bf16.msra.mxu0 0
        %2723 = vmatprep.subr.bf16.mxu0 0
        %2724 = vmatpush1.bf16.msra.mxu0 0
        %2725 = vmatprep.subr.bf16.mxu0 0
        %2726 = vmatpush1.bf16.msra.mxu0 0
        %2727 = vmatprep.subr.bf16.mxu0 0
        %2728 = vmatpush1.bf16.msra.mxu0 0
        %2729 = vmatprep.subr.bf16.mxu0 0
        %2730 = vmatpush1.bf16.msra.mxu0 0
        %2731 = vmatprep.subr.bf16.mxu0 0
        %2732 = vmatpush1.bf16.msra.mxu0 0
        %2733 = vmatprep.subr.bf16.mxu0 0
        %2734 = vmatpush1.bf16.msra.mxu0 0
        %2735 = vmatprep.subr.bf16.mxu0 0
        %2736 = vmatpush1.bf16.msra.mxu0 0
        %2737 = vmatprep.subr.bf16.mxu0 0
        %2738 = vmatpush1.bf16.msra.mxu0 0
        %2739 = vmatprep.subr.bf16.mxu0 0
        %2740 = vmatpush1.bf16.msra.mxu0 0
        %2741 = vmatprep.subr.bf16.mxu0 0
        %2742 = vmatpush1.bf16.msra.mxu0 0
        %2743 = vmatprep.mubr.bf16.mxu0 0
        %2744 = vmatmul.mubr.bf16.gmra.mrb[0].mxu0 %v2709
        %v2745 = vpop.f32.mrb[0].mxu0
        %v2746 = vadd.f32 %v2470, %v2745
        %v2747 = vpop.f32.mrb[0].mxu0
        %v2748 = vadd.f32 %v2474, %v2747
        %v2749 = vpop.f32.mrb[0].mxu0
        %v2750 = vpop.f32.mrb[0].mxu0
        %2751 = vdwg.mxu0
        %2752 = vmatprep.subr.bf16.mxu0 %v2646
        %2753 = vmatpush1.bf16.msra.mxu0 %v2645
        %2754 = vmatprep.subr.bf16.mxu0 %v2662
        %2755 = vmatpush1.bf16.msra.mxu0 %v2661
        %2756 = vmatprep.subr.bf16.mxu0 0
        %2757 = vmatpush1.bf16.msra.mxu0 0
        %2758 = vmatprep.subr.bf16.mxu0 0
        %2759 = vmatpush1.bf16.msra.mxu0 0
        %2760 = vmatprep.subr.bf16.mxu0 0
        %2761 = vmatpush1.bf16.msra.mxu0 0
        %2762 = vmatprep.subr.bf16.mxu0 0
        %2763 = vmatpush1.bf16.msra.mxu0 0
        %2764 = vmatprep.subr.bf16.mxu0 0
        %2765 = vmatpush1.bf16.msra.mxu0 0
        %2766 = vmatprep.subr.bf16.mxu0 0
        %2767 = vmatpush1.bf16.msra.mxu0 0
        %2768 = vmatprep.subr.bf16.mxu0 0
        %2769 = vmatpush1.bf16.msra.mxu0 0
        %2770 = vmatprep.subr.bf16.mxu0 0
        %2771 = vmatpush1.bf16.msra.mxu0 0
        %2772 = vmatprep.subr.bf16.mxu0 0
        %2773 = vmatpush1.bf16.msra.mxu0 0
        %2774 = vmatprep.subr.bf16.mxu0 0
        %2775 = vmatpush1.bf16.msra.mxu0 0
        %2776 = vmatprep.subr.bf16.mxu0 0
        %2777 = vmatpush1.bf16.msra.mxu0 0
        %2778 = vmatprep.subr.bf16.mxu0 0
        %2779 = vmatpush1.bf16.msra.mxu0 0
        %2780 = vmatprep.subr.bf16.mxu0 0
        %2781 = vmatpush1.bf16.msra.mxu0 0
        %2782 = vmatprep.subr.bf16.mxu0 0
        %2783 = vmatpush1.bf16.msra.mxu0 0
        %2784 = vmatprep.mubr.bf16.mxu0 0
        %2785 = vmatmul.mubr.bf16.gmra.mrb[0].mxu0 %v2709
        %v2786 = vpop.f32.mrb[0].mxu0
        %v2787 = vadd.f32 %v2478, %v2786
        %v2788 = vpop.f32.mrb[0].mxu0
        %v2789 = vadd.f32 %v2482, %v2788
        %v2790 = vpop.f32.mrb[0].mxu0
        %v2791 = vpop.f32.mrb[0].mxu0
        %2792 = vdwg.mxu0
        %2793 = vmatprep.subr.bf16.mxu0 %v2648
        %2794 = vmatpush1.bf16.msra.mxu0 %v2647
        %2795 = vmatprep.subr.bf16.mxu0 %v2664
        %2796 = vmatpush1.bf16.msra.mxu0 %v2663
        %2797 = vmatprep.subr.bf16.mxu0 0
        %2798 = vmatpush1.bf16.msra.mxu0 0
        %2799 = vmatprep.subr.bf16.mxu0 0
        %2800 = vmatpush1.bf16.msra.mxu0 0
        %2801 = vmatprep.subr.bf16.mxu0 0
        %2802 = vmatpush1.bf16.msra.mxu0 0
        %2803 = vmatprep.subr.bf16.mxu0 0
        %2804 = vmatpush1.bf16.msra.mxu0 0
        %2805 = vmatprep.subr.bf16.mxu0 0
        %2806 = vmatpush1.bf16.msra.mxu0 0
        %2807 = vmatprep.subr.bf16.mxu0 0
        %2808 = vmatpush1.bf16.msra.mxu0 0
        %2809 = vmatprep.subr.bf16.mxu0 0
        %2810 = vmatpush1.bf16.msra.mxu0 0
        %2811 = vmatprep.subr.bf16.mxu0 0
        %2812 = vmatpush1.bf16.msra.mxu0 0
        %2813 = vmatprep.subr.bf16.mxu0 0
        %2814 = vmatpush1.bf16.msra.mxu0 0
        %2815 = vmatprep.subr.bf16.mxu0 0
        %2816 = vmatpush1.bf16.msra.mxu0 0
        %2817 = vmatprep.subr.bf16.mxu0 0
        %2818 = vmatpush1.bf16.msra.mxu0 0
        %2819 = vmatprep.subr.bf16.mxu0 0
        %2820 = vmatpush1.bf16.msra.mxu0 0
        %2821 = vmatprep.subr.bf16.mxu0 0
        %2822 = vmatpush1.bf16.msra.mxu0 0
        %2823 = vmatprep.subr.bf16.mxu0 0
        %2824 = vmatpush1.bf16.msra.mxu0 0
        %2825 = vmatprep.mubr.bf16.mxu0 0
        %2826 = vmatmul.mubr.bf16.gmra.mrb[0].mxu0 %v2709
        %v2827 = vpop.f32.mrb[0].mxu0
        %v2828 = vadd.f32 %v2486, %v2827
        %v2829 = vpop.f32.mrb[0].mxu0
        %v2830 = vadd.f32 %v2490, %v2829
        %v2831 = vpop.f32.mrb[0].mxu0
        %v2832 = vpop.f32.mrb[0].mxu0
        %2833 = vdwg.mxu0
        %2834 = vmatprep.subr.bf16.mxu0 %v2650
        %2835 = vmatpush1.bf16.msra.mxu0 %v2649
        %2836 = vmatprep.subr.bf16.mxu0 %v2666
        %2837 = vmatpush1.bf16.msra.mxu0 %v2665
        %2838 = vmatprep.subr.bf16.mxu0 0
        %2839 = vmatpush1.bf16.msra.mxu0 0
        %2840 = vmatprep.subr.bf16.mxu0 0
        %2841 = vmatpush1.bf16.msra.mxu0 0
        %2842 = vmatprep.subr.bf16.mxu0 0
        %2843 = vmatpush1.bf16.msra.mxu0 0
        %2844 = vmatprep.subr.bf16.mxu0 0
        %2845 = vmatpush1.bf16.msra.mxu0 0
        %2846 = vmatprep.subr.bf16.mxu0 0
        %2847 = vmatpush1.bf16.msra.mxu0 0
        %2848 = vmatprep.subr.bf16.mxu0 0
        %2849 = vmatpush1.bf16.msra.mxu0 0
        %2850 = vmatprep.subr.bf16.mxu0 0
        %2851 = vmatpush1.bf16.msra.mxu0 0
        %2852 = vmatprep.subr.bf16.mxu0 0
        %2853 = vmatpush1.bf16.msra.mxu0 0
        %2854 = vmatprep.subr.bf16.mxu0 0
        %2855 = vmatpush1.bf16.msra.mxu0 0
        %2856 = vmatprep.subr.bf16.mxu0 0
        %2857 = vmatpush1.bf16.msra.mxu0 0
        %2858 = vmatprep.subr.bf16.mxu0 0
        %2859 = vmatpush1.bf16.msra.mxu0 0
        %2860 = vmatprep.subr.bf16.mxu0 0
        %2861 = vmatpush1.bf16.msra.mxu0 0
        %2862 = vmatprep.subr.bf16.mxu0 0
        %2863 = vmatpush1.bf16.msra.mxu0 0
        %2864 = vmatprep.subr.bf16.mxu0 0
        %2865 = vmatpush1.bf16.msra.mxu0 0
        %2866 = vmatprep.mubr.bf16.mxu0 0
        %2867 = vmatmul.mubr.bf16.gmra.mrb[0].mxu0 %v2709
        %v2868 = vpop.f32.mrb[0].mxu0
        %v2869 = vadd.f32 %v2494, %v2868
        %v2870 = vpop.f32.mrb[0].mxu0
        %v2871 = vadd.f32 %v2498, %v2870
        %v2872 = vpop.f32.mrb[0].mxu0
        %v2873 = vpop.f32.mrb[0].mxu0
        %2874 = vdwg.mxu0
        %2875 = vmatprep.subr.bf16.mxu0 %v2652
        %2876 = vmatpush1.bf16.msra.mxu0 %v2651
        %2877 = vmatprep.subr.bf16.mxu0 %v2668
        %2878 = vmatpush1.bf16.msra.mxu0 %v2667
        %2879 = vmatprep.subr.bf16.mxu0 0
        %2880 = vmatpush1.bf16.msra.mxu0 0
        %2881 = vmatprep.subr.bf16.mxu0 0
        %2882 = vmatpush1.bf16.msra.mxu0 0
        %2883 = vmatprep.subr.bf16.mxu0 0
        %2884 = vmatpush1.bf16.msra.mxu0 0
        %2885 = vmatprep.subr.bf16.mxu0 0
        %2886 = vmatpush1.bf16.msra.mxu0 0
        %2887 = vmatprep.subr.bf16.mxu0 0
        %2888 = vmatpush1.bf16.msra.mxu0 0
        %2889 = vmatprep.subr.bf16.mxu0 0
        %2890 = vmatpush1.bf16.msra.mxu0 0
        %2891 = vmatprep.subr.bf16.mxu0 0
        %2892 = vmatpush1.bf16.msra.mxu0 0
        %2893 = vmatprep.subr.bf16.mxu0 0
        %2894 = vmatpush1.bf16.msra.mxu0 0
        %2895 = vmatprep.subr.bf16.mxu0 0
        %2896 = vmatpush1.bf16.msra.mxu0 0
        %2897 = vmatprep.subr.bf16.mxu0 0
        %2898 = vmatpush1.bf16.msra.mxu0 0
        %2899 = vmatprep.subr.bf16.mxu0 0
        %2900 = vmatpush1.bf16.msra.mxu0 0
        %2901 = vmatprep.subr.bf16.mxu0 0
        %2902 = vmatpush1.bf16.msra.mxu0 0
        %2903 = vmatprep.subr.bf16.mxu0 0
        %2904 = vmatpush1.bf16.msra.mxu0 0
        %2905 = vmatprep.subr.bf16.mxu0 0
        %2906 = vmatpush1.bf16.msra.mxu0 0
        %2907 = vmatprep.mubr.bf16.mxu0 0
        %2908 = vmatmul.mubr.bf16.gmra.mrb[0].mxu0 %v2709
        %v2909 = vpop.f32.mrb[0].mxu0
        %v2910 = vadd.f32 %v2502, %v2909
        %v2911 = vpop.f32.mrb[0].mxu0
        %v2912 = vadd.f32 %v2506, %v2911
        %v2913 = vpop.f32.mrb[0].mxu0
        %v2914 = vpop.f32.mrb[0].mxu0
        %2915 = vdwg.mxu0
        %2916 = vmatprep.subr.bf16.mxu0 %v2654
        %2917 = vmatpush1.bf16.msra.mxu0 %v2653
        %2918 = vmatprep.subr.bf16.mxu0 %v2670
        %2919 = vmatpush1.bf16.msra.mxu0 %v2669
        %2920 = vmatprep.subr.bf16.mxu0 0
        %2921 = vmatpush1.bf16.msra.mxu0 0
        %2922 = vmatprep.subr.bf16.mxu0 0
        %2923 = vmatpush1.bf16.msra.mxu0 0
        %2924 = vmatprep.subr.bf16.mxu0 0
        %2925 = vmatpush1.bf16.msra.mxu0 0
        %2926 = vmatprep.subr.bf16.mxu0 0
        %2927 = vmatpush1.bf16.msra.mxu0 0
        %2928 = vmatprep.subr.bf16.mxu0 0
        %2929 = vmatpush1.bf16.msra.mxu0 0
        %2930 = vmatprep.subr.bf16.mxu0 0
        %2931 = vmatpush1.bf16.msra.mxu0 0
        %2932 = vmatprep.subr.bf16.mxu0 0
        %2933 = vmatpush1.bf16.msra.mxu0 0
        %2934 = vmatprep.subr.bf16.mxu0 0
        %2935 = vmatpush1.bf16.msra.mxu0 0
        %2936 = vmatprep.subr.bf16.mxu0 0
        %2937 = vmatpush1.bf16.msra.mxu0 0
        %2938 = vmatprep.subr.bf16.mxu0 0
        %2939 = vmatpush1.bf16.msra.mxu0 0
        %2940 = vmatprep.subr.bf16.mxu0 0
        %2941 = vmatpush1.bf16.msra.mxu0 0
        %2942 = vmatprep.subr.bf16.mxu0 0
        %2943 = vmatpush1.bf16.msra.mxu0 0
        %2944 = vmatprep.subr.bf16.mxu0 0
        %2945 = vmatpush1.bf16.msra.mxu0 0
        %2946 = vmatprep.subr.bf16.mxu0 0
        %2947 = vmatpush1.bf16.msra.mxu0 0
        %2948 = vmatprep.mubr.bf16.mxu0 0
        %2949 = vmatmul.mubr.bf16.gmra.mrb[0].mxu0 %v2709
        %v2950 = vpop.f32.mrb[0].mxu0
        %v2951 = vadd.f32 %v2510, %v2950
        %v2952 = vpop.f32.mrb[0].mxu0
        %v2953 = vadd.f32 %v2514, %v2952
        %v2954 = vpop.f32.mrb[0].mxu0
        %v2955 = vpop.f32.mrb[0].mxu0
        %2956 = vdwg.mxu0
        %2957 = vmatprep.subr.bf16.mxu0 %v2656
        %2958 = vmatpush1.bf16.msra.mxu0 %v2655
        %2959 = vmatprep.subr.bf16.mxu0 %v2672
        %2960 = vmatpush1.bf16.msra.mxu0 %v2671
        %2961 = vmatprep.subr.bf16.mxu0 0
        %2962 = vmatpush1.bf16.msra.mxu0 0
        %2963 = vmatprep.subr.bf16.mxu0 0
        %2964 = vmatpush1.bf16.msra.mxu0 0
        %2965 = vmatprep.subr.bf16.mxu0 0
        %2966 = vmatpush1.bf16.msra.mxu0 0
        %2967 = vmatprep.subr.bf16.mxu0 0
        %2968 = vmatpush1.bf16.msra.mxu0 0
        %2969 = vmatprep.subr.bf16.mxu0 0
        %2970 = vmatpush1.bf16.msra.mxu0 0
        %2971 = vmatprep.subr.bf16.mxu0 0
        %2972 = vmatpush1.bf16.msra.mxu0 0
        %2973 = vmatprep.subr.bf16.mxu0 0
        %2974 = vmatpush1.bf16.msra.mxu0 0
        %2975 = vmatprep.subr.bf16.mxu0 0
        %2976 = vmatpush1.bf16.msra.mxu0 0
        %2977 = vmatprep.subr.bf16.mxu0 0
        %2978 = vmatpush1.bf16.msra.mxu0 0
        %2979 = vmatprep.subr.bf16.mxu0 0
        %2980 = vmatpush1.bf16.msra.mxu0 0
        %2981 = vmatprep.subr.bf16.mxu0 0
        %2982 = vmatpush1.bf16.msra.mxu0 0
        %2983 = vmatprep.subr.bf16.mxu0 0
        %2984 = vmatpush1.bf16.msra.mxu0 0
        %2985 = vmatprep.subr.bf16.mxu0 0
        %2986 = vmatpush1.bf16.msra.mxu0 0
        %2987 = vmatprep.subr.bf16.mxu0 0
        %2988 = vmatpush1.bf16.msra.mxu0 0
        %2989 = vmatprep.mubr.bf16.mxu0 0
        %2990 = vmatmul.mubr.bf16.gmra.mrb[0].mxu0 %v2709
        %v2991 = vpop.f32.mrb[0].mxu0
        %v2992 = vadd.f32 %v2518, %v2991
        %v2993 = vpop.f32.mrb[0].mxu0
        %v2994 = vadd.f32 %v2522, %v2993
        %v2995 = vpop.f32.mrb[0].mxu0
        %v2996 = vpop.f32.mrb[0].mxu0
        %2997 = vdwg.mxu0
        %2998 = vmatprep.subr.bf16.mxu0 %v2658
        %2999 = vmatpush1.bf16.msra.mxu0 %v2657
        %3000 = vmatprep.subr.bf16.mxu0 %v2674
        %3001 = vmatpush1.bf16.msra.mxu0 %v2673
        %3002 = vmatprep.subr.bf16.mxu0 0
        %3003 = vmatpush1.bf16.msra.mxu0 0
        %3004 = vmatprep.subr.bf16.mxu0 0
        %3005 = vmatpush1.bf16.msra.mxu0 0
        %3006 = vmatprep.subr.bf16.mxu0 0
        %3007 = vmatpush1.bf16.msra.mxu0 0
        %3008 = vmatprep.subr.bf16.mxu0 0
        %3009 = vmatpush1.bf16.msra.mxu0 0
        %3010 = vmatprep.subr.bf16.mxu0 0
        %3011 = vmatpush1.bf16.msra.mxu0 0
        %3012 = vmatprep.subr.bf16.mxu0 0
        %3013 = vmatpush1.bf16.msra.mxu0 0
        %3014 = vmatprep.subr.bf16.mxu0 0
        %3015 = vmatpush1.bf16.msra.mxu0 0
        %3016 = vmatprep.subr.bf16.mxu0 0
        %3017 = vmatpush1.bf16.msra.mxu0 0
        %3018 = vmatprep.subr.bf16.mxu0 0
        %3019 = vmatpush1.bf16.msra.mxu0 0
        %3020 = vmatprep.subr.bf16.mxu0 0
        %3021 = vmatpush1.bf16.msra.mxu0 0
        %3022 = vmatprep.subr.bf16.mxu0 0
        %3023 = vmatpush1.bf16.msra.mxu0 0
        %3024 = vmatprep.subr.bf16.mxu0 0
        %3025 = vmatpush1.bf16.msra.mxu0 0
        %3026 = vmatprep.subr.bf16.mxu0 0
        %3027 = vmatpush1.bf16.msra.mxu0 0
        %3028 = vmatprep.subr.bf16.mxu0 0
        %3029 = vmatpush1.bf16.msra.mxu0 0
        %3030 = vmatprep.mubr.bf16.mxu0 0
        %3031 = vmatmul.mubr.bf16.gmra.mrb[0].mxu0 %v2709
        %v3032 = vpop.f32.mrb[0].mxu0
        %v3033 = vadd.f32 %v2526, %v3032
        %v3034 = vpop.f32.mrb[0].mxu0
        %v3035 = vadd.f32 %v2530, %v3034
        %v3036 = vpop.f32.mrb[0].mxu0
        %v3037 = vpop.f32.mrb[0].mxu0
        %3038 = vdwg.mxu0
        %v3039 = vmax.f32 %v2746, 0.0
        %v3040 = vmax.f32 %v2748, 0.0
        %v3041 = vmax.f32 %v2787, 0.0
        %v3042 = vmax.f32 %v2789, 0.0
        %v3043 = vmax.f32 %v2828, 0.0
        %v3044 = vmax.f32 %v2830, 0.0
        %v3045 = vmax.f32 %v2869, 0.0
        %v3046 = vmax.f32 %v2871, 0.0
        %v3047 = vmax.f32 %v2910, 0.0
        %v3048 = vmax.f32 %v2912, 0.0
        %v3049 = vmax.f32 %v2951, 0.0
        %v3050 = vmax.f32 %v2953, 0.0
        %v3051 = vmax.f32 %v2992, 0.0
        %v3052 = vmax.f32 %v2994, 0.0
        %v3053 = vmax.f32 %v3033, 0.0
        %v3054 = vmax.f32 %v3035, 0.0
        %v3055 = vpack.c.bf16 %v3039, %v3039
        %v3056 = vpack.c.bf16 %v3040, %v3040
        %v3057 = vpack.c.bf16 %v3041, %v3041
        %v3058 = vpack.c.bf16 %v3042, %v3042
        %v3059 = vpack.c.bf16 %v3043, %v3043
        %v3060 = vpack.c.bf16 %v3044, %v3044
        %v3061 = vpack.c.bf16 %v3045, %v3045
        %v3062 = vpack.c.bf16 %v3046, %v3046
        %v3063 = vpack.c.bf16 %v3047, %v3047
        %v3064 = vpack.c.bf16 %v3048, %v3048
        %v3065 = vpack.c.bf16 %v3049, %v3049
        %v3066 = vpack.c.bf16 %v3050, %v3050
        %v3067 = vpack.c.bf16 %v3051, %v3051
        %v3068 = vpack.c.bf16 %v3052, %v3052
        %v3069 = vpack.c.bf16 %v3053, %v3053
        %v3070 = vpack.c.bf16 %v3054, %v3054
        %v3071 = vld [vmem:[#allocation2] sm:$0xff]
        %v3072 = vld [vmem:[#allocation2 + $0x8] sm:$0xff]
        %v3073 = vld [vmem:[#allocation2 + $0x10] sm:$0xff]
        %v3074 = vld [vmem:[#allocation2 + $0x18] sm:$0xff]
        %v3075 = vld [vmem:[#allocation2 + $0x20] sm:$0xff]
        %v3076 = vld [vmem:[#allocation2 + $0x28] sm:$0xff]
        %v3077 = vld [vmem:[#allocation2 + $0x30] sm:$0xff]
        %v3078 = vld [vmem:[#allocation2 + $0x38] sm:$0xff]
        %v3079 = vld [vmem:[%s2345] sm:$0xff]
        %v3080 = vld [vmem:[%s2345 + $0x8] sm:$0xff]
        %v3081 = vld [vmem:[%s2345 + $0x10] sm:$0xff]
        %v3082 = vld [vmem:[%s2345 + $0x18] sm:$0xff]
        %v3083 = vld [vmem:[%s2345 + $0x20] sm:$0xff]
        %v3084 = vld [vmem:[%s2345 + $0x28] sm:$0xff]
        %v3085 = vld [vmem:[%s2345 + $0x30] sm:$0xff]
        %v3086 = vld [vmem:[%s2345 + $0x38] sm:$0xff]
        %v3087 = vld [vmem:[%s2345 + $0x40] sm:$0xff]
        %v3088 = vld [vmem:[%s2345 + $0x48] sm:$0xff]
        %v3089 = vld [vmem:[%s2345 + $0x50] sm:$0xff]
        %v3090 = vld [vmem:[%s2345 + $0x58] sm:$0xff]
        %v3091 = vld [vmem:[%s2345 + $0x60] sm:$0xff]
        %v3092 = vld [vmem:[%s2345 + $0x68] sm:$0xff]
        %v3093 = vld [vmem:[%s2345 + $0x70] sm:$0xff]
        %v3094 = vld [vmem:[%s2345 + $0x78] sm:$0xff]
        %v3095 = vld [vmem:[%s2345 + $0x80] sm:$0xff]
        %v3096 = vld [vmem:[%s2345 + $0x88] sm:$0xff]
        %v3097 = vld [vmem:[%s2345 + $0x90] sm:$0xff]
        %v3098 = vld [vmem:[%s2345 + $0x98] sm:$0xff]
        %v3099 = vld [vmem:[%s2345 + $0xa0] sm:$0xff]
        %v3100 = vld [vmem:[%s2345 + $0xa8] sm:$0xff]
        %v3101 = vld [vmem:[%s2345 + $0xb0] sm:$0xff]
        %v3102 = vld [vmem:[%s2345 + $0xb8] sm:$0xff]
        %v3103 = vld [vmem:[%s2345 + $0xc0] sm:$0xff]
        %v3104 = vld [vmem:[%s2345 + $0xc8] sm:$0xff]
        %v3105 = vld [vmem:[%s2345 + $0xd0] sm:$0xff]
        %v3106 = vld [vmem:[%s2345 + $0xd8] sm:$0xff]
        %v3107 = vld [vmem:[%s2345 + $0xe0] sm:$0xff]
        %v3108 = vld [vmem:[%s2345 + $0xe8] sm:$0xff]
        %v3109 = vld [vmem:[%s2345 + $0xf0] sm:$0xff]
        %v3110 = vld [vmem:[%s2345 + $0xf8] sm:$0xff]
        %v3111 = vld [vmem:[%s2345 + $0x100] sm:$0xff]
        %v3112 = vld [vmem:[%s2345 + $0x108] sm:$0xff]
        %v3113 = vld [vmem:[%s2345 + $0x110] sm:$0xff]
        %v3114 = vld [vmem:[%s2345 + $0x118] sm:$0xff]
        %v3115 = vld [vmem:[%s2345 + $0x120] sm:$0xff]
        %v3116 = vld [vmem:[%s2345 + $0x128] sm:$0xff]
        %v3117 = vld [vmem:[%s2345 + $0x130] sm:$0xff]
        %v3118 = vld [vmem:[%s2345 + $0x138] sm:$0xff]
        %v3119 = vld [vmem:[%s2345 + $0x140] sm:$0xff]
        %v3120 = vld [vmem:[%s2345 + $0x148] sm:$0xff]
        %v3121 = vld [vmem:[%s2345 + $0x150] sm:$0xff]
        %v3122 = vld [vmem:[%s2345 + $0x158] sm:$0xff]
        %v3123 = vld [vmem:[%s2345 + $0x160] sm:$0xff]
        %v3124 = vld [vmem:[%s2345 + $0x168] sm:$0xff]
        %v3125 = vld [vmem:[%s2345 + $0x170] sm:$0xff]
        %v3126 = vld [vmem:[%s2345 + $0x178] sm:$0xff]
        %v3127 = vld [vmem:[%s2345 + $0x180] sm:$0xff]
        %v3128 = vld [vmem:[%s2345 + $0x188] sm:$0xff]
        %v3129 = vld [vmem:[%s2345 + $0x190] sm:$0xff]
        %v3130 = vld [vmem:[%s2345 + $0x198] sm:$0xff]
        %v3131 = vld [vmem:[%s2345 + $0x1a0] sm:$0xff]
        %v3132 = vld [vmem:[%s2345 + $0x1a8] sm:$0xff]
        %v3133 = vld [vmem:[%s2345 + $0x1b0] sm:$0xff]
        %v3134 = vld [vmem:[%s2345 + $0x1b8] sm:$0xff]
        %v3135 = vld [vmem:[%s2345 + $0x1c0] sm:$0xff]
        %v3136 = vld [vmem:[%s2345 + $0x1c8] sm:$0xff]
        %v3137 = vld [vmem:[%s2345 + $0x1d0] sm:$0xff]
        %v3138 = vld [vmem:[%s2345 + $0x1d8] sm:$0xff]
        %v3139 = vld [vmem:[%s2345 + $0x1e0] sm:$0xff]
        %v3140 = vld [vmem:[%s2345 + $0x1e8] sm:$0xff]
        %v3141 = vld [vmem:[%s2345 + $0x1f0] sm:$0xff]
        %v3142 = vld [vmem:[%s2345 + $0x1f8] sm:$0xff]
        %v3143 = vld [vmem:[%s2345 + $0x200] sm:$0xff]
        %v3144 = vld [vmem:[%s2345 + $0x208] sm:$0xff]
        %v3145 = vld [vmem:[%s2345 + $0x210] sm:$0xff]
        %v3146 = vld [vmem:[%s2345 + $0x218] sm:$0xff]
        %v3147 = vld [vmem:[%s2345 + $0x220] sm:$0xff]
        %v3148 = vld [vmem:[%s2345 + $0x228] sm:$0xff]
        %v3149 = vld [vmem:[%s2345 + $0x230] sm:$0xff]
        %v3150 = vld [vmem:[%s2345 + $0x238] sm:$0xff]
        %v3151 = vld [vmem:[%s2345 + $0x240] sm:$0xff]
        %v3152 = vld [vmem:[%s2345 + $0x248] sm:$0xff]
        %v3153 = vld [vmem:[%s2345 + $0x250] sm:$0xff]
        %v3154 = vld [vmem:[%s2345 + $0x258] sm:$0xff]
        %v3155 = vld [vmem:[%s2345 + $0x260] sm:$0xff]
        %v3156 = vld [vmem:[%s2345 + $0x268] sm:$0xff]
        %v3157 = vld [vmem:[%s2345 + $0x270] sm:$0xff]
        %v3158 = vld [vmem:[%s2345 + $0x278] sm:$0xff]
        %v3159 = vld [vmem:[%s2345 + $0x280] sm:$0xff]
        %v3160 = vld [vmem:[%s2345 + $0x288] sm:$0xff]
        %v3161 = vld [vmem:[%s2345 + $0x290] sm:$0xff]
        %v3162 = vld [vmem:[%s2345 + $0x298] sm:$0xff]
        %v3163 = vld [vmem:[%s2345 + $0x2a0] sm:$0xff]
        %v3164 = vld [vmem:[%s2345 + $0x2a8] sm:$0xff]
        %v3165 = vld [vmem:[%s2345 + $0x2b0] sm:$0xff]
        %v3166 = vld [vmem:[%s2345 + $0x2b8] sm:$0xff]
        %v3167 = vld [vmem:[%s2345 + $0x2c0] sm:$0xff]
        %v3168 = vld [vmem:[%s2345 + $0x2c8] sm:$0xff]
        %v3169 = vld [vmem:[%s2345 + $0x2d0] sm:$0xff]
        %v3170 = vld [vmem:[%s2345 + $0x2d8] sm:$0xff]
        %v3171 = vld [vmem:[%s2345 + $0x2e0] sm:$0xff]
        %v3172 = vld [vmem:[%s2345 + $0x2e8] sm:$0xff]
        %v3173 = vld [vmem:[%s2345 + $0x2f0] sm:$0xff]
        %v3174 = vld [vmem:[%s2345 + $0x2f8] sm:$0xff]
        %v3175 = vld [vmem:[%s2345 + $0x300] sm:$0xff]
        %v3176 = vld [vmem:[%s2345 + $0x308] sm:$0xff]
        %v3177 = vld [vmem:[%s2345 + $0x310] sm:$0xff]
        %v3178 = vld [vmem:[%s2345 + $0x318] sm:$0xff]
        %v3179 = vld [vmem:[%s2345 + $0x320] sm:$0xff]
        %v3180 = vld [vmem:[%s2345 + $0x328] sm:$0xff]
        %v3181 = vld [vmem:[%s2345 + $0x330] sm:$0xff]
        %v3182 = vld [vmem:[%s2345 + $0x338] sm:$0xff]
        %v3183 = vld [vmem:[%s2345 + $0x340] sm:$0xff]
        %v3184 = vld [vmem:[%s2345 + $0x348] sm:$0xff]
        %v3185 = vld [vmem:[%s2345 + $0x350] sm:$0xff]
        %v3186 = vld [vmem:[%s2345 + $0x358] sm:$0xff]
        %v3187 = vld [vmem:[%s2345 + $0x360] sm:$0xff]
        %v3188 = vld [vmem:[%s2345 + $0x368] sm:$0xff]
        %v3189 = vld [vmem:[%s2345 + $0x370] sm:$0xff]
        %v3190 = vld [vmem:[%s2345 + $0x378] sm:$0xff]
        %v3191 = vld [vmem:[%s2345 + $0x380] sm:$0xff]
        %v3192 = vld [vmem:[%s2345 + $0x388] sm:$0xff]
        %v3193 = vld [vmem:[%s2345 + $0x390] sm:$0xff]
        %v3194 = vld [vmem:[%s2345 + $0x398] sm:$0xff]
        %v3195 = vld [vmem:[%s2345 + $0x3a0] sm:$0xff]
        %v3196 = vld [vmem:[%s2345 + $0x3a8] sm:$0xff]
        %v3197 = vld [vmem:[%s2345 + $0x3b0] sm:$0xff]
        %v3198 = vld [vmem:[%s2345 + $0x3b8] sm:$0xff]
        %v3199 = vld [vmem:[%s2345 + $0x3c0] sm:$0xff]
        %v3200 = vld [vmem:[%s2345 + $0x3c8] sm:$0xff]
        %v3201 = vld [vmem:[%s2345 + $0x3d0] sm:$0xff]
        %v3202 = vld [vmem:[%s2345 + $0x3d8] sm:$0xff]
        %v3203 = vld [vmem:[%s2345 + $0x3e0] sm:$0xff]
        %v3204 = vld [vmem:[%s2345 + $0x3e8] sm:$0xff]
        %v3205 = vld [vmem:[%s2345 + $0x3f0] sm:$0xff]
        %v3206 = vld [vmem:[%s2345 + $0x3f8] sm:$0xff]
        %v3207 = vld [vmem:[%s2345 + $0x400] sm:$0xff]
        %v3208 = vld [vmem:[%s2345 + $0x408] sm:$0xff]
        %v3209 = vld [vmem:[%s2345 + $0x410] sm:$0xff]
        %v3210 = vld [vmem:[%s2345 + $0x418] sm:$0xff]
        %v3211 = vld [vmem:[%s2345 + $0x420] sm:$0xff]
        %v3212 = vld [vmem:[%s2345 + $0x428] sm:$0xff]
        %v3213 = vld [vmem:[%s2345 + $0x430] sm:$0xff]
        %v3214 = vld [vmem:[%s2345 + $0x438] sm:$0xff]
        %v3215 = vld [vmem:[%s2345 + $0x440] sm:$0xff]
        %v3216 = vld [vmem:[%s2345 + $0x448] sm:$0xff]
        %v3217 = vld [vmem:[%s2345 + $0x450] sm:$0xff]
        %v3218 = vld [vmem:[%s2345 + $0x458] sm:$0xff]
        %v3219 = vld [vmem:[%s2345 + $0x460] sm:$0xff]
        %v3220 = vld [vmem:[%s2345 + $0x468] sm:$0xff]
        %v3221 = vld [vmem:[%s2345 + $0x470] sm:$0xff]
        %v3222 = vld [vmem:[%s2345 + $0x478] sm:$0xff]
        %v3223 = vld [vmem:[%s2345 + $0x480] sm:$0xff]
        %v3224 = vld [vmem:[%s2345 + $0x488] sm:$0xff]
        %v3225 = vld [vmem:[%s2345 + $0x490] sm:$0xff]
        %v3226 = vld [vmem:[%s2345 + $0x498] sm:$0xff]
        %v3227 = vld [vmem:[%s2345 + $0x4a0] sm:$0xff]
        %v3228 = vld [vmem:[%s2345 + $0x4a8] sm:$0xff]
        %v3229 = vld [vmem:[%s2345 + $0x4b0] sm:$0xff]
        %v3230 = vld [vmem:[%s2345 + $0x4b8] sm:$0xff]
        %v3231 = vld [vmem:[%s2345 + $0x4c0] sm:$0xff]
        %v3232 = vld [vmem:[%s2345 + $0x4c8] sm:$0xff]
        %v3233 = vld [vmem:[%s2345 + $0x4d0] sm:$0xff]
        %v3234 = vld [vmem:[%s2345 + $0x4d8] sm:$0xff]
        %v3235 = vld [vmem:[%s2345 + $0x4e0] sm:$0xff]
        %v3236 = vld [vmem:[%s2345 + $0x4e8] sm:$0xff]
        %v3237 = vld [vmem:[%s2345 + $0x4f0] sm:$0xff]
        %v3238 = vld [vmem:[%s2345 + $0x4f8] sm:$0xff]
        %v3239 = vld [vmem:[%s2345 + $0x500] sm:$0xff]
        %v3240 = vld [vmem:[%s2345 + $0x508] sm:$0xff]
        %v3241 = vld [vmem:[%s2345 + $0x510] sm:$0xff]
        %v3242 = vld [vmem:[%s2345 + $0x518] sm:$0xff]
        %v3243 = vld [vmem:[%s2345 + $0x520] sm:$0xff]
        %v3244 = vld [vmem:[%s2345 + $0x528] sm:$0xff]
        %v3245 = vld [vmem:[%s2345 + $0x530] sm:$0xff]
        %v3246 = vld [vmem:[%s2345 + $0x538] sm:$0xff]
        %v3247 = vld [vmem:[%s2345 + $0x540] sm:$0xff]
        %v3248 = vld [vmem:[%s2345 + $0x548] sm:$0xff]
        %v3249 = vld [vmem:[%s2345 + $0x550] sm:$0xff]
        %v3250 = vld [vmem:[%s2345 + $0x558] sm:$0xff]
        %v3251 = vld [vmem:[%s2345 + $0x560] sm:$0xff]
        %v3252 = vld [vmem:[%s2345 + $0x568] sm:$0xff]
        %v3253 = vld [vmem:[%s2345 + $0x570] sm:$0xff]
        %v3254 = vld [vmem:[%s2345 + $0x578] sm:$0xff]
        %v3255 = vld [vmem:[%s2345 + $0x580] sm:$0xff]
        %v3256 = vld [vmem:[%s2345 + $0x588] sm:$0xff]
        %v3257 = vld [vmem:[%s2345 + $0x590] sm:$0xff]
        %v3258 = vld [vmem:[%s2345 + $0x598] sm:$0xff]
        %v3259 = vld [vmem:[%s2345 + $0x5a0] sm:$0xff]
        %v3260 = vld [vmem:[%s2345 + $0x5a8] sm:$0xff]
        %v3261 = vld [vmem:[%s2345 + $0x5b0] sm:$0xff]
        %v3262 = vld [vmem:[%s2345 + $0x5b8] sm:$0xff]
        %v3263 = vld [vmem:[%s2345 + $0x5c0] sm:$0xff]
        %v3264 = vld [vmem:[%s2345 + $0x5c8] sm:$0xff]
        %v3265 = vld [vmem:[%s2345 + $0x5d0] sm:$0xff]
        %v3266 = vld [vmem:[%s2345 + $0x5d8] sm:$0xff]
        %v3267 = vld [vmem:[%s2345 + $0x5e0] sm:$0xff]
        %v3268 = vld [vmem:[%s2345 + $0x5e8] sm:$0xff]
        %v3269 = vld [vmem:[%s2345 + $0x5f0] sm:$0xff]
        %v3270 = vld [vmem:[%s2345 + $0x5f8] sm:$0xff]
        %v3271 = vld [vmem:[%s2345 + $0x600] sm:$0xff]
        %v3272 = vld [vmem:[%s2345 + $0x608] sm:$0xff]
        %v3273 = vld [vmem:[%s2345 + $0x610] sm:$0xff]
        %v3274 = vld [vmem:[%s2345 + $0x618] sm:$0xff]
        %v3275 = vld [vmem:[%s2345 + $0x620] sm:$0xff]
        %v3276 = vld [vmem:[%s2345 + $0x628] sm:$0xff]
        %v3277 = vld [vmem:[%s2345 + $0x630] sm:$0xff]
        %v3278 = vld [vmem:[%s2345 + $0x638] sm:$0xff]
        %v3279 = vld [vmem:[%s2345 + $0x640] sm:$0xff]
        %v3280 = vld [vmem:[%s2345 + $0x648] sm:$0xff]
        %v3281 = vld [vmem:[%s2345 + $0x650] sm:$0xff]
        %v3282 = vld [vmem:[%s2345 + $0x658] sm:$0xff]
        %v3283 = vld [vmem:[%s2345 + $0x660] sm:$0xff]
        %v3284 = vld [vmem:[%s2345 + $0x668] sm:$0xff]
        %v3285 = vld [vmem:[%s2345 + $0x670] sm:$0xff]
        %v3286 = vld [vmem:[%s2345 + $0x678] sm:$0xff]
        %v3287 = vld [vmem:[%s2345 + $0x680] sm:$0xff]
        %v3288 = vld [vmem:[%s2345 + $0x688] sm:$0xff]
        %v3289 = vld [vmem:[%s2345 + $0x690] sm:$0xff]
        %v3290 = vld [vmem:[%s2345 + $0x698] sm:$0xff]
        %v3291 = vld [vmem:[%s2345 + $0x6a0] sm:$0xff]
        %v3292 = vld [vmem:[%s2345 + $0x6a8] sm:$0xff]
        %v3293 = vld [vmem:[%s2345 + $0x6b0] sm:$0xff]
        %v3294 = vld [vmem:[%s2345 + $0x6b8] sm:$0xff]
        %v3295 = vld [vmem:[%s2345 + $0x6c0] sm:$0xff]
        %v3296 = vld [vmem:[%s2345 + $0x6c8] sm:$0xff]
        %v3297 = vld [vmem:[%s2345 + $0x6d0] sm:$0xff]
        %v3298 = vld [vmem:[%s2345 + $0x6d8] sm:$0xff]
        %v3299 = vld [vmem:[%s2345 + $0x6e0] sm:$0xff]
        %v3300 = vld [vmem:[%s2345 + $0x6e8] sm:$0xff]
        %v3301 = vld [vmem:[%s2345 + $0x6f0] sm:$0xff]
        %v3302 = vld [vmem:[%s2345 + $0x6f8] sm:$0xff]
        %v3303 = vld [vmem:[%s2345 + $0x700] sm:$0xff]
        %v3304 = vld [vmem:[%s2345 + $0x708] sm:$0xff]
        %v3305 = vld [vmem:[%s2345 + $0x710] sm:$0xff]
        %v3306 = vld [vmem:[%s2345 + $0x718] sm:$0xff]
        %v3307 = vld [vmem:[%s2345 + $0x720] sm:$0xff]
        %v3308 = vld [vmem:[%s2345 + $0x728] sm:$0xff]
        %v3309 = vld [vmem:[%s2345 + $0x730] sm:$0xff]
        %v3310 = vld [vmem:[%s2345 + $0x738] sm:$0xff]
        %v3311 = vld [vmem:[%s2345 + $0x740] sm:$0xff]
        %v3312 = vld [vmem:[%s2345 + $0x748] sm:$0xff]
        %v3313 = vld [vmem:[%s2345 + $0x750] sm:$0xff]
        %v3314 = vld [vmem:[%s2345 + $0x758] sm:$0xff]
        %v3315 = vld [vmem:[%s2345 + $0x760] sm:$0xff]
        %v3316 = vld [vmem:[%s2345 + $0x768] sm:$0xff]
        %v3317 = vld [vmem:[%s2345 + $0x770] sm:$0xff]
        %v3318 = vld [vmem:[%s2345 + $0x778] sm:$0xff]
        %v3319 = vld [vmem:[%s2345 + $0x780] sm:$0xff]
        %v3320 = vld [vmem:[%s2345 + $0x788] sm:$0xff]
        %v3321 = vld [vmem:[%s2345 + $0x790] sm:$0xff]
        %v3322 = vld [vmem:[%s2345 + $0x798] sm:$0xff]
        %v3323 = vld [vmem:[%s2345 + $0x7a0] sm:$0xff]
        %v3324 = vld [vmem:[%s2345 + $0x7a8] sm:$0xff]
        %v3325 = vld [vmem:[%s2345 + $0x7b0] sm:$0xff]
        %v3326 = vld [vmem:[%s2345 + $0x7b8] sm:$0xff]
        %v3327 = vld [vmem:[%s2345 + $0x7c0] sm:$0xff]
        %v3328 = vld [vmem:[%s2345 + $0x7c8] sm:$0xff]
        %v3329 = vld [vmem:[%s2345 + $0x7d0] sm:$0xff]
        %v3330 = vld [vmem:[%s2345 + $0x7d8] sm:$0xff]
        %v3331 = vld [vmem:[%s2345 + $0x7e0] sm:$0xff]
        %v3332 = vld [vmem:[%s2345 + $0x7e8] sm:$0xff]
        %v3333 = vld [vmem:[%s2345 + $0x7f0] sm:$0xff]
        %v3334 = vld [vmem:[%s2345 + $0x7f8] sm:$0xff]
        %v3335 = vld [vmem:[%s2345 + $0x800] sm:$0xff]
        %v3336 = vld [vmem:[%s2345 + $0x808] sm:$0xff]
        %v3337 = vld [vmem:[%s2345 + $0x810] sm:$0xff]
        %v3338 = vld [vmem:[%s2345 + $0x818] sm:$0xff]
        %v3339 = vld [vmem:[%s2345 + $0x820] sm:$0xff]
        %v3340 = vld [vmem:[%s2345 + $0x828] sm:$0xff]
        %v3341 = vld [vmem:[%s2345 + $0x830] sm:$0xff]
        %v3342 = vld [vmem:[%s2345 + $0x838] sm:$0xff]
        %v3343 = vld [vmem:[%s2345 + $0x840] sm:$0xff]
        %v3344 = vld [vmem:[%s2345 + $0x848] sm:$0xff]
        %v3345 = vld [vmem:[%s2345 + $0x850] sm:$0xff]
        %v3346 = vld [vmem:[%s2345 + $0x858] sm:$0xff]
        %v3347 = vld [vmem:[%s2345 + $0x860] sm:$0xff]
        %v3348 = vld [vmem:[%s2345 + $0x868] sm:$0xff]
        %v3349 = vld [vmem:[%s2345 + $0x870] sm:$0xff]
        %v3350 = vld [vmem:[%s2345 + $0x878] sm:$0xff]
        %v3351 = vld [vmem:[%s2345 + $0x880] sm:$0xff]
        %v3352 = vld [vmem:[%s2345 + $0x888] sm:$0xff]
        %v3353 = vld [vmem:[%s2345 + $0x890] sm:$0xff]
        %v3354 = vld [vmem:[%s2345 + $0x898] sm:$0xff]
        %v3355 = vld [vmem:[%s2345 + $0x8a0] sm:$0xff]
        %v3356 = vld [vmem:[%s2345 + $0x8a8] sm:$0xff]
        %v3357 = vld [vmem:[%s2345 + $0x8b0] sm:$0xff]
        %v3358 = vld [vmem:[%s2345 + $0x8b8] sm:$0xff]
        %v3359 = vld [vmem:[%s2345 + $0x8c0] sm:$0xff]
        %v3360 = vld [vmem:[%s2345 + $0x8c8] sm:$0xff]
        %v3361 = vld [vmem:[%s2345 + $0x8d0] sm:$0xff]
        %v3362 = vld [vmem:[%s2345 + $0x8d8] sm:$0xff]
        %v3363 = vld [vmem:[%s2345 + $0x8e0] sm:$0xff]
        %v3364 = vld [vmem:[%s2345 + $0x8e8] sm:$0xff]
        %v3365 = vld [vmem:[%s2345 + $0x8f0] sm:$0xff]
        %v3366 = vld [vmem:[%s2345 + $0x8f8] sm:$0xff]
        %v3367 = vld [vmem:[%s2345 + $0x900] sm:$0xff]
        %v3368 = vld [vmem:[%s2345 + $0x908] sm:$0xff]
        %v3369 = vld [vmem:[%s2345 + $0x910] sm:$0xff]
        %v3370 = vld [vmem:[%s2345 + $0x918] sm:$0xff]
        %v3371 = vld [vmem:[%s2345 + $0x920] sm:$0xff]
        %v3372 = vld [vmem:[%s2345 + $0x928] sm:$0xff]
        %v3373 = vld [vmem:[%s2345 + $0x930] sm:$0xff]
        %v3374 = vld [vmem:[%s2345 + $0x938] sm:$0xff]
        %v3375 = vld [vmem:[%s2345 + $0x940] sm:$0xff]
        %v3376 = vld [vmem:[%s2345 + $0x948] sm:$0xff]
        %v3377 = vld [vmem:[%s2345 + $0x950] sm:$0xff]
        %v3378 = vld [vmem:[%s2345 + $0x958] sm:$0xff]
        %v3379 = vld [vmem:[%s2345 + $0x960] sm:$0xff]
        %v3380 = vld [vmem:[%s2345 + $0x968] sm:$0xff]
        %v3381 = vld [vmem:[%s2345 + $0x970] sm:$0xff]
        %v3382 = vld [vmem:[%s2345 + $0x978] sm:$0xff]
        %v3383 = vld [vmem:[%s2345 + $0x980] sm:$0xff]
        %v3384 = vld [vmem:[%s2345 + $0x988] sm:$0xff]
        %v3385 = vld [vmem:[%s2345 + $0x990] sm:$0xff]
        %v3386 = vld [vmem:[%s2345 + $0x998] sm:$0xff]
        %v3387 = vld [vmem:[%s2345 + $0x9a0] sm:$0xff]
        %v3388 = vld [vmem:[%s2345 + $0x9a8] sm:$0xff]
        %v3389 = vld [vmem:[%s2345 + $0x9b0] sm:$0xff]
        %v3390 = vld [vmem:[%s2345 + $0x9b8] sm:$0xff]
        %v3391 = vld [vmem:[%s2345 + $0x9c0] sm:$0xff]
        %v3392 = vld [vmem:[%s2345 + $0x9c8] sm:$0xff]
        %v3393 = vld [vmem:[%s2345 + $0x9d0] sm:$0xff]
        %v3394 = vld [vmem:[%s2345 + $0x9d8] sm:$0xff]
        %v3395 = vld [vmem:[%s2345 + $0x9e0] sm:$0xff]
        %v3396 = vld [vmem:[%s2345 + $0x9e8] sm:$0xff]
        %v3397 = vld [vmem:[%s2345 + $0x9f0] sm:$0xff]
        %v3398 = vld [vmem:[%s2345 + $0x9f8] sm:$0xff]
        %v3399 = vld [vmem:[%s2345 + $0xa00] sm:$0xff]
        %v3400 = vld [vmem:[%s2345 + $0xa08] sm:$0xff]
        %v3401 = vld [vmem:[%s2345 + $0xa10] sm:$0xff]
        %v3402 = vld [vmem:[%s2345 + $0xa18] sm:$0xff]
        %v3403 = vld [vmem:[%s2345 + $0xa20] sm:$0xff]
        %v3404 = vld [vmem:[%s2345 + $0xa28] sm:$0xff]
        %v3405 = vld [vmem:[%s2345 + $0xa30] sm:$0xff]
        %v3406 = vld [vmem:[%s2345 + $0xa38] sm:$0xff]
        %v3407 = vld [vmem:[%s2345 + $0xa40] sm:$0xff]
        %v3408 = vld [vmem:[%s2345 + $0xa48] sm:$0xff]
        %v3409 = vld [vmem:[%s2345 + $0xa50] sm:$0xff]
        %v3410 = vld [vmem:[%s2345 + $0xa58] sm:$0xff]
        %v3411 = vld [vmem:[%s2345 + $0xa60] sm:$0xff]
        %v3412 = vld [vmem:[%s2345 + $0xa68] sm:$0xff]
        %v3413 = vld [vmem:[%s2345 + $0xa70] sm:$0xff]
        %v3414 = vld [vmem:[%s2345 + $0xa78] sm:$0xff]
        %v3415 = vld [vmem:[%s2345 + $0xa80] sm:$0xff]
        %v3416 = vld [vmem:[%s2345 + $0xa88] sm:$0xff]
        %v3417 = vld [vmem:[%s2345 + $0xa90] sm:$0xff]
        %v3418 = vld [vmem:[%s2345 + $0xa98] sm:$0xff]
        %v3419 = vld [vmem:[%s2345 + $0xaa0] sm:$0xff]
        %v3420 = vld [vmem:[%s2345 + $0xaa8] sm:$0xff]
        %v3421 = vld [vmem:[%s2345 + $0xab0] sm:$0xff]
        %v3422 = vld [vmem:[%s2345 + $0xab8] sm:$0xff]
        %v3423 = vld [vmem:[%s2345 + $0xac0] sm:$0xff]
        %v3424 = vld [vmem:[%s2345 + $0xac8] sm:$0xff]
        %v3425 = vld [vmem:[%s2345 + $0xad0] sm:$0xff]
        %v3426 = vld [vmem:[%s2345 + $0xad8] sm:$0xff]
        %v3427 = vld [vmem:[%s2345 + $0xae0] sm:$0xff]
        %v3428 = vld [vmem:[%s2345 + $0xae8] sm:$0xff]
        %v3429 = vld [vmem:[%s2345 + $0xaf0] sm:$0xff]
        %v3430 = vld [vmem:[%s2345 + $0xaf8] sm:$0xff]
        %v3431 = vld [vmem:[%s2345 + $0xb00] sm:$0xff]
        %v3432 = vld [vmem:[%s2345 + $0xb08] sm:$0xff]
        %v3433 = vld [vmem:[%s2345 + $0xb10] sm:$0xff]
        %v3434 = vld [vmem:[%s2345 + $0xb18] sm:$0xff]
        %v3435 = vld [vmem:[%s2345 + $0xb20] sm:$0xff]
        %v3436 = vld [vmem:[%s2345 + $0xb28] sm:$0xff]
        %v3437 = vld [vmem:[%s2345 + $0xb30] sm:$0xff]
        %v3438 = vld [vmem:[%s2345 + $0xb38] sm:$0xff]
        %v3439 = vld [vmem:[%s2345 + $0xb40] sm:$0xff]
        %v3440 = vld [vmem:[%s2345 + $0xb48] sm:$0xff]
        %v3441 = vld [vmem:[%s2345 + $0xb50] sm:$0xff]
        %v3442 = vld [vmem:[%s2345 + $0xb58] sm:$0xff]
        %v3443 = vld [vmem:[%s2345 + $0xb60] sm:$0xff]
        %v3444 = vld [vmem:[%s2345 + $0xb68] sm:$0xff]
        %v3445 = vld [vmem:[%s2345 + $0xb70] sm:$0xff]
        %v3446 = vld [vmem:[%s2345 + $0xb78] sm:$0xff]
        %v3447 = vld [vmem:[%s2345 + $0xb80] sm:$0xff]
        %v3448 = vld [vmem:[%s2345 + $0xb88] sm:$0xff]
        %v3449 = vld [vmem:[%s2345 + $0xb90] sm:$0xff]
        %v3450 = vld [vmem:[%s2345 + $0xb98] sm:$0xff]
        %v3451 = vld [vmem:[%s2345 + $0xba0] sm:$0xff]
        %v3452 = vld [vmem:[%s2345 + $0xba8] sm:$0xff]
        %v3453 = vld [vmem:[%s2345 + $0xbb0] sm:$0xff]
        %v3454 = vld [vmem:[%s2345 + $0xbb8] sm:$0xff]
        %v3455 = vld [vmem:[%s2345 + $0xbc0] sm:$0xff]
        %v3456 = vld [vmem:[%s2345 + $0xbc8] sm:$0xff]
        %v3457 = vld [vmem:[%s2345 + $0xbd0] sm:$0xff]
        %v3458 = vld [vmem:[%s2345 + $0xbd8] sm:$0xff]
        %v3459 = vld [vmem:[%s2345 + $0xbe0] sm:$0xff]
        %v3460 = vld [vmem:[%s2345 + $0xbe8] sm:$0xff]
        %v3461 = vld [vmem:[%s2345 + $0xbf0] sm:$0xff]
        %v3462 = vld [vmem:[%s2345 + $0xbf8] sm:$0xff]
        %v3463 = vld [vmem:[%s2345 + $0xc00] sm:$0xff]
        %v3464 = vld [vmem:[%s2345 + $0xc08] sm:$0xff]
        %v3465 = vld [vmem:[%s2345 + $0xc10] sm:$0xff]
        %v3466 = vld [vmem:[%s2345 + $0xc18] sm:$0xff]
        %v3467 = vld [vmem:[%s2345 + $0xc20] sm:$0xff]
        %v3468 = vld [vmem:[%s2345 + $0xc28] sm:$0xff]
        %v3469 = vld [vmem:[%s2345 + $0xc30] sm:$0xff]
        %v3470 = vld [vmem:[%s2345 + $0xc38] sm:$0xff]
        %v3471 = vld [vmem:[%s2345 + $0xc40] sm:$0xff]
        %v3472 = vld [vmem:[%s2345 + $0xc48] sm:$0xff]
        %v3473 = vld [vmem:[%s2345 + $0xc50] sm:$0xff]
        %v3474 = vld [vmem:[%s2345 + $0xc58] sm:$0xff]
        %v3475 = vld [vmem:[%s2345 + $0xc60] sm:$0xff]
        %v3476 = vld [vmem:[%s2345 + $0xc68] sm:$0xff]
        %v3477 = vld [vmem:[%s2345 + $0xc70] sm:$0xff]
        %v3478 = vld [vmem:[%s2345 + $0xc78] sm:$0xff]
        %v3479 = vld [vmem:[%s2345 + $0xc80] sm:$0xff]
        %v3480 = vld [vmem:[%s2345 + $0xc88] sm:$0xff]
        %v3481 = vld [vmem:[%s2345 + $0xc90] sm:$0xff]
        %v3482 = vld [vmem:[%s2345 + $0xc98] sm:$0xff]
        %v3483 = vld [vmem:[%s2345 + $0xca0] sm:$0xff]
        %v3484 = vld [vmem:[%s2345 + $0xca8] sm:$0xff]
        %v3485 = vld [vmem:[%s2345 + $0xcb0] sm:$0xff]
        %v3486 = vld [vmem:[%s2345 + $0xcb8] sm:$0xff]
        %v3487 = vld [vmem:[%s2345 + $0xcc0] sm:$0xff]
        %v3488 = vld [vmem:[%s2345 + $0xcc8] sm:$0xff]
        %v3489 = vld [vmem:[%s2345 + $0xcd0] sm:$0xff]
        %v3490 = vld [vmem:[%s2345 + $0xcd8] sm:$0xff]
        %v3491 = vld [vmem:[%s2345 + $0xce0] sm:$0xff]
        %v3492 = vld [vmem:[%s2345 + $0xce8] sm:$0xff]
        %v3493 = vld [vmem:[%s2345 + $0xcf0] sm:$0xff]
        %v3494 = vld [vmem:[%s2345 + $0xcf8] sm:$0xff]
        %v3495 = vld [vmem:[%s2345 + $0xd00] sm:$0xff]
        %v3496 = vld [vmem:[%s2345 + $0xd08] sm:$0xff]
        %v3497 = vld [vmem:[%s2345 + $0xd10] sm:$0xff]
        %v3498 = vld [vmem:[%s2345 + $0xd18] sm:$0xff]
        %v3499 = vld [vmem:[%s2345 + $0xd20] sm:$0xff]
        %v3500 = vld [vmem:[%s2345 + $0xd28] sm:$0xff]
        %v3501 = vld [vmem:[%s2345 + $0xd30] sm:$0xff]
        %v3502 = vld [vmem:[%s2345 + $0xd38] sm:$0xff]
        %v3503 = vld [vmem:[%s2345 + $0xd40] sm:$0xff]
        %v3504 = vld [vmem:[%s2345 + $0xd48] sm:$0xff]
        %v3505 = vld [vmem:[%s2345 + $0xd50] sm:$0xff]
        %v3506 = vld [vmem:[%s2345 + $0xd58] sm:$0xff]
        %v3507 = vld [vmem:[%s2345 + $0xd60] sm:$0xff]
        %v3508 = vld [vmem:[%s2345 + $0xd68] sm:$0xff]
        %v3509 = vld [vmem:[%s2345 + $0xd70] sm:$0xff]
        %v3510 = vld [vmem:[%s2345 + $0xd78] sm:$0xff]
        %v3511 = vld [vmem:[%s2345 + $0xd80] sm:$0xff]
        %v3512 = vld [vmem:[%s2345 + $0xd88] sm:$0xff]
        %v3513 = vld [vmem:[%s2345 + $0xd90] sm:$0xff]
        %v3514 = vld [vmem:[%s2345 + $0xd98] sm:$0xff]
        %v3515 = vld [vmem:[%s2345 + $0xda0] sm:$0xff]
        %v3516 = vld [vmem:[%s2345 + $0xda8] sm:$0xff]
        %v3517 = vld [vmem:[%s2345 + $0xdb0] sm:$0xff]
        %v3518 = vld [vmem:[%s2345 + $0xdb8] sm:$0xff]
        %v3519 = vld [vmem:[%s2345 + $0xdc0] sm:$0xff]
        %v3520 = vld [vmem:[%s2345 + $0xdc8] sm:$0xff]
        %v3521 = vld [vmem:[%s2345 + $0xdd0] sm:$0xff]
        %v3522 = vld [vmem:[%s2345 + $0xdd8] sm:$0xff]
        %v3523 = vld [vmem:[%s2345 + $0xde0] sm:$0xff]
        %v3524 = vld [vmem:[%s2345 + $0xde8] sm:$0xff]
        %v3525 = vld [vmem:[%s2345 + $0xdf0] sm:$0xff]
        %v3526 = vld [vmem:[%s2345 + $0xdf8] sm:$0xff]
        %v3527 = vld [vmem:[%s2345 + $0xe00] sm:$0xff]
        %v3528 = vld [vmem:[%s2345 + $0xe08] sm:$0xff]
        %v3529 = vld [vmem:[%s2345 + $0xe10] sm:$0xff]
        %v3530 = vld [vmem:[%s2345 + $0xe18] sm:$0xff]
        %v3531 = vld [vmem:[%s2345 + $0xe20] sm:$0xff]
        %v3532 = vld [vmem:[%s2345 + $0xe28] sm:$0xff]
        %v3533 = vld [vmem:[%s2345 + $0xe30] sm:$0xff]
        %v3534 = vld [vmem:[%s2345 + $0xe38] sm:$0xff]
        %v3535 = vld [vmem:[%s2345 + $0xe40] sm:$0xff]
        %v3536 = vld [vmem:[%s2345 + $0xe48] sm:$0xff]
        %v3537 = vld [vmem:[%s2345 + $0xe50] sm:$0xff]
        %v3538 = vld [vmem:[%s2345 + $0xe58] sm:$0xff]
        %v3539 = vld [vmem:[%s2345 + $0xe60] sm:$0xff]
        %v3540 = vld [vmem:[%s2345 + $0xe68] sm:$0xff]
        %v3541 = vld [vmem:[%s2345 + $0xe70] sm:$0xff]
        %v3542 = vld [vmem:[%s2345 + $0xe78] sm:$0xff]
        %v3543 = vld [vmem:[%s2345 + $0xe80] sm:$0xff]
        %v3544 = vld [vmem:[%s2345 + $0xe88] sm:$0xff]
        %v3545 = vld [vmem:[%s2345 + $0xe90] sm:$0xff]
        %v3546 = vld [vmem:[%s2345 + $0xe98] sm:$0xff]
        %v3547 = vld [vmem:[%s2345 + $0xea0] sm:$0xff]
        %v3548 = vld [vmem:[%s2345 + $0xea8] sm:$0xff]
        %v3549 = vld [vmem:[%s2345 + $0xeb0] sm:$0xff]
        %v3550 = vld [vmem:[%s2345 + $0xeb8] sm:$0xff]
        %v3551 = vld [vmem:[%s2345 + $0xec0] sm:$0xff]
        %v3552 = vld [vmem:[%s2345 + $0xec8] sm:$0xff]
        %v3553 = vld [vmem:[%s2345 + $0xed0] sm:$0xff]
        %v3554 = vld [vmem:[%s2345 + $0xed8] sm:$0xff]
        %v3555 = vld [vmem:[%s2345 + $0xee0] sm:$0xff]
        %v3556 = vld [vmem:[%s2345 + $0xee8] sm:$0xff]
        %v3557 = vld [vmem:[%s2345 + $0xef0] sm:$0xff]
        %v3558 = vld [vmem:[%s2345 + $0xef8] sm:$0xff]
        %v3559 = vld [vmem:[%s2345 + $0xf00] sm:$0xff]
        %v3560 = vld [vmem:[%s2345 + $0xf08] sm:$0xff]
        %v3561 = vld [vmem:[%s2345 + $0xf10] sm:$0xff]
        %v3562 = vld [vmem:[%s2345 + $0xf18] sm:$0xff]
        %v3563 = vld [vmem:[%s2345 + $0xf20] sm:$0xff]
        %v3564 = vld [vmem:[%s2345 + $0xf28] sm:$0xff]
        %v3565 = vld [vmem:[%s2345 + $0xf30] sm:$0xff]
        %v3566 = vld [vmem:[%s2345 + $0xf38] sm:$0xff]
        %v3567 = vld [vmem:[%s2345 + $0xf40] sm:$0xff]
        %v3568 = vld [vmem:[%s2345 + $0xf48] sm:$0xff]
        %v3569 = vld [vmem:[%s2345 + $0xf50] sm:$0xff]
        %v3570 = vld [vmem:[%s2345 + $0xf58] sm:$0xff]
        %v3571 = vld [vmem:[%s2345 + $0xf60] sm:$0xff]
        %v3572 = vld [vmem:[%s2345 + $0xf68] sm:$0xff]
        %v3573 = vld [vmem:[%s2345 + $0xf70] sm:$0xff]
        %v3574 = vld [vmem:[%s2345 + $0xf78] sm:$0xff]
        %v3575 = vld [vmem:[%s2345 + $0xf80] sm:$0xff]
        %v3576 = vld [vmem:[%s2345 + $0xf88] sm:$0xff]
        %v3577 = vld [vmem:[%s2345 + $0xf90] sm:$0xff]
        %v3578 = vld [vmem:[%s2345 + $0xf98] sm:$0xff]
        %v3579 = vld [vmem:[%s2345 + $0xfa0] sm:$0xff]
        %v3580 = vld [vmem:[%s2345 + $0xfa8] sm:$0xff]
        %v3581 = vld [vmem:[%s2345 + $0xfb0] sm:$0xff]
        %v3582 = vld [vmem:[%s2345 + $0xfb8] sm:$0xff]
        %v3583 = vld [vmem:[%s2345 + $0xfc0] sm:$0xff]
        %v3584 = vld [vmem:[%s2345 + $0xfc8] sm:$0xff]
        %v3585 = vld [vmem:[%s2345 + $0xfd0] sm:$0xff]
        %v3586 = vld [vmem:[%s2345 + $0xfd8] sm:$0xff]
        %v3587 = vld [vmem:[%s2345 + $0xfe0] sm:$0xff]
        %v3588 = vld [vmem:[%s2345 + $0xfe8] sm:$0xff]
        %v3589 = vld [vmem:[%s2345 + $0xff0] sm:$0xff]
        %v3590 = vld [vmem:[%s2345 + $0xff8] sm:$0xff]
        %v3591 = vld [vmem:[%s2345 + $0x1000] sm:$0xff]
        %v3592 = vld [vmem:[%s2345 + $0x1008] sm:$0xff]
        %v3593 = vld [vmem:[%s2345 + $0x1010] sm:$0xff]
        %v3594 = vld [vmem:[%s2345 + $0x1018] sm:$0xff]
        %v3595 = vld [vmem:[%s2345 + $0x1020] sm:$0xff]
        %v3596 = vld [vmem:[%s2345 + $0x1028] sm:$0xff]
        %v3597 = vld [vmem:[%s2345 + $0x1030] sm:$0xff]
        %v3598 = vld [vmem:[%s2345 + $0x1038] sm:$0xff]
        %v3599 = vld [vmem:[%s2345 + $0x1040] sm:$0xff]
        %v3600 = vld [vmem:[%s2345 + $0x1048] sm:$0xff]
        %v3601 = vld [vmem:[%s2345 + $0x1050] sm:$0xff]
        %v3602 = vld [vmem:[%s2345 + $0x1058] sm:$0xff]
        %v3603 = vld [vmem:[%s2345 + $0x1060] sm:$0xff]
        %v3604 = vld [vmem:[%s2345 + $0x1068] sm:$0xff]
        %v3605 = vld [vmem:[%s2345 + $0x1070] sm:$0xff]
        %v3606 = vld [vmem:[%s2345 + $0x1078] sm:$0xff]
        %v3607 = vld [vmem:[%s2345 + $0x1080] sm:$0xff]
        %v3608 = vld [vmem:[%s2345 + $0x1088] sm:$0xff]
        %v3609 = vld [vmem:[%s2345 + $0x1090] sm:$0xff]
        %v3610 = vld [vmem:[%s2345 + $0x1098] sm:$0xff]
        %v3611 = vld [vmem:[%s2345 + $0x10a0] sm:$0xff]
        %v3612 = vld [vmem:[%s2345 + $0x10a8] sm:$0xff]
        %v3613 = vld [vmem:[%s2345 + $0x10b0] sm:$0xff]
        %v3614 = vld [vmem:[%s2345 + $0x10b8] sm:$0xff]
        %v3615 = vld [vmem:[%s2345 + $0x10c0] sm:$0xff]
        %v3616 = vld [vmem:[%s2345 + $0x10c8] sm:$0xff]
        %v3617 = vld [vmem:[%s2345 + $0x10d0] sm:$0xff]
        %v3618 = vld [vmem:[%s2345 + $0x10d8] sm:$0xff]
        %v3619 = vld [vmem:[%s2345 + $0x10e0] sm:$0xff]
        %v3620 = vld [vmem:[%s2345 + $0x10e8] sm:$0xff]
        %v3621 = vld [vmem:[%s2345 + $0x10f0] sm:$0xff]
        %v3622 = vld [vmem:[%s2345 + $0x10f8] sm:$0xff]
        %v3623 = vld [vmem:[%s2345 + $0x1100] sm:$0xff]
        %v3624 = vld [vmem:[%s2345 + $0x1108] sm:$0xff]
        %v3625 = vld [vmem:[%s2345 + $0x1110] sm:$0xff]
        %v3626 = vld [vmem:[%s2345 + $0x1118] sm:$0xff]
        %v3627 = vld [vmem:[%s2345 + $0x1120] sm:$0xff]
        %v3628 = vld [vmem:[%s2345 + $0x1128] sm:$0xff]
        %v3629 = vld [vmem:[%s2345 + $0x1130] sm:$0xff]
        %v3630 = vld [vmem:[%s2345 + $0x1138] sm:$0xff]
        %v3631 = vld [vmem:[%s2345 + $0x1140] sm:$0xff]
        %v3632 = vld [vmem:[%s2345 + $0x1148] sm:$0xff]
        %v3633 = vld [vmem:[%s2345 + $0x1150] sm:$0xff]
        %v3634 = vld [vmem:[%s2345 + $0x1158] sm:$0xff]
        %v3635 = vld [vmem:[%s2345 + $0x1160] sm:$0xff]
        %v3636 = vld [vmem:[%s2345 + $0x1168] sm:$0xff]
        %v3637 = vld [vmem:[%s2345 + $0x1170] sm:$0xff]
        %v3638 = vld [vmem:[%s2345 + $0x1178] sm:$0xff]
        %v3639 = vld [vmem:[%s2345 + $0x1180] sm:$0xff]
        %v3640 = vld [vmem:[%s2345 + $0x1188] sm:$0xff]
        %v3641 = vld [vmem:[%s2345 + $0x1190] sm:$0xff]
        %v3642 = vld [vmem:[%s2345 + $0x1198] sm:$0xff]
        %v3643 = vld [vmem:[%s2345 + $0x11a0] sm:$0xff]
        %v3644 = vld [vmem:[%s2345 + $0x11a8] sm:$0xff]
        %v3645 = vld [vmem:[%s2345 + $0x11b0] sm:$0xff]
        %v3646 = vld [vmem:[%s2345 + $0x11b8] sm:$0xff]
        %v3647 = vld [vmem:[%s2345 + $0x11c0] sm:$0xff]
        %v3648 = vld [vmem:[%s2345 + $0x11c8] sm:$0xff]
        %v3649 = vld [vmem:[%s2345 + $0x11d0] sm:$0xff]
        %v3650 = vld [vmem:[%s2345 + $0x11d8] sm:$0xff]
        %v3651 = vld [vmem:[%s2345 + $0x11e0] sm:$0xff]
        %v3652 = vld [vmem:[%s2345 + $0x11e8] sm:$0xff]
        %v3653 = vld [vmem:[%s2345 + $0x11f0] sm:$0xff]
        %v3654 = vld [vmem:[%s2345 + $0x11f8] sm:$0xff]
        %v3655 = vld [vmem:[%s2345 + $0x1200] sm:$0xff]
        %v3656 = vld [vmem:[%s2345 + $0x1208] sm:$0xff]
        %v3657 = vld [vmem:[%s2345 + $0x1210] sm:$0xff]
        %v3658 = vld [vmem:[%s2345 + $0x1218] sm:$0xff]
        %v3659 = vld [vmem:[%s2345 + $0x1220] sm:$0xff]
        %v3660 = vld [vmem:[%s2345 + $0x1228] sm:$0xff]
        %v3661 = vld [vmem:[%s2345 + $0x1230] sm:$0xff]
        %v3662 = vld [vmem:[%s2345 + $0x1238] sm:$0xff]
        %v3663 = vld [vmem:[%s2345 + $0x1240] sm:$0xff]
        %v3664 = vld [vmem:[%s2345 + $0x1248] sm:$0xff]
        %v3665 = vld [vmem:[%s2345 + $0x1250] sm:$0xff]
        %v3666 = vld [vmem:[%s2345 + $0x1258] sm:$0xff]
        %v3667 = vld [vmem:[%s2345 + $0x1260] sm:$0xff]
        %v3668 = vld [vmem:[%s2345 + $0x1268] sm:$0xff]
        %v3669 = vld [vmem:[%s2345 + $0x1270] sm:$0xff]
        %v3670 = vld [vmem:[%s2345 + $0x1278] sm:$0xff]
        %v3671 = vld [vmem:[%s2345 + $0x1280] sm:$0xff]
        %v3672 = vld [vmem:[%s2345 + $0x1288] sm:$0xff]
        %v3673 = vld [vmem:[%s2345 + $0x1290] sm:$0xff]
        %v3674 = vld [vmem:[%s2345 + $0x1298] sm:$0xff]
        %v3675 = vld [vmem:[%s2345 + $0x12a0] sm:$0xff]
        %v3676 = vld [vmem:[%s2345 + $0x12a8] sm:$0xff]
        %v3677 = vld [vmem:[%s2345 + $0x12b0] sm:$0xff]
        %v3678 = vld [vmem:[%s2345 + $0x12b8] sm:$0xff]
        %v3679 = vld [vmem:[%s2345 + $0x12c0] sm:$0xff]
        %v3680 = vld [vmem:[%s2345 + $0x12c8] sm:$0xff]
        %v3681 = vld [vmem:[%s2345 + $0x12d0] sm:$0xff]
        %v3682 = vld [vmem:[%s2345 + $0x12d8] sm:$0xff]
        %v3683 = vld [vmem:[%s2345 + $0x12e0] sm:$0xff]
        %v3684 = vld [vmem:[%s2345 + $0x12e8] sm:$0xff]
        %v3685 = vld [vmem:[%s2345 + $0x12f0] sm:$0xff]
        %v3686 = vld [vmem:[%s2345 + $0x12f8] sm:$0xff]
        %v3687 = vld [vmem:[%s2345 + $0x1300] sm:$0xff]
        %v3688 = vld [vmem:[%s2345 + $0x1308] sm:$0xff]
        %v3689 = vld [vmem:[%s2345 + $0x1310] sm:$0xff]
        %v3690 = vld [vmem:[%s2345 + $0x1318] sm:$0xff]
        %v3691 = vld [vmem:[%s2345 + $0x1320] sm:$0xff]
        %v3692 = vld [vmem:[%s2345 + $0x1328] sm:$0xff]
        %v3693 = vld [vmem:[%s2345 + $0x1330] sm:$0xff]
        %v3694 = vld [vmem:[%s2345 + $0x1338] sm:$0xff]
        %v3695 = vld [vmem:[%s2345 + $0x1340] sm:$0xff]
        %v3696 = vld [vmem:[%s2345 + $0x1348] sm:$0xff]
        %v3697 = vld [vmem:[%s2345 + $0x1350] sm:$0xff]
        %v3698 = vld [vmem:[%s2345 + $0x1358] sm:$0xff]
        %v3699 = vld [vmem:[%s2345 + $0x1360] sm:$0xff]
        %v3700 = vld [vmem:[%s2345 + $0x1368] sm:$0xff]
        %v3701 = vld [vmem:[%s2345 + $0x1370] sm:$0xff]
        %v3702 = vld [vmem:[%s2345 + $0x1378] sm:$0xff]
        %v3703 = vld [vmem:[%s2345 + $0x1380] sm:$0xff]
        %v3704 = vld [vmem:[%s2345 + $0x1388] sm:$0xff]
        %v3705 = vld [vmem:[%s2345 + $0x1390] sm:$0xff]
        %v3706 = vld [vmem:[%s2345 + $0x1398] sm:$0xff]
        %v3707 = vld [vmem:[%s2345 + $0x13a0] sm:$0xff]
        %v3708 = vld [vmem:[%s2345 + $0x13a8] sm:$0xff]
        %v3709 = vld [vmem:[%s2345 + $0x13b0] sm:$0xff]
        %v3710 = vld [vmem:[%s2345 + $0x13b8] sm:$0xff]
        %v3711 = vld [vmem:[%s2345 + $0x13c0] sm:$0xff]
        %v3712 = vld [vmem:[%s2345 + $0x13c8] sm:$0xff]
        %v3713 = vld [vmem:[%s2345 + $0x13d0] sm:$0xff]
        %v3714 = vld [vmem:[%s2345 + $0x13d8] sm:$0xff]
        %v3715 = vld [vmem:[%s2345 + $0x13e0] sm:$0xff]
        %v3716 = vld [vmem:[%s2345 + $0x13e8] sm:$0xff]
        %v3717 = vld [vmem:[%s2345 + $0x13f0] sm:$0xff]
        %v3718 = vld [vmem:[%s2345 + $0x13f8] sm:$0xff]
        %v3719 = vld [vmem:[%s2345 + $0x1400] sm:$0xff]
        %v3720 = vld [vmem:[%s2345 + $0x1408] sm:$0xff]
        %v3721 = vld [vmem:[%s2345 + $0x1410] sm:$0xff]
        %v3722 = vld [vmem:[%s2345 + $0x1418] sm:$0xff]
        %v3723 = vld [vmem:[%s2345 + $0x1420] sm:$0xff]
        %v3724 = vld [vmem:[%s2345 + $0x1428] sm:$0xff]
        %v3725 = vld [vmem:[%s2345 + $0x1430] sm:$0xff]
        %v3726 = vld [vmem:[%s2345 + $0x1438] sm:$0xff]
        %v3727 = vld [vmem:[%s2345 + $0x1440] sm:$0xff]
        %v3728 = vld [vmem:[%s2345 + $0x1448] sm:$0xff]
        %v3729 = vld [vmem:[%s2345 + $0x1450] sm:$0xff]
        %v3730 = vld [vmem:[%s2345 + $0x1458] sm:$0xff]
        %v3731 = vld [vmem:[%s2345 + $0x1460] sm:$0xff]
        %v3732 = vld [vmem:[%s2345 + $0x1468] sm:$0xff]
        %v3733 = vld [vmem:[%s2345 + $0x1470] sm:$0xff]
        %v3734 = vld [vmem:[%s2345 + $0x1478] sm:$0xff]
        %v3735 = vld [vmem:[%s2345 + $0x1480] sm:$0xff]
        %v3736 = vld [vmem:[%s2345 + $0x1488] sm:$0xff]
        %v3737 = vld [vmem:[%s2345 + $0x1490] sm:$0xff]
        %v3738 = vld [vmem:[%s2345 + $0x1498] sm:$0xff]
        %v3739 = vld [vmem:[%s2345 + $0x14a0] sm:$0xff]
        %v3740 = vld [vmem:[%s2345 + $0x14a8] sm:$0xff]
        %v3741 = vld [vmem:[%s2345 + $0x14b0] sm:$0xff]
        %v3742 = vld [vmem:[%s2345 + $0x14b8] sm:$0xff]
        %v3743 = vld [vmem:[%s2345 + $0x14c0] sm:$0xff]
        %v3744 = vld [vmem:[%s2345 + $0x14c8] sm:$0xff]
        %v3745 = vld [vmem:[%s2345 + $0x14d0] sm:$0xff]
        %v3746 = vld [vmem:[%s2345 + $0x14d8] sm:$0xff]
        %v3747 = vld [vmem:[%s2345 + $0x14e0] sm:$0xff]
        %v3748 = vld [vmem:[%s2345 + $0x14e8] sm:$0xff]
        %v3749 = vld [vmem:[%s2345 + $0x14f0] sm:$0xff]
        %v3750 = vld [vmem:[%s2345 + $0x14f8] sm:$0xff]
        %v3751 = vld [vmem:[%s2345 + $0x1500] sm:$0xff]
        %v3752 = vld [vmem:[%s2345 + $0x1508] sm:$0xff]
        %v3753 = vld [vmem:[%s2345 + $0x1510] sm:$0xff]
        %v3754 = vld [vmem:[%s2345 + $0x1518] sm:$0xff]
        %v3755 = vld [vmem:[%s2345 + $0x1520] sm:$0xff]
        %v3756 = vld [vmem:[%s2345 + $0x1528] sm:$0xff]
        %v3757 = vld [vmem:[%s2345 + $0x1530] sm:$0xff]
        %v3758 = vld [vmem:[%s2345 + $0x1538] sm:$0xff]
        %v3759 = vld [vmem:[%s2345 + $0x1540] sm:$0xff]
        %v3760 = vld [vmem:[%s2345 + $0x1548] sm:$0xff]
        %v3761 = vld [vmem:[%s2345 + $0x1550] sm:$0xff]
        %v3762 = vld [vmem:[%s2345 + $0x1558] sm:$0xff]
        %v3763 = vld [vmem:[%s2345 + $0x1560] sm:$0xff]
        %v3764 = vld [vmem:[%s2345 + $0x1568] sm:$0xff]
        %v3765 = vld [vmem:[%s2345 + $0x1570] sm:$0xff]
        %v3766 = vld [vmem:[%s2345 + $0x1578] sm:$0xff]
        %v3767 = vld [vmem:[%s2345 + $0x1580] sm:$0xff]
        %v3768 = vld [vmem:[%s2345 + $0x1588] sm:$0xff]
        %v3769 = vld [vmem:[%s2345 + $0x1590] sm:$0xff]
        %v3770 = vld [vmem:[%s2345 + $0x1598] sm:$0xff]
        %v3771 = vld [vmem:[%s2345 + $0x15a0] sm:$0xff]
        %v3772 = vld [vmem:[%s2345 + $0x15a8] sm:$0xff]
        %v3773 = vld [vmem:[%s2345 + $0x15b0] sm:$0xff]
        %v3774 = vld [vmem:[%s2345 + $0x15b8] sm:$0xff]
        %v3775 = vld [vmem:[%s2345 + $0x15c0] sm:$0xff]
        %v3776 = vld [vmem:[%s2345 + $0x15c8] sm:$0xff]
        %v3777 = vld [vmem:[%s2345 + $0x15d0] sm:$0xff]
        %v3778 = vld [vmem:[%s2345 + $0x15d8] sm:$0xff]
        %v3779 = vld [vmem:[%s2345 + $0x15e0] sm:$0xff]
        %v3780 = vld [vmem:[%s2345 + $0x15e8] sm:$0xff]
        %v3781 = vld [vmem:[%s2345 + $0x15f0] sm:$0xff]
        %v3782 = vld [vmem:[%s2345 + $0x15f8] sm:$0xff]
        %v3783 = vld [vmem:[%s2345 + $0x1600] sm:$0xff]
        %v3784 = vld [vmem:[%s2345 + $0x1608] sm:$0xff]
        %v3785 = vld [vmem:[%s2345 + $0x1610] sm:$0xff]
        %v3786 = vld [vmem:[%s2345 + $0x1618] sm:$0xff]
        %v3787 = vld [vmem:[%s2345 + $0x1620] sm:$0xff]
        %v3788 = vld [vmem:[%s2345 + $0x1628] sm:$0xff]
        %v3789 = vld [vmem:[%s2345 + $0x1630] sm:$0xff]
        %v3790 = vld [vmem:[%s2345 + $0x1638] sm:$0xff]
        %v3791 = vld [vmem:[%s2345 + $0x1640] sm:$0xff]
        %v3792 = vld [vmem:[%s2345 + $0x1648] sm:$0xff]
        %v3793 = vld [vmem:[%s2345 + $0x1650] sm:$0xff]
        %v3794 = vld [vmem:[%s2345 + $0x1658] sm:$0xff]
        %v3795 = vld [vmem:[%s2345 + $0x1660] sm:$0xff]
        %v3796 = vld [vmem:[%s2345 + $0x1668] sm:$0xff]
        %v3797 = vld [vmem:[%s2345 + $0x1670] sm:$0xff]
        %v3798 = vld [vmem:[%s2345 + $0x1678] sm:$0xff]
        %v3799 = vld [vmem:[%s2345 + $0x1680] sm:$0xff]
        %v3800 = vld [vmem:[%s2345 + $0x1688] sm:$0xff]
        %v3801 = vld [vmem:[%s2345 + $0x1690] sm:$0xff]
        %v3802 = vld [vmem:[%s2345 + $0x1698] sm:$0xff]
        %v3803 = vld [vmem:[%s2345 + $0x16a0] sm:$0xff]
        %v3804 = vld [vmem:[%s2345 + $0x16a8] sm:$0xff]
        %v3805 = vld [vmem:[%s2345 + $0x16b0] sm:$0xff]
        %v3806 = vld [vmem:[%s2345 + $0x16b8] sm:$0xff]
        %v3807 = vld [vmem:[%s2345 + $0x16c0] sm:$0xff]
        %v3808 = vld [vmem:[%s2345 + $0x16c8] sm:$0xff]
        %v3809 = vld [vmem:[%s2345 + $0x16d0] sm:$0xff]
        %v3810 = vld [vmem:[%s2345 + $0x16d8] sm:$0xff]
        %v3811 = vld [vmem:[%s2345 + $0x16e0] sm:$0xff]
        %v3812 = vld [vmem:[%s2345 + $0x16e8] sm:$0xff]
        %v3813 = vld [vmem:[%s2345 + $0x16f0] sm:$0xff]
        %v3814 = vld [vmem:[%s2345 + $0x16f8] sm:$0xff]
        %v3815 = vld [vmem:[%s2345 + $0x1700] sm:$0xff]
        %v3816 = vld [vmem:[%s2345 + $0x1708] sm:$0xff]
        %v3817 = vld [vmem:[%s2345 + $0x1710] sm:$0xff]
        %v3818 = vld [vmem:[%s2345 + $0x1718] sm:$0xff]
        %v3819 = vld [vmem:[%s2345 + $0x1720] sm:$0xff]
        %v3820 = vld [vmem:[%s2345 + $0x1728] sm:$0xff]
        %v3821 = vld [vmem:[%s2345 + $0x1730] sm:$0xff]
        %v3822 = vld [vmem:[%s2345 + $0x1738] sm:$0xff]
        %v3823 = vld [vmem:[%s2345 + $0x1740] sm:$0xff]
        %v3824 = vld [vmem:[%s2345 + $0x1748] sm:$0xff]
        %v3825 = vld [vmem:[%s2345 + $0x1750] sm:$0xff]
        %v3826 = vld [vmem:[%s2345 + $0x1758] sm:$0xff]
        %v3827 = vld [vmem:[%s2345 + $0x1760] sm:$0xff]
        %v3828 = vld [vmem:[%s2345 + $0x1768] sm:$0xff]
        %v3829 = vld [vmem:[%s2345 + $0x1770] sm:$0xff]
        %v3830 = vld [vmem:[%s2345 + $0x1778] sm:$0xff]
        %v3831 = vld [vmem:[%s2345 + $0x1780] sm:$0xff]
        %v3832 = vld [vmem:[%s2345 + $0x1788] sm:$0xff]
        %v3833 = vld [vmem:[%s2345 + $0x1790] sm:$0xff]
        %v3834 = vld [vmem:[%s2345 + $0x1798] sm:$0xff]
        %v3835 = vld [vmem:[%s2345 + $0x17a0] sm:$0xff]
        %v3836 = vld [vmem:[%s2345 + $0x17a8] sm:$0xff]
        %v3837 = vld [vmem:[%s2345 + $0x17b0] sm:$0xff]
        %v3838 = vld [vmem:[%s2345 + $0x17b8] sm:$0xff]
        %v3839 = vld [vmem:[%s2345 + $0x17c0] sm:$0xff]
        %v3840 = vld [vmem:[%s2345 + $0x17c8] sm:$0xff]
        %v3841 = vld [vmem:[%s2345 + $0x17d0] sm:$0xff]
        %v3842 = vld [vmem:[%s2345 + $0x17d8] sm:$0xff]
        %v3843 = vld [vmem:[%s2345 + $0x17e0] sm:$0xff]
        %v3844 = vld [vmem:[%s2345 + $0x17e8] sm:$0xff]
        %v3845 = vld [vmem:[%s2345 + $0x17f0] sm:$0xff]
        %v3846 = vld [vmem:[%s2345 + $0x17f8] sm:$0xff]
        %v3847 = vld [vmem:[%s2345 + $0x1800] sm:$0xff]
        %v3848 = vld [vmem:[%s2345 + $0x1808] sm:$0xff]
        %v3849 = vld [vmem:[%s2345 + $0x1810] sm:$0xff]
        %v3850 = vld [vmem:[%s2345 + $0x1818] sm:$0xff]
        %v3851 = vld [vmem:[%s2345 + $0x1820] sm:$0xff]
        %v3852 = vld [vmem:[%s2345 + $0x1828] sm:$0xff]
        %v3853 = vld [vmem:[%s2345 + $0x1830] sm:$0xff]
        %v3854 = vld [vmem:[%s2345 + $0x1838] sm:$0xff]
        %v3855 = vld [vmem:[%s2345 + $0x1840] sm:$0xff]
        %v3856 = vld [vmem:[%s2345 + $0x1848] sm:$0xff]
        %v3857 = vld [vmem:[%s2345 + $0x1850] sm:$0xff]
        %v3858 = vld [vmem:[%s2345 + $0x1858] sm:$0xff]
        %v3859 = vld [vmem:[%s2345 + $0x1860] sm:$0xff]
        %v3860 = vld [vmem:[%s2345 + $0x1868] sm:$0xff]
        %v3861 = vld [vmem:[%s2345 + $0x1870] sm:$0xff]
        %v3862 = vld [vmem:[%s2345 + $0x1878] sm:$0xff]
        %v3863 = vld [vmem:[%s2345 + $0x1880] sm:$0xff]
        %v3864 = vld [vmem:[%s2345 + $0x1888] sm:$0xff]
        %v3865 = vld [vmem:[%s2345 + $0x1890] sm:$0xff]
        %v3866 = vld [vmem:[%s2345 + $0x1898] sm:$0xff]
        %v3867 = vld [vmem:[%s2345 + $0x18a0] sm:$0xff]
        %v3868 = vld [vmem:[%s2345 + $0x18a8] sm:$0xff]
        %v3869 = vld [vmem:[%s2345 + $0x18b0] sm:$0xff]
        %v3870 = vld [vmem:[%s2345 + $0x18b8] sm:$0xff]
        %v3871 = vld [vmem:[%s2345 + $0x18c0] sm:$0xff]
        %v3872 = vld [vmem:[%s2345 + $0x18c8] sm:$0xff]
        %v3873 = vld [vmem:[%s2345 + $0x18d0] sm:$0xff]
        %v3874 = vld [vmem:[%s2345 + $0x18d8] sm:$0xff]
        %v3875 = vld [vmem:[%s2345 + $0x18e0] sm:$0xff]
        %v3876 = vld [vmem:[%s2345 + $0x18e8] sm:$0xff]
        %v3877 = vld [vmem:[%s2345 + $0x18f0] sm:$0xff]
        %v3878 = vld [vmem:[%s2345 + $0x18f8] sm:$0xff]
        %v3879 = vld [vmem:[%s2345 + $0x1900] sm:$0xff]
        %v3880 = vld [vmem:[%s2345 + $0x1908] sm:$0xff]
        %v3881 = vld [vmem:[%s2345 + $0x1910] sm:$0xff]
        %v3882 = vld [vmem:[%s2345 + $0x1918] sm:$0xff]
        %v3883 = vld [vmem:[%s2345 + $0x1920] sm:$0xff]
        %v3884 = vld [vmem:[%s2345 + $0x1928] sm:$0xff]
        %v3885 = vld [vmem:[%s2345 + $0x1930] sm:$0xff]
        %v3886 = vld [vmem:[%s2345 + $0x1938] sm:$0xff]
        %v3887 = vld [vmem:[%s2345 + $0x1940] sm:$0xff]
        %v3888 = vld [vmem:[%s2345 + $0x1948] sm:$0xff]
        %v3889 = vld [vmem:[%s2345 + $0x1950] sm:$0xff]
        %v3890 = vld [vmem:[%s2345 + $0x1958] sm:$0xff]
        %v3891 = vld [vmem:[%s2345 + $0x1960] sm:$0xff]
        %v3892 = vld [vmem:[%s2345 + $0x1968] sm:$0xff]
        %v3893 = vld [vmem:[%s2345 + $0x1970] sm:$0xff]
        %v3894 = vld [vmem:[%s2345 + $0x1978] sm:$0xff]
        %v3895 = vld [vmem:[%s2345 + $0x1980] sm:$0xff]
        %v3896 = vld [vmem:[%s2345 + $0x1988] sm:$0xff]
        %v3897 = vld [vmem:[%s2345 + $0x1990] sm:$0xff]
        %v3898 = vld [vmem:[%s2345 + $0x1998] sm:$0xff]
        %v3899 = vld [vmem:[%s2345 + $0x19a0] sm:$0xff]
        %v3900 = vld [vmem:[%s2345 + $0x19a8] sm:$0xff]
        %v3901 = vld [vmem:[%s2345 + $0x19b0] sm:$0xff]
        %v3902 = vld [vmem:[%s2345 + $0x19b8] sm:$0xff]
        %v3903 = vld [vmem:[%s2345 + $0x19c0] sm:$0xff]
        %v3904 = vld [vmem:[%s2345 + $0x19c8] sm:$0xff]
        %v3905 = vld [vmem:[%s2345 + $0x19d0] sm:$0xff]
        %v3906 = vld [vmem:[%s2345 + $0x19d8] sm:$0xff]
        %v3907 = vld [vmem:[%s2345 + $0x19e0] sm:$0xff]
        %v3908 = vld [vmem:[%s2345 + $0x19e8] sm:$0xff]
        %v3909 = vld [vmem:[%s2345 + $0x19f0] sm:$0xff]
        %v3910 = vld [vmem:[%s2345 + $0x19f8] sm:$0xff]
        %v3911 = vld [vmem:[%s2345 + $0x1a00] sm:$0xff]
        %v3912 = vld [vmem:[%s2345 + $0x1a08] sm:$0xff]
        %v3913 = vld [vmem:[%s2345 + $0x1a10] sm:$0xff]
        %v3914 = vld [vmem:[%s2345 + $0x1a18] sm:$0xff]
        %v3915 = vld [vmem:[%s2345 + $0x1a20] sm:$0xff]
        %v3916 = vld [vmem:[%s2345 + $0x1a28] sm:$0xff]
        %v3917 = vld [vmem:[%s2345 + $0x1a30] sm:$0xff]
        %v3918 = vld [vmem:[%s2345 + $0x1a38] sm:$0xff]
        %v3919 = vld [vmem:[%s2345 + $0x1a40] sm:$0xff]
        %v3920 = vld [vmem:[%s2345 + $0x1a48] sm:$0xff]
        %v3921 = vld [vmem:[%s2345 + $0x1a50] sm:$0xff]
        %v3922 = vld [vmem:[%s2345 + $0x1a58] sm:$0xff]
        %v3923 = vld [vmem:[%s2345 + $0x1a60] sm:$0xff]
        %v3924 = vld [vmem:[%s2345 + $0x1a68] sm:$0xff]
        %v3925 = vld [vmem:[%s2345 + $0x1a70] sm:$0xff]
        %v3926 = vld [vmem:[%s2345 + $0x1a78] sm:$0xff]
        %v3927 = vld [vmem:[%s2345 + $0x1a80] sm:$0xff]
        %v3928 = vld [vmem:[%s2345 + $0x1a88] sm:$0xff]
        %v3929 = vld [vmem:[%s2345 + $0x1a90] sm:$0xff]
        %v3930 = vld [vmem:[%s2345 + $0x1a98] sm:$0xff]
        %v3931 = vld [vmem:[%s2345 + $0x1aa0] sm:$0xff]
        %v3932 = vld [vmem:[%s2345 + $0x1aa8] sm:$0xff]
        %v3933 = vld [vmem:[%s2345 + $0x1ab0] sm:$0xff]
        %v3934 = vld [vmem:[%s2345 + $0x1ab8] sm:$0xff]
        %v3935 = vld [vmem:[%s2345 + $0x1ac0] sm:$0xff]
        %v3936 = vld [vmem:[%s2345 + $0x1ac8] sm:$0xff]
        %v3937 = vld [vmem:[%s2345 + $0x1ad0] sm:$0xff]
        %v3938 = vld [vmem:[%s2345 + $0x1ad8] sm:$0xff]
        %v3939 = vld [vmem:[%s2345 + $0x1ae0] sm:$0xff]
        %v3940 = vld [vmem:[%s2345 + $0x1ae8] sm:$0xff]
        %v3941 = vld [vmem:[%s2345 + $0x1af0] sm:$0xff]
        %v3942 = vld [vmem:[%s2345 + $0x1af8] sm:$0xff]
        %v3943 = vld [vmem:[%s2345 + $0x1b00] sm:$0xff]
        %v3944 = vld [vmem:[%s2345 + $0x1b08] sm:$0xff]
        %v3945 = vld [vmem:[%s2345 + $0x1b10] sm:$0xff]
        %v3946 = vld [vmem:[%s2345 + $0x1b18] sm:$0xff]
        %v3947 = vld [vmem:[%s2345 + $0x1b20] sm:$0xff]
        %v3948 = vld [vmem:[%s2345 + $0x1b28] sm:$0xff]
        %v3949 = vld [vmem:[%s2345 + $0x1b30] sm:$0xff]
        %v3950 = vld [vmem:[%s2345 + $0x1b38] sm:$0xff]
        %v3951 = vld [vmem:[%s2345 + $0x1b40] sm:$0xff]
        %v3952 = vld [vmem:[%s2345 + $0x1b48] sm:$0xff]
        %v3953 = vld [vmem:[%s2345 + $0x1b50] sm:$0xff]
        %v3954 = vld [vmem:[%s2345 + $0x1b58] sm:$0xff]
        %v3955 = vld [vmem:[%s2345 + $0x1b60] sm:$0xff]
        %v3956 = vld [vmem:[%s2345 + $0x1b68] sm:$0xff]
        %v3957 = vld [vmem:[%s2345 + $0x1b70] sm:$0xff]
        %v3958 = vld [vmem:[%s2345 + $0x1b78] sm:$0xff]
        %v3959 = vld [vmem:[%s2345 + $0x1b80] sm:$0xff]
        %v3960 = vld [vmem:[%s2345 + $0x1b88] sm:$0xff]
        %v3961 = vld [vmem:[%s2345 + $0x1b90] sm:$0xff]
        %v3962 = vld [vmem:[%s2345 + $0x1b98] sm:$0xff]
        %v3963 = vld [vmem:[%s2345 + $0x1ba0] sm:$0xff]
        %v3964 = vld [vmem:[%s2345 + $0x1ba8] sm:$0xff]
        %v3965 = vld [vmem:[%s2345 + $0x1bb0] sm:$0xff]
        %v3966 = vld [vmem:[%s2345 + $0x1bb8] sm:$0xff]
        %v3967 = vld [vmem:[%s2345 + $0x1bc0] sm:$0xff]
        %v3968 = vld [vmem:[%s2345 + $0x1bc8] sm:$0xff]
        %v3969 = vld [vmem:[%s2345 + $0x1bd0] sm:$0xff]
        %v3970 = vld [vmem:[%s2345 + $0x1bd8] sm:$0xff]
        %v3971 = vld [vmem:[%s2345 + $0x1be0] sm:$0xff]
        %v3972 = vld [vmem:[%s2345 + $0x1be8] sm:$0xff]
        %v3973 = vld [vmem:[%s2345 + $0x1bf0] sm:$0xff]
        %v3974 = vld [vmem:[%s2345 + $0x1bf8] sm:$0xff]
        %v3975 = vld [vmem:[%s2345 + $0x1c00] sm:$0xff]
        %v3976 = vld [vmem:[%s2345 + $0x1c08] sm:$0xff]
        %v3977 = vld [vmem:[%s2345 + $0x1c10] sm:$0xff]
        %v3978 = vld [vmem:[%s2345 + $0x1c18] sm:$0xff]
        %v3979 = vld [vmem:[%s2345 + $0x1c20] sm:$0xff]
        %v3980 = vld [vmem:[%s2345 + $0x1c28] sm:$0xff]
        %v3981 = vld [vmem:[%s2345 + $0x1c30] sm:$0xff]
        %v3982 = vld [vmem:[%s2345 + $0x1c38] sm:$0xff]
        %v3983 = vld [vmem:[%s2345 + $0x1c40] sm:$0xff]
        %v3984 = vld [vmem:[%s2345 + $0x1c48] sm:$0xff]
        %v3985 = vld [vmem:[%s2345 + $0x1c50] sm:$0xff]
        %v3986 = vld [vmem:[%s2345 + $0x1c58] sm:$0xff]
        %v3987 = vld [vmem:[%s2345 + $0x1c60] sm:$0xff]
        %v3988 = vld [vmem:[%s2345 + $0x1c68] sm:$0xff]
        %v3989 = vld [vmem:[%s2345 + $0x1c70] sm:$0xff]
        %v3990 = vld [vmem:[%s2345 + $0x1c78] sm:$0xff]
        %v3991 = vld [vmem:[%s2345 + $0x1c80] sm:$0xff]
        %v3992 = vld [vmem:[%s2345 + $0x1c88] sm:$0xff]
        %v3993 = vld [vmem:[%s2345 + $0x1c90] sm:$0xff]
        %v3994 = vld [vmem:[%s2345 + $0x1c98] sm:$0xff]
        %v3995 = vld [vmem:[%s2345 + $0x1ca0] sm:$0xff]
        %v3996 = vld [vmem:[%s2345 + $0x1ca8] sm:$0xff]
        %v3997 = vld [vmem:[%s2345 + $0x1cb0] sm:$0xff]
        %v3998 = vld [vmem:[%s2345 + $0x1cb8] sm:$0xff]
        %v3999 = vld [vmem:[%s2345 + $0x1cc0] sm:$0xff]
        %v4000 = vld [vmem:[%s2345 + $0x1cc8] sm:$0xff]
        %v4001 = vld [vmem:[%s2345 + $0x1cd0] sm:$0xff]
        %v4002 = vld [vmem:[%s2345 + $0x1cd8] sm:$0xff]
        %v4003 = vld [vmem:[%s2345 + $0x1ce0] sm:$0xff]
        %v4004 = vld [vmem:[%s2345 + $0x1ce8] sm:$0xff]
        %v4005 = vld [vmem:[%s2345 + $0x1cf0] sm:$0xff]
        %v4006 = vld [vmem:[%s2345 + $0x1cf8] sm:$0xff]
        %v4007 = vld [vmem:[%s2345 + $0x1d00] sm:$0xff]
        %v4008 = vld [vmem:[%s2345 + $0x1d08] sm:$0xff]
        %v4009 = vld [vmem:[%s2345 + $0x1d10] sm:$0xff]
        %v4010 = vld [vmem:[%s2345 + $0x1d18] sm:$0xff]
        %v4011 = vld [vmem:[%s2345 + $0x1d20] sm:$0xff]
        %v4012 = vld [vmem:[%s2345 + $0x1d28] sm:$0xff]
        %v4013 = vld [vmem:[%s2345 + $0x1d30] sm:$0xff]
        %v4014 = vld [vmem:[%s2345 + $0x1d38] sm:$0xff]
        %v4015 = vld [vmem:[%s2345 + $0x1d40] sm:$0xff]
        %v4016 = vld [vmem:[%s2345 + $0x1d48] sm:$0xff]
        %v4017 = vld [vmem:[%s2345 + $0x1d50] sm:$0xff]
        %v4018 = vld [vmem:[%s2345 + $0x1d58] sm:$0xff]
        %v4019 = vld [vmem:[%s2345 + $0x1d60] sm:$0xff]
        %v4020 = vld [vmem:[%s2345 + $0x1d68] sm:$0xff]
        %v4021 = vld [vmem:[%s2345 + $0x1d70] sm:$0xff]
        %v4022 = vld [vmem:[%s2345 + $0x1d78] sm:$0xff]
        %v4023 = vld [vmem:[%s2345 + $0x1d80] sm:$0xff]
        %v4024 = vld [vmem:[%s2345 + $0x1d88] sm:$0xff]
        %v4025 = vld [vmem:[%s2345 + $0x1d90] sm:$0xff]
        %v4026 = vld [vmem:[%s2345 + $0x1d98] sm:$0xff]
        %v4027 = vld [vmem:[%s2345 + $0x1da0] sm:$0xff]
        %v4028 = vld [vmem:[%s2345 + $0x1da8] sm:$0xff]
        %v4029 = vld [vmem:[%s2345 + $0x1db0] sm:$0xff]
        %v4030 = vld [vmem:[%s2345 + $0x1db8] sm:$0xff]
        %v4031 = vld [vmem:[%s2345 + $0x1dc0] sm:$0xff]
        %v4032 = vld [vmem:[%s2345 + $0x1dc8] sm:$0xff]
        %v4033 = vld [vmem:[%s2345 + $0x1dd0] sm:$0xff]
        %v4034 = vld [vmem:[%s2345 + $0x1dd8] sm:$0xff]
        %v4035 = vld [vmem:[%s2345 + $0x1de0] sm:$0xff]
        %v4036 = vld [vmem:[%s2345 + $0x1de8] sm:$0xff]
        %v4037 = vld [vmem:[%s2345 + $0x1df0] sm:$0xff]
        %v4038 = vld [vmem:[%s2345 + $0x1df8] sm:$0xff]
        %v4039 = vld [vmem:[%s2345 + $0x1e00] sm:$0xff]
        %v4040 = vld [vmem:[%s2345 + $0x1e08] sm:$0xff]
        %v4041 = vld [vmem:[%s2345 + $0x1e10] sm:$0xff]
        %v4042 = vld [vmem:[%s2345 + $0x1e18] sm:$0xff]
        %v4043 = vld [vmem:[%s2345 + $0x1e20] sm:$0xff]
        %v4044 = vld [vmem:[%s2345 + $0x1e28] sm:$0xff]
        %v4045 = vld [vmem:[%s2345 + $0x1e30] sm:$0xff]
        %v4046 = vld [vmem:[%s2345 + $0x1e38] sm:$0xff]
        %v4047 = vld [vmem:[%s2345 + $0x1e40] sm:$0xff]
        %v4048 = vld [vmem:[%s2345 + $0x1e48] sm:$0xff]
        %v4049 = vld [vmem:[%s2345 + $0x1e50] sm:$0xff]
        %v4050 = vld [vmem:[%s2345 + $0x1e58] sm:$0xff]
        %v4051 = vld [vmem:[%s2345 + $0x1e60] sm:$0xff]
        %v4052 = vld [vmem:[%s2345 + $0x1e68] sm:$0xff]
        %v4053 = vld [vmem:[%s2345 + $0x1e70] sm:$0xff]
        %v4054 = vld [vmem:[%s2345 + $0x1e78] sm:$0xff]
        %v4055 = vld [vmem:[%s2345 + $0x1e80] sm:$0xff]
        %v4056 = vld [vmem:[%s2345 + $0x1e88] sm:$0xff]
        %v4057 = vld [vmem:[%s2345 + $0x1e90] sm:$0xff]
        %v4058 = vld [vmem:[%s2345 + $0x1e98] sm:$0xff]
        %v4059 = vld [vmem:[%s2345 + $0x1ea0] sm:$0xff]
        %v4060 = vld [vmem:[%s2345 + $0x1ea8] sm:$0xff]
        %v4061 = vld [vmem:[%s2345 + $0x1eb0] sm:$0xff]
        %v4062 = vld [vmem:[%s2345 + $0x1eb8] sm:$0xff]
        %v4063 = vld [vmem:[%s2345 + $0x1ec0] sm:$0xff]
        %v4064 = vld [vmem:[%s2345 + $0x1ec8] sm:$0xff]
        %v4065 = vld [vmem:[%s2345 + $0x1ed0] sm:$0xff]
        %v4066 = vld [vmem:[%s2345 + $0x1ed8] sm:$0xff]
        %v4067 = vld [vmem:[%s2345 + $0x1ee0] sm:$0xff]
        %v4068 = vld [vmem:[%s2345 + $0x1ee8] sm:$0xff]
        %v4069 = vld [vmem:[%s2345 + $0x1ef0] sm:$0xff]
        %v4070 = vld [vmem:[%s2345 + $0x1ef8] sm:$0xff]
        %v4071 = vld [vmem:[%s2345 + $0x1f00] sm:$0xff]
        %v4072 = vld [vmem:[%s2345 + $0x1f08] sm:$0xff]
        %v4073 = vld [vmem:[%s2345 + $0x1f10] sm:$0xff]
        %v4074 = vld [vmem:[%s2345 + $0x1f18] sm:$0xff]
        %v4075 = vld [vmem:[%s2345 + $0x1f20] sm:$0xff]
        %v4076 = vld [vmem:[%s2345 + $0x1f28] sm:$0xff]
        %v4077 = vld [vmem:[%s2345 + $0x1f30] sm:$0xff]
        %v4078 = vld [vmem:[%s2345 + $0x1f38] sm:$0xff]
        %v4079 = vld [vmem:[%s2345 + $0x1f40] sm:$0xff]
        %v4080 = vld [vmem:[%s2345 + $0x1f48] sm:$0xff]
        %v4081 = vld [vmem:[%s2345 + $0x1f50] sm:$0xff]
        %v4082 = vld [vmem:[%s2345 + $0x1f58] sm:$0xff]
        %v4083 = vld [vmem:[%s2345 + $0x1f60] sm:$0xff]
        %v4084 = vld [vmem:[%s2345 + $0x1f68] sm:$0xff]
        %v4085 = vld [vmem:[%s2345 + $0x1f70] sm:$0xff]
        %v4086 = vld [vmem:[%s2345 + $0x1f78] sm:$0xff]
        %v4087 = vld [vmem:[%s2345 + $0x1f80] sm:$0xff]
        %v4088 = vld [vmem:[%s2345 + $0x1f88] sm:$0xff]
        %v4089 = vld [vmem:[%s2345 + $0x1f90] sm:$0xff]
        %v4090 = vld [vmem:[%s2345 + $0x1f98] sm:$0xff]
        %v4091 = vld [vmem:[%s2345 + $0x1fa0] sm:$0xff]
        %v4092 = vld [vmem:[%s2345 + $0x1fa8] sm:$0xff]
        %v4093 = vld [vmem:[%s2345 + $0x1fb0] sm:$0xff]
        %v4094 = vld [vmem:[%s2345 + $0x1fb8] sm:$0xff]
        %v4095 = vld [vmem:[%s2345 + $0x1fc0] sm:$0xff]
        %v4096 = vld [vmem:[%s2345 + $0x1fc8] sm:$0xff]
        %v4097 = vld [vmem:[%s2345 + $0x1fd0] sm:$0xff]
        %v4098 = vld [vmem:[%s2345 + $0x1fd8] sm:$0xff]
        %v4099 = vld [vmem:[%s2345 + $0x1fe0] sm:$0xff]
        %v4100 = vld [vmem:[%s2345 + $0x1fe8] sm:$0xff]
        %v4101 = vld [vmem:[%s2345 + $0x1ff0] sm:$0xff]
        %v4102 = vld [vmem:[%s2345 + $0x1ff8] sm:$0xff]
        %v5127 = vunpack.c.l.b16 %v3079
        %v5128 = vunpack.c.h.b16 %v3079
        %v5129 = vunpack.c.l.b16 %v3080
        %v5130 = vunpack.c.h.b16 %v3080
        %v5131 = vunpack.c.l.b16 %v3081
        %v5132 = vunpack.c.h.b16 %v3081
        %v5133 = vunpack.c.l.b16 %v3082
        %v5134 = vunpack.c.h.b16 %v3082
        %v5135 = vunpack.c.l.b16 %v3083
        %v5136 = vunpack.c.h.b16 %v3083
        %v5137 = vunpack.c.l.b16 %v3084
        %v5138 = vunpack.c.h.b16 %v3084
        %v5139 = vunpack.c.l.b16 %v3085
        %v5140 = vunpack.c.h.b16 %v3085
        %v5141 = vunpack.c.l.b16 %v3086
        %v5142 = vunpack.c.h.b16 %v3086
        %v5143 = vunpack.c.l.b16 %v3087
        %v5144 = vunpack.c.h.b16 %v3087
        %v5145 = vunpack.c.l.b16 %v3088
        %v5146 = vunpack.c.h.b16 %v3088
        %v5147 = vunpack.c.l.b16 %v3089
        %v5148 = vunpack.c.h.b16 %v3089
        %v5149 = vunpack.c.l.b16 %v3090
        %v5150 = vunpack.c.h.b16 %v3090
        %v5151 = vunpack.c.l.b16 %v3091
        %v5152 = vunpack.c.h.b16 %v3091
        %v5153 = vunpack.c.l.b16 %v3092
        %v5154 = vunpack.c.h.b16 %v3092
        %v5155 = vunpack.c.l.b16 %v3093
        %v5156 = vunpack.c.h.b16 %v3093
        %v5157 = vunpack.c.l.b16 %v3094
        %v5158 = vunpack.c.h.b16 %v3094
        %v5159 = vunpack.c.l.b16 %v3095
        %v5160 = vunpack.c.h.b16 %v3095
        %v5161 = vunpack.c.l.b16 %v3096
        %v5162 = vunpack.c.h.b16 %v3096
        %v5163 = vunpack.c.l.b16 %v3097
        %v5164 = vunpack.c.h.b16 %v3097
        %v5165 = vunpack.c.l.b16 %v3098
        %v5166 = vunpack.c.h.b16 %v3098
        %v5167 = vunpack.c.l.b16 %v3099
        %v5168 = vunpack.c.h.b16 %v3099
        %v5169 = vunpack.c.l.b16 %v3100
        %v5170 = vunpack.c.h.b16 %v3100
        %v5171 = vunpack.c.l.b16 %v3101
        %v5172 = vunpack.c.h.b16 %v3101
        %v5173 = vunpack.c.l.b16 %v3102
        %v5174 = vunpack.c.h.b16 %v3102
        %v5175 = vunpack.c.l.b16 %v3103
        %v5176 = vunpack.c.h.b16 %v3103
        %v5177 = vunpack.c.l.b16 %v3104
        %v5178 = vunpack.c.h.b16 %v3104
        %v5179 = vunpack.c.l.b16 %v3105
        %v5180 = vunpack.c.h.b16 %v3105
        %v5181 = vunpack.c.l.b16 %v3106
        %v5182 = vunpack.c.h.b16 %v3106
        %v5183 = vunpack.c.l.b16 %v3107
        %v5184 = vunpack.c.h.b16 %v3107
        %v5185 = vunpack.c.l.b16 %v3108
        %v5186 = vunpack.c.h.b16 %v3108
        %v5187 = vunpack.c.l.b16 %v3109
        %v5188 = vunpack.c.h.b16 %v3109
        %v5189 = vunpack.c.l.b16 %v3110
        %v5190 = vunpack.c.h.b16 %v3110
        %v5191 = vunpack.c.l.b16 %v3111
        %v5192 = vunpack.c.h.b16 %v3111
        %v5193 = vunpack.c.l.b16 %v3112
        %v5194 = vunpack.c.h.b16 %v3112
        %v5195 = vunpack.c.l.b16 %v3113
        %v5196 = vunpack.c.h.b16 %v3113
        %v5197 = vunpack.c.l.b16 %v3114
        %v5198 = vunpack.c.h.b16 %v3114
        %v5199 = vunpack.c.l.b16 %v3115
        %v5200 = vunpack.c.h.b16 %v3115
        %v5201 = vunpack.c.l.b16 %v3116
        %v5202 = vunpack.c.h.b16 %v3116
        %v5203 = vunpack.c.l.b16 %v3117
        %v5204 = vunpack.c.h.b16 %v3117
        %v5205 = vunpack.c.l.b16 %v3118
        %v5206 = vunpack.c.h.b16 %v3118
        %v5207 = vunpack.c.l.b16 %v3119
        %v5208 = vunpack.c.h.b16 %v3119
        %v5209 = vunpack.c.l.b16 %v3120
        %v5210 = vunpack.c.h.b16 %v3120
        %v5211 = vunpack.c.l.b16 %v3121
        %v5212 = vunpack.c.h.b16 %v3121
        %v5213 = vunpack.c.l.b16 %v3122
        %v5214 = vunpack.c.h.b16 %v3122
        %v5215 = vunpack.c.l.b16 %v3123
        %v5216 = vunpack.c.h.b16 %v3123
        %v5217 = vunpack.c.l.b16 %v3124
        %v5218 = vunpack.c.h.b16 %v3124
        %v5219 = vunpack.c.l.b16 %v3125
        %v5220 = vunpack.c.h.b16 %v3125
        %v5221 = vunpack.c.l.b16 %v3126
        %v5222 = vunpack.c.h.b16 %v3126
        %v5223 = vunpack.c.l.b16 %v3127
        %v5224 = vunpack.c.h.b16 %v3127
        %v5225 = vunpack.c.l.b16 %v3128
        %v5226 = vunpack.c.h.b16 %v3128
        %v5227 = vunpack.c.l.b16 %v3129
        %v5228 = vunpack.c.h.b16 %v3129
        %v5229 = vunpack.c.l.b16 %v3130
        %v5230 = vunpack.c.h.b16 %v3130
        %v5231 = vunpack.c.l.b16 %v3131
        %v5232 = vunpack.c.h.b16 %v3131
        %v5233 = vunpack.c.l.b16 %v3132
        %v5234 = vunpack.c.h.b16 %v3132
        %v5235 = vunpack.c.l.b16 %v3133
        %v5236 = vunpack.c.h.b16 %v3133
        %v5237 = vunpack.c.l.b16 %v3134
        %v5238 = vunpack.c.h.b16 %v3134
        %v5239 = vunpack.c.l.b16 %v3135
        %v5240 = vunpack.c.h.b16 %v3135
        %v5241 = vunpack.c.l.b16 %v3136
        %v5242 = vunpack.c.h.b16 %v3136
        %v5243 = vunpack.c.l.b16 %v3137
        %v5244 = vunpack.c.h.b16 %v3137
        %v5245 = vunpack.c.l.b16 %v3138
        %v5246 = vunpack.c.h.b16 %v3138
        %v5247 = vunpack.c.l.b16 %v3139
        %v5248 = vunpack.c.h.b16 %v3139
        %v5249 = vunpack.c.l.b16 %v3140
        %v5250 = vunpack.c.h.b16 %v3140
        %v5251 = vunpack.c.l.b16 %v3141
        %v5252 = vunpack.c.h.b16 %v3141
        %v5253 = vunpack.c.l.b16 %v3142
        %v5254 = vunpack.c.h.b16 %v3142
        %v5255 = vunpack.c.l.b16 %v3143
        %v5256 = vunpack.c.h.b16 %v3143
        %v5257 = vunpack.c.l.b16 %v3144
        %v5258 = vunpack.c.h.b16 %v3144
        %v5259 = vunpack.c.l.b16 %v3145
        %v5260 = vunpack.c.h.b16 %v3145
        %v5261 = vunpack.c.l.b16 %v3146
        %v5262 = vunpack.c.h.b16 %v3146
        %v5263 = vunpack.c.l.b16 %v3147
        %v5264 = vunpack.c.h.b16 %v3147
        %v5265 = vunpack.c.l.b16 %v3148
        %v5266 = vunpack.c.h.b16 %v3148
        %v5267 = vunpack.c.l.b16 %v3149
        %v5268 = vunpack.c.h.b16 %v3149
        %v5269 = vunpack.c.l.b16 %v3150
        %v5270 = vunpack.c.h.b16 %v3150
        %v5271 = vunpack.c.l.b16 %v3151
        %v5272 = vunpack.c.h.b16 %v3151
        %v5273 = vunpack.c.l.b16 %v3152
        %v5274 = vunpack.c.h.b16 %v3152
        %v5275 = vunpack.c.l.b16 %v3153
        %v5276 = vunpack.c.h.b16 %v3153
        %v5277 = vunpack.c.l.b16 %v3154
        %v5278 = vunpack.c.h.b16 %v3154
        %v5279 = vunpack.c.l.b16 %v3155
        %v5280 = vunpack.c.h.b16 %v3155
        %v5281 = vunpack.c.l.b16 %v3156
        %v5282 = vunpack.c.h.b16 %v3156
        %v5283 = vunpack.c.l.b16 %v3157
        %v5284 = vunpack.c.h.b16 %v3157
        %v5285 = vunpack.c.l.b16 %v3158
        %v5286 = vunpack.c.h.b16 %v3158
        %v5287 = vunpack.c.l.b16 %v3159
        %v5288 = vunpack.c.h.b16 %v3159
        %v5289 = vunpack.c.l.b16 %v3160
        %v5290 = vunpack.c.h.b16 %v3160
        %v5291 = vunpack.c.l.b16 %v3161
        %v5292 = vunpack.c.h.b16 %v3161
        %v5293 = vunpack.c.l.b16 %v3162
        %v5294 = vunpack.c.h.b16 %v3162
        %v5295 = vunpack.c.l.b16 %v3163
        %v5296 = vunpack.c.h.b16 %v3163
        %v5297 = vunpack.c.l.b16 %v3164
        %v5298 = vunpack.c.h.b16 %v3164
        %v5299 = vunpack.c.l.b16 %v3165
        %v5300 = vunpack.c.h.b16 %v3165
        %v5301 = vunpack.c.l.b16 %v3166
        %v5302 = vunpack.c.h.b16 %v3166
        %v5303 = vunpack.c.l.b16 %v3167
        %v5304 = vunpack.c.h.b16 %v3167
        %v5305 = vunpack.c.l.b16 %v3168
        %v5306 = vunpack.c.h.b16 %v3168
        %v5307 = vunpack.c.l.b16 %v3169
        %v5308 = vunpack.c.h.b16 %v3169
        %v5309 = vunpack.c.l.b16 %v3170
        %v5310 = vunpack.c.h.b16 %v3170
        %v5311 = vunpack.c.l.b16 %v3171
        %v5312 = vunpack.c.h.b16 %v3171
        %v5313 = vunpack.c.l.b16 %v3172
        %v5314 = vunpack.c.h.b16 %v3172
        %v5315 = vunpack.c.l.b16 %v3173
        %v5316 = vunpack.c.h.b16 %v3173
        %v5317 = vunpack.c.l.b16 %v3174
        %v5318 = vunpack.c.h.b16 %v3174
        %v5319 = vunpack.c.l.b16 %v3175
        %v5320 = vunpack.c.h.b16 %v3175
        %v5321 = vunpack.c.l.b16 %v3176
        %v5322 = vunpack.c.h.b16 %v3176
        %v5323 = vunpack.c.l.b16 %v3177
        %v5324 = vunpack.c.h.b16 %v3177
        %v5325 = vunpack.c.l.b16 %v3178
        %v5326 = vunpack.c.h.b16 %v3178
        %v5327 = vunpack.c.l.b16 %v3179
        %v5328 = vunpack.c.h.b16 %v3179
        %v5329 = vunpack.c.l.b16 %v3180
        %v5330 = vunpack.c.h.b16 %v3180
        %v5331 = vunpack.c.l.b16 %v3181
        %v5332 = vunpack.c.h.b16 %v3181
        %v5333 = vunpack.c.l.b16 %v3182
        %v5334 = vunpack.c.h.b16 %v3182
        %v5335 = vunpack.c.l.b16 %v3183
        %v5336 = vunpack.c.h.b16 %v3183
        %v5337 = vunpack.c.l.b16 %v3184
        %v5338 = vunpack.c.h.b16 %v3184
        %v5339 = vunpack.c.l.b16 %v3185
        %v5340 = vunpack.c.h.b16 %v3185
        %v5341 = vunpack.c.l.b16 %v3186
        %v5342 = vunpack.c.h.b16 %v3186
        %v5343 = vunpack.c.l.b16 %v3187
        %v5344 = vunpack.c.h.b16 %v3187
        %v5345 = vunpack.c.l.b16 %v3188
        %v5346 = vunpack.c.h.b16 %v3188
        %v5347 = vunpack.c.l.b16 %v3189
        %v5348 = vunpack.c.h.b16 %v3189
        %v5349 = vunpack.c.l.b16 %v3190
        %v5350 = vunpack.c.h.b16 %v3190
        %v5351 = vunpack.c.l.b16 %v3191
        %v5352 = vunpack.c.h.b16 %v3191
        %v5353 = vunpack.c.l.b16 %v3192
        %v5354 = vunpack.c.h.b16 %v3192
        %v5355 = vunpack.c.l.b16 %v3193
        %v5356 = vunpack.c.h.b16 %v3193
        %v5357 = vunpack.c.l.b16 %v3194
        %v5358 = vunpack.c.h.b16 %v3194
        %v5359 = vunpack.c.l.b16 %v3195
        %v5360 = vunpack.c.h.b16 %v3195
        %v5361 = vunpack.c.l.b16 %v3196
        %v5362 = vunpack.c.h.b16 %v3196
        %v5363 = vunpack.c.l.b16 %v3197
        %v5364 = vunpack.c.h.b16 %v3197
        %v5365 = vunpack.c.l.b16 %v3198
        %v5366 = vunpack.c.h.b16 %v3198
        %v5367 = vunpack.c.l.b16 %v3199
        %v5368 = vunpack.c.h.b16 %v3199
        %v5369 = vunpack.c.l.b16 %v3200
        %v5370 = vunpack.c.h.b16 %v3200
        %v5371 = vunpack.c.l.b16 %v3201
        %v5372 = vunpack.c.h.b16 %v3201
        %v5373 = vunpack.c.l.b16 %v3202
        %v5374 = vunpack.c.h.b16 %v3202
        %v5375 = vunpack.c.l.b16 %v3203
        %v5376 = vunpack.c.h.b16 %v3203
        %v5377 = vunpack.c.l.b16 %v3204
        %v5378 = vunpack.c.h.b16 %v3204
        %v5379 = vunpack.c.l.b16 %v3205
        %v5380 = vunpack.c.h.b16 %v3205
        %v5381 = vunpack.c.l.b16 %v3206
        %v5382 = vunpack.c.h.b16 %v3206
        %v5383 = vunpack.c.l.b16 %v3207
        %v5384 = vunpack.c.h.b16 %v3207
        %v5385 = vunpack.c.l.b16 %v3208
        %v5386 = vunpack.c.h.b16 %v3208
        %v5387 = vunpack.c.l.b16 %v3209
        %v5388 = vunpack.c.h.b16 %v3209
        %v5389 = vunpack.c.l.b16 %v3210
        %v5390 = vunpack.c.h.b16 %v3210
        %v5391 = vunpack.c.l.b16 %v3211
        %v5392 = vunpack.c.h.b16 %v3211
        %v5393 = vunpack.c.l.b16 %v3212
        %v5394 = vunpack.c.h.b16 %v3212
        %v5395 = vunpack.c.l.b16 %v3213
        %v5396 = vunpack.c.h.b16 %v3213
        %v5397 = vunpack.c.l.b16 %v3214
        %v5398 = vunpack.c.h.b16 %v3214
        %v5399 = vunpack.c.l.b16 %v3215
        %v5400 = vunpack.c.h.b16 %v3215
        %v5401 = vunpack.c.l.b16 %v3216
        %v5402 = vunpack.c.h.b16 %v3216
        %v5403 = vunpack.c.l.b16 %v3217
        %v5404 = vunpack.c.h.b16 %v3217
        %v5405 = vunpack.c.l.b16 %v3218
        %v5406 = vunpack.c.h.b16 %v3218
        %v5407 = vunpack.c.l.b16 %v3219
        %v5408 = vunpack.c.h.b16 %v3219
        %v5409 = vunpack.c.l.b16 %v3220
        %v5410 = vunpack.c.h.b16 %v3220
        %v5411 = vunpack.c.l.b16 %v3221
        %v5412 = vunpack.c.h.b16 %v3221
        %v5413 = vunpack.c.l.b16 %v3222
        %v5414 = vunpack.c.h.b16 %v3222
        %v5415 = vunpack.c.l.b16 %v3223
        %v5416 = vunpack.c.h.b16 %v3223
        %v5417 = vunpack.c.l.b16 %v3224
        %v5418 = vunpack.c.h.b16 %v3224
        %v5419 = vunpack.c.l.b16 %v3225
        %v5420 = vunpack.c.h.b16 %v3225
        %v5421 = vunpack.c.l.b16 %v3226
        %v5422 = vunpack.c.h.b16 %v3226
        %v5423 = vunpack.c.l.b16 %v3227
        %v5424 = vunpack.c.h.b16 %v3227
        %v5425 = vunpack.c.l.b16 %v3228
        %v5426 = vunpack.c.h.b16 %v3228
        %v5427 = vunpack.c.l.b16 %v3229
        %v5428 = vunpack.c.h.b16 %v3229
        %v5429 = vunpack.c.l.b16 %v3230
        %v5430 = vunpack.c.h.b16 %v3230
        %v5431 = vunpack.c.l.b16 %v3231
        %v5432 = vunpack.c.h.b16 %v3231
        %v5433 = vunpack.c.l.b16 %v3232
        %v5434 = vunpack.c.h.b16 %v3232
        %v5435 = vunpack.c.l.b16 %v3233
        %v5436 = vunpack.c.h.b16 %v3233
        %v5437 = vunpack.c.l.b16 %v3234
        %v5438 = vunpack.c.h.b16 %v3234
        %v5439 = vunpack.c.l.b16 %v3235
        %v5440 = vunpack.c.h.b16 %v3235
        %v5441 = vunpack.c.l.b16 %v3236
        %v5442 = vunpack.c.h.b16 %v3236
        %v5443 = vunpack.c.l.b16 %v3237
        %v5444 = vunpack.c.h.b16 %v3237
        %v5445 = vunpack.c.l.b16 %v3238
        %v5446 = vunpack.c.h.b16 %v3238
        %v5447 = vunpack.c.l.b16 %v3239
        %v5448 = vunpack.c.h.b16 %v3239
        %v5449 = vunpack.c.l.b16 %v3240
        %v5450 = vunpack.c.h.b16 %v3240
        %v5451 = vunpack.c.l.b16 %v3241
        %v5452 = vunpack.c.h.b16 %v3241
        %v5453 = vunpack.c.l.b16 %v3242
        %v5454 = vunpack.c.h.b16 %v3242
        %v5455 = vunpack.c.l.b16 %v3243
        %v5456 = vunpack.c.h.b16 %v3243
        %v5457 = vunpack.c.l.b16 %v3244
        %v5458 = vunpack.c.h.b16 %v3244
        %v5459 = vunpack.c.l.b16 %v3245
        %v5460 = vunpack.c.h.b16 %v3245
        %v5461 = vunpack.c.l.b16 %v3246
        %v5462 = vunpack.c.h.b16 %v3246
        %v5463 = vunpack.c.l.b16 %v3247
        %v5464 = vunpack.c.h.b16 %v3247
        %v5465 = vunpack.c.l.b16 %v3248
        %v5466 = vunpack.c.h.b16 %v3248
        %v5467 = vunpack.c.l.b16 %v3249
        %v5468 = vunpack.c.h.b16 %v3249
        %v5469 = vunpack.c.l.b16 %v3250
        %v5470 = vunpack.c.h.b16 %v3250
        %v5471 = vunpack.c.l.b16 %v3251
        %v5472 = vunpack.c.h.b16 %v3251
        %v5473 = vunpack.c.l.b16 %v3252
        %v5474 = vunpack.c.h.b16 %v3252
        %v5475 = vunpack.c.l.b16 %v3253
        %v5476 = vunpack.c.h.b16 %v3253
        %v5477 = vunpack.c.l.b16 %v3254
        %v5478 = vunpack.c.h.b16 %v3254
        %v5479 = vunpack.c.l.b16 %v3255
        %v5480 = vunpack.c.h.b16 %v3255
        %v5481 = vunpack.c.l.b16 %v3256
        %v5482 = vunpack.c.h.b16 %v3256
        %v5483 = vunpack.c.l.b16 %v3257
        %v5484 = vunpack.c.h.b16 %v3257
        %v5485 = vunpack.c.l.b16 %v3258
        %v5486 = vunpack.c.h.b16 %v3258
        %v5487 = vunpack.c.l.b16 %v3259
        %v5488 = vunpack.c.h.b16 %v3259
        %v5489 = vunpack.c.l.b16 %v3260
        %v5490 = vunpack.c.h.b16 %v3260
        %v5491 = vunpack.c.l.b16 %v3261
        %v5492 = vunpack.c.h.b16 %v3261
        %v5493 = vunpack.c.l.b16 %v3262
        %v5494 = vunpack.c.h.b16 %v3262
        %v5495 = vunpack.c.l.b16 %v3263
        %v5496 = vunpack.c.h.b16 %v3263
        %v5497 = vunpack.c.l.b16 %v3264
        %v5498 = vunpack.c.h.b16 %v3264
        %v5499 = vunpack.c.l.b16 %v3265
        %v5500 = vunpack.c.h.b16 %v3265
        %v5501 = vunpack.c.l.b16 %v3266
        %v5502 = vunpack.c.h.b16 %v3266
        %v5503 = vunpack.c.l.b16 %v3267
        %v5504 = vunpack.c.h.b16 %v3267
        %v5505 = vunpack.c.l.b16 %v3268
        %v5506 = vunpack.c.h.b16 %v3268
        %v5507 = vunpack.c.l.b16 %v3269
        %v5508 = vunpack.c.h.b16 %v3269
        %v5509 = vunpack.c.l.b16 %v3270
        %v5510 = vunpack.c.h.b16 %v3270
        %v5511 = vunpack.c.l.b16 %v3271
        %v5512 = vunpack.c.h.b16 %v3271
        %v5513 = vunpack.c.l.b16 %v3272
        %v5514 = vunpack.c.h.b16 %v3272
        %v5515 = vunpack.c.l.b16 %v3273
        %v5516 = vunpack.c.h.b16 %v3273
        %v5517 = vunpack.c.l.b16 %v3274
        %v5518 = vunpack.c.h.b16 %v3274
        %v5519 = vunpack.c.l.b16 %v3275
        %v5520 = vunpack.c.h.b16 %v3275
        %v5521 = vunpack.c.l.b16 %v3276
        %v5522 = vunpack.c.h.b16 %v3276
        %v5523 = vunpack.c.l.b16 %v3277
        %v5524 = vunpack.c.h.b16 %v3277
        %v5525 = vunpack.c.l.b16 %v3278
        %v5526 = vunpack.c.h.b16 %v3278
        %v5527 = vunpack.c.l.b16 %v3279
        %v5528 = vunpack.c.h.b16 %v3279
        %v5529 = vunpack.c.l.b16 %v3280
        %v5530 = vunpack.c.h.b16 %v3280
        %v5531 = vunpack.c.l.b16 %v3281
        %v5532 = vunpack.c.h.b16 %v3281
        %v5533 = vunpack.c.l.b16 %v3282
        %v5534 = vunpack.c.h.b16 %v3282
        %v5535 = vunpack.c.l.b16 %v3283
        %v5536 = vunpack.c.h.b16 %v3283
        %v5537 = vunpack.c.l.b16 %v3284
        %v5538 = vunpack.c.h.b16 %v3284
        %v5539 = vunpack.c.l.b16 %v3285
        %v5540 = vunpack.c.h.b16 %v3285
        %v5541 = vunpack.c.l.b16 %v3286
        %v5542 = vunpack.c.h.b16 %v3286
        %v5543 = vunpack.c.l.b16 %v3287
        %v5544 = vunpack.c.h.b16 %v3287
        %v5545 = vunpack.c.l.b16 %v3288
        %v5546 = vunpack.c.h.b16 %v3288
        %v5547 = vunpack.c.l.b16 %v3289
        %v5548 = vunpack.c.h.b16 %v3289
        %v5549 = vunpack.c.l.b16 %v3290
        %v5550 = vunpack.c.h.b16 %v3290
        %v5551 = vunpack.c.l.b16 %v3291
        %v5552 = vunpack.c.h.b16 %v3291
        %v5553 = vunpack.c.l.b16 %v3292
        %v5554 = vunpack.c.h.b16 %v3292
        %v5555 = vunpack.c.l.b16 %v3293
        %v5556 = vunpack.c.h.b16 %v3293
        %v5557 = vunpack.c.l.b16 %v3294
        %v5558 = vunpack.c.h.b16 %v3294
        %v5559 = vunpack.c.l.b16 %v3295
        %v5560 = vunpack.c.h.b16 %v3295
        %v5561 = vunpack.c.l.b16 %v3296
        %v5562 = vunpack.c.h.b16 %v3296
        %v5563 = vunpack.c.l.b16 %v3297
        %v5564 = vunpack.c.h.b16 %v3297
        %v5565 = vunpack.c.l.b16 %v3298
        %v5566 = vunpack.c.h.b16 %v3298
        %v5567 = vunpack.c.l.b16 %v3299
        %v5568 = vunpack.c.h.b16 %v3299
        %v5569 = vunpack.c.l.b16 %v3300
        %v5570 = vunpack.c.h.b16 %v3300
        %v5571 = vunpack.c.l.b16 %v3301
        %v5572 = vunpack.c.h.b16 %v3301
        %v5573 = vunpack.c.l.b16 %v3302
        %v5574 = vunpack.c.h.b16 %v3302
        %v5575 = vunpack.c.l.b16 %v3303
        %v5576 = vunpack.c.h.b16 %v3303
        %v5577 = vunpack.c.l.b16 %v3304
        %v5578 = vunpack.c.h.b16 %v3304
        %v5579 = vunpack.c.l.b16 %v3305
        %v5580 = vunpack.c.h.b16 %v3305
        %v5581 = vunpack.c.l.b16 %v3306
        %v5582 = vunpack.c.h.b16 %v3306
        %v5583 = vunpack.c.l.b16 %v3307
        %v5584 = vunpack.c.h.b16 %v3307
        %v5585 = vunpack.c.l.b16 %v3308
        %v5586 = vunpack.c.h.b16 %v3308
        %v5587 = vunpack.c.l.b16 %v3309
        %v5588 = vunpack.c.h.b16 %v3309
        %v5589 = vunpack.c.l.b16 %v3310
        %v5590 = vunpack.c.h.b16 %v3310
        %v5591 = vunpack.c.l.b16 %v3311
        %v5592 = vunpack.c.h.b16 %v3311
        %v5593 = vunpack.c.l.b16 %v3312
        %v5594 = vunpack.c.h.b16 %v3312
        %v5595 = vunpack.c.l.b16 %v3313
        %v5596 = vunpack.c.h.b16 %v3313
        %v5597 = vunpack.c.l.b16 %v3314
        %v5598 = vunpack.c.h.b16 %v3314
        %v5599 = vunpack.c.l.b16 %v3315
        %v5600 = vunpack.c.h.b16 %v3315
        %v5601 = vunpack.c.l.b16 %v3316
        %v5602 = vunpack.c.h.b16 %v3316
        %v5603 = vunpack.c.l.b16 %v3317
        %v5604 = vunpack.c.h.b16 %v3317
        %v5605 = vunpack.c.l.b16 %v3318
        %v5606 = vunpack.c.h.b16 %v3318
        %v5607 = vunpack.c.l.b16 %v3319
        %v5608 = vunpack.c.h.b16 %v3319
        %v5609 = vunpack.c.l.b16 %v3320
        %v5610 = vunpack.c.h.b16 %v3320
        %v5611 = vunpack.c.l.b16 %v3321
        %v5612 = vunpack.c.h.b16 %v3321
        %v5613 = vunpack.c.l.b16 %v3322
        %v5614 = vunpack.c.h.b16 %v3322
        %v5615 = vunpack.c.l.b16 %v3323
        %v5616 = vunpack.c.h.b16 %v3323
        %v5617 = vunpack.c.l.b16 %v3324
        %v5618 = vunpack.c.h.b16 %v3324
        %v5619 = vunpack.c.l.b16 %v3325
        %v5620 = vunpack.c.h.b16 %v3325
        %v5621 = vunpack.c.l.b16 %v3326
        %v5622 = vunpack.c.h.b16 %v3326
        %v5623 = vunpack.c.l.b16 %v3327
        %v5624 = vunpack.c.h.b16 %v3327
        %v5625 = vunpack.c.l.b16 %v3328
        %v5626 = vunpack.c.h.b16 %v3328
        %v5627 = vunpack.c.l.b16 %v3329
        %v5628 = vunpack.c.h.b16 %v3329
        %v5629 = vunpack.c.l.b16 %v3330
        %v5630 = vunpack.c.h.b16 %v3330
        %v5631 = vunpack.c.l.b16 %v3331
        %v5632 = vunpack.c.h.b16 %v3331
        %v5633 = vunpack.c.l.b16 %v3332
        %v5634 = vunpack.c.h.b16 %v3332
        %v5635 = vunpack.c.l.b16 %v3333
        %v5636 = vunpack.c.h.b16 %v3333
        %v5637 = vunpack.c.l.b16 %v3334
        %v5638 = vunpack.c.h.b16 %v3334
        %v5639 = vunpack.c.l.b16 %v3335
        %v5640 = vunpack.c.h.b16 %v3335
        %v5641 = vunpack.c.l.b16 %v3336
        %v5642 = vunpack.c.h.b16 %v3336
        %v5643 = vunpack.c.l.b16 %v3337
        %v5644 = vunpack.c.h.b16 %v3337
        %v5645 = vunpack.c.l.b16 %v3338
        %v5646 = vunpack.c.h.b16 %v3338
        %v5647 = vunpack.c.l.b16 %v3339
        %v5648 = vunpack.c.h.b16 %v3339
        %v5649 = vunpack.c.l.b16 %v3340
        %v5650 = vunpack.c.h.b16 %v3340
        %v5651 = vunpack.c.l.b16 %v3341
        %v5652 = vunpack.c.h.b16 %v3341
        %v5653 = vunpack.c.l.b16 %v3342
        %v5654 = vunpack.c.h.b16 %v3342
        %v5655 = vunpack.c.l.b16 %v3343
        %v5656 = vunpack.c.h.b16 %v3343
        %v5657 = vunpack.c.l.b16 %v3344
        %v5658 = vunpack.c.h.b16 %v3344
        %v5659 = vunpack.c.l.b16 %v3345
        %v5660 = vunpack.c.h.b16 %v3345
        %v5661 = vunpack.c.l.b16 %v3346
        %v5662 = vunpack.c.h.b16 %v3346
        %v5663 = vunpack.c.l.b16 %v3347
        %v5664 = vunpack.c.h.b16 %v3347
        %v5665 = vunpack.c.l.b16 %v3348
        %v5666 = vunpack.c.h.b16 %v3348
        %v5667 = vunpack.c.l.b16 %v3349
        %v5668 = vunpack.c.h.b16 %v3349
        %v5669 = vunpack.c.l.b16 %v3350
        %v5670 = vunpack.c.h.b16 %v3350
        %v5671 = vunpack.c.l.b16 %v3351
        %v5672 = vunpack.c.h.b16 %v3351
        %v5673 = vunpack.c.l.b16 %v3352
        %v5674 = vunpack.c.h.b16 %v3352
        %v5675 = vunpack.c.l.b16 %v3353
        %v5676 = vunpack.c.h.b16 %v3353
        %v5677 = vunpack.c.l.b16 %v3354
        %v5678 = vunpack.c.h.b16 %v3354
        %v5679 = vunpack.c.l.b16 %v3355
        %v5680 = vunpack.c.h.b16 %v3355
        %v5681 = vunpack.c.l.b16 %v3356
        %v5682 = vunpack.c.h.b16 %v3356
        %v5683 = vunpack.c.l.b16 %v3357
        %v5684 = vunpack.c.h.b16 %v3357
        %v5685 = vunpack.c.l.b16 %v3358
        %v5686 = vunpack.c.h.b16 %v3358
        %v5687 = vunpack.c.l.b16 %v3359
        %v5688 = vunpack.c.h.b16 %v3359
        %v5689 = vunpack.c.l.b16 %v3360
        %v5690 = vunpack.c.h.b16 %v3360
        %v5691 = vunpack.c.l.b16 %v3361
        %v5692 = vunpack.c.h.b16 %v3361
        %v5693 = vunpack.c.l.b16 %v3362
        %v5694 = vunpack.c.h.b16 %v3362
        %v5695 = vunpack.c.l.b16 %v3363
        %v5696 = vunpack.c.h.b16 %v3363
        %v5697 = vunpack.c.l.b16 %v3364
        %v5698 = vunpack.c.h.b16 %v3364
        %v5699 = vunpack.c.l.b16 %v3365
        %v5700 = vunpack.c.h.b16 %v3365
        %v5701 = vunpack.c.l.b16 %v3366
        %v5702 = vunpack.c.h.b16 %v3366
        %v5703 = vunpack.c.l.b16 %v3367
        %v5704 = vunpack.c.h.b16 %v3367
        %v5705 = vunpack.c.l.b16 %v3368
        %v5706 = vunpack.c.h.b16 %v3368
        %v5707 = vunpack.c.l.b16 %v3369
        %v5708 = vunpack.c.h.b16 %v3369
        %v5709 = vunpack.c.l.b16 %v3370
        %v5710 = vunpack.c.h.b16 %v3370
        %v5711 = vunpack.c.l.b16 %v3371
        %v5712 = vunpack.c.h.b16 %v3371
        %v5713 = vunpack.c.l.b16 %v3372
        %v5714 = vunpack.c.h.b16 %v3372
        %v5715 = vunpack.c.l.b16 %v3373
        %v5716 = vunpack.c.h.b16 %v3373
        %v5717 = vunpack.c.l.b16 %v3374
        %v5718 = vunpack.c.h.b16 %v3374
        %v5719 = vunpack.c.l.b16 %v3375
        %v5720 = vunpack.c.h.b16 %v3375
        %v5721 = vunpack.c.l.b16 %v3376
        %v5722 = vunpack.c.h.b16 %v3376
        %v5723 = vunpack.c.l.b16 %v3377
        %v5724 = vunpack.c.h.b16 %v3377
        %v5725 = vunpack.c.l.b16 %v3378
        %v5726 = vunpack.c.h.b16 %v3378
        %v5727 = vunpack.c.l.b16 %v3379
        %v5728 = vunpack.c.h.b16 %v3379
        %v5729 = vunpack.c.l.b16 %v3380
        %v5730 = vunpack.c.h.b16 %v3380
        %v5731 = vunpack.c.l.b16 %v3381
        %v5732 = vunpack.c.h.b16 %v3381
        %v5733 = vunpack.c.l.b16 %v3382
        %v5734 = vunpack.c.h.b16 %v3382
        %v5735 = vunpack.c.l.b16 %v3383
        %v5736 = vunpack.c.h.b16 %v3383
        %v5737 = vunpack.c.l.b16 %v3384
        %v5738 = vunpack.c.h.b16 %v3384
        %v5739 = vunpack.c.l.b16 %v3385
        %v5740 = vunpack.c.h.b16 %v3385
        %v5741 = vunpack.c.l.b16 %v3386
        %v5742 = vunpack.c.h.b16 %v3386
        %v5743 = vunpack.c.l.b16 %v3387
        %v5744 = vunpack.c.h.b16 %v3387
        %v5745 = vunpack.c.l.b16 %v3388
        %v5746 = vunpack.c.h.b16 %v3388
        %v5747 = vunpack.c.l.b16 %v3389
        %v5748 = vunpack.c.h.b16 %v3389
        %v5749 = vunpack.c.l.b16 %v3390
        %v5750 = vunpack.c.h.b16 %v3390
        %v5751 = vunpack.c.l.b16 %v3391
        %v5752 = vunpack.c.h.b16 %v3391
        %v5753 = vunpack.c.l.b16 %v3392
        %v5754 = vunpack.c.h.b16 %v3392
        %v5755 = vunpack.c.l.b16 %v3393
        %v5756 = vunpack.c.h.b16 %v3393
        %v5757 = vunpack.c.l.b16 %v3394
        %v5758 = vunpack.c.h.b16 %v3394
        %v5759 = vunpack.c.l.b16 %v3395
        %v5760 = vunpack.c.h.b16 %v3395
        %v5761 = vunpack.c.l.b16 %v3396
        %v5762 = vunpack.c.h.b16 %v3396
        %v5763 = vunpack.c.l.b16 %v3397
        %v5764 = vunpack.c.h.b16 %v3397
        %v5765 = vunpack.c.l.b16 %v3398
        %v5766 = vunpack.c.h.b16 %v3398
        %v5767 = vunpack.c.l.b16 %v3399
        %v5768 = vunpack.c.h.b16 %v3399
        %v5769 = vunpack.c.l.b16 %v3400
        %v5770 = vunpack.c.h.b16 %v3400
        %v5771 = vunpack.c.l.b16 %v3401
        %v5772 = vunpack.c.h.b16 %v3401
        %v5773 = vunpack.c.l.b16 %v3402
        %v5774 = vunpack.c.h.b16 %v3402
        %v5775 = vunpack.c.l.b16 %v3403
        %v5776 = vunpack.c.h.b16 %v3403
        %v5777 = vunpack.c.l.b16 %v3404
        %v5778 = vunpack.c.h.b16 %v3404
        %v5779 = vunpack.c.l.b16 %v3405
        %v5780 = vunpack.c.h.b16 %v3405
        %v5781 = vunpack.c.l.b16 %v3406
        %v5782 = vunpack.c.h.b16 %v3406
        %v5783 = vunpack.c.l.b16 %v3407
        %v5784 = vunpack.c.h.b16 %v3407
        %v5785 = vunpack.c.l.b16 %v3408
        %v5786 = vunpack.c.h.b16 %v3408
        %v5787 = vunpack.c.l.b16 %v3409
        %v5788 = vunpack.c.h.b16 %v3409
        %v5789 = vunpack.c.l.b16 %v3410
        %v5790 = vunpack.c.h.b16 %v3410
        %v5791 = vunpack.c.l.b16 %v3411
        %v5792 = vunpack.c.h.b16 %v3411
        %v5793 = vunpack.c.l.b16 %v3412
        %v5794 = vunpack.c.h.b16 %v3412
        %v5795 = vunpack.c.l.b16 %v3413
        %v5796 = vunpack.c.h.b16 %v3413
        %v5797 = vunpack.c.l.b16 %v3414
        %v5798 = vunpack.c.h.b16 %v3414
        %v5799 = vunpack.c.l.b16 %v3415
        %v5800 = vunpack.c.h.b16 %v3415
        %v5801 = vunpack.c.l.b16 %v3416
        %v5802 = vunpack.c.h.b16 %v3416
        %v5803 = vunpack.c.l.b16 %v3417
        %v5804 = vunpack.c.h.b16 %v3417
        %v5805 = vunpack.c.l.b16 %v3418
        %v5806 = vunpack.c.h.b16 %v3418
        %v5807 = vunpack.c.l.b16 %v3419
        %v5808 = vunpack.c.h.b16 %v3419
        %v5809 = vunpack.c.l.b16 %v3420
        %v5810 = vunpack.c.h.b16 %v3420
        %v5811 = vunpack.c.l.b16 %v3421
        %v5812 = vunpack.c.h.b16 %v3421
        %v5813 = vunpack.c.l.b16 %v3422
        %v5814 = vunpack.c.h.b16 %v3422
        %v5815 = vunpack.c.l.b16 %v3423
        %v5816 = vunpack.c.h.b16 %v3423
        %v5817 = vunpack.c.l.b16 %v3424
        %v5818 = vunpack.c.h.b16 %v3424
        %v5819 = vunpack.c.l.b16 %v3425
        %v5820 = vunpack.c.h.b16 %v3425
        %v5821 = vunpack.c.l.b16 %v3426
        %v5822 = vunpack.c.h.b16 %v3426
        %v5823 = vunpack.c.l.b16 %v3427
        %v5824 = vunpack.c.h.b16 %v3427
        %v5825 = vunpack.c.l.b16 %v3428
        %v5826 = vunpack.c.h.b16 %v3428
        %v5827 = vunpack.c.l.b16 %v3429
        %v5828 = vunpack.c.h.b16 %v3429
        %v5829 = vunpack.c.l.b16 %v3430
        %v5830 = vunpack.c.h.b16 %v3430
        %v5831 = vunpack.c.l.b16 %v3431
        %v5832 = vunpack.c.h.b16 %v3431
        %v5833 = vunpack.c.l.b16 %v3432
        %v5834 = vunpack.c.h.b16 %v3432
        %v5835 = vunpack.c.l.b16 %v3433
        %v5836 = vunpack.c.h.b16 %v3433
        %v5837 = vunpack.c.l.b16 %v3434
        %v5838 = vunpack.c.h.b16 %v3434
        %v5839 = vunpack.c.l.b16 %v3435
        %v5840 = vunpack.c.h.b16 %v3435
        %v5841 = vunpack.c.l.b16 %v3436
        %v5842 = vunpack.c.h.b16 %v3436
        %v5843 = vunpack.c.l.b16 %v3437
        %v5844 = vunpack.c.h.b16 %v3437
        %v5845 = vunpack.c.l.b16 %v3438
        %v5846 = vunpack.c.h.b16 %v3438
        %v5847 = vunpack.c.l.b16 %v3439
        %v5848 = vunpack.c.h.b16 %v3439
        %v5849 = vunpack.c.l.b16 %v3440
        %v5850 = vunpack.c.h.b16 %v3440
        %v5851 = vunpack.c.l.b16 %v3441
        %v5852 = vunpack.c.h.b16 %v3441
        %v5853 = vunpack.c.l.b16 %v3442
        %v5854 = vunpack.c.h.b16 %v3442
        %v5855 = vunpack.c.l.b16 %v3443
        %v5856 = vunpack.c.h.b16 %v3443
        %v5857 = vunpack.c.l.b16 %v3444
        %v5858 = vunpack.c.h.b16 %v3444
        %v5859 = vunpack.c.l.b16 %v3445
        %v5860 = vunpack.c.h.b16 %v3445
        %v5861 = vunpack.c.l.b16 %v3446
        %v5862 = vunpack.c.h.b16 %v3446
        %v5863 = vunpack.c.l.b16 %v3447
        %v5864 = vunpack.c.h.b16 %v3447
        %v5865 = vunpack.c.l.b16 %v3448
        %v5866 = vunpack.c.h.b16 %v3448
        %v5867 = vunpack.c.l.b16 %v3449
        %v5868 = vunpack.c.h.b16 %v3449
        %v5869 = vunpack.c.l.b16 %v3450
        %v5870 = vunpack.c.h.b16 %v3450
        %v5871 = vunpack.c.l.b16 %v3451
        %v5872 = vunpack.c.h.b16 %v3451
        %v5873 = vunpack.c.l.b16 %v3452
        %v5874 = vunpack.c.h.b16 %v3452
        %v5875 = vunpack.c.l.b16 %v3453
        %v5876 = vunpack.c.h.b16 %v3453
        %v5877 = vunpack.c.l.b16 %v3454
        %v5878 = vunpack.c.h.b16 %v3454
        %v5879 = vunpack.c.l.b16 %v3455
        %v5880 = vunpack.c.h.b16 %v3455
        %v5881 = vunpack.c.l.b16 %v3456
        %v5882 = vunpack.c.h.b16 %v3456
        %v5883 = vunpack.c.l.b16 %v3457
        %v5884 = vunpack.c.h.b16 %v3457
        %v5885 = vunpack.c.l.b16 %v3458
        %v5886 = vunpack.c.h.b16 %v3458
        %v5887 = vunpack.c.l.b16 %v3459
        %v5888 = vunpack.c.h.b16 %v3459
        %v5889 = vunpack.c.l.b16 %v3460
        %v5890 = vunpack.c.h.b16 %v3460
        %v5891 = vunpack.c.l.b16 %v3461
        %v5892 = vunpack.c.h.b16 %v3461
        %v5893 = vunpack.c.l.b16 %v3462
        %v5894 = vunpack.c.h.b16 %v3462
        %v5895 = vunpack.c.l.b16 %v3463
        %v5896 = vunpack.c.h.b16 %v3463
        %v5897 = vunpack.c.l.b16 %v3464
        %v5898 = vunpack.c.h.b16 %v3464
        %v5899 = vunpack.c.l.b16 %v3465
        %v5900 = vunpack.c.h.b16 %v3465
        %v5901 = vunpack.c.l.b16 %v3466
        %v5902 = vunpack.c.h.b16 %v3466
        %v5903 = vunpack.c.l.b16 %v3467
        %v5904 = vunpack.c.h.b16 %v3467
        %v5905 = vunpack.c.l.b16 %v3468
        %v5906 = vunpack.c.h.b16 %v3468
        %v5907 = vunpack.c.l.b16 %v3469
        %v5908 = vunpack.c.h.b16 %v3469
        %v5909 = vunpack.c.l.b16 %v3470
        %v5910 = vunpack.c.h.b16 %v3470
        %v5911 = vunpack.c.l.b16 %v3471
        %v5912 = vunpack.c.h.b16 %v3471
        %v5913 = vunpack.c.l.b16 %v3472
        %v5914 = vunpack.c.h.b16 %v3472
        %v5915 = vunpack.c.l.b16 %v3473
        %v5916 = vunpack.c.h.b16 %v3473
        %v5917 = vunpack.c.l.b16 %v3474
        %v5918 = vunpack.c.h.b16 %v3474
        %v5919 = vunpack.c.l.b16 %v3475
        %v5920 = vunpack.c.h.b16 %v3475
        %v5921 = vunpack.c.l.b16 %v3476
        %v5922 = vunpack.c.h.b16 %v3476
        %v5923 = vunpack.c.l.b16 %v3477
        %v5924 = vunpack.c.h.b16 %v3477
        %v5925 = vunpack.c.l.b16 %v3478
        %v5926 = vunpack.c.h.b16 %v3478
        %v5927 = vunpack.c.l.b16 %v3479
        %v5928 = vunpack.c.h.b16 %v3479
        %v5929 = vunpack.c.l.b16 %v3480
        %v5930 = vunpack.c.h.b16 %v3480
        %v5931 = vunpack.c.l.b16 %v3481
        %v5932 = vunpack.c.h.b16 %v3481
        %v5933 = vunpack.c.l.b16 %v3482
        %v5934 = vunpack.c.h.b16 %v3482
        %v5935 = vunpack.c.l.b16 %v3483
        %v5936 = vunpack.c.h.b16 %v3483
        %v5937 = vunpack.c.l.b16 %v3484
        %v5938 = vunpack.c.h.b16 %v3484
        %v5939 = vunpack.c.l.b16 %v3485
        %v5940 = vunpack.c.h.b16 %v3485
        %v5941 = vunpack.c.l.b16 %v3486
        %v5942 = vunpack.c.h.b16 %v3486
        %v5943 = vunpack.c.l.b16 %v3487
        %v5944 = vunpack.c.h.b16 %v3487
        %v5945 = vunpack.c.l.b16 %v3488
        %v5946 = vunpack.c.h.b16 %v3488
        %v5947 = vunpack.c.l.b16 %v3489
        %v5948 = vunpack.c.h.b16 %v3489
        %v5949 = vunpack.c.l.b16 %v3490
        %v5950 = vunpack.c.h.b16 %v3490
        %v5951 = vunpack.c.l.b16 %v3491
        %v5952 = vunpack.c.h.b16 %v3491
        %v5953 = vunpack.c.l.b16 %v3492
        %v5954 = vunpack.c.h.b16 %v3492
        %v5955 = vunpack.c.l.b16 %v3493
        %v5956 = vunpack.c.h.b16 %v3493
        %v5957 = vunpack.c.l.b16 %v3494
        %v5958 = vunpack.c.h.b16 %v3494
        %v5959 = vunpack.c.l.b16 %v3495
        %v5960 = vunpack.c.h.b16 %v3495
        %v5961 = vunpack.c.l.b16 %v3496
        %v5962 = vunpack.c.h.b16 %v3496
        %v5963 = vunpack.c.l.b16 %v3497
        %v5964 = vunpack.c.h.b16 %v3497
        %v5965 = vunpack.c.l.b16 %v3498
        %v5966 = vunpack.c.h.b16 %v3498
        %v5967 = vunpack.c.l.b16 %v3499
        %v5968 = vunpack.c.h.b16 %v3499
        %v5969 = vunpack.c.l.b16 %v3500
        %v5970 = vunpack.c.h.b16 %v3500
        %v5971 = vunpack.c.l.b16 %v3501
        %v5972 = vunpack.c.h.b16 %v3501
        %v5973 = vunpack.c.l.b16 %v3502
        %v5974 = vunpack.c.h.b16 %v3502
        %v5975 = vunpack.c.l.b16 %v3503
        %v5976 = vunpack.c.h.b16 %v3503
        %v5977 = vunpack.c.l.b16 %v3504
        %v5978 = vunpack.c.h.b16 %v3504
        %v5979 = vunpack.c.l.b16 %v3505
        %v5980 = vunpack.c.h.b16 %v3505
        %v5981 = vunpack.c.l.b16 %v3506
        %v5982 = vunpack.c.h.b16 %v3506
        %v5983 = vunpack.c.l.b16 %v3507
        %v5984 = vunpack.c.h.b16 %v3507
        %v5985 = vunpack.c.l.b16 %v3508
        %v5986 = vunpack.c.h.b16 %v3508
        %v5987 = vunpack.c.l.b16 %v3509
        %v5988 = vunpack.c.h.b16 %v3509
        %v5989 = vunpack.c.l.b16 %v3510
        %v5990 = vunpack.c.h.b16 %v3510
        %v5991 = vunpack.c.l.b16 %v3511
        %v5992 = vunpack.c.h.b16 %v3511
        %v5993 = vunpack.c.l.b16 %v3512
        %v5994 = vunpack.c.h.b16 %v3512
        %v5995 = vunpack.c.l.b16 %v3513
        %v5996 = vunpack.c.h.b16 %v3513
        %v5997 = vunpack.c.l.b16 %v3514
        %v5998 = vunpack.c.h.b16 %v3514
        %v5999 = vunpack.c.l.b16 %v3515
        %v6000 = vunpack.c.h.b16 %v3515
        %v6001 = vunpack.c.l.b16 %v3516
        %v6002 = vunpack.c.h.b16 %v3516
        %v6003 = vunpack.c.l.b16 %v3517
        %v6004 = vunpack.c.h.b16 %v3517
        %v6005 = vunpack.c.l.b16 %v3518
        %v6006 = vunpack.c.h.b16 %v3518
        %v6007 = vunpack.c.l.b16 %v3519
        %v6008 = vunpack.c.h.b16 %v3519
        %v6009 = vunpack.c.l.b16 %v3520
        %v6010 = vunpack.c.h.b16 %v3520
        %v6011 = vunpack.c.l.b16 %v3521
        %v6012 = vunpack.c.h.b16 %v3521
        %v6013 = vunpack.c.l.b16 %v3522
        %v6014 = vunpack.c.h.b16 %v3522
        %v6015 = vunpack.c.l.b16 %v3523
        %v6016 = vunpack.c.h.b16 %v3523
        %v6017 = vunpack.c.l.b16 %v3524
        %v6018 = vunpack.c.h.b16 %v3524
        %v6019 = vunpack.c.l.b16 %v3525
        %v6020 = vunpack.c.h.b16 %v3525
        %v6021 = vunpack.c.l.b16 %v3526
        %v6022 = vunpack.c.h.b16 %v3526
        %v6023 = vunpack.c.l.b16 %v3527
        %v6024 = vunpack.c.h.b16 %v3527
        %v6025 = vunpack.c.l.b16 %v3528
        %v6026 = vunpack.c.h.b16 %v3528
        %v6027 = vunpack.c.l.b16 %v3529
        %v6028 = vunpack.c.h.b16 %v3529
        %v6029 = vunpack.c.l.b16 %v3530
        %v6030 = vunpack.c.h.b16 %v3530
        %v6031 = vunpack.c.l.b16 %v3531
        %v6032 = vunpack.c.h.b16 %v3531
        %v6033 = vunpack.c.l.b16 %v3532
        %v6034 = vunpack.c.h.b16 %v3532
        %v6035 = vunpack.c.l.b16 %v3533
        %v6036 = vunpack.c.h.b16 %v3533
        %v6037 = vunpack.c.l.b16 %v3534
        %v6038 = vunpack.c.h.b16 %v3534
        %v6039 = vunpack.c.l.b16 %v3535
        %v6040 = vunpack.c.h.b16 %v3535
        %v6041 = vunpack.c.l.b16 %v3536
        %v6042 = vunpack.c.h.b16 %v3536
        %v6043 = vunpack.c.l.b16 %v3537
        %v6044 = vunpack.c.h.b16 %v3537
        %v6045 = vunpack.c.l.b16 %v3538
        %v6046 = vunpack.c.h.b16 %v3538
        %v6047 = vunpack.c.l.b16 %v3539
        %v6048 = vunpack.c.h.b16 %v3539
        %v6049 = vunpack.c.l.b16 %v3540
        %v6050 = vunpack.c.h.b16 %v3540
        %v6051 = vunpack.c.l.b16 %v3541
        %v6052 = vunpack.c.h.b16 %v3541
        %v6053 = vunpack.c.l.b16 %v3542
        %v6054 = vunpack.c.h.b16 %v3542
        %v6055 = vunpack.c.l.b16 %v3543
        %v6056 = vunpack.c.h.b16 %v3543
        %v6057 = vunpack.c.l.b16 %v3544
        %v6058 = vunpack.c.h.b16 %v3544
        %v6059 = vunpack.c.l.b16 %v3545
        %v6060 = vunpack.c.h.b16 %v3545
        %v6061 = vunpack.c.l.b16 %v3546
        %v6062 = vunpack.c.h.b16 %v3546
        %v6063 = vunpack.c.l.b16 %v3547
        %v6064 = vunpack.c.h.b16 %v3547
        %v6065 = vunpack.c.l.b16 %v3548
        %v6066 = vunpack.c.h.b16 %v3548
        %v6067 = vunpack.c.l.b16 %v3549
        %v6068 = vunpack.c.h.b16 %v3549
        %v6069 = vunpack.c.l.b16 %v3550
        %v6070 = vunpack.c.h.b16 %v3550
        %v6071 = vunpack.c.l.b16 %v3551
        %v6072 = vunpack.c.h.b16 %v3551
        %v6073 = vunpack.c.l.b16 %v3552
        %v6074 = vunpack.c.h.b16 %v3552
        %v6075 = vunpack.c.l.b16 %v3553
        %v6076 = vunpack.c.h.b16 %v3553
        %v6077 = vunpack.c.l.b16 %v3554
        %v6078 = vunpack.c.h.b16 %v3554
        %v6079 = vunpack.c.l.b16 %v3555
        %v6080 = vunpack.c.h.b16 %v3555
        %v6081 = vunpack.c.l.b16 %v3556
        %v6082 = vunpack.c.h.b16 %v3556
        %v6083 = vunpack.c.l.b16 %v3557
        %v6084 = vunpack.c.h.b16 %v3557
        %v6085 = vunpack.c.l.b16 %v3558
        %v6086 = vunpack.c.h.b16 %v3558
        %v6087 = vunpack.c.l.b16 %v3559
        %v6088 = vunpack.c.h.b16 %v3559
        %v6089 = vunpack.c.l.b16 %v3560
        %v6090 = vunpack.c.h.b16 %v3560
        %v6091 = vunpack.c.l.b16 %v3561
        %v6092 = vunpack.c.h.b16 %v3561
        %v6093 = vunpack.c.l.b16 %v3562
        %v6094 = vunpack.c.h.b16 %v3562
        %v6095 = vunpack.c.l.b16 %v3563
        %v6096 = vunpack.c.h.b16 %v3563
        %v6097 = vunpack.c.l.b16 %v3564
        %v6098 = vunpack.c.h.b16 %v3564
        %v6099 = vunpack.c.l.b16 %v3565
        %v6100 = vunpack.c.h.b16 %v3565
        %v6101 = vunpack.c.l.b16 %v3566
        %v6102 = vunpack.c.h.b16 %v3566
        %v6103 = vunpack.c.l.b16 %v3567
        %v6104 = vunpack.c.h.b16 %v3567
        %v6105 = vunpack.c.l.b16 %v3568
        %v6106 = vunpack.c.h.b16 %v3568
        %v6107 = vunpack.c.l.b16 %v3569
        %v6108 = vunpack.c.h.b16 %v3569
        %v6109 = vunpack.c.l.b16 %v3570
        %v6110 = vunpack.c.h.b16 %v3570
        %v6111 = vunpack.c.l.b16 %v3571
        %v6112 = vunpack.c.h.b16 %v3571
        %v6113 = vunpack.c.l.b16 %v3572
        %v6114 = vunpack.c.h.b16 %v3572
        %v6115 = vunpack.c.l.b16 %v3573
        %v6116 = vunpack.c.h.b16 %v3573
        %v6117 = vunpack.c.l.b16 %v3574
        %v6118 = vunpack.c.h.b16 %v3574
        %v6119 = vunpack.c.l.b16 %v3575
        %v6120 = vunpack.c.h.b16 %v3575
        %v6121 = vunpack.c.l.b16 %v3576
        %v6122 = vunpack.c.h.b16 %v3576
        %v6123 = vunpack.c.l.b16 %v3577
        %v6124 = vunpack.c.h.b16 %v3577
        %v6125 = vunpack.c.l.b16 %v3578
        %v6126 = vunpack.c.h.b16 %v3578
        %v6127 = vunpack.c.l.b16 %v3579
        %v6128 = vunpack.c.h.b16 %v3579
        %v6129 = vunpack.c.l.b16 %v3580
        %v6130 = vunpack.c.h.b16 %v3580
        %v6131 = vunpack.c.l.b16 %v3581
        %v6132 = vunpack.c.h.b16 %v3581
        %v6133 = vunpack.c.l.b16 %v3582
        %v6134 = vunpack.c.h.b16 %v3582
        %v6135 = vunpack.c.l.b16 %v3583
        %v6136 = vunpack.c.h.b16 %v3583
        %v6137 = vunpack.c.l.b16 %v3584
        %v6138 = vunpack.c.h.b16 %v3584
        %v6139 = vunpack.c.l.b16 %v3585
        %v6140 = vunpack.c.h.b16 %v3585
        %v6141 = vunpack.c.l.b16 %v3586
        %v6142 = vunpack.c.h.b16 %v3586
        %v6143 = vunpack.c.l.b16 %v3587
        %v6144 = vunpack.c.h.b16 %v3587
        %v6145 = vunpack.c.l.b16 %v3588
        %v6146 = vunpack.c.h.b16 %v3588
        %v6147 = vunpack.c.l.b16 %v3589
        %v6148 = vunpack.c.h.b16 %v3589
        %v6149 = vunpack.c.l.b16 %v3590
        %v6150 = vunpack.c.h.b16 %v3590
        %v6151 = vunpack.c.l.b16 %v3591
        %v6152 = vunpack.c.h.b16 %v3591
        %v6153 = vunpack.c.l.b16 %v3592
        %v6154 = vunpack.c.h.b16 %v3592
        %v6155 = vunpack.c.l.b16 %v3593
        %v6156 = vunpack.c.h.b16 %v3593
        %v6157 = vunpack.c.l.b16 %v3594
        %v6158 = vunpack.c.h.b16 %v3594
        %v6159 = vunpack.c.l.b16 %v3595
        %v6160 = vunpack.c.h.b16 %v3595
        %v6161 = vunpack.c.l.b16 %v3596
        %v6162 = vunpack.c.h.b16 %v3596
        %v6163 = vunpack.c.l.b16 %v3597
        %v6164 = vunpack.c.h.b16 %v3597
        %v6165 = vunpack.c.l.b16 %v3598
        %v6166 = vunpack.c.h.b16 %v3598
        %v6167 = vunpack.c.l.b16 %v3599
        %v6168 = vunpack.c.h.b16 %v3599
        %v6169 = vunpack.c.l.b16 %v3600
        %v6170 = vunpack.c.h.b16 %v3600
        %v6171 = vunpack.c.l.b16 %v3601
        %v6172 = vunpack.c.h.b16 %v3601
        %v6173 = vunpack.c.l.b16 %v3602
        %v6174 = vunpack.c.h.b16 %v3602
        %v6175 = vunpack.c.l.b16 %v3603
        %v6176 = vunpack.c.h.b16 %v3603
        %v6177 = vunpack.c.l.b16 %v3604
        %v6178 = vunpack.c.h.b16 %v3604
        %v6179 = vunpack.c.l.b16 %v3605
        %v6180 = vunpack.c.h.b16 %v3605
        %v6181 = vunpack.c.l.b16 %v3606
        %v6182 = vunpack.c.h.b16 %v3606
        %v6183 = vunpack.c.l.b16 %v3607
        %v6184 = vunpack.c.h.b16 %v3607
        %v6185 = vunpack.c.l.b16 %v3608
        %v6186 = vunpack.c.h.b16 %v3608
        %v6187 = vunpack.c.l.b16 %v3609
        %v6188 = vunpack.c.h.b16 %v3609
        %v6189 = vunpack.c.l.b16 %v3610
        %v6190 = vunpack.c.h.b16 %v3610
        %v6191 = vunpack.c.l.b16 %v3611
        %v6192 = vunpack.c.h.b16 %v3611
        %v6193 = vunpack.c.l.b16 %v3612
        %v6194 = vunpack.c.h.b16 %v3612
        %v6195 = vunpack.c.l.b16 %v3613
        %v6196 = vunpack.c.h.b16 %v3613
        %v6197 = vunpack.c.l.b16 %v3614
        %v6198 = vunpack.c.h.b16 %v3614
        %v6199 = vunpack.c.l.b16 %v3615
        %v6200 = vunpack.c.h.b16 %v3615
        %v6201 = vunpack.c.l.b16 %v3616
        %v6202 = vunpack.c.h.b16 %v3616
        %v6203 = vunpack.c.l.b16 %v3617
        %v6204 = vunpack.c.h.b16 %v3617
        %v6205 = vunpack.c.l.b16 %v3618
        %v6206 = vunpack.c.h.b16 %v3618
        %v6207 = vunpack.c.l.b16 %v3619
        %v6208 = vunpack.c.h.b16 %v3619
        %v6209 = vunpack.c.l.b16 %v3620
        %v6210 = vunpack.c.h.b16 %v3620
        %v6211 = vunpack.c.l.b16 %v3621
        %v6212 = vunpack.c.h.b16 %v3621
        %v6213 = vunpack.c.l.b16 %v3622
        %v6214 = vunpack.c.h.b16 %v3622
        %v6215 = vunpack.c.l.b16 %v3623
        %v6216 = vunpack.c.h.b16 %v3623
        %v6217 = vunpack.c.l.b16 %v3624
        %v6218 = vunpack.c.h.b16 %v3624
        %v6219 = vunpack.c.l.b16 %v3625
        %v6220 = vunpack.c.h.b16 %v3625
        %v6221 = vunpack.c.l.b16 %v3626
        %v6222 = vunpack.c.h.b16 %v3626
        %v6223 = vunpack.c.l.b16 %v3627
        %v6224 = vunpack.c.h.b16 %v3627
        %v6225 = vunpack.c.l.b16 %v3628
        %v6226 = vunpack.c.h.b16 %v3628
        %v6227 = vunpack.c.l.b16 %v3629
        %v6228 = vunpack.c.h.b16 %v3629
        %v6229 = vunpack.c.l.b16 %v3630
        %v6230 = vunpack.c.h.b16 %v3630
        %v6231 = vunpack.c.l.b16 %v3631
        %v6232 = vunpack.c.h.b16 %v3631
        %v6233 = vunpack.c.l.b16 %v3632
        %v6234 = vunpack.c.h.b16 %v3632
        %v6235 = vunpack.c.l.b16 %v3633
        %v6236 = vunpack.c.h.b16 %v3633
        %v6237 = vunpack.c.l.b16 %v3634
        %v6238 = vunpack.c.h.b16 %v3634
        %v6239 = vunpack.c.l.b16 %v3635
        %v6240 = vunpack.c.h.b16 %v3635
        %v6241 = vunpack.c.l.b16 %v3636
        %v6242 = vunpack.c.h.b16 %v3636
        %v6243 = vunpack.c.l.b16 %v3637
        %v6244 = vunpack.c.h.b16 %v3637
        %v6245 = vunpack.c.l.b16 %v3638
        %v6246 = vunpack.c.h.b16 %v3638
        %v6247 = vunpack.c.l.b16 %v3639
        %v6248 = vunpack.c.h.b16 %v3639
        %v6249 = vunpack.c.l.b16 %v3640
        %v6250 = vunpack.c.h.b16 %v3640
        %v6251 = vunpack.c.l.b16 %v3641
        %v6252 = vunpack.c.h.b16 %v3641
        %v6253 = vunpack.c.l.b16 %v3642
        %v6254 = vunpack.c.h.b16 %v3642
        %v6255 = vunpack.c.l.b16 %v3643
        %v6256 = vunpack.c.h.b16 %v3643
        %v6257 = vunpack.c.l.b16 %v3644
        %v6258 = vunpack.c.h.b16 %v3644
        %v6259 = vunpack.c.l.b16 %v3645
        %v6260 = vunpack.c.h.b16 %v3645
        %v6261 = vunpack.c.l.b16 %v3646
        %v6262 = vunpack.c.h.b16 %v3646
        %v6263 = vunpack.c.l.b16 %v3647
        %v6264 = vunpack.c.h.b16 %v3647
        %v6265 = vunpack.c.l.b16 %v3648
        %v6266 = vunpack.c.h.b16 %v3648
        %v6267 = vunpack.c.l.b16 %v3649
        %v6268 = vunpack.c.h.b16 %v3649
        %v6269 = vunpack.c.l.b16 %v3650
        %v6270 = vunpack.c.h.b16 %v3650
        %v6271 = vunpack.c.l.b16 %v3651
        %v6272 = vunpack.c.h.b16 %v3651
        %v6273 = vunpack.c.l.b16 %v3652
        %v6274 = vunpack.c.h.b16 %v3652
        %v6275 = vunpack.c.l.b16 %v3653
        %v6276 = vunpack.c.h.b16 %v3653
        %v6277 = vunpack.c.l.b16 %v3654
        %v6278 = vunpack.c.h.b16 %v3654
        %v6279 = vunpack.c.l.b16 %v3655
        %v6280 = vunpack.c.h.b16 %v3655
        %v6281 = vunpack.c.l.b16 %v3656
        %v6282 = vunpack.c.h.b16 %v3656
        %v6283 = vunpack.c.l.b16 %v3657
        %v6284 = vunpack.c.h.b16 %v3657
        %v6285 = vunpack.c.l.b16 %v3658
        %v6286 = vunpack.c.h.b16 %v3658
        %v6287 = vunpack.c.l.b16 %v3659
        %v6288 = vunpack.c.h.b16 %v3659
        %v6289 = vunpack.c.l.b16 %v3660
        %v6290 = vunpack.c.h.b16 %v3660
        %v6291 = vunpack.c.l.b16 %v3661
        %v6292 = vunpack.c.h.b16 %v3661
        %v6293 = vunpack.c.l.b16 %v3662
        %v6294 = vunpack.c.h.b16 %v3662
        %v6295 = vunpack.c.l.b16 %v3663
        %v6296 = vunpack.c.h.b16 %v3663
        %v6297 = vunpack.c.l.b16 %v3664
        %v6298 = vunpack.c.h.b16 %v3664
        %v6299 = vunpack.c.l.b16 %v3665
        %v6300 = vunpack.c.h.b16 %v3665
        %v6301 = vunpack.c.l.b16 %v3666
        %v6302 = vunpack.c.h.b16 %v3666
        %v6303 = vunpack.c.l.b16 %v3667
        %v6304 = vunpack.c.h.b16 %v3667
        %v6305 = vunpack.c.l.b16 %v3668
        %v6306 = vunpack.c.h.b16 %v3668
        %v6307 = vunpack.c.l.b16 %v3669
        %v6308 = vunpack.c.h.b16 %v3669
        %v6309 = vunpack.c.l.b16 %v3670
        %v6310 = vunpack.c.h.b16 %v3670
        %v6311 = vunpack.c.l.b16 %v3671
        %v6312 = vunpack.c.h.b16 %v3671
        %v6313 = vunpack.c.l.b16 %v3672
        %v6314 = vunpack.c.h.b16 %v3672
        %v6315 = vunpack.c.l.b16 %v3673
        %v6316 = vunpack.c.h.b16 %v3673
        %v6317 = vunpack.c.l.b16 %v3674
        %v6318 = vunpack.c.h.b16 %v3674
        %v6319 = vunpack.c.l.b16 %v3675
        %v6320 = vunpack.c.h.b16 %v3675
        %v6321 = vunpack.c.l.b16 %v3676
        %v6322 = vunpack.c.h.b16 %v3676
        %v6323 = vunpack.c.l.b16 %v3677
        %v6324 = vunpack.c.h.b16 %v3677
        %v6325 = vunpack.c.l.b16 %v3678
        %v6326 = vunpack.c.h.b16 %v3678
        %v6327 = vunpack.c.l.b16 %v3679
        %v6328 = vunpack.c.h.b16 %v3679
        %v6329 = vunpack.c.l.b16 %v3680
        %v6330 = vunpack.c.h.b16 %v3680
        %v6331 = vunpack.c.l.b16 %v3681
        %v6332 = vunpack.c.h.b16 %v3681
        %v6333 = vunpack.c.l.b16 %v3682
        %v6334 = vunpack.c.h.b16 %v3682
        %v6335 = vunpack.c.l.b16 %v3683
        %v6336 = vunpack.c.h.b16 %v3683
        %v6337 = vunpack.c.l.b16 %v3684
        %v6338 = vunpack.c.h.b16 %v3684
        %v6339 = vunpack.c.l.b16 %v3685
        %v6340 = vunpack.c.h.b16 %v3685
        %v6341 = vunpack.c.l.b16 %v3686
        %v6342 = vunpack.c.h.b16 %v3686
        %v6343 = vunpack.c.l.b16 %v3687
        %v6344 = vunpack.c.h.b16 %v3687
        %v6345 = vunpack.c.l.b16 %v3688
        %v6346 = vunpack.c.h.b16 %v3688
        %v6347 = vunpack.c.l.b16 %v3689
        %v6348 = vunpack.c.h.b16 %v3689
        %v6349 = vunpack.c.l.b16 %v3690
        %v6350 = vunpack.c.h.b16 %v3690
        %v6351 = vunpack.c.l.b16 %v3691
        %v6352 = vunpack.c.h.b16 %v3691
        %v6353 = vunpack.c.l.b16 %v3692
        %v6354 = vunpack.c.h.b16 %v3692
        %v6355 = vunpack.c.l.b16 %v3693
        %v6356 = vunpack.c.h.b16 %v3693
        %v6357 = vunpack.c.l.b16 %v3694
        %v6358 = vunpack.c.h.b16 %v3694
        %v6359 = vunpack.c.l.b16 %v3695
        %v6360 = vunpack.c.h.b16 %v3695
        %v6361 = vunpack.c.l.b16 %v3696
        %v6362 = vunpack.c.h.b16 %v3696
        %v6363 = vunpack.c.l.b16 %v3697
        %v6364 = vunpack.c.h.b16 %v3697
        %v6365 = vunpack.c.l.b16 %v3698
        %v6366 = vunpack.c.h.b16 %v3698
        %v6367 = vunpack.c.l.b16 %v3699
        %v6368 = vunpack.c.h.b16 %v3699
        %v6369 = vunpack.c.l.b16 %v3700
        %v6370 = vunpack.c.h.b16 %v3700
        %v6371 = vunpack.c.l.b16 %v3701
        %v6372 = vunpack.c.h.b16 %v3701
        %v6373 = vunpack.c.l.b16 %v3702
        %v6374 = vunpack.c.h.b16 %v3702
        %v6375 = vunpack.c.l.b16 %v3703
        %v6376 = vunpack.c.h.b16 %v3703
        %v6377 = vunpack.c.l.b16 %v3704
        %v6378 = vunpack.c.h.b16 %v3704
        %v6379 = vunpack.c.l.b16 %v3705
        %v6380 = vunpack.c.h.b16 %v3705
        %v6381 = vunpack.c.l.b16 %v3706
        %v6382 = vunpack.c.h.b16 %v3706
        %v6383 = vunpack.c.l.b16 %v3707
        %v6384 = vunpack.c.h.b16 %v3707
        %v6385 = vunpack.c.l.b16 %v3708
        %v6386 = vunpack.c.h.b16 %v3708
        %v6387 = vunpack.c.l.b16 %v3709
        %v6388 = vunpack.c.h.b16 %v3709
        %v6389 = vunpack.c.l.b16 %v3710
        %v6390 = vunpack.c.h.b16 %v3710
        %v6391 = vunpack.c.l.b16 %v3711
        %v6392 = vunpack.c.h.b16 %v3711
        %v6393 = vunpack.c.l.b16 %v3712
        %v6394 = vunpack.c.h.b16 %v3712
        %v6395 = vunpack.c.l.b16 %v3713
        %v6396 = vunpack.c.h.b16 %v3713
        %v6397 = vunpack.c.l.b16 %v3714
        %v6398 = vunpack.c.h.b16 %v3714
        %v6399 = vunpack.c.l.b16 %v3715
        %v6400 = vunpack.c.h.b16 %v3715
        %v6401 = vunpack.c.l.b16 %v3716
        %v6402 = vunpack.c.h.b16 %v3716
        %v6403 = vunpack.c.l.b16 %v3717
        %v6404 = vunpack.c.h.b16 %v3717
        %v6405 = vunpack.c.l.b16 %v3718
        %v6406 = vunpack.c.h.b16 %v3718
        %v6407 = vunpack.c.l.b16 %v3719
        %v6408 = vunpack.c.h.b16 %v3719
        %v6409 = vunpack.c.l.b16 %v3720
        %v6410 = vunpack.c.h.b16 %v3720
        %v6411 = vunpack.c.l.b16 %v3721
        %v6412 = vunpack.c.h.b16 %v3721
        %v6413 = vunpack.c.l.b16 %v3722
        %v6414 = vunpack.c.h.b16 %v3722
        %v6415 = vunpack.c.l.b16 %v3723
        %v6416 = vunpack.c.h.b16 %v3723
        %v6417 = vunpack.c.l.b16 %v3724
        %v6418 = vunpack.c.h.b16 %v3724
        %v6419 = vunpack.c.l.b16 %v3725
        %v6420 = vunpack.c.h.b16 %v3725
        %v6421 = vunpack.c.l.b16 %v3726
        %v6422 = vunpack.c.h.b16 %v3726
        %v6423 = vunpack.c.l.b16 %v3727
        %v6424 = vunpack.c.h.b16 %v3727
        %v6425 = vunpack.c.l.b16 %v3728
        %v6426 = vunpack.c.h.b16 %v3728
        %v6427 = vunpack.c.l.b16 %v3729
        %v6428 = vunpack.c.h.b16 %v3729
        %v6429 = vunpack.c.l.b16 %v3730
        %v6430 = vunpack.c.h.b16 %v3730
        %v6431 = vunpack.c.l.b16 %v3731
        %v6432 = vunpack.c.h.b16 %v3731
        %v6433 = vunpack.c.l.b16 %v3732
        %v6434 = vunpack.c.h.b16 %v3732
        %v6435 = vunpack.c.l.b16 %v3733
        %v6436 = vunpack.c.h.b16 %v3733
        %v6437 = vunpack.c.l.b16 %v3734
        %v6438 = vunpack.c.h.b16 %v3734
        %v6439 = vunpack.c.l.b16 %v3735
        %v6440 = vunpack.c.h.b16 %v3735
        %v6441 = vunpack.c.l.b16 %v3736
        %v6442 = vunpack.c.h.b16 %v3736
        %v6443 = vunpack.c.l.b16 %v3737
        %v6444 = vunpack.c.h.b16 %v3737
        %v6445 = vunpack.c.l.b16 %v3738
        %v6446 = vunpack.c.h.b16 %v3738
        %v6447 = vunpack.c.l.b16 %v3739
        %v6448 = vunpack.c.h.b16 %v3739
        %v6449 = vunpack.c.l.b16 %v3740
        %v6450 = vunpack.c.h.b16 %v3740
        %v6451 = vunpack.c.l.b16 %v3741
        %v6452 = vunpack.c.h.b16 %v3741
        %v6453 = vunpack.c.l.b16 %v3742
        %v6454 = vunpack.c.h.b16 %v3742
        %v6455 = vunpack.c.l.b16 %v3743
        %v6456 = vunpack.c.h.b16 %v3743
        %v6457 = vunpack.c.l.b16 %v3744
        %v6458 = vunpack.c.h.b16 %v3744
        %v6459 = vunpack.c.l.b16 %v3745
        %v6460 = vunpack.c.h.b16 %v3745
        %v6461 = vunpack.c.l.b16 %v3746
        %v6462 = vunpack.c.h.b16 %v3746
        %v6463 = vunpack.c.l.b16 %v3747
        %v6464 = vunpack.c.h.b16 %v3747
        %v6465 = vunpack.c.l.b16 %v3748
        %v6466 = vunpack.c.h.b16 %v3748
        %v6467 = vunpack.c.l.b16 %v3749
        %v6468 = vunpack.c.h.b16 %v3749
        %v6469 = vunpack.c.l.b16 %v3750
        %v6470 = vunpack.c.h.b16 %v3750
        %v6471 = vunpack.c.l.b16 %v3751
        %v6472 = vunpack.c.h.b16 %v3751
        %v6473 = vunpack.c.l.b16 %v3752
        %v6474 = vunpack.c.h.b16 %v3752
        %v6475 = vunpack.c.l.b16 %v3753
        %v6476 = vunpack.c.h.b16 %v3753
        %v6477 = vunpack.c.l.b16 %v3754
        %v6478 = vunpack.c.h.b16 %v3754
        %v6479 = vunpack.c.l.b16 %v3755
        %v6480 = vunpack.c.h.b16 %v3755
        %v6481 = vunpack.c.l.b16 %v3756
        %v6482 = vunpack.c.h.b16 %v3756
        %v6483 = vunpack.c.l.b16 %v3757
        %v6484 = vunpack.c.h.b16 %v3757
        %v6485 = vunpack.c.l.b16 %v3758
        %v6486 = vunpack.c.h.b16 %v3758
        %v6487 = vunpack.c.l.b16 %v3759
        %v6488 = vunpack.c.h.b16 %v3759
        %v6489 = vunpack.c.l.b16 %v3760
        %v6490 = vunpack.c.h.b16 %v3760
        %v6491 = vunpack.c.l.b16 %v3761
        %v6492 = vunpack.c.h.b16 %v3761
        %v6493 = vunpack.c.l.b16 %v3762
        %v6494 = vunpack.c.h.b16 %v3762
        %v6495 = vunpack.c.l.b16 %v3763
        %v6496 = vunpack.c.h.b16 %v3763
        %v6497 = vunpack.c.l.b16 %v3764
        %v6498 = vunpack.c.h.b16 %v3764
        %v6499 = vunpack.c.l.b16 %v3765
        %v6500 = vunpack.c.h.b16 %v3765
        %v6501 = vunpack.c.l.b16 %v3766
        %v6502 = vunpack.c.h.b16 %v3766
        %v6503 = vunpack.c.l.b16 %v3767
        %v6504 = vunpack.c.h.b16 %v3767
        %v6505 = vunpack.c.l.b16 %v3768
        %v6506 = vunpack.c.h.b16 %v3768
        %v6507 = vunpack.c.l.b16 %v3769
        %v6508 = vunpack.c.h.b16 %v3769
        %v6509 = vunpack.c.l.b16 %v3770
        %v6510 = vunpack.c.h.b16 %v3770
        %v6511 = vunpack.c.l.b16 %v3771
        %v6512 = vunpack.c.h.b16 %v3771
        %v6513 = vunpack.c.l.b16 %v3772
        %v6514 = vunpack.c.h.b16 %v3772
        %v6515 = vunpack.c.l.b16 %v3773
        %v6516 = vunpack.c.h.b16 %v3773
        %v6517 = vunpack.c.l.b16 %v3774
        %v6518 = vunpack.c.h.b16 %v3774
        %v6519 = vunpack.c.l.b16 %v3775
        %v6520 = vunpack.c.h.b16 %v3775
        %v6521 = vunpack.c.l.b16 %v3776
        %v6522 = vunpack.c.h.b16 %v3776
        %v6523 = vunpack.c.l.b16 %v3777
        %v6524 = vunpack.c.h.b16 %v3777
        %v6525 = vunpack.c.l.b16 %v3778
        %v6526 = vunpack.c.h.b16 %v3778
        %v6527 = vunpack.c.l.b16 %v3779
        %v6528 = vunpack.c.h.b16 %v3779
        %v6529 = vunpack.c.l.b16 %v3780
        %v6530 = vunpack.c.h.b16 %v3780
        %v6531 = vunpack.c.l.b16 %v3781
        %v6532 = vunpack.c.h.b16 %v3781
        %v6533 = vunpack.c.l.b16 %v3782
        %v6534 = vunpack.c.h.b16 %v3782
        %v6535 = vunpack.c.l.b16 %v3783
        %v6536 = vunpack.c.h.b16 %v3783
        %v6537 = vunpack.c.l.b16 %v3784
        %v6538 = vunpack.c.h.b16 %v3784
        %v6539 = vunpack.c.l.b16 %v3785
        %v6540 = vunpack.c.h.b16 %v3785
        %v6541 = vunpack.c.l.b16 %v3786
        %v6542 = vunpack.c.h.b16 %v3786
        %v6543 = vunpack.c.l.b16 %v3787
        %v6544 = vunpack.c.h.b16 %v3787
        %v6545 = vunpack.c.l.b16 %v3788
        %v6546 = vunpack.c.h.b16 %v3788
        %v6547 = vunpack.c.l.b16 %v3789
        %v6548 = vunpack.c.h.b16 %v3789
        %v6549 = vunpack.c.l.b16 %v3790
        %v6550 = vunpack.c.h.b16 %v3790
        %v6551 = vunpack.c.l.b16 %v3791
        %v6552 = vunpack.c.h.b16 %v3791
        %v6553 = vunpack.c.l.b16 %v3792
        %v6554 = vunpack.c.h.b16 %v3792
        %v6555 = vunpack.c.l.b16 %v3793
        %v6556 = vunpack.c.h.b16 %v3793
        %v6557 = vunpack.c.l.b16 %v3794
        %v6558 = vunpack.c.h.b16 %v3794
        %v6559 = vunpack.c.l.b16 %v3795
        %v6560 = vunpack.c.h.b16 %v3795
        %v6561 = vunpack.c.l.b16 %v3796
        %v6562 = vunpack.c.h.b16 %v3796
        %v6563 = vunpack.c.l.b16 %v3797
        %v6564 = vunpack.c.h.b16 %v3797
        %v6565 = vunpack.c.l.b16 %v3798
        %v6566 = vunpack.c.h.b16 %v3798
        %v6567 = vunpack.c.l.b16 %v3799
        %v6568 = vunpack.c.h.b16 %v3799
        %v6569 = vunpack.c.l.b16 %v3800
        %v6570 = vunpack.c.h.b16 %v3800
        %v6571 = vunpack.c.l.b16 %v3801
        %v6572 = vunpack.c.h.b16 %v3801
        %v6573 = vunpack.c.l.b16 %v3802
        %v6574 = vunpack.c.h.b16 %v3802
        %v6575 = vunpack.c.l.b16 %v3803
        %v6576 = vunpack.c.h.b16 %v3803
        %v6577 = vunpack.c.l.b16 %v3804
        %v6578 = vunpack.c.h.b16 %v3804
        %v6579 = vunpack.c.l.b16 %v3805
        %v6580 = vunpack.c.h.b16 %v3805
        %v6581 = vunpack.c.l.b16 %v3806
        %v6582 = vunpack.c.h.b16 %v3806
        %v6583 = vunpack.c.l.b16 %v3807
        %v6584 = vunpack.c.h.b16 %v3807
        %v6585 = vunpack.c.l.b16 %v3808
        %v6586 = vunpack.c.h.b16 %v3808
        %v6587 = vunpack.c.l.b16 %v3809
        %v6588 = vunpack.c.h.b16 %v3809
        %v6589 = vunpack.c.l.b16 %v3810
        %v6590 = vunpack.c.h.b16 %v3810
        %v6591 = vunpack.c.l.b16 %v3811
        %v6592 = vunpack.c.h.b16 %v3811
        %v6593 = vunpack.c.l.b16 %v3812
        %v6594 = vunpack.c.h.b16 %v3812
        %v6595 = vunpack.c.l.b16 %v3813
        %v6596 = vunpack.c.h.b16 %v3813
        %v6597 = vunpack.c.l.b16 %v3814
        %v6598 = vunpack.c.h.b16 %v3814
        %v6599 = vunpack.c.l.b16 %v3815
        %v6600 = vunpack.c.h.b16 %v3815
        %v6601 = vunpack.c.l.b16 %v3816
        %v6602 = vunpack.c.h.b16 %v3816
        %v6603 = vunpack.c.l.b16 %v3817
        %v6604 = vunpack.c.h.b16 %v3817
        %v6605 = vunpack.c.l.b16 %v3818
        %v6606 = vunpack.c.h.b16 %v3818
        %v6607 = vunpack.c.l.b16 %v3819
        %v6608 = vunpack.c.h.b16 %v3819
        %v6609 = vunpack.c.l.b16 %v3820
        %v6610 = vunpack.c.h.b16 %v3820
        %v6611 = vunpack.c.l.b16 %v3821
        %v6612 = vunpack.c.h.b16 %v3821
        %v6613 = vunpack.c.l.b16 %v3822
        %v6614 = vunpack.c.h.b16 %v3822
        %v6615 = vunpack.c.l.b16 %v3823
        %v6616 = vunpack.c.h.b16 %v3823
        %v6617 = vunpack.c.l.b16 %v3824
        %v6618 = vunpack.c.h.b16 %v3824
        %v6619 = vunpack.c.l.b16 %v3825
        %v6620 = vunpack.c.h.b16 %v3825
        %v6621 = vunpack.c.l.b16 %v3826
        %v6622 = vunpack.c.h.b16 %v3826
        %v6623 = vunpack.c.l.b16 %v3827
        %v6624 = vunpack.c.h.b16 %v3827
        %v6625 = vunpack.c.l.b16 %v3828
        %v6626 = vunpack.c.h.b16 %v3828
        %v6627 = vunpack.c.l.b16 %v3829
        %v6628 = vunpack.c.h.b16 %v3829
        %v6629 = vunpack.c.l.b16 %v3830
        %v6630 = vunpack.c.h.b16 %v3830
        %v6631 = vunpack.c.l.b16 %v3831
        %v6632 = vunpack.c.h.b16 %v3831
        %v6633 = vunpack.c.l.b16 %v3832
        %v6634 = vunpack.c.h.b16 %v3832
        %v6635 = vunpack.c.l.b16 %v3833
        %v6636 = vunpack.c.h.b16 %v3833
        %v6637 = vunpack.c.l.b16 %v3834
        %v6638 = vunpack.c.h.b16 %v3834
        %v6639 = vunpack.c.l.b16 %v3835
        %v6640 = vunpack.c.h.b16 %v3835
        %v6641 = vunpack.c.l.b16 %v3836
        %v6642 = vunpack.c.h.b16 %v3836
        %v6643 = vunpack.c.l.b16 %v3837
        %v6644 = vunpack.c.h.b16 %v3837
        %v6645 = vunpack.c.l.b16 %v3838
        %v6646 = vunpack.c.h.b16 %v3838
        %v6647 = vunpack.c.l.b16 %v3839
        %v6648 = vunpack.c.h.b16 %v3839
        %v6649 = vunpack.c.l.b16 %v3840
        %v6650 = vunpack.c.h.b16 %v3840
        %v6651 = vunpack.c.l.b16 %v3841
        %v6652 = vunpack.c.h.b16 %v3841
        %v6653 = vunpack.c.l.b16 %v3842
        %v6654 = vunpack.c.h.b16 %v3842
        %v6655 = vunpack.c.l.b16 %v3843
        %v6656 = vunpack.c.h.b16 %v3843
        %v6657 = vunpack.c.l.b16 %v3844
        %v6658 = vunpack.c.h.b16 %v3844
        %v6659 = vunpack.c.l.b16 %v3845
        %v6660 = vunpack.c.h.b16 %v3845
        %v6661 = vunpack.c.l.b16 %v3846
        %v6662 = vunpack.c.h.b16 %v3846
        %v6663 = vunpack.c.l.b16 %v3847
        %v6664 = vunpack.c.h.b16 %v3847
        %v6665 = vunpack.c.l.b16 %v3848
        %v6666 = vunpack.c.h.b16 %v3848
        %v6667 = vunpack.c.l.b16 %v3849
        %v6668 = vunpack.c.h.b16 %v3849
        %v6669 = vunpack.c.l.b16 %v3850
        %v6670 = vunpack.c.h.b16 %v3850
        %v6671 = vunpack.c.l.b16 %v3851
        %v6672 = vunpack.c.h.b16 %v3851
        %v6673 = vunpack.c.l.b16 %v3852
        %v6674 = vunpack.c.h.b16 %v3852
        %v6675 = vunpack.c.l.b16 %v3853
        %v6676 = vunpack.c.h.b16 %v3853
        %v6677 = vunpack.c.l.b16 %v3854
        %v6678 = vunpack.c.h.b16 %v3854
        %v6679 = vunpack.c.l.b16 %v3855
        %v6680 = vunpack.c.h.b16 %v3855
        %v6681 = vunpack.c.l.b16 %v3856
        %v6682 = vunpack.c.h.b16 %v3856
        %v6683 = vunpack.c.l.b16 %v3857
        %v6684 = vunpack.c.h.b16 %v3857
        %v6685 = vunpack.c.l.b16 %v3858
        %v6686 = vunpack.c.h.b16 %v3858
        %v6687 = vunpack.c.l.b16 %v3859
        %v6688 = vunpack.c.h.b16 %v3859
        %v6689 = vunpack.c.l.b16 %v3860
        %v6690 = vunpack.c.h.b16 %v3860
        %v6691 = vunpack.c.l.b16 %v3861
        %v6692 = vunpack.c.h.b16 %v3861
        %v6693 = vunpack.c.l.b16 %v3862
        %v6694 = vunpack.c.h.b16 %v3862
        %v6695 = vunpack.c.l.b16 %v3863
        %v6696 = vunpack.c.h.b16 %v3863
        %v6697 = vunpack.c.l.b16 %v3864
        %v6698 = vunpack.c.h.b16 %v3864
        %v6699 = vunpack.c.l.b16 %v3865
        %v6700 = vunpack.c.h.b16 %v3865
        %v6701 = vunpack.c.l.b16 %v3866
        %v6702 = vunpack.c.h.b16 %v3866
        %v6703 = vunpack.c.l.b16 %v3867
        %v6704 = vunpack.c.h.b16 %v3867
        %v6705 = vunpack.c.l.b16 %v3868
        %v6706 = vunpack.c.h.b16 %v3868
        %v6707 = vunpack.c.l.b16 %v3869
        %v6708 = vunpack.c.h.b16 %v3869
        %v6709 = vunpack.c.l.b16 %v3870
        %v6710 = vunpack.c.h.b16 %v3870
        %v6711 = vunpack.c.l.b16 %v3871
        %v6712 = vunpack.c.h.b16 %v3871
        %v6713 = vunpack.c.l.b16 %v3872
        %v6714 = vunpack.c.h.b16 %v3872
        %v6715 = vunpack.c.l.b16 %v3873
        %v6716 = vunpack.c.h.b16 %v3873
        %v6717 = vunpack.c.l.b16 %v3874
        %v6718 = vunpack.c.h.b16 %v3874
        %v6719 = vunpack.c.l.b16 %v3875
        %v6720 = vunpack.c.h.b16 %v3875
        %v6721 = vunpack.c.l.b16 %v3876
        %v6722 = vunpack.c.h.b16 %v3876
        %v6723 = vunpack.c.l.b16 %v3877
        %v6724 = vunpack.c.h.b16 %v3877
        %v6725 = vunpack.c.l.b16 %v3878
        %v6726 = vunpack.c.h.b16 %v3878
        %v6727 = vunpack.c.l.b16 %v3879
        %v6728 = vunpack.c.h.b16 %v3879
        %v6729 = vunpack.c.l.b16 %v3880
        %v6730 = vunpack.c.h.b16 %v3880
        %v6731 = vunpack.c.l.b16 %v3881
        %v6732 = vunpack.c.h.b16 %v3881
        %v6733 = vunpack.c.l.b16 %v3882
        %v6734 = vunpack.c.h.b16 %v3882
        %v6735 = vunpack.c.l.b16 %v3883
        %v6736 = vunpack.c.h.b16 %v3883
        %v6737 = vunpack.c.l.b16 %v3884
        %v6738 = vunpack.c.h.b16 %v3884
        %v6739 = vunpack.c.l.b16 %v3885
        %v6740 = vunpack.c.h.b16 %v3885
        %v6741 = vunpack.c.l.b16 %v3886
        %v6742 = vunpack.c.h.b16 %v3886
        %v6743 = vunpack.c.l.b16 %v3887
        %v6744 = vunpack.c.h.b16 %v3887
        %v6745 = vunpack.c.l.b16 %v3888
        %v6746 = vunpack.c.h.b16 %v3888
        %v6747 = vunpack.c.l.b16 %v3889
        %v6748 = vunpack.c.h.b16 %v3889
        %v6749 = vunpack.c.l.b16 %v3890
        %v6750 = vunpack.c.h.b16 %v3890
        %v6751 = vunpack.c.l.b16 %v3891
        %v6752 = vunpack.c.h.b16 %v3891
        %v6753 = vunpack.c.l.b16 %v3892
        %v6754 = vunpack.c.h.b16 %v3892
        %v6755 = vunpack.c.l.b16 %v3893
        %v6756 = vunpack.c.h.b16 %v3893
        %v6757 = vunpack.c.l.b16 %v3894
        %v6758 = vunpack.c.h.b16 %v3894
        %v6759 = vunpack.c.l.b16 %v3895
        %v6760 = vunpack.c.h.b16 %v3895
        %v6761 = vunpack.c.l.b16 %v3896
        %v6762 = vunpack.c.h.b16 %v3896
        %v6763 = vunpack.c.l.b16 %v3897
        %v6764 = vunpack.c.h.b16 %v3897
        %v6765 = vunpack.c.l.b16 %v3898
        %v6766 = vunpack.c.h.b16 %v3898
        %v6767 = vunpack.c.l.b16 %v3899
        %v6768 = vunpack.c.h.b16 %v3899
        %v6769 = vunpack.c.l.b16 %v3900
        %v6770 = vunpack.c.h.b16 %v3900
        %v6771 = vunpack.c.l.b16 %v3901
        %v6772 = vunpack.c.h.b16 %v3901
        %v6773 = vunpack.c.l.b16 %v3902
        %v6774 = vunpack.c.h.b16 %v3902
        %v6775 = vunpack.c.l.b16 %v3903
        %v6776 = vunpack.c.h.b16 %v3903
        %v6777 = vunpack.c.l.b16 %v3904
        %v6778 = vunpack.c.h.b16 %v3904
        %v6779 = vunpack.c.l.b16 %v3905
        %v6780 = vunpack.c.h.b16 %v3905
        %v6781 = vunpack.c.l.b16 %v3906
        %v6782 = vunpack.c.h.b16 %v3906
        %v6783 = vunpack.c.l.b16 %v3907
        %v6784 = vunpack.c.h.b16 %v3907
        %v6785 = vunpack.c.l.b16 %v3908
        %v6786 = vunpack.c.h.b16 %v3908
        %v6787 = vunpack.c.l.b16 %v3909
        %v6788 = vunpack.c.h.b16 %v3909
        %v6789 = vunpack.c.l.b16 %v3910
        %v6790 = vunpack.c.h.b16 %v3910
        %v6791 = vunpack.c.l.b16 %v3911
        %v6792 = vunpack.c.h.b16 %v3911
        %v6793 = vunpack.c.l.b16 %v3912
        %v6794 = vunpack.c.h.b16 %v3912
        %v6795 = vunpack.c.l.b16 %v3913
        %v6796 = vunpack.c.h.b16 %v3913
        %v6797 = vunpack.c.l.b16 %v3914
        %v6798 = vunpack.c.h.b16 %v3914
        %v6799 = vunpack.c.l.b16 %v3915
        %v6800 = vunpack.c.h.b16 %v3915
        %v6801 = vunpack.c.l.b16 %v3916
        %v6802 = vunpack.c.h.b16 %v3916
        %v6803 = vunpack.c.l.b16 %v3917
        %v6804 = vunpack.c.h.b16 %v3917
        %v6805 = vunpack.c.l.b16 %v3918
        %v6806 = vunpack.c.h.b16 %v3918
        %v6807 = vunpack.c.l.b16 %v3919
        %v6808 = vunpack.c.h.b16 %v3919
        %v6809 = vunpack.c.l.b16 %v3920
        %v6810 = vunpack.c.h.b16 %v3920
        %v6811 = vunpack.c.l.b16 %v3921
        %v6812 = vunpack.c.h.b16 %v3921
        %v6813 = vunpack.c.l.b16 %v3922
        %v6814 = vunpack.c.h.b16 %v3922
        %v6815 = vunpack.c.l.b16 %v3923
        %v6816 = vunpack.c.h.b16 %v3923
        %v6817 = vunpack.c.l.b16 %v3924
        %v6818 = vunpack.c.h.b16 %v3924
        %v6819 = vunpack.c.l.b16 %v3925
        %v6820 = vunpack.c.h.b16 %v3925
        %v6821 = vunpack.c.l.b16 %v3926
        %v6822 = vunpack.c.h.b16 %v3926
        %v6823 = vunpack.c.l.b16 %v3927
        %v6824 = vunpack.c.h.b16 %v3927
        %v6825 = vunpack.c.l.b16 %v3928
        %v6826 = vunpack.c.h.b16 %v3928
        %v6827 = vunpack.c.l.b16 %v3929
        %v6828 = vunpack.c.h.b16 %v3929
        %v6829 = vunpack.c.l.b16 %v3930
        %v6830 = vunpack.c.h.b16 %v3930
        %v6831 = vunpack.c.l.b16 %v3931
        %v6832 = vunpack.c.h.b16 %v3931
        %v6833 = vunpack.c.l.b16 %v3932
        %v6834 = vunpack.c.h.b16 %v3932
        %v6835 = vunpack.c.l.b16 %v3933
        %v6836 = vunpack.c.h.b16 %v3933
        %v6837 = vunpack.c.l.b16 %v3934
        %v6838 = vunpack.c.h.b16 %v3934
        %v6839 = vunpack.c.l.b16 %v3935
        %v6840 = vunpack.c.h.b16 %v3935
        %v6841 = vunpack.c.l.b16 %v3936
        %v6842 = vunpack.c.h.b16 %v3936
        %v6843 = vunpack.c.l.b16 %v3937
        %v6844 = vunpack.c.h.b16 %v3937
        %v6845 = vunpack.c.l.b16 %v3938
        %v6846 = vunpack.c.h.b16 %v3938
        %v6847 = vunpack.c.l.b16 %v3939
        %v6848 = vunpack.c.h.b16 %v3939
        %v6849 = vunpack.c.l.b16 %v3940
        %v6850 = vunpack.c.h.b16 %v3940
        %v6851 = vunpack.c.l.b16 %v3941
        %v6852 = vunpack.c.h.b16 %v3941
        %v6853 = vunpack.c.l.b16 %v3942
        %v6854 = vunpack.c.h.b16 %v3942
        %v6855 = vunpack.c.l.b16 %v3943
        %v6856 = vunpack.c.h.b16 %v3943
        %v6857 = vunpack.c.l.b16 %v3944
        %v6858 = vunpack.c.h.b16 %v3944
        %v6859 = vunpack.c.l.b16 %v3945
        %v6860 = vunpack.c.h.b16 %v3945
        %v6861 = vunpack.c.l.b16 %v3946
        %v6862 = vunpack.c.h.b16 %v3946
        %v6863 = vunpack.c.l.b16 %v3947
        %v6864 = vunpack.c.h.b16 %v3947
        %v6865 = vunpack.c.l.b16 %v3948
        %v6866 = vunpack.c.h.b16 %v3948
        %v6867 = vunpack.c.l.b16 %v3949
        %v6868 = vunpack.c.h.b16 %v3949
        %v6869 = vunpack.c.l.b16 %v3950
        %v6870 = vunpack.c.h.b16 %v3950
        %v6871 = vunpack.c.l.b16 %v3951
        %v6872 = vunpack.c.h.b16 %v3951
        %v6873 = vunpack.c.l.b16 %v3952
        %v6874 = vunpack.c.h.b16 %v3952
        %v6875 = vunpack.c.l.b16 %v3953
        %v6876 = vunpack.c.h.b16 %v3953
        %v6877 = vunpack.c.l.b16 %v3954
        %v6878 = vunpack.c.h.b16 %v3954
        %v6879 = vunpack.c.l.b16 %v3955
        %v6880 = vunpack.c.h.b16 %v3955
        %v6881 = vunpack.c.l.b16 %v3956
        %v6882 = vunpack.c.h.b16 %v3956
        %v6883 = vunpack.c.l.b16 %v3957
        %v6884 = vunpack.c.h.b16 %v3957
        %v6885 = vunpack.c.l.b16 %v3958
        %v6886 = vunpack.c.h.b16 %v3958
        %v6887 = vunpack.c.l.b16 %v3959
        %v6888 = vunpack.c.h.b16 %v3959
        %v6889 = vunpack.c.l.b16 %v3960
        %v6890 = vunpack.c.h.b16 %v3960
        %v6891 = vunpack.c.l.b16 %v3961
        %v6892 = vunpack.c.h.b16 %v3961
        %v6893 = vunpack.c.l.b16 %v3962
        %v6894 = vunpack.c.h.b16 %v3962
        %v6895 = vunpack.c.l.b16 %v3963
        %v6896 = vunpack.c.h.b16 %v3963
        %v6897 = vunpack.c.l.b16 %v3964
        %v6898 = vunpack.c.h.b16 %v3964
        %v6899 = vunpack.c.l.b16 %v3965
        %v6900 = vunpack.c.h.b16 %v3965
        %v6901 = vunpack.c.l.b16 %v3966
        %v6902 = vunpack.c.h.b16 %v3966
        %v6903 = vunpack.c.l.b16 %v3967
        %v6904 = vunpack.c.h.b16 %v3967
        %v6905 = vunpack.c.l.b16 %v3968
        %v6906 = vunpack.c.h.b16 %v3968
        %v6907 = vunpack.c.l.b16 %v3969
        %v6908 = vunpack.c.h.b16 %v3969
        %v6909 = vunpack.c.l.b16 %v3970
        %v6910 = vunpack.c.h.b16 %v3970
        %v6911 = vunpack.c.l.b16 %v3971
        %v6912 = vunpack.c.h.b16 %v3971
        %v6913 = vunpack.c.l.b16 %v3972
        %v6914 = vunpack.c.h.b16 %v3972
        %v6915 = vunpack.c.l.b16 %v3973
        %v6916 = vunpack.c.h.b16 %v3973
        %v6917 = vunpack.c.l.b16 %v3974
        %v6918 = vunpack.c.h.b16 %v3974
        %v6919 = vunpack.c.l.b16 %v3975
        %v6920 = vunpack.c.h.b16 %v3975
        %v6921 = vunpack.c.l.b16 %v3976
        %v6922 = vunpack.c.h.b16 %v3976
        %v6923 = vunpack.c.l.b16 %v3977
        %v6924 = vunpack.c.h.b16 %v3977
        %v6925 = vunpack.c.l.b16 %v3978
        %v6926 = vunpack.c.h.b16 %v3978
        %v6927 = vunpack.c.l.b16 %v3979
        %v6928 = vunpack.c.h.b16 %v3979
        %v6929 = vunpack.c.l.b16 %v3980
        %v6930 = vunpack.c.h.b16 %v3980
        %v6931 = vunpack.c.l.b16 %v3981
        %v6932 = vunpack.c.h.b16 %v3981
        %v6933 = vunpack.c.l.b16 %v3982
        %v6934 = vunpack.c.h.b16 %v3982
        %v6935 = vunpack.c.l.b16 %v3983
        %v6936 = vunpack.c.h.b16 %v3983
        %v6937 = vunpack.c.l.b16 %v3984
        %v6938 = vunpack.c.h.b16 %v3984
        %v6939 = vunpack.c.l.b16 %v3985
        %v6940 = vunpack.c.h.b16 %v3985
        %v6941 = vunpack.c.l.b16 %v3986
        %v6942 = vunpack.c.h.b16 %v3986
        %v6943 = vunpack.c.l.b16 %v3987
        %v6944 = vunpack.c.h.b16 %v3987
        %v6945 = vunpack.c.l.b16 %v3988
        %v6946 = vunpack.c.h.b16 %v3988
        %v6947 = vunpack.c.l.b16 %v3989
        %v6948 = vunpack.c.h.b16 %v3989
        %v6949 = vunpack.c.l.b16 %v3990
        %v6950 = vunpack.c.h.b16 %v3990
        %v6951 = vunpack.c.l.b16 %v3991
        %v6952 = vunpack.c.h.b16 %v3991
        %v6953 = vunpack.c.l.b16 %v3992
        %v6954 = vunpack.c.h.b16 %v3992
        %v6955 = vunpack.c.l.b16 %v3993
        %v6956 = vunpack.c.h.b16 %v3993
        %v6957 = vunpack.c.l.b16 %v3994
        %v6958 = vunpack.c.h.b16 %v3994
        %v6959 = vunpack.c.l.b16 %v3995
        %v6960 = vunpack.c.h.b16 %v3995
        %v6961 = vunpack.c.l.b16 %v3996
        %v6962 = vunpack.c.h.b16 %v3996
        %v6963 = vunpack.c.l.b16 %v3997
        %v6964 = vunpack.c.h.b16 %v3997
        %v6965 = vunpack.c.l.b16 %v3998
        %v6966 = vunpack.c.h.b16 %v3998
        %v6967 = vunpack.c.l.b16 %v3999
        %v6968 = vunpack.c.h.b16 %v3999
        %v6969 = vunpack.c.l.b16 %v4000
        %v6970 = vunpack.c.h.b16 %v4000
        %v6971 = vunpack.c.l.b16 %v4001
        %v6972 = vunpack.c.h.b16 %v4001
        %v6973 = vunpack.c.l.b16 %v4002
        %v6974 = vunpack.c.h.b16 %v4002
        %v6975 = vunpack.c.l.b16 %v4003
        %v6976 = vunpack.c.h.b16 %v4003
        %v6977 = vunpack.c.l.b16 %v4004
        %v6978 = vunpack.c.h.b16 %v4004
        %v6979 = vunpack.c.l.b16 %v4005
        %v6980 = vunpack.c.h.b16 %v4005
        %v6981 = vunpack.c.l.b16 %v4006
        %v6982 = vunpack.c.h.b16 %v4006
        %v6983 = vunpack.c.l.b16 %v4007
        %v6984 = vunpack.c.h.b16 %v4007
        %v6985 = vunpack.c.l.b16 %v4008
        %v6986 = vunpack.c.h.b16 %v4008
        %v6987 = vunpack.c.l.b16 %v4009
        %v6988 = vunpack.c.h.b16 %v4009
        %v6989 = vunpack.c.l.b16 %v4010
        %v6990 = vunpack.c.h.b16 %v4010
        %v6991 = vunpack.c.l.b16 %v4011
        %v6992 = vunpack.c.h.b16 %v4011
        %v6993 = vunpack.c.l.b16 %v4012
        %v6994 = vunpack.c.h.b16 %v4012
        %v6995 = vunpack.c.l.b16 %v4013
        %v6996 = vunpack.c.h.b16 %v4013
        %v6997 = vunpack.c.l.b16 %v4014
        %v6998 = vunpack.c.h.b16 %v4014
        %v6999 = vunpack.c.l.b16 %v4015
        %v7000 = vunpack.c.h.b16 %v4015
        %v7001 = vunpack.c.l.b16 %v4016
        %v7002 = vunpack.c.h.b16 %v4016
        %v7003 = vunpack.c.l.b16 %v4017
        %v7004 = vunpack.c.h.b16 %v4017
        %v7005 = vunpack.c.l.b16 %v4018
        %v7006 = vunpack.c.h.b16 %v4018
        %v7007 = vunpack.c.l.b16 %v4019
        %v7008 = vunpack.c.h.b16 %v4019
        %v7009 = vunpack.c.l.b16 %v4020
        %v7010 = vunpack.c.h.b16 %v4020
        %v7011 = vunpack.c.l.b16 %v4021
        %v7012 = vunpack.c.h.b16 %v4021
        %v7013 = vunpack.c.l.b16 %v4022
        %v7014 = vunpack.c.h.b16 %v4022
        %v7015 = vunpack.c.l.b16 %v4023
        %v7016 = vunpack.c.h.b16 %v4023
        %v7017 = vunpack.c.l.b16 %v4024
        %v7018 = vunpack.c.h.b16 %v4024
        %v7019 = vunpack.c.l.b16 %v4025
        %v7020 = vunpack.c.h.b16 %v4025
        %v7021 = vunpack.c.l.b16 %v4026
        %v7022 = vunpack.c.h.b16 %v4026
        %v7023 = vunpack.c.l.b16 %v4027
        %v7024 = vunpack.c.h.b16 %v4027
        %v7025 = vunpack.c.l.b16 %v4028
        %v7026 = vunpack.c.h.b16 %v4028
        %v7027 = vunpack.c.l.b16 %v4029
        %v7028 = vunpack.c.h.b16 %v4029
        %v7029 = vunpack.c.l.b16 %v4030
        %v7030 = vunpack.c.h.b16 %v4030
        %v7031 = vunpack.c.l.b16 %v4031
        %v7032 = vunpack.c.h.b16 %v4031
        %v7033 = vunpack.c.l.b16 %v4032
        %v7034 = vunpack.c.h.b16 %v4032
        %v7035 = vunpack.c.l.b16 %v4033
        %v7036 = vunpack.c.h.b16 %v4033
        %v7037 = vunpack.c.l.b16 %v4034
        %v7038 = vunpack.c.h.b16 %v4034
        %v7039 = vunpack.c.l.b16 %v4035
        %v7040 = vunpack.c.h.b16 %v4035
        %v7041 = vunpack.c.l.b16 %v4036
        %v7042 = vunpack.c.h.b16 %v4036
        %v7043 = vunpack.c.l.b16 %v4037
        %v7044 = vunpack.c.h.b16 %v4037
        %v7045 = vunpack.c.l.b16 %v4038
        %v7046 = vunpack.c.h.b16 %v4038
        %v7047 = vunpack.c.l.b16 %v4039
        %v7048 = vunpack.c.h.b16 %v4039
        %v7049 = vunpack.c.l.b16 %v4040
        %v7050 = vunpack.c.h.b16 %v4040
        %v7051 = vunpack.c.l.b16 %v4041
        %v7052 = vunpack.c.h.b16 %v4041
        %v7053 = vunpack.c.l.b16 %v4042
        %v7054 = vunpack.c.h.b16 %v4042
        %v7055 = vunpack.c.l.b16 %v4043
        %v7056 = vunpack.c.h.b16 %v4043
        %v7057 = vunpack.c.l.b16 %v4044
        %v7058 = vunpack.c.h.b16 %v4044
        %v7059 = vunpack.c.l.b16 %v4045
        %v7060 = vunpack.c.h.b16 %v4045
        %v7061 = vunpack.c.l.b16 %v4046
        %v7062 = vunpack.c.h.b16 %v4046
        %v7063 = vunpack.c.l.b16 %v4047
        %v7064 = vunpack.c.h.b16 %v4047
        %v7065 = vunpack.c.l.b16 %v4048
        %v7066 = vunpack.c.h.b16 %v4048
        %v7067 = vunpack.c.l.b16 %v4049
        %v7068 = vunpack.c.h.b16 %v4049
        %v7069 = vunpack.c.l.b16 %v4050
        %v7070 = vunpack.c.h.b16 %v4050
        %v7071 = vunpack.c.l.b16 %v4051
        %v7072 = vunpack.c.h.b16 %v4051
        %v7073 = vunpack.c.l.b16 %v4052
        %v7074 = vunpack.c.h.b16 %v4052
        %v7075 = vunpack.c.l.b16 %v4053
        %v7076 = vunpack.c.h.b16 %v4053
        %v7077 = vunpack.c.l.b16 %v4054
        %v7078 = vunpack.c.h.b16 %v4054
        %v7079 = vunpack.c.l.b16 %v4055
        %v7080 = vunpack.c.h.b16 %v4055
        %v7081 = vunpack.c.l.b16 %v4056
        %v7082 = vunpack.c.h.b16 %v4056
        %v7083 = vunpack.c.l.b16 %v4057
        %v7084 = vunpack.c.h.b16 %v4057
        %v7085 = vunpack.c.l.b16 %v4058
        %v7086 = vunpack.c.h.b16 %v4058
        %v7087 = vunpack.c.l.b16 %v4059
        %v7088 = vunpack.c.h.b16 %v4059
        %v7089 = vunpack.c.l.b16 %v4060
        %v7090 = vunpack.c.h.b16 %v4060
        %v7091 = vunpack.c.l.b16 %v4061
        %v7092 = vunpack.c.h.b16 %v4061
        %v7093 = vunpack.c.l.b16 %v4062
        %v7094 = vunpack.c.h.b16 %v4062
        %v7095 = vunpack.c.l.b16 %v4063
        %v7096 = vunpack.c.h.b16 %v4063
        %v7097 = vunpack.c.l.b16 %v4064
        %v7098 = vunpack.c.h.b16 %v4064
        %v7099 = vunpack.c.l.b16 %v4065
        %v7100 = vunpack.c.h.b16 %v4065
        %v7101 = vunpack.c.l.b16 %v4066
        %v7102 = vunpack.c.h.b16 %v4066
        %v7103 = vunpack.c.l.b16 %v4067
        %v7104 = vunpack.c.h.b16 %v4067
        %v7105 = vunpack.c.l.b16 %v4068
        %v7106 = vunpack.c.h.b16 %v4068
        %v7107 = vunpack.c.l.b16 %v4069
        %v7108 = vunpack.c.h.b16 %v4069
        %v7109 = vunpack.c.l.b16 %v4070
        %v7110 = vunpack.c.h.b16 %v4070
        %v7111 = vunpack.c.l.b16 %v4071
        %v7112 = vunpack.c.h.b16 %v4071
        %v7113 = vunpack.c.l.b16 %v4072
        %v7114 = vunpack.c.h.b16 %v4072
        %v7115 = vunpack.c.l.b16 %v4073
        %v7116 = vunpack.c.h.b16 %v4073
        %v7117 = vunpack.c.l.b16 %v4074
        %v7118 = vunpack.c.h.b16 %v4074
        %v7119 = vunpack.c.l.b16 %v4075
        %v7120 = vunpack.c.h.b16 %v4075
        %v7121 = vunpack.c.l.b16 %v4076
        %v7122 = vunpack.c.h.b16 %v4076
        %v7123 = vunpack.c.l.b16 %v4077
        %v7124 = vunpack.c.h.b16 %v4077
        %v7125 = vunpack.c.l.b16 %v4078
        %v7126 = vunpack.c.h.b16 %v4078
        %v7127 = vunpack.c.l.b16 %v4079
        %v7128 = vunpack.c.h.b16 %v4079
        %v7129 = vunpack.c.l.b16 %v4080
        %v7130 = vunpack.c.h.b16 %v4080
        %v7131 = vunpack.c.l.b16 %v4081
        %v7132 = vunpack.c.h.b16 %v4081
        %v7133 = vunpack.c.l.b16 %v4082
        %v7134 = vunpack.c.h.b16 %v4082
        %v7135 = vunpack.c.l.b16 %v4083
        %v7136 = vunpack.c.h.b16 %v4083
        %v7137 = vunpack.c.l.b16 %v4084
        %v7138 = vunpack.c.h.b16 %v4084
        %v7139 = vunpack.c.l.b16 %v4085
        %v7140 = vunpack.c.h.b16 %v4085
        %v7141 = vunpack.c.l.b16 %v4086
        %v7142 = vunpack.c.h.b16 %v4086
        %v7143 = vunpack.c.l.b16 %v4087
        %v7144 = vunpack.c.h.b16 %v4087
        %v7145 = vunpack.c.l.b16 %v4088
        %v7146 = vunpack.c.h.b16 %v4088
        %v7147 = vunpack.c.l.b16 %v4089
        %v7148 = vunpack.c.h.b16 %v4089
        %v7149 = vunpack.c.l.b16 %v4090
        %v7150 = vunpack.c.h.b16 %v4090
        %v7151 = vunpack.c.l.b16 %v4091
        %v7152 = vunpack.c.h.b16 %v4091
        %v7153 = vunpack.c.l.b16 %v4092
        %v7154 = vunpack.c.h.b16 %v4092
        %v7155 = vunpack.c.l.b16 %v4093
        %v7156 = vunpack.c.h.b16 %v4093
        %v7157 = vunpack.c.l.b16 %v4094
        %v7158 = vunpack.c.h.b16 %v4094
        %v7159 = vunpack.c.l.b16 %v4095
        %v7160 = vunpack.c.h.b16 %v4095
        %v7161 = vunpack.c.l.b16 %v4096
        %v7162 = vunpack.c.h.b16 %v4096
        %v7163 = vunpack.c.l.b16 %v4097
        %v7164 = vunpack.c.h.b16 %v4097
        %v7165 = vunpack.c.l.b16 %v4098
        %v7166 = vunpack.c.h.b16 %v4098
        %v7167 = vunpack.c.l.b16 %v4099
        %v7168 = vunpack.c.h.b16 %v4099
        %v7169 = vunpack.c.l.b16 %v4100
        %v7170 = vunpack.c.h.b16 %v4100
        %v7171 = vunpack.c.l.b16 %v4101
        %v7172 = vunpack.c.h.b16 %v4101
        %v7173 = vunpack.c.l.b16 %v4102
        %v7174 = vunpack.c.h.b16 %v4102
        %v7175 = vpack.c.b16 %v5135, %v5127
        %v7176 = vpack.c.b16 %v5136, %v5128
        %v7177 = vpack.c.b16 %v5137, %v5129
        %v7178 = vpack.c.b16 %v5138, %v5130
        %v7179 = vpack.c.b16 %v5139, %v5131
        %v7180 = vpack.c.b16 %v5140, %v5132
        %v7181 = vpack.c.b16 %v5141, %v5133
        %v7182 = vpack.c.b16 %v5142, %v5134
        %v7183 = vpack.c.b16 %v5151, %v5143
        %v7184 = vpack.c.b16 %v5152, %v5144
        %v7185 = vpack.c.b16 %v5153, %v5145
        %v7186 = vpack.c.b16 %v5154, %v5146
        %v7187 = vpack.c.b16 %v5155, %v5147
        %v7188 = vpack.c.b16 %v5156, %v5148
        %v7189 = vpack.c.b16 %v5157, %v5149
        %v7190 = vpack.c.b16 %v5158, %v5150
        %v7191 = vpack.c.b16 %v5167, %v5159
        %v7192 = vpack.c.b16 %v5168, %v5160
        %v7193 = vpack.c.b16 %v5169, %v5161
        %v7194 = vpack.c.b16 %v5170, %v5162
        %v7195 = vpack.c.b16 %v5171, %v5163
        %v7196 = vpack.c.b16 %v5172, %v5164
        %v7197 = vpack.c.b16 %v5173, %v5165
        %v7198 = vpack.c.b16 %v5174, %v5166
        %v7199 = vpack.c.b16 %v5183, %v5175
        %v7200 = vpack.c.b16 %v5184, %v5176
        %v7201 = vpack.c.b16 %v5185, %v5177
        %v7202 = vpack.c.b16 %v5186, %v5178
        %v7203 = vpack.c.b16 %v5187, %v5179
        %v7204 = vpack.c.b16 %v5188, %v5180
        %v7205 = vpack.c.b16 %v5189, %v5181
        %v7206 = vpack.c.b16 %v5190, %v5182
        %v7207 = vpack.c.b16 %v5199, %v5191
        %v7208 = vpack.c.b16 %v5200, %v5192
        %v7209 = vpack.c.b16 %v5201, %v5193
        %v7210 = vpack.c.b16 %v5202, %v5194
        %v7211 = vpack.c.b16 %v5203, %v5195
        %v7212 = vpack.c.b16 %v5204, %v5196
        %v7213 = vpack.c.b16 %v5205, %v5197
        %v7214 = vpack.c.b16 %v5206, %v5198
        %v7215 = vpack.c.b16 %v5215, %v5207
        %v7216 = vpack.c.b16 %v5216, %v5208
        %v7217 = vpack.c.b16 %v5217, %v5209
        %v7218 = vpack.c.b16 %v5218, %v5210
        %v7219 = vpack.c.b16 %v5219, %v5211
        %v7220 = vpack.c.b16 %v5220, %v5212
        %v7221 = vpack.c.b16 %v5221, %v5213
        %v7222 = vpack.c.b16 %v5222, %v5214
        %v7223 = vpack.c.b16 %v5231, %v5223
        %v7224 = vpack.c.b16 %v5232, %v5224
        %v7225 = vpack.c.b16 %v5233, %v5225
        %v7226 = vpack.c.b16 %v5234, %v5226
        %v7227 = vpack.c.b16 %v5235, %v5227
        %v7228 = vpack.c.b16 %v5236, %v5228
        %v7229 = vpack.c.b16 %v5237, %v5229
        %v7230 = vpack.c.b16 %v5238, %v5230
        %v7231 = vpack.c.b16 %v5247, %v5239
        %v7232 = vpack.c.b16 %v5248, %v5240
        %v7233 = vpack.c.b16 %v5249, %v5241
        %v7234 = vpack.c.b16 %v5250, %v5242
        %v7235 = vpack.c.b16 %v5251, %v5243
        %v7236 = vpack.c.b16 %v5252, %v5244
        %v7237 = vpack.c.b16 %v5253, %v5245
        %v7238 = vpack.c.b16 %v5254, %v5246
        %v7239 = vpack.c.b16 %v5263, %v5255
        %v7240 = vpack.c.b16 %v5264, %v5256
        %v7241 = vpack.c.b16 %v5265, %v5257
        %v7242 = vpack.c.b16 %v5266, %v5258
        %v7243 = vpack.c.b16 %v5267, %v5259
        %v7244 = vpack.c.b16 %v5268, %v5260
        %v7245 = vpack.c.b16 %v5269, %v5261
        %v7246 = vpack.c.b16 %v5270, %v5262
        %v7247 = vpack.c.b16 %v5279, %v5271
        %v7248 = vpack.c.b16 %v5280, %v5272
        %v7249 = vpack.c.b16 %v5281, %v5273
        %v7250 = vpack.c.b16 %v5282, %v5274
        %v7251 = vpack.c.b16 %v5283, %v5275
        %v7252 = vpack.c.b16 %v5284, %v5276
        %v7253 = vpack.c.b16 %v5285, %v5277
        %v7254 = vpack.c.b16 %v5286, %v5278
        %v7255 = vpack.c.b16 %v5295, %v5287
        %v7256 = vpack.c.b16 %v5296, %v5288
        %v7257 = vpack.c.b16 %v5297, %v5289
        %v7258 = vpack.c.b16 %v5298, %v5290
        %v7259 = vpack.c.b16 %v5299, %v5291
        %v7260 = vpack.c.b16 %v5300, %v5292
        %v7261 = vpack.c.b16 %v5301, %v5293
        %v7262 = vpack.c.b16 %v5302, %v5294
        %v7263 = vpack.c.b16 %v5311, %v5303
        %v7264 = vpack.c.b16 %v5312, %v5304
        %v7265 = vpack.c.b16 %v5313, %v5305
        %v7266 = vpack.c.b16 %v5314, %v5306
        %v7267 = vpack.c.b16 %v5315, %v5307
        %v7268 = vpack.c.b16 %v5316, %v5308
        %v7269 = vpack.c.b16 %v5317, %v5309
        %v7270 = vpack.c.b16 %v5318, %v5310
        %v7271 = vpack.c.b16 %v5327, %v5319
        %v7272 = vpack.c.b16 %v5328, %v5320
        %v7273 = vpack.c.b16 %v5329, %v5321
        %v7274 = vpack.c.b16 %v5330, %v5322
        %v7275 = vpack.c.b16 %v5331, %v5323
        %v7276 = vpack.c.b16 %v5332, %v5324
        %v7277 = vpack.c.b16 %v5333, %v5325
        %v7278 = vpack.c.b16 %v5334, %v5326
        %v7279 = vpack.c.b16 %v5343, %v5335
        %v7280 = vpack.c.b16 %v5344, %v5336
        %v7281 = vpack.c.b16 %v5345, %v5337
        %v7282 = vpack.c.b16 %v5346, %v5338
        %v7283 = vpack.c.b16 %v5347, %v5339
        %v7284 = vpack.c.b16 %v5348, %v5340
        %v7285 = vpack.c.b16 %v5349, %v5341
        %v7286 = vpack.c.b16 %v5350, %v5342
        %v7287 = vpack.c.b16 %v5359, %v5351
        %v7288 = vpack.c.b16 %v5360, %v5352
        %v7289 = vpack.c.b16 %v5361, %v5353
        %v7290 = vpack.c.b16 %v5362, %v5354
        %v7291 = vpack.c.b16 %v5363, %v5355
        %v7292 = vpack.c.b16 %v5364, %v5356
        %v7293 = vpack.c.b16 %v5365, %v5357
        %v7294 = vpack.c.b16 %v5366, %v5358
        %v7295 = vpack.c.b16 %v5375, %v5367
        %v7296 = vpack.c.b16 %v5376, %v5368
        %v7297 = vpack.c.b16 %v5377, %v5369
        %v7298 = vpack.c.b16 %v5378, %v5370
        %v7299 = vpack.c.b16 %v5379, %v5371
        %v7300 = vpack.c.b16 %v5380, %v5372
        %v7301 = vpack.c.b16 %v5381, %v5373
        %v7302 = vpack.c.b16 %v5382, %v5374
        %v7303 = vpack.c.b16 %v5391, %v5383
        %v7304 = vpack.c.b16 %v5392, %v5384
        %v7305 = vpack.c.b16 %v5393, %v5385
        %v7306 = vpack.c.b16 %v5394, %v5386
        %v7307 = vpack.c.b16 %v5395, %v5387
        %v7308 = vpack.c.b16 %v5396, %v5388
        %v7309 = vpack.c.b16 %v5397, %v5389
        %v7310 = vpack.c.b16 %v5398, %v5390
        %v7311 = vpack.c.b16 %v5407, %v5399
        %v7312 = vpack.c.b16 %v5408, %v5400
        %v7313 = vpack.c.b16 %v5409, %v5401
        %v7314 = vpack.c.b16 %v5410, %v5402
        %v7315 = vpack.c.b16 %v5411, %v5403
        %v7316 = vpack.c.b16 %v5412, %v5404
        %v7317 = vpack.c.b16 %v5413, %v5405
        %v7318 = vpack.c.b16 %v5414, %v5406
        %v7319 = vpack.c.b16 %v5423, %v5415
        %v7320 = vpack.c.b16 %v5424, %v5416
        %v7321 = vpack.c.b16 %v5425, %v5417
        %v7322 = vpack.c.b16 %v5426, %v5418
        %v7323 = vpack.c.b16 %v5427, %v5419
        %v7324 = vpack.c.b16 %v5428, %v5420
        %v7325 = vpack.c.b16 %v5429, %v5421
        %v7326 = vpack.c.b16 %v5430, %v5422
        %v7327 = vpack.c.b16 %v5439, %v5431
        %v7328 = vpack.c.b16 %v5440, %v5432
        %v7329 = vpack.c.b16 %v5441, %v5433
        %v7330 = vpack.c.b16 %v5442, %v5434
        %v7331 = vpack.c.b16 %v5443, %v5435
        %v7332 = vpack.c.b16 %v5444, %v5436
        %v7333 = vpack.c.b16 %v5445, %v5437
        %v7334 = vpack.c.b16 %v5446, %v5438
        %v7335 = vpack.c.b16 %v5455, %v5447
        %v7336 = vpack.c.b16 %v5456, %v5448
        %v7337 = vpack.c.b16 %v5457, %v5449
        %v7338 = vpack.c.b16 %v5458, %v5450
        %v7339 = vpack.c.b16 %v5459, %v5451
        %v7340 = vpack.c.b16 %v5460, %v5452
        %v7341 = vpack.c.b16 %v5461, %v5453
        %v7342 = vpack.c.b16 %v5462, %v5454
        %v7343 = vpack.c.b16 %v5471, %v5463
        %v7344 = vpack.c.b16 %v5472, %v5464
        %v7345 = vpack.c.b16 %v5473, %v5465
        %v7346 = vpack.c.b16 %v5474, %v5466
        %v7347 = vpack.c.b16 %v5475, %v5467
        %v7348 = vpack.c.b16 %v5476, %v5468
        %v7349 = vpack.c.b16 %v5477, %v5469
        %v7350 = vpack.c.b16 %v5478, %v5470
        %v7351 = vpack.c.b16 %v5487, %v5479
        %v7352 = vpack.c.b16 %v5488, %v5480
        %v7353 = vpack.c.b16 %v5489, %v5481
        %v7354 = vpack.c.b16 %v5490, %v5482
        %v7355 = vpack.c.b16 %v5491, %v5483
        %v7356 = vpack.c.b16 %v5492, %v5484
        %v7357 = vpack.c.b16 %v5493, %v5485
        %v7358 = vpack.c.b16 %v5494, %v5486
        %v7359 = vpack.c.b16 %v5503, %v5495
        %v7360 = vpack.c.b16 %v5504, %v5496
        %v7361 = vpack.c.b16 %v5505, %v5497
        %v7362 = vpack.c.b16 %v5506, %v5498
        %v7363 = vpack.c.b16 %v5507, %v5499
        %v7364 = vpack.c.b16 %v5508, %v5500
        %v7365 = vpack.c.b16 %v5509, %v5501
        %v7366 = vpack.c.b16 %v5510, %v5502
        %v7367 = vpack.c.b16 %v5519, %v5511
        %v7368 = vpack.c.b16 %v5520, %v5512
        %v7369 = vpack.c.b16 %v5521, %v5513
        %v7370 = vpack.c.b16 %v5522, %v5514
        %v7371 = vpack.c.b16 %v5523, %v5515
        %v7372 = vpack.c.b16 %v5524, %v5516
        %v7373 = vpack.c.b16 %v5525, %v5517
        %v7374 = vpack.c.b16 %v5526, %v5518
        %v7375 = vpack.c.b16 %v5535, %v5527
        %v7376 = vpack.c.b16 %v5536, %v5528
        %v7377 = vpack.c.b16 %v5537, %v5529
        %v7378 = vpack.c.b16 %v5538, %v5530
        %v7379 = vpack.c.b16 %v5539, %v5531
        %v7380 = vpack.c.b16 %v5540, %v5532
        %v7381 = vpack.c.b16 %v5541, %v5533
        %v7382 = vpack.c.b16 %v5542, %v5534
        %v7383 = vpack.c.b16 %v5551, %v5543
        %v7384 = vpack.c.b16 %v5552, %v5544
        %v7385 = vpack.c.b16 %v5553, %v5545
        %v7386 = vpack.c.b16 %v5554, %v5546
        %v7387 = vpack.c.b16 %v5555, %v5547
        %v7388 = vpack.c.b16 %v5556, %v5548
        %v7389 = vpack.c.b16 %v5557, %v5549
        %v7390 = vpack.c.b16 %v5558, %v5550
        %v7391 = vpack.c.b16 %v5567, %v5559
        %v7392 = vpack.c.b16 %v5568, %v5560
        %v7393 = vpack.c.b16 %v5569, %v5561
        %v7394 = vpack.c.b16 %v5570, %v5562
        %v7395 = vpack.c.b16 %v5571, %v5563
        %v7396 = vpack.c.b16 %v5572, %v5564
        %v7397 = vpack.c.b16 %v5573, %v5565
        %v7398 = vpack.c.b16 %v5574, %v5566
        %v7399 = vpack.c.b16 %v5583, %v5575
        %v7400 = vpack.c.b16 %v5584, %v5576
        %v7401 = vpack.c.b16 %v5585, %v5577
        %v7402 = vpack.c.b16 %v5586, %v5578
        %v7403 = vpack.c.b16 %v5587, %v5579
        %v7404 = vpack.c.b16 %v5588, %v5580
        %v7405 = vpack.c.b16 %v5589, %v5581
        %v7406 = vpack.c.b16 %v5590, %v5582
        %v7407 = vpack.c.b16 %v5599, %v5591
        %v7408 = vpack.c.b16 %v5600, %v5592
        %v7409 = vpack.c.b16 %v5601, %v5593
        %v7410 = vpack.c.b16 %v5602, %v5594
        %v7411 = vpack.c.b16 %v5603, %v5595
        %v7412 = vpack.c.b16 %v5604, %v5596
        %v7413 = vpack.c.b16 %v5605, %v5597
        %v7414 = vpack.c.b16 %v5606, %v5598
        %v7415 = vpack.c.b16 %v5615, %v5607
        %v7416 = vpack.c.b16 %v5616, %v5608
        %v7417 = vpack.c.b16 %v5617, %v5609
        %v7418 = vpack.c.b16 %v5618, %v5610
        %v7419 = vpack.c.b16 %v5619, %v5611
        %v7420 = vpack.c.b16 %v5620, %v5612
        %v7421 = vpack.c.b16 %v5621, %v5613
        %v7422 = vpack.c.b16 %v5622, %v5614
        %v7423 = vpack.c.b16 %v5631, %v5623
        %v7424 = vpack.c.b16 %v5632, %v5624
        %v7425 = vpack.c.b16 %v5633, %v5625
        %v7426 = vpack.c.b16 %v5634, %v5626
        %v7427 = vpack.c.b16 %v5635, %v5627
        %v7428 = vpack.c.b16 %v5636, %v5628
        %v7429 = vpack.c.b16 %v5637, %v5629
        %v7430 = vpack.c.b16 %v5638, %v5630
        %v7431 = vpack.c.b16 %v5647, %v5639
        %v7432 = vpack.c.b16 %v5648, %v5640
        %v7433 = vpack.c.b16 %v5649, %v5641
        %v7434 = vpack.c.b16 %v5650, %v5642
        %v7435 = vpack.c.b16 %v5651, %v5643
        %v7436 = vpack.c.b16 %v5652, %v5644
        %v7437 = vpack.c.b16 %v5653, %v5645
        %v7438 = vpack.c.b16 %v5654, %v5646
        %v7439 = vpack.c.b16 %v5663, %v5655
        %v7440 = vpack.c.b16 %v5664, %v5656
        %v7441 = vpack.c.b16 %v5665, %v5657
        %v7442 = vpack.c.b16 %v5666, %v5658
        %v7443 = vpack.c.b16 %v5667, %v5659
        %v7444 = vpack.c.b16 %v5668, %v5660
        %v7445 = vpack.c.b16 %v5669, %v5661
        %v7446 = vpack.c.b16 %v5670, %v5662
        %v7447 = vpack.c.b16 %v5679, %v5671
        %v7448 = vpack.c.b16 %v5680, %v5672
        %v7449 = vpack.c.b16 %v5681, %v5673
        %v7450 = vpack.c.b16 %v5682, %v5674
        %v7451 = vpack.c.b16 %v5683, %v5675
        %v7452 = vpack.c.b16 %v5684, %v5676
        %v7453 = vpack.c.b16 %v5685, %v5677
        %v7454 = vpack.c.b16 %v5686, %v5678
        %v7455 = vpack.c.b16 %v5695, %v5687
        %v7456 = vpack.c.b16 %v5696, %v5688
        %v7457 = vpack.c.b16 %v5697, %v5689
        %v7458 = vpack.c.b16 %v5698, %v5690
        %v7459 = vpack.c.b16 %v5699, %v5691
        %v7460 = vpack.c.b16 %v5700, %v5692
        %v7461 = vpack.c.b16 %v5701, %v5693
        %v7462 = vpack.c.b16 %v5702, %v5694
        %v7463 = vpack.c.b16 %v5711, %v5703
        %v7464 = vpack.c.b16 %v5712, %v5704
        %v7465 = vpack.c.b16 %v5713, %v5705
        %v7466 = vpack.c.b16 %v5714, %v5706
        %v7467 = vpack.c.b16 %v5715, %v5707
        %v7468 = vpack.c.b16 %v5716, %v5708
        %v7469 = vpack.c.b16 %v5717, %v5709
        %v7470 = vpack.c.b16 %v5718, %v5710
        %v7471 = vpack.c.b16 %v5727, %v5719
        %v7472 = vpack.c.b16 %v5728, %v5720
        %v7473 = vpack.c.b16 %v5729, %v5721
        %v7474 = vpack.c.b16 %v5730, %v5722
        %v7475 = vpack.c.b16 %v5731, %v5723
        %v7476 = vpack.c.b16 %v5732, %v5724
        %v7477 = vpack.c.b16 %v5733, %v5725
        %v7478 = vpack.c.b16 %v5734, %v5726
        %v7479 = vpack.c.b16 %v5743, %v5735
        %v7480 = vpack.c.b16 %v5744, %v5736
        %v7481 = vpack.c.b16 %v5745, %v5737
        %v7482 = vpack.c.b16 %v5746, %v5738
        %v7483 = vpack.c.b16 %v5747, %v5739
        %v7484 = vpack.c.b16 %v5748, %v5740
        %v7485 = vpack.c.b16 %v5749, %v5741
        %v7486 = vpack.c.b16 %v5750, %v5742
        %v7487 = vpack.c.b16 %v5759, %v5751
        %v7488 = vpack.c.b16 %v5760, %v5752
        %v7489 = vpack.c.b16 %v5761, %v5753
        %v7490 = vpack.c.b16 %v5762, %v5754
        %v7491 = vpack.c.b16 %v5763, %v5755
        %v7492 = vpack.c.b16 %v5764, %v5756
        %v7493 = vpack.c.b16 %v5765, %v5757
        %v7494 = vpack.c.b16 %v5766, %v5758
        %v7495 = vpack.c.b16 %v5775, %v5767
        %v7496 = vpack.c.b16 %v5776, %v5768
        %v7497 = vpack.c.b16 %v5777, %v5769
        %v7498 = vpack.c.b16 %v5778, %v5770
        %v7499 = vpack.c.b16 %v5779, %v5771
        %v7500 = vpack.c.b16 %v5780, %v5772
        %v7501 = vpack.c.b16 %v5781, %v5773
        %v7502 = vpack.c.b16 %v5782, %v5774
        %v7503 = vpack.c.b16 %v5791, %v5783
        %v7504 = vpack.c.b16 %v5792, %v5784
        %v7505 = vpack.c.b16 %v5793, %v5785
        %v7506 = vpack.c.b16 %v5794, %v5786
        %v7507 = vpack.c.b16 %v5795, %v5787
        %v7508 = vpack.c.b16 %v5796, %v5788
        %v7509 = vpack.c.b16 %v5797, %v5789
        %v7510 = vpack.c.b16 %v5798, %v5790
        %v7511 = vpack.c.b16 %v5807, %v5799
        %v7512 = vpack.c.b16 %v5808, %v5800
        %v7513 = vpack.c.b16 %v5809, %v5801
        %v7514 = vpack.c.b16 %v5810, %v5802
        %v7515 = vpack.c.b16 %v5811, %v5803
        %v7516 = vpack.c.b16 %v5812, %v5804
        %v7517 = vpack.c.b16 %v5813, %v5805
        %v7518 = vpack.c.b16 %v5814, %v5806
        %v7519 = vpack.c.b16 %v5823, %v5815
        %v7520 = vpack.c.b16 %v5824, %v5816
        %v7521 = vpack.c.b16 %v5825, %v5817
        %v7522 = vpack.c.b16 %v5826, %v5818
        %v7523 = vpack.c.b16 %v5827, %v5819
        %v7524 = vpack.c.b16 %v5828, %v5820
        %v7525 = vpack.c.b16 %v5829, %v5821
        %v7526 = vpack.c.b16 %v5830, %v5822
        %v7527 = vpack.c.b16 %v5839, %v5831
        %v7528 = vpack.c.b16 %v5840, %v5832
        %v7529 = vpack.c.b16 %v5841, %v5833
        %v7530 = vpack.c.b16 %v5842, %v5834
        %v7531 = vpack.c.b16 %v5843, %v5835
        %v7532 = vpack.c.b16 %v5844, %v5836
        %v7533 = vpack.c.b16 %v5845, %v5837
        %v7534 = vpack.c.b16 %v5846, %v5838
        %v7535 = vpack.c.b16 %v5855, %v5847
        %v7536 = vpack.c.b16 %v5856, %v5848
        %v7537 = vpack.c.b16 %v5857, %v5849
        %v7538 = vpack.c.b16 %v5858, %v5850
        %v7539 = vpack.c.b16 %v5859, %v5851
        %v7540 = vpack.c.b16 %v5860, %v5852
        %v7541 = vpack.c.b16 %v5861, %v5853
        %v7542 = vpack.c.b16 %v5862, %v5854
        %v7543 = vpack.c.b16 %v5871, %v5863
        %v7544 = vpack.c.b16 %v5872, %v5864
        %v7545 = vpack.c.b16 %v5873, %v5865
        %v7546 = vpack.c.b16 %v5874, %v5866
        %v7547 = vpack.c.b16 %v5875, %v5867
        %v7548 = vpack.c.b16 %v5876, %v5868
        %v7549 = vpack.c.b16 %v5877, %v5869
        %v7550 = vpack.c.b16 %v5878, %v5870
        %v7551 = vpack.c.b16 %v5887, %v5879
        %v7552 = vpack.c.b16 %v5888, %v5880
        %v7553 = vpack.c.b16 %v5889, %v5881
        %v7554 = vpack.c.b16 %v5890, %v5882
        %v7555 = vpack.c.b16 %v5891, %v5883
        %v7556 = vpack.c.b16 %v5892, %v5884
        %v7557 = vpack.c.b16 %v5893, %v5885
        %v7558 = vpack.c.b16 %v5894, %v5886
        %v7559 = vpack.c.b16 %v5903, %v5895
        %v7560 = vpack.c.b16 %v5904, %v5896
        %v7561 = vpack.c.b16 %v5905, %v5897
        %v7562 = vpack.c.b16 %v5906, %v5898
        %v7563 = vpack.c.b16 %v5907, %v5899
        %v7564 = vpack.c.b16 %v5908, %v5900
        %v7565 = vpack.c.b16 %v5909, %v5901
        %v7566 = vpack.c.b16 %v5910, %v5902
        %v7567 = vpack.c.b16 %v5919, %v5911
        %v7568 = vpack.c.b16 %v5920, %v5912
        %v7569 = vpack.c.b16 %v5921, %v5913
        %v7570 = vpack.c.b16 %v5922, %v5914
        %v7571 = vpack.c.b16 %v5923, %v5915
        %v7572 = vpack.c.b16 %v5924, %v5916
        %v7573 = vpack.c.b16 %v5925, %v5917
        %v7574 = vpack.c.b16 %v5926, %v5918
        %v7575 = vpack.c.b16 %v5935, %v5927
        %v7576 = vpack.c.b16 %v5936, %v5928
        %v7577 = vpack.c.b16 %v5937, %v5929
        %v7578 = vpack.c.b16 %v5938, %v5930
        %v7579 = vpack.c.b16 %v5939, %v5931
        %v7580 = vpack.c.b16 %v5940, %v5932
        %v7581 = vpack.c.b16 %v5941, %v5933
        %v7582 = vpack.c.b16 %v5942, %v5934
        %v7583 = vpack.c.b16 %v5951, %v5943
        %v7584 = vpack.c.b16 %v5952, %v5944
        %v7585 = vpack.c.b16 %v5953, %v5945
        %v7586 = vpack.c.b16 %v5954, %v5946
        %v7587 = vpack.c.b16 %v5955, %v5947
        %v7588 = vpack.c.b16 %v5956, %v5948
        %v7589 = vpack.c.b16 %v5957, %v5949
        %v7590 = vpack.c.b16 %v5958, %v5950
        %v7591 = vpack.c.b16 %v5967, %v5959
        %v7592 = vpack.c.b16 %v5968, %v5960
        %v7593 = vpack.c.b16 %v5969, %v5961
        %v7594 = vpack.c.b16 %v5970, %v5962
        %v7595 = vpack.c.b16 %v5971, %v5963
        %v7596 = vpack.c.b16 %v5972, %v5964
        %v7597 = vpack.c.b16 %v5973, %v5965
        %v7598 = vpack.c.b16 %v5974, %v5966
        %v7599 = vpack.c.b16 %v5983, %v5975
        %v7600 = vpack.c.b16 %v5984, %v5976
        %v7601 = vpack.c.b16 %v5985, %v5977
        %v7602 = vpack.c.b16 %v5986, %v5978
        %v7603 = vpack.c.b16 %v5987, %v5979
        %v7604 = vpack.c.b16 %v5988, %v5980
        %v7605 = vpack.c.b16 %v5989, %v5981
        %v7606 = vpack.c.b16 %v5990, %v5982
        %v7607 = vpack.c.b16 %v5999, %v5991
        %v7608 = vpack.c.b16 %v6000, %v5992
        %v7609 = vpack.c.b16 %v6001, %v5993
        %v7610 = vpack.c.b16 %v6002, %v5994
        %v7611 = vpack.c.b16 %v6003, %v5995
        %v7612 = vpack.c.b16 %v6004, %v5996
        %v7613 = vpack.c.b16 %v6005, %v5997
        %v7614 = vpack.c.b16 %v6006, %v5998
        %v7615 = vpack.c.b16 %v6015, %v6007
        %v7616 = vpack.c.b16 %v6016, %v6008
        %v7617 = vpack.c.b16 %v6017, %v6009
        %v7618 = vpack.c.b16 %v6018, %v6010
        %v7619 = vpack.c.b16 %v6019, %v6011
        %v7620 = vpack.c.b16 %v6020, %v6012
        %v7621 = vpack.c.b16 %v6021, %v6013
        %v7622 = vpack.c.b16 %v6022, %v6014
        %v7623 = vpack.c.b16 %v6031, %v6023
        %v7624 = vpack.c.b16 %v6032, %v6024
        %v7625 = vpack.c.b16 %v6033, %v6025
        %v7626 = vpack.c.b16 %v6034, %v6026
        %v7627 = vpack.c.b16 %v6035, %v6027
        %v7628 = vpack.c.b16 %v6036, %v6028
        %v7629 = vpack.c.b16 %v6037, %v6029
        %v7630 = vpack.c.b16 %v6038, %v6030
        %v7631 = vpack.c.b16 %v6047, %v6039
        %v7632 = vpack.c.b16 %v6048, %v6040
        %v7633 = vpack.c.b16 %v6049, %v6041
        %v7634 = vpack.c.b16 %v6050, %v6042
        %v7635 = vpack.c.b16 %v6051, %v6043
        %v7636 = vpack.c.b16 %v6052, %v6044
        %v7637 = vpack.c.b16 %v6053, %v6045
        %v7638 = vpack.c.b16 %v6054, %v6046
        %v7639 = vpack.c.b16 %v6063, %v6055
        %v7640 = vpack.c.b16 %v6064, %v6056
        %v7641 = vpack.c.b16 %v6065, %v6057
        %v7642 = vpack.c.b16 %v6066, %v6058
        %v7643 = vpack.c.b16 %v6067, %v6059
        %v7644 = vpack.c.b16 %v6068, %v6060
        %v7645 = vpack.c.b16 %v6069, %v6061
        %v7646 = vpack.c.b16 %v6070, %v6062
        %v7647 = vpack.c.b16 %v6079, %v6071
        %v7648 = vpack.c.b16 %v6080, %v6072
        %v7649 = vpack.c.b16 %v6081, %v6073
        %v7650 = vpack.c.b16 %v6082, %v6074
        %v7651 = vpack.c.b16 %v6083, %v6075
        %v7652 = vpack.c.b16 %v6084, %v6076
        %v7653 = vpack.c.b16 %v6085, %v6077
        %v7654 = vpack.c.b16 %v6086, %v6078
        %v7655 = vpack.c.b16 %v6095, %v6087
        %v7656 = vpack.c.b16 %v6096, %v6088
        %v7657 = vpack.c.b16 %v6097, %v6089
        %v7658 = vpack.c.b16 %v6098, %v6090
        %v7659 = vpack.c.b16 %v6099, %v6091
        %v7660 = vpack.c.b16 %v6100, %v6092
        %v7661 = vpack.c.b16 %v6101, %v6093
        %v7662 = vpack.c.b16 %v6102, %v6094
        %v7663 = vpack.c.b16 %v6111, %v6103
        %v7664 = vpack.c.b16 %v6112, %v6104
        %v7665 = vpack.c.b16 %v6113, %v6105
        %v7666 = vpack.c.b16 %v6114, %v6106
        %v7667 = vpack.c.b16 %v6115, %v6107
        %v7668 = vpack.c.b16 %v6116, %v6108
        %v7669 = vpack.c.b16 %v6117, %v6109
        %v7670 = vpack.c.b16 %v6118, %v6110
        %v7671 = vpack.c.b16 %v6127, %v6119
        %v7672 = vpack.c.b16 %v6128, %v6120
        %v7673 = vpack.c.b16 %v6129, %v6121
        %v7674 = vpack.c.b16 %v6130, %v6122
        %v7675 = vpack.c.b16 %v6131, %v6123
        %v7676 = vpack.c.b16 %v6132, %v6124
        %v7677 = vpack.c.b16 %v6133, %v6125
        %v7678 = vpack.c.b16 %v6134, %v6126
        %v7679 = vpack.c.b16 %v6143, %v6135
        %v7680 = vpack.c.b16 %v6144, %v6136
        %v7681 = vpack.c.b16 %v6145, %v6137
        %v7682 = vpack.c.b16 %v6146, %v6138
        %v7683 = vpack.c.b16 %v6147, %v6139
        %v7684 = vpack.c.b16 %v6148, %v6140
        %v7685 = vpack.c.b16 %v6149, %v6141
        %v7686 = vpack.c.b16 %v6150, %v6142
        %v7687 = vpack.c.b16 %v6159, %v6151
        %v7688 = vpack.c.b16 %v6160, %v6152
        %v7689 = vpack.c.b16 %v6161, %v6153
        %v7690 = vpack.c.b16 %v6162, %v6154
        %v7691 = vpack.c.b16 %v6163, %v6155
        %v7692 = vpack.c.b16 %v6164, %v6156
        %v7693 = vpack.c.b16 %v6165, %v6157
        %v7694 = vpack.c.b16 %v6166, %v6158
        %v7695 = vpack.c.b16 %v6175, %v6167
        %v7696 = vpack.c.b16 %v6176, %v6168
        %v7697 = vpack.c.b16 %v6177, %v6169
        %v7698 = vpack.c.b16 %v6178, %v6170
        %v7699 = vpack.c.b16 %v6179, %v6171
        %v7700 = vpack.c.b16 %v6180, %v6172
        %v7701 = vpack.c.b16 %v6181, %v6173
        %v7702 = vpack.c.b16 %v6182, %v6174
        %v7703 = vpack.c.b16 %v6191, %v6183
        %v7704 = vpack.c.b16 %v6192, %v6184
        %v7705 = vpack.c.b16 %v6193, %v6185
        %v7706 = vpack.c.b16 %v6194, %v6186
        %v7707 = vpack.c.b16 %v6195, %v6187
        %v7708 = vpack.c.b16 %v6196, %v6188
        %v7709 = vpack.c.b16 %v6197, %v6189
        %v7710 = vpack.c.b16 %v6198, %v6190
        %v7711 = vpack.c.b16 %v6207, %v6199
        %v7712 = vpack.c.b16 %v6208, %v6200
        %v7713 = vpack.c.b16 %v6209, %v6201
        %v7714 = vpack.c.b16 %v6210, %v6202
        %v7715 = vpack.c.b16 %v6211, %v6203
        %v7716 = vpack.c.b16 %v6212, %v6204
        %v7717 = vpack.c.b16 %v6213, %v6205
        %v7718 = vpack.c.b16 %v6214, %v6206
        %v7719 = vpack.c.b16 %v6223, %v6215
        %v7720 = vpack.c.b16 %v6224, %v6216
        %v7721 = vpack.c.b16 %v6225, %v6217
        %v7722 = vpack.c.b16 %v6226, %v6218
        %v7723 = vpack.c.b16 %v6227, %v6219
        %v7724 = vpack.c.b16 %v6228, %v6220
        %v7725 = vpack.c.b16 %v6229, %v6221
        %v7726 = vpack.c.b16 %v6230, %v6222
        %v7727 = vpack.c.b16 %v6239, %v6231
        %v7728 = vpack.c.b16 %v6240, %v6232
        %v7729 = vpack.c.b16 %v6241, %v6233
        %v7730 = vpack.c.b16 %v6242, %v6234
        %v7731 = vpack.c.b16 %v6243, %v6235
        %v7732 = vpack.c.b16 %v6244, %v6236
        %v7733 = vpack.c.b16 %v6245, %v6237
        %v7734 = vpack.c.b16 %v6246, %v6238
        %v7735 = vpack.c.b16 %v6255, %v6247
        %v7736 = vpack.c.b16 %v6256, %v6248
        %v7737 = vpack.c.b16 %v6257, %v6249
        %v7738 = vpack.c.b16 %v6258, %v6250
        %v7739 = vpack.c.b16 %v6259, %v6251
        %v7740 = vpack.c.b16 %v6260, %v6252
        %v7741 = vpack.c.b16 %v6261, %v6253
        %v7742 = vpack.c.b16 %v6262, %v6254
        %v7743 = vpack.c.b16 %v6271, %v6263
        %v7744 = vpack.c.b16 %v6272, %v6264
        %v7745 = vpack.c.b16 %v6273, %v6265
        %v7746 = vpack.c.b16 %v6274, %v6266
        %v7747 = vpack.c.b16 %v6275, %v6267
        %v7748 = vpack.c.b16 %v6276, %v6268
        %v7749 = vpack.c.b16 %v6277, %v6269
        %v7750 = vpack.c.b16 %v6278, %v6270
        %v7751 = vpack.c.b16 %v6287, %v6279
        %v7752 = vpack.c.b16 %v6288, %v6280
        %v7753 = vpack.c.b16 %v6289, %v6281
        %v7754 = vpack.c.b16 %v6290, %v6282
        %v7755 = vpack.c.b16 %v6291, %v6283
        %v7756 = vpack.c.b16 %v6292, %v6284
        %v7757 = vpack.c.b16 %v6293, %v6285
        %v7758 = vpack.c.b16 %v6294, %v6286
        %v7759 = vpack.c.b16 %v6303, %v6295
        %v7760 = vpack.c.b16 %v6304, %v6296
        %v7761 = vpack.c.b16 %v6305, %v6297
        %v7762 = vpack.c.b16 %v6306, %v6298
        %v7763 = vpack.c.b16 %v6307, %v6299
        %v7764 = vpack.c.b16 %v6308, %v6300
        %v7765 = vpack.c.b16 %v6309, %v6301
        %v7766 = vpack.c.b16 %v6310, %v6302
        %v7767 = vpack.c.b16 %v6319, %v6311
        %v7768 = vpack.c.b16 %v6320, %v6312
        %v7769 = vpack.c.b16 %v6321, %v6313
        %v7770 = vpack.c.b16 %v6322, %v6314
        %v7771 = vpack.c.b16 %v6323, %v6315
        %v7772 = vpack.c.b16 %v6324, %v6316
        %v7773 = vpack.c.b16 %v6325, %v6317
        %v7774 = vpack.c.b16 %v6326, %v6318
        %v7775 = vpack.c.b16 %v6335, %v6327
        %v7776 = vpack.c.b16 %v6336, %v6328
        %v7777 = vpack.c.b16 %v6337, %v6329
        %v7778 = vpack.c.b16 %v6338, %v6330
        %v7779 = vpack.c.b16 %v6339, %v6331
        %v7780 = vpack.c.b16 %v6340, %v6332
        %v7781 = vpack.c.b16 %v6341, %v6333
        %v7782 = vpack.c.b16 %v6342, %v6334
        %v7783 = vpack.c.b16 %v6351, %v6343
        %v7784 = vpack.c.b16 %v6352, %v6344
        %v7785 = vpack.c.b16 %v6353, %v6345
        %v7786 = vpack.c.b16 %v6354, %v6346
        %v7787 = vpack.c.b16 %v6355, %v6347
        %v7788 = vpack.c.b16 %v6356, %v6348
        %v7789 = vpack.c.b16 %v6357, %v6349
        %v7790 = vpack.c.b16 %v6358, %v6350
        %v7791 = vpack.c.b16 %v6367, %v6359
        %v7792 = vpack.c.b16 %v6368, %v6360
        %v7793 = vpack.c.b16 %v6369, %v6361
        %v7794 = vpack.c.b16 %v6370, %v6362
        %v7795 = vpack.c.b16 %v6371, %v6363
        %v7796 = vpack.c.b16 %v6372, %v6364
        %v7797 = vpack.c.b16 %v6373, %v6365
        %v7798 = vpack.c.b16 %v6374, %v6366
        %v7799 = vpack.c.b16 %v6383, %v6375
        %v7800 = vpack.c.b16 %v6384, %v6376
        %v7801 = vpack.c.b16 %v6385, %v6377
        %v7802 = vpack.c.b16 %v6386, %v6378
        %v7803 = vpack.c.b16 %v6387, %v6379
        %v7804 = vpack.c.b16 %v6388, %v6380
        %v7805 = vpack.c.b16 %v6389, %v6381
        %v7806 = vpack.c.b16 %v6390, %v6382
        %v7807 = vpack.c.b16 %v6399, %v6391
        %v7808 = vpack.c.b16 %v6400, %v6392
        %v7809 = vpack.c.b16 %v6401, %v6393
        %v7810 = vpack.c.b16 %v6402, %v6394
        %v7811 = vpack.c.b16 %v6403, %v6395
        %v7812 = vpack.c.b16 %v6404, %v6396
        %v7813 = vpack.c.b16 %v6405, %v6397
        %v7814 = vpack.c.b16 %v6406, %v6398
        %v7815 = vpack.c.b16 %v6415, %v6407
        %v7816 = vpack.c.b16 %v6416, %v6408
        %v7817 = vpack.c.b16 %v6417, %v6409
        %v7818 = vpack.c.b16 %v6418, %v6410
        %v7819 = vpack.c.b16 %v6419, %v6411
        %v7820 = vpack.c.b16 %v6420, %v6412
        %v7821 = vpack.c.b16 %v6421, %v6413
        %v7822 = vpack.c.b16 %v6422, %v6414
        %v7823 = vpack.c.b16 %v6431, %v6423
        %v7824 = vpack.c.b16 %v6432, %v6424
        %v7825 = vpack.c.b16 %v6433, %v6425
        %v7826 = vpack.c.b16 %v6434, %v6426
        %v7827 = vpack.c.b16 %v6435, %v6427
        %v7828 = vpack.c.b16 %v6436, %v6428
        %v7829 = vpack.c.b16 %v6437, %v6429
        %v7830 = vpack.c.b16 %v6438, %v6430
        %v7831 = vpack.c.b16 %v6447, %v6439
        %v7832 = vpack.c.b16 %v6448, %v6440
        %v7833 = vpack.c.b16 %v6449, %v6441
        %v7834 = vpack.c.b16 %v6450, %v6442
        %v7835 = vpack.c.b16 %v6451, %v6443
        %v7836 = vpack.c.b16 %v6452, %v6444
        %v7837 = vpack.c.b16 %v6453, %v6445
        %v7838 = vpack.c.b16 %v6454, %v6446
        %v7839 = vpack.c.b16 %v6463, %v6455
        %v7840 = vpack.c.b16 %v6464, %v6456
        %v7841 = vpack.c.b16 %v6465, %v6457
        %v7842 = vpack.c.b16 %v6466, %v6458
        %v7843 = vpack.c.b16 %v6467, %v6459
        %v7844 = vpack.c.b16 %v6468, %v6460
        %v7845 = vpack.c.b16 %v6469, %v6461
        %v7846 = vpack.c.b16 %v6470, %v6462
        %v7847 = vpack.c.b16 %v6479, %v6471
        %v7848 = vpack.c.b16 %v6480, %v6472
        %v7849 = vpack.c.b16 %v6481, %v6473
        %v7850 = vpack.c.b16 %v6482, %v6474
        %v7851 = vpack.c.b16 %v6483, %v6475
        %v7852 = vpack.c.b16 %v6484, %v6476
        %v7853 = vpack.c.b16 %v6485, %v6477
        %v7854 = vpack.c.b16 %v6486, %v6478
        %v7855 = vpack.c.b16 %v6495, %v6487
        %v7856 = vpack.c.b16 %v6496, %v6488
        %v7857 = vpack.c.b16 %v6497, %v6489
        %v7858 = vpack.c.b16 %v6498, %v6490
        %v7859 = vpack.c.b16 %v6499, %v6491
        %v7860 = vpack.c.b16 %v6500, %v6492
        %v7861 = vpack.c.b16 %v6501, %v6493
        %v7862 = vpack.c.b16 %v6502, %v6494
        %v7863 = vpack.c.b16 %v6511, %v6503
        %v7864 = vpack.c.b16 %v6512, %v6504
        %v7865 = vpack.c.b16 %v6513, %v6505
        %v7866 = vpack.c.b16 %v6514, %v6506
        %v7867 = vpack.c.b16 %v6515, %v6507
        %v7868 = vpack.c.b16 %v6516, %v6508
        %v7869 = vpack.c.b16 %v6517, %v6509
        %v7870 = vpack.c.b16 %v6518, %v6510
        %v7871 = vpack.c.b16 %v6527, %v6519
        %v7872 = vpack.c.b16 %v6528, %v6520
        %v7873 = vpack.c.b16 %v6529, %v6521
        %v7874 = vpack.c.b16 %v6530, %v6522
        %v7875 = vpack.c.b16 %v6531, %v6523
        %v7876 = vpack.c.b16 %v6532, %v6524
        %v7877 = vpack.c.b16 %v6533, %v6525
        %v7878 = vpack.c.b16 %v6534, %v6526
        %v7879 = vpack.c.b16 %v6543, %v6535
        %v7880 = vpack.c.b16 %v6544, %v6536
        %v7881 = vpack.c.b16 %v6545, %v6537
        %v7882 = vpack.c.b16 %v6546, %v6538
        %v7883 = vpack.c.b16 %v6547, %v6539
        %v7884 = vpack.c.b16 %v6548, %v6540
        %v7885 = vpack.c.b16 %v6549, %v6541
        %v7886 = vpack.c.b16 %v6550, %v6542
        %v7887 = vpack.c.b16 %v6559, %v6551
        %v7888 = vpack.c.b16 %v6560, %v6552
        %v7889 = vpack.c.b16 %v6561, %v6553
        %v7890 = vpack.c.b16 %v6562, %v6554
        %v7891 = vpack.c.b16 %v6563, %v6555
        %v7892 = vpack.c.b16 %v6564, %v6556
        %v7893 = vpack.c.b16 %v6565, %v6557
        %v7894 = vpack.c.b16 %v6566, %v6558
        %v7895 = vpack.c.b16 %v6575, %v6567
        %v7896 = vpack.c.b16 %v6576, %v6568
        %v7897 = vpack.c.b16 %v6577, %v6569
        %v7898 = vpack.c.b16 %v6578, %v6570
        %v7899 = vpack.c.b16 %v6579, %v6571
        %v7900 = vpack.c.b16 %v6580, %v6572
        %v7901 = vpack.c.b16 %v6581, %v6573
        %v7902 = vpack.c.b16 %v6582, %v6574
        %v7903 = vpack.c.b16 %v6591, %v6583
        %v7904 = vpack.c.b16 %v6592, %v6584
        %v7905 = vpack.c.b16 %v6593, %v6585
        %v7906 = vpack.c.b16 %v6594, %v6586
        %v7907 = vpack.c.b16 %v6595, %v6587
        %v7908 = vpack.c.b16 %v6596, %v6588
        %v7909 = vpack.c.b16 %v6597, %v6589
        %v7910 = vpack.c.b16 %v6598, %v6590
        %v7911 = vpack.c.b16 %v6607, %v6599
        %v7912 = vpack.c.b16 %v6608, %v6600
        %v7913 = vpack.c.b16 %v6609, %v6601
        %v7914 = vpack.c.b16 %v6610, %v6602
        %v7915 = vpack.c.b16 %v6611, %v6603
        %v7916 = vpack.c.b16 %v6612, %v6604
        %v7917 = vpack.c.b16 %v6613, %v6605
        %v7918 = vpack.c.b16 %v6614, %v6606
        %v7919 = vpack.c.b16 %v6623, %v6615
        %v7920 = vpack.c.b16 %v6624, %v6616
        %v7921 = vpack.c.b16 %v6625, %v6617
        %v7922 = vpack.c.b16 %v6626, %v6618
        %v7923 = vpack.c.b16 %v6627, %v6619
        %v7924 = vpack.c.b16 %v6628, %v6620
        %v7925 = vpack.c.b16 %v6629, %v6621
        %v7926 = vpack.c.b16 %v6630, %v6622
        %v7927 = vpack.c.b16 %v6639, %v6631
        %v7928 = vpack.c.b16 %v6640, %v6632
        %v7929 = vpack.c.b16 %v6641, %v6633
        %v7930 = vpack.c.b16 %v6642, %v6634
        %v7931 = vpack.c.b16 %v6643, %v6635
        %v7932 = vpack.c.b16 %v6644, %v6636
        %v7933 = vpack.c.b16 %v6645, %v6637
        %v7934 = vpack.c.b16 %v6646, %v6638
        %v7935 = vpack.c.b16 %v6655, %v6647
        %v7936 = vpack.c.b16 %v6656, %v6648
        %v7937 = vpack.c.b16 %v6657, %v6649
        %v7938 = vpack.c.b16 %v6658, %v6650
        %v7939 = vpack.c.b16 %v6659, %v6651
        %v7940 = vpack.c.b16 %v6660, %v6652
        %v7941 = vpack.c.b16 %v6661, %v6653
        %v7942 = vpack.c.b16 %v6662, %v6654
        %v7943 = vpack.c.b16 %v6671, %v6663
        %v7944 = vpack.c.b16 %v6672, %v6664
        %v7945 = vpack.c.b16 %v6673, %v6665
        %v7946 = vpack.c.b16 %v6674, %v6666
        %v7947 = vpack.c.b16 %v6675, %v6667
        %v7948 = vpack.c.b16 %v6676, %v6668
        %v7949 = vpack.c.b16 %v6677, %v6669
        %v7950 = vpack.c.b16 %v6678, %v6670
        %v7951 = vpack.c.b16 %v6687, %v6679
        %v7952 = vpack.c.b16 %v6688, %v6680
        %v7953 = vpack.c.b16 %v6689, %v6681
        %v7954 = vpack.c.b16 %v6690, %v6682
        %v7955 = vpack.c.b16 %v6691, %v6683
        %v7956 = vpack.c.b16 %v6692, %v6684
        %v7957 = vpack.c.b16 %v6693, %v6685
        %v7958 = vpack.c.b16 %v6694, %v6686
        %v7959 = vpack.c.b16 %v6703, %v6695
        %v7960 = vpack.c.b16 %v6704, %v6696
        %v7961 = vpack.c.b16 %v6705, %v6697
        %v7962 = vpack.c.b16 %v6706, %v6698
        %v7963 = vpack.c.b16 %v6707, %v6699
        %v7964 = vpack.c.b16 %v6708, %v6700
        %v7965 = vpack.c.b16 %v6709, %v6701
        %v7966 = vpack.c.b16 %v6710, %v6702
        %v7967 = vpack.c.b16 %v6719, %v6711
        %v7968 = vpack.c.b16 %v6720, %v6712
        %v7969 = vpack.c.b16 %v6721, %v6713
        %v7970 = vpack.c.b16 %v6722, %v6714
        %v7971 = vpack.c.b16 %v6723, %v6715
        %v7972 = vpack.c.b16 %v6724, %v6716
        %v7973 = vpack.c.b16 %v6725, %v6717
        %v7974 = vpack.c.b16 %v6726, %v6718
        %v7975 = vpack.c.b16 %v6735, %v6727
        %v7976 = vpack.c.b16 %v6736, %v6728
        %v7977 = vpack.c.b16 %v6737, %v6729
        %v7978 = vpack.c.b16 %v6738, %v6730
        %v7979 = vpack.c.b16 %v6739, %v6731
        %v7980 = vpack.c.b16 %v6740, %v6732
        %v7981 = vpack.c.b16 %v6741, %v6733
        %v7982 = vpack.c.b16 %v6742, %v6734
        %v7983 = vpack.c.b16 %v6751, %v6743
        %v7984 = vpack.c.b16 %v6752, %v6744
        %v7985 = vpack.c.b16 %v6753, %v6745
        %v7986 = vpack.c.b16 %v6754, %v6746
        %v7987 = vpack.c.b16 %v6755, %v6747
        %v7988 = vpack.c.b16 %v6756, %v6748
        %v7989 = vpack.c.b16 %v6757, %v6749
        %v7990 = vpack.c.b16 %v6758, %v6750
        %v7991 = vpack.c.b16 %v6767, %v6759
        %v7992 = vpack.c.b16 %v6768, %v6760
        %v7993 = vpack.c.b16 %v6769, %v6761
        %v7994 = vpack.c.b16 %v6770, %v6762
        %v7995 = vpack.c.b16 %v6771, %v6763
        %v7996 = vpack.c.b16 %v6772, %v6764
        %v7997 = vpack.c.b16 %v6773, %v6765
        %v7998 = vpack.c.b16 %v6774, %v6766
        %v7999 = vpack.c.b16 %v6783, %v6775
        %v8000 = vpack.c.b16 %v6784, %v6776
        %v8001 = vpack.c.b16 %v6785, %v6777
        %v8002 = vpack.c.b16 %v6786, %v6778
        %v8003 = vpack.c.b16 %v6787, %v6779
        %v8004 = vpack.c.b16 %v6788, %v6780
        %v8005 = vpack.c.b16 %v6789, %v6781
        %v8006 = vpack.c.b16 %v6790, %v6782
        %v8007 = vpack.c.b16 %v6799, %v6791
        %v8008 = vpack.c.b16 %v6800, %v6792
        %v8009 = vpack.c.b16 %v6801, %v6793
        %v8010 = vpack.c.b16 %v6802, %v6794
        %v8011 = vpack.c.b16 %v6803, %v6795
        %v8012 = vpack.c.b16 %v6804, %v6796
        %v8013 = vpack.c.b16 %v6805, %v6797
        %v8014 = vpack.c.b16 %v6806, %v6798
        %v8015 = vpack.c.b16 %v6815, %v6807
        %v8016 = vpack.c.b16 %v6816, %v6808
        %v8017 = vpack.c.b16 %v6817, %v6809
        %v8018 = vpack.c.b16 %v6818, %v6810
        %v8019 = vpack.c.b16 %v6819, %v6811
        %v8020 = vpack.c.b16 %v6820, %v6812
        %v8021 = vpack.c.b16 %v6821, %v6813
        %v8022 = vpack.c.b16 %v6822, %v6814
        %v8023 = vpack.c.b16 %v6831, %v6823
        %v8024 = vpack.c.b16 %v6832, %v6824
        %v8025 = vpack.c.b16 %v6833, %v6825
        %v8026 = vpack.c.b16 %v6834, %v6826
        %v8027 = vpack.c.b16 %v6835, %v6827
        %v8028 = vpack.c.b16 %v6836, %v6828
        %v8029 = vpack.c.b16 %v6837, %v6829
        %v8030 = vpack.c.b16 %v6838, %v6830
        %v8031 = vpack.c.b16 %v6847, %v6839
        %v8032 = vpack.c.b16 %v6848, %v6840
        %v8033 = vpack.c.b16 %v6849, %v6841
        %v8034 = vpack.c.b16 %v6850, %v6842
        %v8035 = vpack.c.b16 %v6851, %v6843
        %v8036 = vpack.c.b16 %v6852, %v6844
        %v8037 = vpack.c.b16 %v6853, %v6845
        %v8038 = vpack.c.b16 %v6854, %v6846
        %v8039 = vpack.c.b16 %v6863, %v6855
        %v8040 = vpack.c.b16 %v6864, %v6856
        %v8041 = vpack.c.b16 %v6865, %v6857
        %v8042 = vpack.c.b16 %v6866, %v6858
        %v8043 = vpack.c.b16 %v6867, %v6859
        %v8044 = vpack.c.b16 %v6868, %v6860
        %v8045 = vpack.c.b16 %v6869, %v6861
        %v8046 = vpack.c.b16 %v6870, %v6862
        %v8047 = vpack.c.b16 %v6879, %v6871
        %v8048 = vpack.c.b16 %v6880, %v6872
        %v8049 = vpack.c.b16 %v6881, %v6873
        %v8050 = vpack.c.b16 %v6882, %v6874
        %v8051 = vpack.c.b16 %v6883, %v6875
        %v8052 = vpack.c.b16 %v6884, %v6876
        %v8053 = vpack.c.b16 %v6885, %v6877
        %v8054 = vpack.c.b16 %v6886, %v6878
        %v8055 = vpack.c.b16 %v6895, %v6887
        %v8056 = vpack.c.b16 %v6896, %v6888
        %v8057 = vpack.c.b16 %v6897, %v6889
        %v8058 = vpack.c.b16 %v6898, %v6890
        %v8059 = vpack.c.b16 %v6899, %v6891
        %v8060 = vpack.c.b16 %v6900, %v6892
        %v8061 = vpack.c.b16 %v6901, %v6893
        %v8062 = vpack.c.b16 %v6902, %v6894
        %v8063 = vpack.c.b16 %v6911, %v6903
        %v8064 = vpack.c.b16 %v6912, %v6904
        %v8065 = vpack.c.b16 %v6913, %v6905
        %v8066 = vpack.c.b16 %v6914, %v6906
        %v8067 = vpack.c.b16 %v6915, %v6907
        %v8068 = vpack.c.b16 %v6916, %v6908
        %v8069 = vpack.c.b16 %v6917, %v6909
        %v8070 = vpack.c.b16 %v6918, %v6910
        %v8071 = vpack.c.b16 %v6927, %v6919
        %v8072 = vpack.c.b16 %v6928, %v6920
        %v8073 = vpack.c.b16 %v6929, %v6921
        %v8074 = vpack.c.b16 %v6930, %v6922
        %v8075 = vpack.c.b16 %v6931, %v6923
        %v8076 = vpack.c.b16 %v6932, %v6924
        %v8077 = vpack.c.b16 %v6933, %v6925
        %v8078 = vpack.c.b16 %v6934, %v6926
        %v8079 = vpack.c.b16 %v6943, %v6935
        %v8080 = vpack.c.b16 %v6944, %v6936
        %v8081 = vpack.c.b16 %v6945, %v6937
        %v8082 = vpack.c.b16 %v6946, %v6938
        %v8083 = vpack.c.b16 %v6947, %v6939
        %v8084 = vpack.c.b16 %v6948, %v6940
        %v8085 = vpack.c.b16 %v6949, %v6941
        %v8086 = vpack.c.b16 %v6950, %v6942
        %v8087 = vpack.c.b16 %v6959, %v6951
        %v8088 = vpack.c.b16 %v6960, %v6952
        %v8089 = vpack.c.b16 %v6961, %v6953
        %v8090 = vpack.c.b16 %v6962, %v6954
        %v8091 = vpack.c.b16 %v6963, %v6955
        %v8092 = vpack.c.b16 %v6964, %v6956
        %v8093 = vpack.c.b16 %v6965, %v6957
        %v8094 = vpack.c.b16 %v6966, %v6958
        %v8095 = vpack.c.b16 %v6975, %v6967
        %v8096 = vpack.c.b16 %v6976, %v6968
        %v8097 = vpack.c.b16 %v6977, %v6969
        %v8098 = vpack.c.b16 %v6978, %v6970
        %v8099 = vpack.c.b16 %v6979, %v6971
        %v8100 = vpack.c.b16 %v6980, %v6972
        %v8101 = vpack.c.b16 %v6981, %v6973
        %v8102 = vpack.c.b16 %v6982, %v6974
        %v8103 = vpack.c.b16 %v6991, %v6983
        %v8104 = vpack.c.b16 %v6992, %v6984
        %v8105 = vpack.c.b16 %v6993, %v6985
        %v8106 = vpack.c.b16 %v6994, %v6986
        %v8107 = vpack.c.b16 %v6995, %v6987
        %v8108 = vpack.c.b16 %v6996, %v6988
        %v8109 = vpack.c.b16 %v6997, %v6989
        %v8110 = vpack.c.b16 %v6998, %v6990
        %v8111 = vpack.c.b16 %v7007, %v6999
        %v8112 = vpack.c.b16 %v7008, %v7000
        %v8113 = vpack.c.b16 %v7009, %v7001
        %v8114 = vpack.c.b16 %v7010, %v7002
        %v8115 = vpack.c.b16 %v7011, %v7003
        %v8116 = vpack.c.b16 %v7012, %v7004
        %v8117 = vpack.c.b16 %v7013, %v7005
        %v8118 = vpack.c.b16 %v7014, %v7006
        %v8119 = vpack.c.b16 %v7023, %v7015
        %v8120 = vpack.c.b16 %v7024, %v7016
        %v8121 = vpack.c.b16 %v7025, %v7017
        %v8122 = vpack.c.b16 %v7026, %v7018
        %v8123 = vpack.c.b16 %v7027, %v7019
        %v8124 = vpack.c.b16 %v7028, %v7020
        %v8125 = vpack.c.b16 %v7029, %v7021
        %v8126 = vpack.c.b16 %v7030, %v7022
        %v8127 = vpack.c.b16 %v7039, %v7031
        %v8128 = vpack.c.b16 %v7040, %v7032
        %v8129 = vpack.c.b16 %v7041, %v7033
        %v8130 = vpack.c.b16 %v7042, %v7034
        %v8131 = vpack.c.b16 %v7043, %v7035
        %v8132 = vpack.c.b16 %v7044, %v7036
        %v8133 = vpack.c.b16 %v7045, %v7037
        %v8134 = vpack.c.b16 %v7046, %v7038
        %v8135 = vpack.c.b16 %v7055, %v7047
        %v8136 = vpack.c.b16 %v7056, %v7048
        %v8137 = vpack.c.b16 %v7057, %v7049
        %v8138 = vpack.c.b16 %v7058, %v7050
        %v8139 = vpack.c.b16 %v7059, %v7051
        %v8140 = vpack.c.b16 %v7060, %v7052
        %v8141 = vpack.c.b16 %v7061, %v7053
        %v8142 = vpack.c.b16 %v7062, %v7054
        %v8143 = vpack.c.b16 %v7071, %v7063
        %v8144 = vpack.c.b16 %v7072, %v7064
        %v8145 = vpack.c.b16 %v7073, %v7065
        %v8146 = vpack.c.b16 %v7074, %v7066
        %v8147 = vpack.c.b16 %v7075, %v7067
        %v8148 = vpack.c.b16 %v7076, %v7068
        %v8149 = vpack.c.b16 %v7077, %v7069
        %v8150 = vpack.c.b16 %v7078, %v7070
        %v8151 = vpack.c.b16 %v7087, %v7079
        %v8152 = vpack.c.b16 %v7088, %v7080
        %v8153 = vpack.c.b16 %v7089, %v7081
        %v8154 = vpack.c.b16 %v7090, %v7082
        %v8155 = vpack.c.b16 %v7091, %v7083
        %v8156 = vpack.c.b16 %v7092, %v7084
        %v8157 = vpack.c.b16 %v7093, %v7085
        %v8158 = vpack.c.b16 %v7094, %v7086
        %v8159 = vpack.c.b16 %v7103, %v7095
        %v8160 = vpack.c.b16 %v7104, %v7096
        %v8161 = vpack.c.b16 %v7105, %v7097
        %v8162 = vpack.c.b16 %v7106, %v7098
        %v8163 = vpack.c.b16 %v7107, %v7099
        %v8164 = vpack.c.b16 %v7108, %v7100
        %v8165 = vpack.c.b16 %v7109, %v7101
        %v8166 = vpack.c.b16 %v7110, %v7102
        %v8167 = vpack.c.b16 %v7119, %v7111
        %v8168 = vpack.c.b16 %v7120, %v7112
        %v8169 = vpack.c.b16 %v7121, %v7113
        %v8170 = vpack.c.b16 %v7122, %v7114
        %v8171 = vpack.c.b16 %v7123, %v7115
        %v8172 = vpack.c.b16 %v7124, %v7116
        %v8173 = vpack.c.b16 %v7125, %v7117
        %v8174 = vpack.c.b16 %v7126, %v7118
        %v8175 = vpack.c.b16 %v7135, %v7127
        %v8176 = vpack.c.b16 %v7136, %v7128
        %v8177 = vpack.c.b16 %v7137, %v7129
        %v8178 = vpack.c.b16 %v7138, %v7130
        %v8179 = vpack.c.b16 %v7139, %v7131
        %v8180 = vpack.c.b16 %v7140, %v7132
        %v8181 = vpack.c.b16 %v7141, %v7133
        %v8182 = vpack.c.b16 %v7142, %v7134
        %v8183 = vpack.c.b16 %v7151, %v7143
        %v8184 = vpack.c.b16 %v7152, %v7144
        %v8185 = vpack.c.b16 %v7153, %v7145
        %v8186 = vpack.c.b16 %v7154, %v7146
        %v8187 = vpack.c.b16 %v7155, %v7147
        %v8188 = vpack.c.b16 %v7156, %v7148
        %v8189 = vpack.c.b16 %v7157, %v7149
        %v8190 = vpack.c.b16 %v7158, %v7150
        %v8191 = vpack.c.b16 %v7167, %v7159
        %v8192 = vpack.c.b16 %v7168, %v7160
        %v8193 = vpack.c.b16 %v7169, %v7161
        %v8194 = vpack.c.b16 %v7170, %v7162
        %v8195 = vpack.c.b16 %v7171, %v7163
        %v8196 = vpack.c.b16 %v7172, %v7164
        %v8197 = vpack.c.b16 %v7173, %v7165
        %v8198 = vpack.c.b16 %v7174, %v7166
        %9223 = vmatprep.subr.bf16.mxu0 %v7176
        %9224 = vmatpush1.bf16.msra.mxu0 %v7175
        %9225 = vmatprep.subr.bf16.mxu0 %v7184
        %9226 = vmatpush1.bf16.msra.mxu0 %v7183
        %9227 = vmatprep.subr.bf16.mxu0 %v7192
        %9228 = vmatpush1.bf16.msra.mxu0 %v7191
        %9229 = vmatprep.subr.bf16.mxu0 %v7200
        %9230 = vmatpush1.bf16.msra.mxu0 %v7199
        %9231 = vmatprep.subr.bf16.mxu0 %v7208
        %9232 = vmatpush1.bf16.msra.mxu0 %v7207
        %9233 = vmatprep.subr.bf16.mxu0 %v7216
        %9234 = vmatpush1.bf16.msra.mxu0 %v7215
        %9235 = vmatprep.subr.bf16.mxu0 %v7224
        %9236 = vmatpush1.bf16.msra.mxu0 %v7223
        %9237 = vmatprep.subr.bf16.mxu0 %v7232
        %9238 = vmatpush1.bf16.msra.mxu0 %v7231
        %9239 = vmatprep.subr.bf16.mxu0 %v7240
        %9240 = vmatpush1.bf16.msra.mxu0 %v7239
        %9241 = vmatprep.subr.bf16.mxu0 %v7248
        %9242 = vmatpush1.bf16.msra.mxu0 %v7247
        %9243 = vmatprep.subr.bf16.mxu0 %v7256
        %9244 = vmatpush1.bf16.msra.mxu0 %v7255
        %9245 = vmatprep.subr.bf16.mxu0 %v7264
        %9246 = vmatpush1.bf16.msra.mxu0 %v7263
        %9247 = vmatprep.subr.bf16.mxu0 %v7272
        %9248 = vmatpush1.bf16.msra.mxu0 %v7271
        %9249 = vmatprep.subr.bf16.mxu0 %v7280
        %9250 = vmatpush1.bf16.msra.mxu0 %v7279
        %9251 = vmatprep.subr.bf16.mxu0 %v7288
        %9252 = vmatpush1.bf16.msra.mxu0 %v7287
        %9253 = vmatprep.subr.bf16.mxu0 %v7296
        %9254 = vmatpush1.bf16.msra.mxu0 %v7295
        %9255 = vmatprep.mubr.bf16.mxu0 %v3056
        %9256 = vmatmul.mubr.bf16.gmra.mrb[0].mxu0 %v3055
        %v9257 = vpop.f32.mrb[0].mxu0
        %v9258 = vadd.f32 0.0, %v9257
        %v9259 = vpop.f32.mrb[0].mxu0
        %v9260 = vadd.f32 0.0, %v9259
        %v9261 = vpop.f32.mrb[0].mxu0
        %v9262 = vpop.f32.mrb[0].mxu0
        %9263 = vdwg.mxu0
        %9264 = vmatprep.subr.bf16.mxu0 %v7304
        %9265 = vmatpush1.bf16.msra.mxu0 %v7303
        %9266 = vmatprep.subr.bf16.mxu0 %v7312
        %9267 = vmatpush1.bf16.msra.mxu0 %v7311
        %9268 = vmatprep.subr.bf16.mxu0 %v7320
        %9269 = vmatpush1.bf16.msra.mxu0 %v7319
        %9270 = vmatprep.subr.bf16.mxu0 %v7328
        %9271 = vmatpush1.bf16.msra.mxu0 %v7327
        %9272 = vmatprep.subr.bf16.mxu0 %v7336
        %9273 = vmatpush1.bf16.msra.mxu0 %v7335
        %9274 = vmatprep.subr.bf16.mxu0 %v7344
        %9275 = vmatpush1.bf16.msra.mxu0 %v7343
        %9276 = vmatprep.subr.bf16.mxu0 %v7352
        %9277 = vmatpush1.bf16.msra.mxu0 %v7351
        %9278 = vmatprep.subr.bf16.mxu0 %v7360
        %9279 = vmatpush1.bf16.msra.mxu0 %v7359
        %9280 = vmatprep.subr.bf16.mxu0 %v7368
        %9281 = vmatpush1.bf16.msra.mxu0 %v7367
        %9282 = vmatprep.subr.bf16.mxu0 %v7376
        %9283 = vmatpush1.bf16.msra.mxu0 %v7375
        %9284 = vmatprep.subr.bf16.mxu0 %v7384
        %9285 = vmatpush1.bf16.msra.mxu0 %v7383
        %9286 = vmatprep.subr.bf16.mxu0 %v7392
        %9287 = vmatpush1.bf16.msra.mxu0 %v7391
        %9288 = vmatprep.subr.bf16.mxu0 %v7400
        %9289 = vmatpush1.bf16.msra.mxu0 %v7399
        %9290 = vmatprep.subr.bf16.mxu0 %v7408
        %9291 = vmatpush1.bf16.msra.mxu0 %v7407
        %9292 = vmatprep.subr.bf16.mxu0 %v7416
        %9293 = vmatpush1.bf16.msra.mxu0 %v7415
        %9294 = vmatprep.subr.bf16.mxu0 %v7424
        %9295 = vmatpush1.bf16.msra.mxu0 %v7423
        %9296 = vmatprep.mubr.bf16.mxu0 %v3058
        %9297 = vmatmul.mubr.bf16.gmra.mrb[0].mxu0 %v3057
        %v9298 = vpop.f32.mrb[0].mxu0
        %v9299 = vadd.f32 %v9258, %v9298
        %v9300 = vpop.f32.mrb[0].mxu0
        %v9301 = vadd.f32 %v9260, %v9300
        %v9302 = vpop.f32.mrb[0].mxu0
        %v9303 = vpop.f32.mrb[0].mxu0
        %9304 = vdwg.mxu0
        %9305 = vmatprep.subr.bf16.mxu0 %v7432
        %9306 = vmatpush1.bf16.msra.mxu0 %v7431
        %9307 = vmatprep.subr.bf16.mxu0 %v7440
        %9308 = vmatpush1.bf16.msra.mxu0 %v7439
        %9309 = vmatprep.subr.bf16.mxu0 %v7448
        %9310 = vmatpush1.bf16.msra.mxu0 %v7447
        %9311 = vmatprep.subr.bf16.mxu0 %v7456
        %9312 = vmatpush1.bf16.msra.mxu0 %v7455
        %9313 = vmatprep.subr.bf16.mxu0 %v7464
        %9314 = vmatpush1.bf16.msra.mxu0 %v7463
        %9315 = vmatprep.subr.bf16.mxu0 %v7472
        %9316 = vmatpush1.bf16.msra.mxu0 %v7471
        %9317 = vmatprep.subr.bf16.mxu0 %v7480
        %9318 = vmatpush1.bf16.msra.mxu0 %v7479
        %9319 = vmatprep.subr.bf16.mxu0 %v7488
        %9320 = vmatpush1.bf16.msra.mxu0 %v7487
        %9321 = vmatprep.subr.bf16.mxu0 %v7496
        %9322 = vmatpush1.bf16.msra.mxu0 %v7495
        %9323 = vmatprep.subr.bf16.mxu0 %v7504
        %9324 = vmatpush1.bf16.msra.mxu0 %v7503
        %9325 = vmatprep.subr.bf16.mxu0 %v7512
        %9326 = vmatpush1.bf16.msra.mxu0 %v7511
        %9327 = vmatprep.subr.bf16.mxu0 %v7520
        %9328 = vmatpush1.bf16.msra.mxu0 %v7519
        %9329 = vmatprep.subr.bf16.mxu0 %v7528
        %9330 = vmatpush1.bf16.msra.mxu0 %v7527
        %9331 = vmatprep.subr.bf16.mxu0 %v7536
        %9332 = vmatpush1.bf16.msra.mxu0 %v7535
        %9333 = vmatprep.subr.bf16.mxu0 %v7544
        %9334 = vmatpush1.bf16.msra.mxu0 %v7543
        %9335 = vmatprep.subr.bf16.mxu0 %v7552
        %9336 = vmatpush1.bf16.msra.mxu0 %v7551
        %9337 = vmatprep.mubr.bf16.mxu0 %v3060
        %9338 = vmatmul.mubr.bf16.gmra.mrb[0].mxu0 %v3059
        %v9339 = vpop.f32.mrb[0].mxu0
        %v9340 = vadd.f32 %v9299, %v9339
        %v9341 = vpop.f32.mrb[0].mxu0
        %v9342 = vadd.f32 %v9301, %v9341
        %v9343 = vpop.f32.mrb[0].mxu0
        %v9344 = vpop.f32.mrb[0].mxu0
        %9345 = vdwg.mxu0
        %9346 = vmatprep.subr.bf16.mxu0 %v7560
        %9347 = vmatpush1.bf16.msra.mxu0 %v7559
        %9348 = vmatprep.subr.bf16.mxu0 %v7568
        %9349 = vmatpush1.bf16.msra.mxu0 %v7567
        %9350 = vmatprep.subr.bf16.mxu0 %v7576
        %9351 = vmatpush1.bf16.msra.mxu0 %v7575
        %9352 = vmatprep.subr.bf16.mxu0 %v7584
        %9353 = vmatpush1.bf16.msra.mxu0 %v7583
        %9354 = vmatprep.subr.bf16.mxu0 %v7592
        %9355 = vmatpush1.bf16.msra.mxu0 %v7591
        %9356 = vmatprep.subr.bf16.mxu0 %v7600
        %9357 = vmatpush1.bf16.msra.mxu0 %v7599
        %9358 = vmatprep.subr.bf16.mxu0 %v7608
        %9359 = vmatpush1.bf16.msra.mxu0 %v7607
        %9360 = vmatprep.subr.bf16.mxu0 %v7616
        %9361 = vmatpush1.bf16.msra.mxu0 %v7615
        %9362 = vmatprep.subr.bf16.mxu0 %v7624
        %9363 = vmatpush1.bf16.msra.mxu0 %v7623
        %9364 = vmatprep.subr.bf16.mxu0 %v7632
        %9365 = vmatpush1.bf16.msra.mxu0 %v7631
        %9366 = vmatprep.subr.bf16.mxu0 %v7640
        %9367 = vmatpush1.bf16.msra.mxu0 %v7639
        %9368 = vmatprep.subr.bf16.mxu0 %v7648
        %9369 = vmatpush1.bf16.msra.mxu0 %v7647
        %9370 = vmatprep.subr.bf16.mxu0 %v7656
        %9371 = vmatpush1.bf16.msra.mxu0 %v7655
        %9372 = vmatprep.subr.bf16.mxu0 %v7664
        %9373 = vmatpush1.bf16.msra.mxu0 %v7663
        %9374 = vmatprep.subr.bf16.mxu0 %v7672
        %9375 = vmatpush1.bf16.msra.mxu0 %v7671
        %9376 = vmatprep.subr.bf16.mxu0 %v7680
        %9377 = vmatpush1.bf16.msra.mxu0 %v7679
        %9378 = vmatprep.mubr.bf16.mxu0 %v3062
        %9379 = vmatmul.mubr.bf16.gmra.mrb[0].mxu0 %v3061
        %v9380 = vpop.f32.mrb[0].mxu0
        %v9381 = vadd.f32 %v9340, %v9380
        %v9382 = vpop.f32.mrb[0].mxu0
        %v9383 = vadd.f32 %v9342, %v9382
        %v9384 = vpop.f32.mrb[0].mxu0
        %v9385 = vpop.f32.mrb[0].mxu0
        %9386 = vdwg.mxu0
        %9387 = vmatprep.subr.bf16.mxu0 %v7688
        %9388 = vmatpush1.bf16.msra.mxu0 %v7687
        %9389 = vmatprep.subr.bf16.mxu0 %v7696
        %9390 = vmatpush1.bf16.msra.mxu0 %v7695
        %9391 = vmatprep.subr.bf16.mxu0 %v7704
        %9392 = vmatpush1.bf16.msra.mxu0 %v7703
        %9393 = vmatprep.subr.bf16.mxu0 %v7712
        %9394 = vmatpush1.bf16.msra.mxu0 %v7711
        %9395 = vmatprep.subr.bf16.mxu0 %v7720
        %9396 = vmatpush1.bf16.msra.mxu0 %v7719
        %9397 = vmatprep.subr.bf16.mxu0 %v7728
        %9398 = vmatpush1.bf16.msra.mxu0 %v7727
        %9399 = vmatprep.subr.bf16.mxu0 %v7736
        %9400 = vmatpush1.bf16.msra.mxu0 %v7735
        %9401 = vmatprep.subr.bf16.mxu0 %v7744
        %9402 = vmatpush1.bf16.msra.mxu0 %v7743
        %9403 = vmatprep.subr.bf16.mxu0 %v7752
        %9404 = vmatpush1.bf16.msra.mxu0 %v7751
        %9405 = vmatprep.subr.bf16.mxu0 %v7760
        %9406 = vmatpush1.bf16.msra.mxu0 %v7759
        %9407 = vmatprep.subr.bf16.mxu0 %v7768
        %9408 = vmatpush1.bf16.msra.mxu0 %v7767
        %9409 = vmatprep.subr.bf16.mxu0 %v7776
        %9410 = vmatpush1.bf16.msra.mxu0 %v7775
        %9411 = vmatprep.subr.bf16.mxu0 %v7784
        %9412 = vmatpush1.bf16.msra.mxu0 %v7783
        %9413 = vmatprep.subr.bf16.mxu0 %v7792
        %9414 = vmatpush1.bf16.msra.mxu0 %v7791
        %9415 = vmatprep.subr.bf16.mxu0 %v7800
        %9416 = vmatpush1.bf16.msra.mxu0 %v7799
        %9417 = vmatprep.subr.bf16.mxu0 %v7808
        %9418 = vmatpush1.bf16.msra.mxu0 %v7807
        %9419 = vmatprep.mubr.bf16.mxu0 %v3064
        %9420 = vmatmul.mubr.bf16.gmra.mrb[0].mxu0 %v3063
        %v9421 = vpop.f32.mrb[0].mxu0
        %v9422 = vadd.f32 %v9381, %v9421
        %v9423 = vpop.f32.mrb[0].mxu0
        %v9424 = vadd.f32 %v9383, %v9423
        %v9425 = vpop.f32.mrb[0].mxu0
        %v9426 = vpop.f32.mrb[0].mxu0
        %9427 = vdwg.mxu0
        %9428 = vmatprep.subr.bf16.mxu0 %v7816
        %9429 = vmatpush1.bf16.msra.mxu0 %v7815
        %9430 = vmatprep.subr.bf16.mxu0 %v7824
        %9431 = vmatpush1.bf16.msra.mxu0 %v7823
        %9432 = vmatprep.subr.bf16.mxu0 %v7832
        %9433 = vmatpush1.bf16.msra.mxu0 %v7831
        %9434 = vmatprep.subr.bf16.mxu0 %v7840
        %9435 = vmatpush1.bf16.msra.mxu0 %v7839
        %9436 = vmatprep.subr.bf16.mxu0 %v7848
        %9437 = vmatpush1.bf16.msra.mxu0 %v7847
        %9438 = vmatprep.subr.bf16.mxu0 %v7856
        %9439 = vmatpush1.bf16.msra.mxu0 %v7855
        %9440 = vmatprep.subr.bf16.mxu0 %v7864
        %9441 = vmatpush1.bf16.msra.mxu0 %v7863
        %9442 = vmatprep.subr.bf16.mxu0 %v7872
        %9443 = vmatpush1.bf16.msra.mxu0 %v7871
        %9444 = vmatprep.subr.bf16.mxu0 %v7880
        %9445 = vmatpush1.bf16.msra.mxu0 %v7879
        %9446 = vmatprep.subr.bf16.mxu0 %v7888
        %9447 = vmatpush1.bf16.msra.mxu0 %v7887
        %9448 = vmatprep.subr.bf16.mxu0 %v7896
        %9449 = vmatpush1.bf16.msra.mxu0 %v7895
        %9450 = vmatprep.subr.bf16.mxu0 %v7904
        %9451 = vmatpush1.bf16.msra.mxu0 %v7903
        %9452 = vmatprep.subr.bf16.mxu0 %v7912
        %9453 = vmatpush1.bf16.msra.mxu0 %v7911
        %9454 = vmatprep.subr.bf16.mxu0 %v7920
        %9455 = vmatpush1.bf16.msra.mxu0 %v7919
        %9456 = vmatprep.subr.bf16.mxu0 %v7928
        %9457 = vmatpush1.bf16.msra.mxu0 %v7927
        %9458 = vmatprep.subr.bf16.mxu0 %v7936
        %9459 = vmatpush1.bf16.msra.mxu0 %v7935
        %9460 = vmatprep.mubr.bf16.mxu0 %v3066
        %9461 = vmatmul.mubr.bf16.gmra.mrb[0].mxu0 %v3065
        %v9462 = vpop.f32.mrb[0].mxu0
        %v9463 = vadd.f32 %v9422, %v9462
        %v9464 = vpop.f32.mrb[0].mxu0
        %v9465 = vadd.f32 %v9424, %v9464
        %v9466 = vpop.f32.mrb[0].mxu0
        %v9467 = vpop.f32.mrb[0].mxu0
        %9468 = vdwg.mxu0
        %9469 = vmatprep.subr.bf16.mxu0 %v7944
        %9470 = vmatpush1.bf16.msra.mxu0 %v7943
        %9471 = vmatprep.subr.bf16.mxu0 %v7952
        %9472 = vmatpush1.bf16.msra.mxu0 %v7951
        %9473 = vmatprep.subr.bf16.mxu0 %v7960
        %9474 = vmatpush1.bf16.msra.mxu0 %v7959
        %9475 = vmatprep.subr.bf16.mxu0 %v7968
        %9476 = vmatpush1.bf16.msra.mxu0 %v7967
        %9477 = vmatprep.subr.bf16.mxu0 %v7976
        %9478 = vmatpush1.bf16.msra.mxu0 %v7975
        %9479 = vmatprep.subr.bf16.mxu0 %v7984
        %9480 = vmatpush1.bf16.msra.mxu0 %v7983
        %9481 = vmatprep.subr.bf16.mxu0 %v7992
        %9482 = vmatpush1.bf16.msra.mxu0 %v7991
        %9483 = vmatprep.subr.bf16.mxu0 %v8000
        %9484 = vmatpush1.bf16.msra.mxu0 %v7999
        %9485 = vmatprep.subr.bf16.mxu0 %v8008
        %9486 = vmatpush1.bf16.msra.mxu0 %v8007
        %9487 = vmatprep.subr.bf16.mxu0 %v8016
        %9488 = vmatpush1.bf16.msra.mxu0 %v8015
        %9489 = vmatprep.subr.bf16.mxu0 %v8024
        %9490 = vmatpush1.bf16.msra.mxu0 %v8023
        %9491 = vmatprep.subr.bf16.mxu0 %v8032
        %9492 = vmatpush1.bf16.msra.mxu0 %v8031
        %9493 = vmatprep.subr.bf16.mxu0 %v8040
        %9494 = vmatpush1.bf16.msra.mxu0 %v8039
        %9495 = vmatprep.subr.bf16.mxu0 %v8048
        %9496 = vmatpush1.bf16.msra.mxu0 %v8047
        %9497 = vmatprep.subr.bf16.mxu0 %v8056
        %9498 = vmatpush1.bf16.msra.mxu0 %v8055
        %9499 = vmatprep.subr.bf16.mxu0 %v8064
        %9500 = vmatpush1.bf16.msra.mxu0 %v8063
        %9501 = vmatprep.mubr.bf16.mxu0 %v3068
        %9502 = vmatmul.mubr.bf16.gmra.mrb[0].mxu0 %v3067
        %v9503 = vpop.f32.mrb[0].mxu0
        %v9504 = vadd.f32 %v9463, %v9503
        %v9505 = vpop.f32.mrb[0].mxu0
        %v9506 = vadd.f32 %v9465, %v9505
        %v9507 = vpop.f32.mrb[0].mxu0
        %v9508 = vpop.f32.mrb[0].mxu0
        %9509 = vdwg.mxu0
        %9510 = vmatprep.subr.bf16.mxu0 %v8072
        %9511 = vmatpush1.bf16.msra.mxu0 %v8071
        %9512 = vmatprep.subr.bf16.mxu0 %v8080
        %9513 = vmatpush1.bf16.msra.mxu0 %v8079
        %9514 = vmatprep.subr.bf16.mxu0 %v8088
        %9515 = vmatpush1.bf16.msra.mxu0 %v8087
        %9516 = vmatprep.subr.bf16.mxu0 %v8096
        %9517 = vmatpush1.bf16.msra.mxu0 %v8095
        %9518 = vmatprep.subr.bf16.mxu0 %v8104
        %9519 = vmatpush1.bf16.msra.mxu0 %v8103
        %9520 = vmatprep.subr.bf16.mxu0 %v8112
        %9521 = vmatpush1.bf16.msra.mxu0 %v8111
        %9522 = vmatprep.subr.bf16.mxu0 %v8120
        %9523 = vmatpush1.bf16.msra.mxu0 %v8119
        %9524 = vmatprep.subr.bf16.mxu0 %v8128
        %9525 = vmatpush1.bf16.msra.mxu0 %v8127
        %9526 = vmatprep.subr.bf16.mxu0 %v8136
        %9527 = vmatpush1.bf16.msra.mxu0 %v8135
        %9528 = vmatprep.subr.bf16.mxu0 %v8144
        %9529 = vmatpush1.bf16.msra.mxu0 %v8143
        %9530 = vmatprep.subr.bf16.mxu0 %v8152
        %9531 = vmatpush1.bf16.msra.mxu0 %v8151
        %9532 = vmatprep.subr.bf16.mxu0 %v8160
        %9533 = vmatpush1.bf16.msra.mxu0 %v8159
        %9534 = vmatprep.subr.bf16.mxu0 %v8168
        %9535 = vmatpush1.bf16.msra.mxu0 %v8167
        %9536 = vmatprep.subr.bf16.mxu0 %v8176
        %9537 = vmatpush1.bf16.msra.mxu0 %v8175
        %9538 = vmatprep.subr.bf16.mxu0 %v8184
        %9539 = vmatpush1.bf16.msra.mxu0 %v8183
        %9540 = vmatprep.subr.bf16.mxu0 %v8192
        %9541 = vmatpush1.bf16.msra.mxu0 %v8191
        %9542 = vmatprep.mubr.bf16.mxu0 %v3070
        %9543 = vmatmul.mubr.bf16.gmra.mrb[0].mxu0 %v3069
        %v9544 = vpop.f32.mrb[0].mxu0
        %v9545 = vadd.f32 %v9504, %v9544
        %v9546 = vpop.f32.mrb[0].mxu0
        %v9547 = vadd.f32 %v9506, %v9546
        %v9548 = vpop.f32.mrb[0].mxu0
        %v9549 = vpop.f32.mrb[0].mxu0
        %9550 = vdwg.mxu0
        %9551 = vmatprep.subr.bf16.mxu0 %v7178
        %9552 = vmatpush1.bf16.msra.mxu0 %v7177
        %9553 = vmatprep.subr.bf16.mxu0 %v7186
        %9554 = vmatpush1.bf16.msra.mxu0 %v7185
        %9555 = vmatprep.subr.bf16.mxu0 %v7194
        %9556 = vmatpush1.bf16.msra.mxu0 %v7193
        %9557 = vmatprep.subr.bf16.mxu0 %v7202
        %9558 = vmatpush1.bf16.msra.mxu0 %v7201
        %9559 = vmatprep.subr.bf16.mxu0 %v7210
        %9560 = vmatpush1.bf16.msra.mxu0 %v7209
        %9561 = vmatprep.subr.bf16.mxu0 %v7218
        %9562 = vmatpush1.bf16.msra.mxu0 %v7217
        %9563 = vmatprep.subr.bf16.mxu0 %v7226
        %9564 = vmatpush1.bf16.msra.mxu0 %v7225
        %9565 = vmatprep.subr.bf16.mxu0 %v7234
        %9566 = vmatpush1.bf16.msra.mxu0 %v7233
        %9567 = vmatprep.subr.bf16.mxu0 %v7242
        %9568 = vmatpush1.bf16.msra.mxu0 %v7241
        %9569 = vmatprep.subr.bf16.mxu0 %v7250
        %9570 = vmatpush1.bf16.msra.mxu0 %v7249
        %9571 = vmatprep.subr.bf16.mxu0 %v7258
        %9572 = vmatpush1.bf16.msra.mxu0 %v7257
        %9573 = vmatprep.subr.bf16.mxu0 %v7266
        %9574 = vmatpush1.bf16.msra.mxu0 %v7265
        %9575 = vmatprep.subr.bf16.mxu0 %v7274
        %9576 = vmatpush1.bf16.msra.mxu0 %v7273
        %9577 = vmatprep.subr.bf16.mxu0 %v7282
        %9578 = vmatpush1.bf16.msra.mxu0 %v7281
        %9579 = vmatprep.subr.bf16.mxu0 %v7290
        %9580 = vmatpush1.bf16.msra.mxu0 %v7289
        %9581 = vmatprep.subr.bf16.mxu0 %v7298
        %9582 = vmatpush1.bf16.msra.mxu0 %v7297
        %9583 = vmatprep.mubr.bf16.mxu0 %v3056
        %9584 = vmatmul.mubr.bf16.gmra.mrb[0].mxu0 %v3055
        %v9585 = vpop.f32.mrb[0].mxu0
        %v9586 = vadd.f32 0.0, %v9585
        %v9587 = vpop.f32.mrb[0].mxu0
        %v9588 = vadd.f32 0.0, %v9587
        %v9589 = vpop.f32.mrb[0].mxu0
        %v9590 = vpop.f32.mrb[0].mxu0
        %9591 = vdwg.mxu0
        %9592 = vmatprep.subr.bf16.mxu0 %v7306
        %9593 = vmatpush1.bf16.msra.mxu0 %v7305
        %9594 = vmatprep.subr.bf16.mxu0 %v7314
        %9595 = vmatpush1.bf16.msra.mxu0 %v7313
        %9596 = vmatprep.subr.bf16.mxu0 %v7322
        %9597 = vmatpush1.bf16.msra.mxu0 %v7321
        %9598 = vmatprep.subr.bf16.mxu0 %v7330
        %9599 = vmatpush1.bf16.msra.mxu0 %v7329
        %9600 = vmatprep.subr.bf16.mxu0 %v7338
        %9601 = vmatpush1.bf16.msra.mxu0 %v7337
        %9602 = vmatprep.subr.bf16.mxu0 %v7346
        %9603 = vmatpush1.bf16.msra.mxu0 %v7345
        %9604 = vmatprep.subr.bf16.mxu0 %v7354
        %9605 = vmatpush1.bf16.msra.mxu0 %v7353
        %9606 = vmatprep.subr.bf16.mxu0 %v7362
        %9607 = vmatpush1.bf16.msra.mxu0 %v7361
        %9608 = vmatprep.subr.bf16.mxu0 %v7370
        %9609 = vmatpush1.bf16.msra.mxu0 %v7369
        %9610 = vmatprep.subr.bf16.mxu0 %v7378
        %9611 = vmatpush1.bf16.msra.mxu0 %v7377
        %9612 = vmatprep.subr.bf16.mxu0 %v7386
        %9613 = vmatpush1.bf16.msra.mxu0 %v7385
        %9614 = vmatprep.subr.bf16.mxu0 %v7394
        %9615 = vmatpush1.bf16.msra.mxu0 %v7393
        %9616 = vmatprep.subr.bf16.mxu0 %v7402
        %9617 = vmatpush1.bf16.msra.mxu0 %v7401
        %9618 = vmatprep.subr.bf16.mxu0 %v7410
        %9619 = vmatpush1.bf16.msra.mxu0 %v7409
        %9620 = vmatprep.subr.bf16.mxu0 %v7418
        %9621 = vmatpush1.bf16.msra.mxu0 %v7417
        %9622 = vmatprep.subr.bf16.mxu0 %v7426
        %9623 = vmatpush1.bf16.msra.mxu0 %v7425
        %9624 = vmatprep.mubr.bf16.mxu0 %v3058
        %9625 = vmatmul.mubr.bf16.gmra.mrb[0].mxu0 %v3057
        %v9626 = vpop.f32.mrb[0].mxu0
        %v9627 = vadd.f32 %v9586, %v9626
        %v9628 = vpop.f32.mrb[0].mxu0
        %v9629 = vadd.f32 %v9588, %v9628
        %v9630 = vpop.f32.mrb[0].mxu0
        %v9631 = vpop.f32.mrb[0].mxu0
        %9632 = vdwg.mxu0
        %9633 = vmatprep.subr.bf16.mxu0 %v7434
        %9634 = vmatpush1.bf16.msra.mxu0 %v7433
        %9635 = vmatprep.subr.bf16.mxu0 %v7442
        %9636 = vmatpush1.bf16.msra.mxu0 %v7441
        %9637 = vmatprep.subr.bf16.mxu0 %v7450
        %9638 = vmatpush1.bf16.msra.mxu0 %v7449
        %9639 = vmatprep.subr.bf16.mxu0 %v7458
        %9640 = vmatpush1.bf16.msra.mxu0 %v7457
        %9641 = vmatprep.subr.bf16.mxu0 %v7466
        %9642 = vmatpush1.bf16.msra.mxu0 %v7465
        %9643 = vmatprep.subr.bf16.mxu0 %v7474
        %9644 = vmatpush1.bf16.msra.mxu0 %v7473
        %9645 = vmatprep.subr.bf16.mxu0 %v7482
        %9646 = vmatpush1.bf16.msra.mxu0 %v7481
        %9647 = vmatprep.subr.bf16.mxu0 %v7490
        %9648 = vmatpush1.bf16.msra.mxu0 %v7489
        %9649 = vmatprep.subr.bf16.mxu0 %v7498
        %9650 = vmatpush1.bf16.msra.mxu0 %v7497
        %9651 = vmatprep.subr.bf16.mxu0 %v7506
        %9652 = vmatpush1.bf16.msra.mxu0 %v7505
        %9653 = vmatprep.subr.bf16.mxu0 %v7514
        %9654 = vmatpush1.bf16.msra.mxu0 %v7513
        %9655 = vmatprep.subr.bf16.mxu0 %v7522
        %9656 = vmatpush1.bf16.msra.mxu0 %v7521
        %9657 = vmatprep.subr.bf16.mxu0 %v7530
        %9658 = vmatpush1.bf16.msra.mxu0 %v7529
        %9659 = vmatprep.subr.bf16.mxu0 %v7538
        %9660 = vmatpush1.bf16.msra.mxu0 %v7537
        %9661 = vmatprep.subr.bf16.mxu0 %v7546
        %9662 = vmatpush1.bf16.msra.mxu0 %v7545
        %9663 = vmatprep.subr.bf16.mxu0 %v7554
        %9664 = vmatpush1.bf16.msra.mxu0 %v7553
        %9665 = vmatprep.mubr.bf16.mxu0 %v3060
        %9666 = vmatmul.mubr.bf16.gmra.mrb[0].mxu0 %v3059
        %v9667 = vpop.f32.mrb[0].mxu0
        %v9668 = vadd.f32 %v9627, %v9667
        %v9669 = vpop.f32.mrb[0].mxu0
        %v9670 = vadd.f32 %v9629, %v9669
        %v9671 = vpop.f32.mrb[0].mxu0
        %v9672 = vpop.f32.mrb[0].mxu0
        %9673 = vdwg.mxu0
        %9674 = vmatprep.subr.bf16.mxu0 %v7562
        %9675 = vmatpush1.bf16.msra.mxu0 %v7561
        %9676 = vmatprep.subr.bf16.mxu0 %v7570
        %9677 = vmatpush1.bf16.msra.mxu0 %v7569
        %9678 = vmatprep.subr.bf16.mxu0 %v7578
        %9679 = vmatpush1.bf16.msra.mxu0 %v7577
        %9680 = vmatprep.subr.bf16.mxu0 %v7586
        %9681 = vmatpush1.bf16.msra.mxu0 %v7585
        %9682 = vmatprep.subr.bf16.mxu0 %v7594
        %9683 = vmatpush1.bf16.msra.mxu0 %v7593
        %9684 = vmatprep.subr.bf16.mxu0 %v7602
        %9685 = vmatpush1.bf16.msra.mxu0 %v7601
        %9686 = vmatprep.subr.bf16.mxu0 %v7610
        %9687 = vmatpush1.bf16.msra.mxu0 %v7609
        %9688 = vmatprep.subr.bf16.mxu0 %v7618
        %9689 = vmatpush1.bf16.msra.mxu0 %v7617
        %9690 = vmatprep.subr.bf16.mxu0 %v7626
        %9691 = vmatpush1.bf16.msra.mxu0 %v7625
        %9692 = vmatprep.subr.bf16.mxu0 %v7634
        %9693 = vmatpush1.bf16.msra.mxu0 %v7633
        %9694 = vmatprep.subr.bf16.mxu0 %v7642
        %9695 = vmatpush1.bf16.msra.mxu0 %v7641
        %9696 = vmatprep.subr.bf16.mxu0 %v7650
        %9697 = vmatpush1.bf16.msra.mxu0 %v7649
        %9698 = vmatprep.subr.bf16.mxu0 %v7658
        %9699 = vmatpush1.bf16.msra.mxu0 %v7657
        %9700 = vmatprep.subr.bf16.mxu0 %v7666
        %9701 = vmatpush1.bf16.msra.mxu0 %v7665
        %9702 = vmatprep.subr.bf16.mxu0 %v7674
        %9703 = vmatpush1.bf16.msra.mxu0 %v7673
        %9704 = vmatprep.subr.bf16.mxu0 %v7682
        %9705 = vmatpush1.bf16.msra.mxu0 %v7681
        %9706 = vmatprep.mubr.bf16.mxu0 %v3062
        %9707 = vmatmul.mubr.bf16.gmra.mrb[0].mxu0 %v3061
        %v9708 = vpop.f32.mrb[0].mxu0
        %v9709 = vadd.f32 %v9668, %v9708
        %v9710 = vpop.f32.mrb[0].mxu0
        %v9711 = vadd.f32 %v9670, %v9710
        %v9712 = vpop.f32.mrb[0].mxu0
        %v9713 = vpop.f32.mrb[0].mxu0
        %9714 = vdwg.mxu0
        %9715 = vmatprep.subr.bf16.mxu0 %v7690
        %9716 = vmatpush1.bf16.msra.mxu0 %v7689
        %9717 = vmatprep.subr.bf16.mxu0 %v7698
        %9718 = vmatpush1.bf16.msra.mxu0 %v7697
        %9719 = vmatprep.subr.bf16.mxu0 %v7706
        %9720 = vmatpush1.bf16.msra.mxu0 %v7705
        %9721 = vmatprep.subr.bf16.mxu0 %v7714
        %9722 = vmatpush1.bf16.msra.mxu0 %v7713
        %9723 = vmatprep.subr.bf16.mxu0 %v7722
        %9724 = vmatpush1.bf16.msra.mxu0 %v7721
        %9725 = vmatprep.subr.bf16.mxu0 %v7730
        %9726 = vmatpush1.bf16.msra.mxu0 %v7729
        %9727 = vmatprep.subr.bf16.mxu0 %v7738
        %9728 = vmatpush1.bf16.msra.mxu0 %v7737
        %9729 = vmatprep.subr.bf16.mxu0 %v7746
        %9730 = vmatpush1.bf16.msra.mxu0 %v7745
        %9731 = vmatprep.subr.bf16.mxu0 %v7754
        %9732 = vmatpush1.bf16.msra.mxu0 %v7753
        %9733 = vmatprep.subr.bf16.mxu0 %v7762
        %9734 = vmatpush1.bf16.msra.mxu0 %v7761
        %9735 = vmatprep.subr.bf16.mxu0 %v7770
        %9736 = vmatpush1.bf16.msra.mxu0 %v7769
        %9737 = vmatprep.subr.bf16.mxu0 %v7778
        %9738 = vmatpush1.bf16.msra.mxu0 %v7777
        %9739 = vmatprep.subr.bf16.mxu0 %v7786
        %9740 = vmatpush1.bf16.msra.mxu0 %v7785
        %9741 = vmatprep.subr.bf16.mxu0 %v7794
        %9742 = vmatpush1.bf16.msra.mxu0 %v7793
        %9743 = vmatprep.subr.bf16.mxu0 %v7802
        %9744 = vmatpush1.bf16.msra.mxu0 %v7801
        %9745 = vmatprep.subr.bf16.mxu0 %v7810
        %9746 = vmatpush1.bf16.msra.mxu0 %v7809
        %9747 = vmatprep.mubr.bf16.mxu0 %v3064
        %9748 = vmatmul.mubr.bf16.gmra.mrb[0].mxu0 %v3063
        %v9749 = vpop.f32.mrb[0].mxu0
        %v9750 = vadd.f32 %v9709, %v9749
        %v9751 = vpop.f32.mrb[0].mxu0
        %v9752 = vadd.f32 %v9711, %v9751
        %v9753 = vpop.f32.mrb[0].mxu0
        %v9754 = vpop.f32.mrb[0].mxu0
        %9755 = vdwg.mxu0
        %9756 = vmatprep.subr.bf16.mxu0 %v7818
        %9757 = vmatpush1.bf16.msra.mxu0 %v7817
        %9758 = vmatprep.subr.bf16.mxu0 %v7826
        %9759 = vmatpush1.bf16.msra.mxu0 %v7825
        %9760 = vmatprep.subr.bf16.mxu0 %v7834
        %9761 = vmatpush1.bf16.msra.mxu0 %v7833
        %9762 = vmatprep.subr.bf16.mxu0 %v7842
        %9763 = vmatpush1.bf16.msra.mxu0 %v7841
        %9764 = vmatprep.subr.bf16.mxu0 %v7850
        %9765 = vmatpush1.bf16.msra.mxu0 %v7849
        %9766 = vmatprep.subr.bf16.mxu0 %v7858
        %9767 = vmatpush1.bf16.msra.mxu0 %v7857
        %9768 = vmatprep.subr.bf16.mxu0 %v7866
        %9769 = vmatpush1.bf16.msra.mxu0 %v7865
        %9770 = vmatprep.subr.bf16.mxu0 %v7874
        %9771 = vmatpush1.bf16.msra.mxu0 %v7873
        %9772 = vmatprep.subr.bf16.mxu0 %v7882
        %9773 = vmatpush1.bf16.msra.mxu0 %v7881
        %9774 = vmatprep.subr.bf16.mxu0 %v7890
        %9775 = vmatpush1.bf16.msra.mxu0 %v7889
        %9776 = vmatprep.subr.bf16.mxu0 %v7898
        %9777 = vmatpush1.bf16.msra.mxu0 %v7897
        %9778 = vmatprep.subr.bf16.mxu0 %v7906
        %9779 = vmatpush1.bf16.msra.mxu0 %v7905
        %9780 = vmatprep.subr.bf16.mxu0 %v7914
        %9781 = vmatpush1.bf16.msra.mxu0 %v7913
        %9782 = vmatprep.subr.bf16.mxu0 %v7922
        %9783 = vmatpush1.bf16.msra.mxu0 %v7921
        %9784 = vmatprep.subr.bf16.mxu0 %v7930
        %9785 = vmatpush1.bf16.msra.mxu0 %v7929
        %9786 = vmatprep.subr.bf16.mxu0 %v7938
        %9787 = vmatpush1.bf16.msra.mxu0 %v7937
        %9788 = vmatprep.mubr.bf16.mxu0 %v3066
        %9789 = vmatmul.mubr.bf16.gmra.mrb[0].mxu0 %v3065
        %v9790 = vpop.f32.mrb[0].mxu0
        %v9791 = vadd.f32 %v9750, %v9790
        %v9792 = vpop.f32.mrb[0].mxu0
        %v9793 = vadd.f32 %v9752, %v9792
        %v9794 = vpop.f32.mrb[0].mxu0
        %v9795 = vpop.f32.mrb[0].mxu0
        %9796 = vdwg.mxu0
        %9797 = vmatprep.subr.bf16.mxu0 %v7946
        %9798 = vmatpush1.bf16.msra.mxu0 %v7945
        %9799 = vmatprep.subr.bf16.mxu0 %v7954
        %9800 = vmatpush1.bf16.msra.mxu0 %v7953
        %9801 = vmatprep.subr.bf16.mxu0 %v7962
        %9802 = vmatpush1.bf16.msra.mxu0 %v7961
        %9803 = vmatprep.subr.bf16.mxu0 %v7970
        %9804 = vmatpush1.bf16.msra.mxu0 %v7969
        %9805 = vmatprep.subr.bf16.mxu0 %v7978
        %9806 = vmatpush1.bf16.msra.mxu0 %v7977
        %9807 = vmatprep.subr.bf16.mxu0 %v7986
        %9808 = vmatpush1.bf16.msra.mxu0 %v7985
        %9809 = vmatprep.subr.bf16.mxu0 %v7994
        %9810 = vmatpush1.bf16.msra.mxu0 %v7993
        %9811 = vmatprep.subr.bf16.mxu0 %v8002
        %9812 = vmatpush1.bf16.msra.mxu0 %v8001
        %9813 = vmatprep.subr.bf16.mxu0 %v8010
        %9814 = vmatpush1.bf16.msra.mxu0 %v8009
        %9815 = vmatprep.subr.bf16.mxu0 %v8018
        %9816 = vmatpush1.bf16.msra.mxu0 %v8017
        %9817 = vmatprep.subr.bf16.mxu0 %v8026
        %9818 = vmatpush1.bf16.msra.mxu0 %v8025
        %9819 = vmatprep.subr.bf16.mxu0 %v8034
        %9820 = vmatpush1.bf16.msra.mxu0 %v8033
        %9821 = vmatprep.subr.bf16.mxu0 %v8042
        %9822 = vmatpush1.bf16.msra.mxu0 %v8041
        %9823 = vmatprep.subr.bf16.mxu0 %v8050
        %9824 = vmatpush1.bf16.msra.mxu0 %v8049
        %9825 = vmatprep.subr.bf16.mxu0 %v8058
        %9826 = vmatpush1.bf16.msra.mxu0 %v8057
        %9827 = vmatprep.subr.bf16.mxu0 %v8066
        %9828 = vmatpush1.bf16.msra.mxu0 %v8065
        %9829 = vmatprep.mubr.bf16.mxu0 %v3068
        %9830 = vmatmul.mubr.bf16.gmra.mrb[0].mxu0 %v3067
        %v9831 = vpop.f32.mrb[0].mxu0
        %v9832 = vadd.f32 %v9791, %v9831
        %v9833 = vpop.f32.mrb[0].mxu0
        %v9834 = vadd.f32 %v9793, %v9833
        %v9835 = vpop.f32.mrb[0].mxu0
        %v9836 = vpop.f32.mrb[0].mxu0
        %9837 = vdwg.mxu0
        %9838 = vmatprep.subr.bf16.mxu0 %v8074
        %9839 = vmatpush1.bf16.msra.mxu0 %v8073
        %9840 = vmatprep.subr.bf16.mxu0 %v8082
        %9841 = vmatpush1.bf16.msra.mxu0 %v8081
        %9842 = vmatprep.subr.bf16.mxu0 %v8090
        %9843 = vmatpush1.bf16.msra.mxu0 %v8089
        %9844 = vmatprep.subr.bf16.mxu0 %v8098
        %9845 = vmatpush1.bf16.msra.mxu0 %v8097
        %9846 = vmatprep.subr.bf16.mxu0 %v8106
        %9847 = vmatpush1.bf16.msra.mxu0 %v8105
        %9848 = vmatprep.subr.bf16.mxu0 %v8114
        %9849 = vmatpush1.bf16.msra.mxu0 %v8113
        %9850 = vmatprep.subr.bf16.mxu0 %v8122
        %9851 = vmatpush1.bf16.msra.mxu0 %v8121
        %9852 = vmatprep.subr.bf16.mxu0 %v8130
        %9853 = vmatpush1.bf16.msra.mxu0 %v8129
        %9854 = vmatprep.subr.bf16.mxu0 %v8138
        %9855 = vmatpush1.bf16.msra.mxu0 %v8137
        %9856 = vmatprep.subr.bf16.mxu0 %v8146
        %9857 = vmatpush1.bf16.msra.mxu0 %v8145
        %9858 = vmatprep.subr.bf16.mxu0 %v8154
        %9859 = vmatpush1.bf16.msra.mxu0 %v8153
        %9860 = vmatprep.subr.bf16.mxu0 %v8162
        %9861 = vmatpush1.bf16.msra.mxu0 %v8161
        %9862 = vmatprep.subr.bf16.mxu0 %v8170
        %9863 = vmatpush1.bf16.msra.mxu0 %v8169
        %9864 = vmatprep.subr.bf16.mxu0 %v8178
        %9865 = vmatpush1.bf16.msra.mxu0 %v8177
        %9866 = vmatprep.subr.bf16.mxu0 %v8186
        %9867 = vmatpush1.bf16.msra.mxu0 %v8185
        %9868 = vmatprep.subr.bf16.mxu0 %v8194
        %9869 = vmatpush1.bf16.msra.mxu0 %v8193
        %9870 = vmatprep.mubr.bf16.mxu0 %v3070
        %9871 = vmatmul.mubr.bf16.gmra.mrb[0].mxu0 %v3069
        %v9872 = vpop.f32.mrb[0].mxu0
        %v9873 = vadd.f32 %v9832, %v9872
        %v9874 = vpop.f32.mrb[0].mxu0
        %v9875 = vadd.f32 %v9834, %v9874
        %v9876 = vpop.f32.mrb[0].mxu0
        %v9877 = vpop.f32.mrb[0].mxu0
        %9878 = vdwg.mxu0
        %9879 = vmatprep.subr.bf16.mxu0 %v7180
        %9880 = vmatpush1.bf16.msra.mxu0 %v7179
        %9881 = vmatprep.subr.bf16.mxu0 %v7188
        %9882 = vmatpush1.bf16.msra.mxu0 %v7187
        %9883 = vmatprep.subr.bf16.mxu0 %v7196
        %9884 = vmatpush1.bf16.msra.mxu0 %v7195
        %9885 = vmatprep.subr.bf16.mxu0 %v7204
        %9886 = vmatpush1.bf16.msra.mxu0 %v7203
        %9887 = vmatprep.subr.bf16.mxu0 %v7212
        %9888 = vmatpush1.bf16.msra.mxu0 %v7211
        %9889 = vmatprep.subr.bf16.mxu0 %v7220
        %9890 = vmatpush1.bf16.msra.mxu0 %v7219
        %9891 = vmatprep.subr.bf16.mxu0 %v7228
        %9892 = vmatpush1.bf16.msra.mxu0 %v7227
        %9893 = vmatprep.subr.bf16.mxu0 %v7236
        %9894 = vmatpush1.bf16.msra.mxu0 %v7235
        %9895 = vmatprep.subr.bf16.mxu0 %v7244
        %9896 = vmatpush1.bf16.msra.mxu0 %v7243
        %9897 = vmatprep.subr.bf16.mxu0 %v7252
        %9898 = vmatpush1.bf16.msra.mxu0 %v7251
        %9899 = vmatprep.subr.bf16.mxu0 %v7260
        %9900 = vmatpush1.bf16.msra.mxu0 %v7259
        %9901 = vmatprep.subr.bf16.mxu0 %v7268
        %9902 = vmatpush1.bf16.msra.mxu0 %v7267
        %9903 = vmatprep.subr.bf16.mxu0 %v7276
        %9904 = vmatpush1.bf16.msra.mxu0 %v7275
        %9905 = vmatprep.subr.bf16.mxu0 %v7284
        %9906 = vmatpush1.bf16.msra.mxu0 %v7283
        %9907 = vmatprep.subr.bf16.mxu0 %v7292
        %9908 = vmatpush1.bf16.msra.mxu0 %v7291
        %9909 = vmatprep.subr.bf16.mxu0 %v7300
        %9910 = vmatpush1.bf16.msra.mxu0 %v7299
        %9911 = vmatprep.mubr.bf16.mxu0 %v3056
        %9912 = vmatmul.mubr.bf16.gmra.mrb[0].mxu0 %v3055
        %v9913 = vpop.f32.mrb[0].mxu0
        %v9914 = vadd.f32 0.0, %v9913
        %v9915 = vpop.f32.mrb[0].mxu0
        %v9916 = vadd.f32 0.0, %v9915
        %v9917 = vpop.f32.mrb[0].mxu0
        %v9918 = vpop.f32.mrb[0].mxu0
        %9919 = vdwg.mxu0
        %9920 = vmatprep.subr.bf16.mxu0 %v7308
        %9921 = vmatpush1.bf16.msra.mxu0 %v7307
        %9922 = vmatprep.subr.bf16.mxu0 %v7316
        %9923 = vmatpush1.bf16.msra.mxu0 %v7315
        %9924 = vmatprep.subr.bf16.mxu0 %v7324
        %9925 = vmatpush1.bf16.msra.mxu0 %v7323
        %9926 = vmatprep.subr.bf16.mxu0 %v7332
        %9927 = vmatpush1.bf16.msra.mxu0 %v7331
        %9928 = vmatprep.subr.bf16.mxu0 %v7340
        %9929 = vmatpush1.bf16.msra.mxu0 %v7339
        %9930 = vmatprep.subr.bf16.mxu0 %v7348
        %9931 = vmatpush1.bf16.msra.mxu0 %v7347
        %9932 = vmatprep.subr.bf16.mxu0 %v7356
        %9933 = vmatpush1.bf16.msra.mxu0 %v7355
        %9934 = vmatprep.subr.bf16.mxu0 %v7364
        %9935 = vmatpush1.bf16.msra.mxu0 %v7363
        %9936 = vmatprep.subr.bf16.mxu0 %v7372
        %9937 = vmatpush1.bf16.msra.mxu0 %v7371
        %9938 = vmatprep.subr.bf16.mxu0 %v7380
        %9939 = vmatpush1.bf16.msra.mxu0 %v7379
        %9940 = vmatprep.subr.bf16.mxu0 %v7388
        %9941 = vmatpush1.bf16.msra.mxu0 %v7387
        %9942 = vmatprep.subr.bf16.mxu0 %v7396
        %9943 = vmatpush1.bf16.msra.mxu0 %v7395
        %9944 = vmatprep.subr.bf16.mxu0 %v7404
        %9945 = vmatpush1.bf16.msra.mxu0 %v7403
        %9946 = vmatprep.subr.bf16.mxu0 %v7412
        %9947 = vmatpush1.bf16.msra.mxu0 %v7411
        %9948 = vmatprep.subr.bf16.mxu0 %v7420
        %9949 = vmatpush1.bf16.msra.mxu0 %v7419
        %9950 = vmatprep.subr.bf16.mxu0 %v7428
        %9951 = vmatpush1.bf16.msra.mxu0 %v7427
        %9952 = vmatprep.mubr.bf16.mxu0 %v3058
        %9953 = vmatmul.mubr.bf16.gmra.mrb[0].mxu0 %v3057
        %v9954 = vpop.f32.mrb[0].mxu0
        %v9955 = vadd.f32 %v9914, %v9954
        %v9956 = vpop.f32.mrb[0].mxu0
        %v9957 = vadd.f32 %v9916, %v9956
        %v9958 = vpop.f32.mrb[0].mxu0
        %v9959 = vpop.f32.mrb[0].mxu0
        %9960 = vdwg.mxu0
        %9961 = vmatprep.subr.bf16.mxu0 %v7436
        %9962 = vmatpush1.bf16.msra.mxu0 %v7435
        %9963 = vmatprep.subr.bf16.mxu0 %v7444
        %9964 = vmatpush1.bf16.msra.mxu0 %v7443
        %9965 = vmatprep.subr.bf16.mxu0 %v7452
        %9966 = vmatpush1.bf16.msra.mxu0 %v7451
        %9967 = vmatprep.subr.bf16.mxu0 %v7460
        %9968 = vmatpush1.bf16.msra.mxu0 %v7459
        %9969 = vmatprep.subr.bf16.mxu0 %v7468
        %9970 = vmatpush1.bf16.msra.mxu0 %v7467
        %9971 = vmatprep.subr.bf16.mxu0 %v7476
        %9972 = vmatpush1.bf16.msra.mxu0 %v7475
        %9973 = vmatprep.subr.bf16.mxu0 %v7484
        %9974 = vmatpush1.bf16.msra.mxu0 %v7483
        %9975 = vmatprep.subr.bf16.mxu0 %v7492
        %9976 = vmatpush1.bf16.msra.mxu0 %v7491
        %9977 = vmatprep.subr.bf16.mxu0 %v7500
        %9978 = vmatpush1.bf16.msra.mxu0 %v7499
        %9979 = vmatprep.subr.bf16.mxu0 %v7508
        %9980 = vmatpush1.bf16.msra.mxu0 %v7507
        %9981 = vmatprep.subr.bf16.mxu0 %v7516
        %9982 = vmatpush1.bf16.msra.mxu0 %v7515
        %9983 = vmatprep.subr.bf16.mxu0 %v7524
        %9984 = vmatpush1.bf16.msra.mxu0 %v7523
        %9985 = vmatprep.subr.bf16.mxu0 %v7532
        %9986 = vmatpush1.bf16.msra.mxu0 %v7531
        %9987 = vmatprep.subr.bf16.mxu0 %v7540
        %9988 = vmatpush1.bf16.msra.mxu0 %v7539
        %9989 = vmatprep.subr.bf16.mxu0 %v7548
        %9990 = vmatpush1.bf16.msra.mxu0 %v7547
        %9991 = vmatprep.subr.bf16.mxu0 %v7556
        %9992 = vmatpush1.bf16.msra.mxu0 %v7555
        %9993 = vmatprep.mubr.bf16.mxu0 %v3060
        %9994 = vmatmul.mubr.bf16.gmra.mrb[0].mxu0 %v3059
        %v9995 = vpop.f32.mrb[0].mxu0
        %v9996 = vadd.f32 %v9955, %v9995
        %v9997 = vpop.f32.mrb[0].mxu0
        %v9998 = vadd.f32 %v9957, %v9997
        %v9999 = vpop.f32.mrb[0].mxu0
        %v10000 = vpop.f32.mrb[0].mxu0
        %10001 = vdwg.mxu0
        %10002 = vmatprep.subr.bf16.mxu0 %v7564
        %10003 = vmatpush1.bf16.msra.mxu0 %v7563
        %10004 = vmatprep.subr.bf16.mxu0 %v7572
        %10005 = vmatpush1.bf16.msra.mxu0 %v7571
        %10006 = vmatprep.subr.bf16.mxu0 %v7580
        %10007 = vmatpush1.bf16.msra.mxu0 %v7579
        %10008 = vmatprep.subr.bf16.mxu0 %v7588
        %10009 = vmatpush1.bf16.msra.mxu0 %v7587
        %10010 = vmatprep.subr.bf16.mxu0 %v7596
        %10011 = vmatpush1.bf16.msra.mxu0 %v7595
        %10012 = vmatprep.subr.bf16.mxu0 %v7604
        %10013 = vmatpush1.bf16.msra.mxu0 %v7603
        %10014 = vmatprep.subr.bf16.mxu0 %v7612
        %10015 = vmatpush1.bf16.msra.mxu0 %v7611
        %10016 = vmatprep.subr.bf16.mxu0 %v7620
        %10017 = vmatpush1.bf16.msra.mxu0 %v7619
        %10018 = vmatprep.subr.bf16.mxu0 %v7628
        %10019 = vmatpush1.bf16.msra.mxu0 %v7627
        %10020 = vmatprep.subr.bf16.mxu0 %v7636
        %10021 = vmatpush1.bf16.msra.mxu0 %v7635
        %10022 = vmatprep.subr.bf16.mxu0 %v7644
        %10023 = vmatpush1.bf16.msra.mxu0 %v7643
        %10024 = vmatprep.subr.bf16.mxu0 %v7652
        %10025 = vmatpush1.bf16.msra.mxu0 %v7651
        %10026 = vmatprep.subr.bf16.mxu0 %v7660
        %10027 = vmatpush1.bf16.msra.mxu0 %v7659
        %10028 = vmatprep.subr.bf16.mxu0 %v7668
        %10029 = vmatpush1.bf16.msra.mxu0 %v7667
        %10030 = vmatprep.subr.bf16.mxu0 %v7676
        %10031 = vmatpush1.bf16.msra.mxu0 %v7675
        %10032 = vmatprep.subr.bf16.mxu0 %v7684
        %10033 = vmatpush1.bf16.msra.mxu0 %v7683
        %10034 = vmatprep.mubr.bf16.mxu0 %v3062
        %10035 = vmatmul.mubr.bf16.gmra.mrb[0].mxu0 %v3061
        %v10036 = vpop.f32.mrb[0].mxu0
        %v10037 = vadd.f32 %v9996, %v10036
        %v10038 = vpop.f32.mrb[0].mxu0
        %v10039 = vadd.f32 %v9998, %v10038
        %v10040 = vpop.f32.mrb[0].mxu0
        %v10041 = vpop.f32.mrb[0].mxu0
        %10042 = vdwg.mxu0
        %10043 = vmatprep.subr.bf16.mxu0 %v7692
        %10044 = vmatpush1.bf16.msra.mxu0 %v7691
        %10045 = vmatprep.subr.bf16.mxu0 %v7700
        %10046 = vmatpush1.bf16.msra.mxu0 %v7699
        %10047 = vmatprep.subr.bf16.mxu0 %v7708
        %10048 = vmatpush1.bf16.msra.mxu0 %v7707
        %10049 = vmatprep.subr.bf16.mxu0 %v7716
        %10050 = vmatpush1.bf16.msra.mxu0 %v7715
        %10051 = vmatprep.subr.bf16.mxu0 %v7724
        %10052 = vmatpush1.bf16.msra.mxu0 %v7723
        %10053 = vmatprep.subr.bf16.mxu0 %v7732
        %10054 = vmatpush1.bf16.msra.mxu0 %v7731
        %10055 = vmatprep.subr.bf16.mxu0 %v7740
        %10056 = vmatpush1.bf16.msra.mxu0 %v7739
        %10057 = vmatprep.subr.bf16.mxu0 %v7748
        %10058 = vmatpush1.bf16.msra.mxu0 %v7747
        %10059 = vmatprep.subr.bf16.mxu0 %v7756
        %10060 = vmatpush1.bf16.msra.mxu0 %v7755
        %10061 = vmatprep.subr.bf16.mxu0 %v7764
        %10062 = vmatpush1.bf16.msra.mxu0 %v7763
        %10063 = vmatprep.subr.bf16.mxu0 %v7772
        %10064 = vmatpush1.bf16.msra.mxu0 %v7771
        %10065 = vmatprep.subr.bf16.mxu0 %v7780
        %10066 = vmatpush1.bf16.msra.mxu0 %v7779
        %10067 = vmatprep.subr.bf16.mxu0 %v7788
        %10068 = vmatpush1.bf16.msra.mxu0 %v7787
        %10069 = vmatprep.subr.bf16.mxu0 %v7796
        %10070 = vmatpush1.bf16.msra.mxu0 %v7795
        %10071 = vmatprep.subr.bf16.mxu0 %v7804
        %10072 = vmatpush1.bf16.msra.mxu0 %v7803
        %10073 = vmatprep.subr.bf16.mxu0 %v7812
        %10074 = vmatpush1.bf16.msra.mxu0 %v7811
        %10075 = vmatprep.mubr.bf16.mxu0 %v3064
        %10076 = vmatmul.mubr.bf16.gmra.mrb[0].mxu0 %v3063
        %v10077 = vpop.f32.mrb[0].mxu0
        %v10078 = vadd.f32 %v10037, %v10077
        %v10079 = vpop.f32.mrb[0].mxu0
        %v10080 = vadd.f32 %v10039, %v10079
        %v10081 = vpop.f32.mrb[0].mxu0
        %v10082 = vpop.f32.mrb[0].mxu0
        %10083 = vdwg.mxu0
        %10084 = vmatprep.subr.bf16.mxu0 %v7820
        %10085 = vmatpush1.bf16.msra.mxu0 %v7819
        %10086 = vmatprep.subr.bf16.mxu0 %v7828
        %10087 = vmatpush1.bf16.msra.mxu0 %v7827
        %10088 = vmatprep.subr.bf16.mxu0 %v7836
        %10089 = vmatpush1.bf16.msra.mxu0 %v7835
        %10090 = vmatprep.subr.bf16.mxu0 %v7844
        %10091 = vmatpush1.bf16.msra.mxu0 %v7843
        %10092 = vmatprep.subr.bf16.mxu0 %v7852
        %10093 = vmatpush1.bf16.msra.mxu0 %v7851
        %10094 = vmatprep.subr.bf16.mxu0 %v7860
        %10095 = vmatpush1.bf16.msra.mxu0 %v7859
        %10096 = vmatprep.subr.bf16.mxu0 %v7868
        %10097 = vmatpush1.bf16.msra.mxu0 %v7867
        %10098 = vmatprep.subr.bf16.mxu0 %v7876
        %10099 = vmatpush1.bf16.msra.mxu0 %v7875
        %10100 = vmatprep.subr.bf16.mxu0 %v7884
        %10101 = vmatpush1.bf16.msra.mxu0 %v7883
        %10102 = vmatprep.subr.bf16.mxu0 %v7892
        %10103 = vmatpush1.bf16.msra.mxu0 %v7891
        %10104 = vmatprep.subr.bf16.mxu0 %v7900
        %10105 = vmatpush1.bf16.msra.mxu0 %v7899
        %10106 = vmatprep.subr.bf16.mxu0 %v7908
        %10107 = vmatpush1.bf16.msra.mxu0 %v7907
        %10108 = vmatprep.subr.bf16.mxu0 %v7916
        %10109 = vmatpush1.bf16.msra.mxu0 %v7915
        %10110 = vmatprep.subr.bf16.mxu0 %v7924
        %10111 = vmatpush1.bf16.msra.mxu0 %v7923
        %10112 = vmatprep.subr.bf16.mxu0 %v7932
        %10113 = vmatpush1.bf16.msra.mxu0 %v7931
        %10114 = vmatprep.subr.bf16.mxu0 %v7940
        %10115 = vmatpush1.bf16.msra.mxu0 %v7939
        %10116 = vmatprep.mubr.bf16.mxu0 %v3066
        %10117 = vmatmul.mubr.bf16.gmra.mrb[0].mxu0 %v3065
        %v10118 = vpop.f32.mrb[0].mxu0
        %v10119 = vadd.f32 %v10078, %v10118
        %v10120 = vpop.f32.mrb[0].mxu0
        %v10121 = vadd.f32 %v10080, %v10120
        %v10122 = vpop.f32.mrb[0].mxu0
        %v10123 = vpop.f32.mrb[0].mxu0
        %10124 = vdwg.mxu0
        %10125 = vmatprep.subr.bf16.mxu0 %v7948
        %10126 = vmatpush1.bf16.msra.mxu0 %v7947
        %10127 = vmatprep.subr.bf16.mxu0 %v7956
        %10128 = vmatpush1.bf16.msra.mxu0 %v7955
        %10129 = vmatprep.subr.bf16.mxu0 %v7964
        %10130 = vmatpush1.bf16.msra.mxu0 %v7963
        %10131 = vmatprep.subr.bf16.mxu0 %v7972
        %10132 = vmatpush1.bf16.msra.mxu0 %v7971
        %10133 = vmatprep.subr.bf16.mxu0 %v7980
        %10134 = vmatpush1.bf16.msra.mxu0 %v7979
        %10135 = vmatprep.subr.bf16.mxu0 %v7988
        %10136 = vmatpush1.bf16.msra.mxu0 %v7987
        %10137 = vmatprep.subr.bf16.mxu0 %v7996
        %10138 = vmatpush1.bf16.msra.mxu0 %v7995
        %10139 = vmatprep.subr.bf16.mxu0 %v8004
        %10140 = vmatpush1.bf16.msra.mxu0 %v8003
        %10141 = vmatprep.subr.bf16.mxu0 %v8012
        %10142 = vmatpush1.bf16.msra.mxu0 %v8011
        %10143 = vmatprep.subr.bf16.mxu0 %v8020
        %10144 = vmatpush1.bf16.msra.mxu0 %v8019
        %10145 = vmatprep.subr.bf16.mxu0 %v8028
        %10146 = vmatpush1.bf16.msra.mxu0 %v8027
        %10147 = vmatprep.subr.bf16.mxu0 %v8036
        %10148 = vmatpush1.bf16.msra.mxu0 %v8035
        %10149 = vmatprep.subr.bf16.mxu0 %v8044
        %10150 = vmatpush1.bf16.msra.mxu0 %v8043
        %10151 = vmatprep.subr.bf16.mxu0 %v8052
        %10152 = vmatpush1.bf16.msra.mxu0 %v8051
        %10153 = vmatprep.subr.bf16.mxu0 %v8060
        %10154 = vmatpush1.bf16.msra.mxu0 %v8059
        %10155 = vmatprep.subr.bf16.mxu0 %v8068
        %10156 = vmatpush1.bf16.msra.mxu0 %v8067
        %10157 = vmatprep.mubr.bf16.mxu0 %v3068
        %10158 = vmatmul.mubr.bf16.gmra.mrb[0].mxu0 %v3067
        %v10159 = vpop.f32.mrb[0].mxu0
        %v10160 = vadd.f32 %v10119, %v10159
        %v10161 = vpop.f32.mrb[0].mxu0
        %v10162 = vadd.f32 %v10121, %v10161
        %v10163 = vpop.f32.mrb[0].mxu0
        %v10164 = vpop.f32.mrb[0].mxu0
        %10165 = vdwg.mxu0
        %10166 = vmatprep.subr.bf16.mxu0 %v8076
        %10167 = vmatpush1.bf16.msra.mxu0 %v8075
        %10168 = vmatprep.subr.bf16.mxu0 %v8084
        %10169 = vmatpush1.bf16.msra.mxu0 %v8083
        %10170 = vmatprep.subr.bf16.mxu0 %v8092
        %10171 = vmatpush1.bf16.msra.mxu0 %v8091
        %10172 = vmatprep.subr.bf16.mxu0 %v8100
        %10173 = vmatpush1.bf16.msra.mxu0 %v8099
        %10174 = vmatprep.subr.bf16.mxu0 %v8108
        %10175 = vmatpush1.bf16.msra.mxu0 %v8107
        %10176 = vmatprep.subr.bf16.mxu0 %v8116
        %10177 = vmatpush1.bf16.msra.mxu0 %v8115
        %10178 = vmatprep.subr.bf16.mxu0 %v8124
        %10179 = vmatpush1.bf16.msra.mxu0 %v8123
        %10180 = vmatprep.subr.bf16.mxu0 %v8132
        %10181 = vmatpush1.bf16.msra.mxu0 %v8131
        %10182 = vmatprep.subr.bf16.mxu0 %v8140
        %10183 = vmatpush1.bf16.msra.mxu0 %v8139
        %10184 = vmatprep.subr.bf16.mxu0 %v8148
        %10185 = vmatpush1.bf16.msra.mxu0 %v8147
        %10186 = vmatprep.subr.bf16.mxu0 %v8156
        %10187 = vmatpush1.bf16.msra.mxu0 %v8155
        %10188 = vmatprep.subr.bf16.mxu0 %v8164
        %10189 = vmatpush1.bf16.msra.mxu0 %v8163
        %10190 = vmatprep.subr.bf16.mxu0 %v8172
        %10191 = vmatpush1.bf16.msra.mxu0 %v8171
        %10192 = vmatprep.subr.bf16.mxu0 %v8180
        %10193 = vmatpush1.bf16.msra.mxu0 %v8179
        %10194 = vmatprep.subr.bf16.mxu0 %v8188
        %10195 = vmatpush1.bf16.msra.mxu0 %v8187
        %10196 = vmatprep.subr.bf16.mxu0 %v8196
        %10197 = vmatpush1.bf16.msra.mxu0 %v8195
        %10198 = vmatprep.mubr.bf16.mxu0 %v3070
        %10199 = vmatmul.mubr.bf16.gmra.mrb[0].mxu0 %v3069
        %v10200 = vpop.f32.mrb[0].mxu0
        %v10201 = vadd.f32 %v10160, %v10200
        %v10202 = vpop.f32.mrb[0].mxu0
        %v10203 = vadd.f32 %v10162, %v10202
        %v10204 = vpop.f32.mrb[0].mxu0
        %v10205 = vpop.f32.mrb[0].mxu0
        %10206 = vdwg.mxu0
        %10207 = vmatprep.subr.bf16.mxu0 %v7182
        %10208 = vmatpush1.bf16.msra.mxu0 %v7181
        %10209 = vmatprep.subr.bf16.mxu0 %v7190
        %10210 = vmatpush1.bf16.msra.mxu0 %v7189
        %10211 = vmatprep.subr.bf16.mxu0 %v7198
        %10212 = vmatpush1.bf16.msra.mxu0 %v7197
        %10213 = vmatprep.subr.bf16.mxu0 %v7206
        %10214 = vmatpush1.bf16.msra.mxu0 %v7205
        %10215 = vmatprep.subr.bf16.mxu0 %v7214
        %10216 = vmatpush1.bf16.msra.mxu0 %v7213
        %10217 = vmatprep.subr.bf16.mxu0 %v7222
        %10218 = vmatpush1.bf16.msra.mxu0 %v7221
        %10219 = vmatprep.subr.bf16.mxu0 %v7230
        %10220 = vmatpush1.bf16.msra.mxu0 %v7229
        %10221 = vmatprep.subr.bf16.mxu0 %v7238
        %10222 = vmatpush1.bf16.msra.mxu0 %v7237
        %10223 = vmatprep.subr.bf16.mxu0 %v7246
        %10224 = vmatpush1.bf16.msra.mxu0 %v7245
        %10225 = vmatprep.subr.bf16.mxu0 %v7254
        %10226 = vmatpush1.bf16.msra.mxu0 %v7253
        %10227 = vmatprep.subr.bf16.mxu0 %v7262
        %10228 = vmatpush1.bf16.msra.mxu0 %v7261
        %10229 = vmatprep.subr.bf16.mxu0 %v7270
        %10230 = vmatpush1.bf16.msra.mxu0 %v7269
        %10231 = vmatprep.subr.bf16.mxu0 %v7278
        %10232 = vmatpush1.bf16.msra.mxu0 %v7277
        %10233 = vmatprep.subr.bf16.mxu0 %v7286
        %10234 = vmatpush1.bf16.msra.mxu0 %v7285
        %10235 = vmatprep.subr.bf16.mxu0 %v7294
        %10236 = vmatpush1.bf16.msra.mxu0 %v7293
        %10237 = vmatprep.subr.bf16.mxu0 %v7302
        %10238 = vmatpush1.bf16.msra.mxu0 %v7301
        %10239 = vmatprep.mubr.bf16.mxu0 %v3056
        %10240 = vmatmul.mubr.bf16.gmra.mrb[0].mxu0 %v3055
        %v10241 = vpop.f32.mrb[0].mxu0
        %v10242 = vadd.f32 0.0, %v10241
        %v10243 = vpop.f32.mrb[0].mxu0
        %v10244 = vadd.f32 0.0, %v10243
        %v10245 = vpop.f32.mrb[0].mxu0
        %v10246 = vpop.f32.mrb[0].mxu0
        %10247 = vdwg.mxu0
        %10248 = vmatprep.subr.bf16.mxu0 %v7310
        %10249 = vmatpush1.bf16.msra.mxu0 %v7309
        %10250 = vmatprep.subr.bf16.mxu0 %v7318
        %10251 = vmatpush1.bf16.msra.mxu0 %v7317
        %10252 = vmatprep.subr.bf16.mxu0 %v7326
        %10253 = vmatpush1.bf16.msra.mxu0 %v7325
        %10254 = vmatprep.subr.bf16.mxu0 %v7334
        %10255 = vmatpush1.bf16.msra.mxu0 %v7333
        %10256 = vmatprep.subr.bf16.mxu0 %v7342
        %10257 = vmatpush1.bf16.msra.mxu0 %v7341
        %10258 = vmatprep.subr.bf16.mxu0 %v7350
        %10259 = vmatpush1.bf16.msra.mxu0 %v7349
        %10260 = vmatprep.subr.bf16.mxu0 %v7358
        %10261 = vmatpush1.bf16.msra.mxu0 %v7357
        %10262 = vmatprep.subr.bf16.mxu0 %v7366
        %10263 = vmatpush1.bf16.msra.mxu0 %v7365
        %10264 = vmatprep.subr.bf16.mxu0 %v7374
        %10265 = vmatpush1.bf16.msra.mxu0 %v7373
        %10266 = vmatprep.subr.bf16.mxu0 %v7382
        %10267 = vmatpush1.bf16.msra.mxu0 %v7381
        %10268 = vmatprep.subr.bf16.mxu0 %v7390
        %10269 = vmatpush1.bf16.msra.mxu0 %v7389
        %10270 = vmatprep.subr.bf16.mxu0 %v7398
        %10271 = vmatpush1.bf16.msra.mxu0 %v7397
        %10272 = vmatprep.subr.bf16.mxu0 %v7406
        %10273 = vmatpush1.bf16.msra.mxu0 %v7405
        %10274 = vmatprep.subr.bf16.mxu0 %v7414
        %10275 = vmatpush1.bf16.msra.mxu0 %v7413
        %10276 = vmatprep.subr.bf16.mxu0 %v7422
        %10277 = vmatpush1.bf16.msra.mxu0 %v7421
        %10278 = vmatprep.subr.bf16.mxu0 %v7430
        %10279 = vmatpush1.bf16.msra.mxu0 %v7429
        %10280 = vmatprep.mubr.bf16.mxu0 %v3058
        %10281 = vmatmul.mubr.bf16.gmra.mrb[0].mxu0 %v3057
        %v10282 = vpop.f32.mrb[0].mxu0
        %v10283 = vadd.f32 %v10242, %v10282
        %v10284 = vpop.f32.mrb[0].mxu0
        %v10285 = vadd.f32 %v10244, %v10284
        %v10286 = vpop.f32.mrb[0].mxu0
        %v10287 = vpop.f32.mrb[0].mxu0
        %10288 = vdwg.mxu0
        %10289 = vmatprep.subr.bf16.mxu0 %v7438
        %10290 = vmatpush1.bf16.msra.mxu0 %v7437
        %10291 = vmatprep.subr.bf16.mxu0 %v7446
        %10292 = vmatpush1.bf16.msra.mxu0 %v7445
        %10293 = vmatprep.subr.bf16.mxu0 %v7454
        %10294 = vmatpush1.bf16.msra.mxu0 %v7453
        %10295 = vmatprep.subr.bf16.mxu0 %v7462
        %10296 = vmatpush1.bf16.msra.mxu0 %v7461
        %10297 = vmatprep.subr.bf16.mxu0 %v7470
        %10298 = vmatpush1.bf16.msra.mxu0 %v7469
        %10299 = vmatprep.subr.bf16.mxu0 %v7478
        %10300 = vmatpush1.bf16.msra.mxu0 %v7477
        %10301 = vmatprep.subr.bf16.mxu0 %v7486
        %10302 = vmatpush1.bf16.msra.mxu0 %v7485
        %10303 = vmatprep.subr.bf16.mxu0 %v7494
        %10304 = vmatpush1.bf16.msra.mxu0 %v7493
        %10305 = vmatprep.subr.bf16.mxu0 %v7502
        %10306 = vmatpush1.bf16.msra.mxu0 %v7501
        %10307 = vmatprep.subr.bf16.mxu0 %v7510
        %10308 = vmatpush1.bf16.msra.mxu0 %v7509
        %10309 = vmatprep.subr.bf16.mxu0 %v7518
        %10310 = vmatpush1.bf16.msra.mxu0 %v7517
        %10311 = vmatprep.subr.bf16.mxu0 %v7526
        %10312 = vmatpush1.bf16.msra.mxu0 %v7525
        %10313 = vmatprep.subr.bf16.mxu0 %v7534
        %10314 = vmatpush1.bf16.msra.mxu0 %v7533
        %10315 = vmatprep.subr.bf16.mxu0 %v7542
        %10316 = vmatpush1.bf16.msra.mxu0 %v7541
        %10317 = vmatprep.subr.bf16.mxu0 %v7550
        %10318 = vmatpush1.bf16.msra.mxu0 %v7549
        %10319 = vmatprep.subr.bf16.mxu0 %v7558
        %10320 = vmatpush1.bf16.msra.mxu0 %v7557
        %10321 = vmatprep.mubr.bf16.mxu0 %v3060
        %10322 = vmatmul.mubr.bf16.gmra.mrb[0].mxu0 %v3059
        %v10323 = vpop.f32.mrb[0].mxu0
        %v10324 = vadd.f32 %v10283, %v10323
        %v10325 = vpop.f32.mrb[0].mxu0
        %v10326 = vadd.f32 %v10285, %v10325
        %v10327 = vpop.f32.mrb[0].mxu0
        %v10328 = vpop.f32.mrb[0].mxu0
        %10329 = vdwg.mxu0
        %10330 = vmatprep.subr.bf16.mxu0 %v7566
        %10331 = vmatpush1.bf16.msra.mxu0 %v7565
        %10332 = vmatprep.subr.bf16.mxu0 %v7574
        %10333 = vmatpush1.bf16.msra.mxu0 %v7573
        %10334 = vmatprep.subr.bf16.mxu0 %v7582
        %10335 = vmatpush1.bf16.msra.mxu0 %v7581
        %10336 = vmatprep.subr.bf16.mxu0 %v7590
        %10337 = vmatpush1.bf16.msra.mxu0 %v7589
        %10338 = vmatprep.subr.bf16.mxu0 %v7598
        %10339 = vmatpush1.bf16.msra.mxu0 %v7597
        %10340 = vmatprep.subr.bf16.mxu0 %v7606
        %10341 = vmatpush1.bf16.msra.mxu0 %v7605
        %10342 = vmatprep.subr.bf16.mxu0 %v7614
        %10343 = vmatpush1.bf16.msra.mxu0 %v7613
        %10344 = vmatprep.subr.bf16.mxu0 %v7622
        %10345 = vmatpush1.bf16.msra.mxu0 %v7621
        %10346 = vmatprep.subr.bf16.mxu0 %v7630
        %10347 = vmatpush1.bf16.msra.mxu0 %v7629
        %10348 = vmatprep.subr.bf16.mxu0 %v7638
        %10349 = vmatpush1.bf16.msra.mxu0 %v7637
        %10350 = vmatprep.subr.bf16.mxu0 %v7646
        %10351 = vmatpush1.bf16.msra.mxu0 %v7645
        %10352 = vmatprep.subr.bf16.mxu0 %v7654
        %10353 = vmatpush1.bf16.msra.mxu0 %v7653
        %10354 = vmatprep.subr.bf16.mxu0 %v7662
        %10355 = vmatpush1.bf16.msra.mxu0 %v7661
        %10356 = vmatprep.subr.bf16.mxu0 %v7670
        %10357 = vmatpush1.bf16.msra.mxu0 %v7669
        %10358 = vmatprep.subr.bf16.mxu0 %v7678
        %10359 = vmatpush1.bf16.msra.mxu0 %v7677
        %10360 = vmatprep.subr.bf16.mxu0 %v7686
        %10361 = vmatpush1.bf16.msra.mxu0 %v7685
        %10362 = vmatprep.mubr.bf16.mxu0 %v3062
        %10363 = vmatmul.mubr.bf16.gmra.mrb[0].mxu0 %v3061
        %v10364 = vpop.f32.mrb[0].mxu0
        %v10365 = vadd.f32 %v10324, %v10364
        %v10366 = vpop.f32.mrb[0].mxu0
        %v10367 = vadd.f32 %v10326, %v10366
        %v10368 = vpop.f32.mrb[0].mxu0
        %v10369 = vpop.f32.mrb[0].mxu0
        %10370 = vdwg.mxu0
        %10371 = vmatprep.subr.bf16.mxu0 %v7694
        %10372 = vmatpush1.bf16.msra.mxu0 %v7693
        %10373 = vmatprep.subr.bf16.mxu0 %v7702
        %10374 = vmatpush1.bf16.msra.mxu0 %v7701
        %10375 = vmatprep.subr.bf16.mxu0 %v7710
        %10376 = vmatpush1.bf16.msra.mxu0 %v7709
        %10377 = vmatprep.subr.bf16.mxu0 %v7718
        %10378 = vmatpush1.bf16.msra.mxu0 %v7717
        %10379 = vmatprep.subr.bf16.mxu0 %v7726
        %10380 = vmatpush1.bf16.msra.mxu0 %v7725
        %10381 = vmatprep.subr.bf16.mxu0 %v7734
        %10382 = vmatpush1.bf16.msra.mxu0 %v7733
        %10383 = vmatprep.subr.bf16.mxu0 %v7742
        %10384 = vmatpush1.bf16.msra.mxu0 %v7741
        %10385 = vmatprep.subr.bf16.mxu0 %v7750
        %10386 = vmatpush1.bf16.msra.mxu0 %v7749
        %10387 = vmatprep.subr.bf16.mxu0 %v7758
        %10388 = vmatpush1.bf16.msra.mxu0 %v7757
        %10389 = vmatprep.subr.bf16.mxu0 %v7766
        %10390 = vmatpush1.bf16.msra.mxu0 %v7765
        %10391 = vmatprep.subr.bf16.mxu0 %v7774
        %10392 = vmatpush1.bf16.msra.mxu0 %v7773
        %10393 = vmatprep.subr.bf16.mxu0 %v7782
        %10394 = vmatpush1.bf16.msra.mxu0 %v7781
        %10395 = vmatprep.subr.bf16.mxu0 %v7790
        %10396 = vmatpush1.bf16.msra.mxu0 %v7789
        %10397 = vmatprep.subr.bf16.mxu0 %v7798
        %10398 = vmatpush1.bf16.msra.mxu0 %v7797
        %10399 = vmatprep.subr.bf16.mxu0 %v7806
        %10400 = vmatpush1.bf16.msra.mxu0 %v7805
        %10401 = vmatprep.subr.bf16.mxu0 %v7814
        %10402 = vmatpush1.bf16.msra.mxu0 %v7813
        %10403 = vmatprep.mubr.bf16.mxu0 %v3064
        %10404 = vmatmul.mubr.bf16.gmra.mrb[0].mxu0 %v3063
        %v10405 = vpop.f32.mrb[0].mxu0
        %v10406 = vadd.f32 %v10365, %v10405
        %v10407 = vpop.f32.mrb[0].mxu0
        %v10408 = vadd.f32 %v10367, %v10407
        %v10409 = vpop.f32.mrb[0].mxu0
        %v10410 = vpop.f32.mrb[0].mxu0
        %10411 = vdwg.mxu0
        %10412 = vmatprep.subr.bf16.mxu0 %v7822
        %10413 = vmatpush1.bf16.msra.mxu0 %v7821
        %10414 = vmatprep.subr.bf16.mxu0 %v7830
        %10415 = vmatpush1.bf16.msra.mxu0 %v7829
        %10416 = vmatprep.subr.bf16.mxu0 %v7838
        %10417 = vmatpush1.bf16.msra.mxu0 %v7837
        %10418 = vmatprep.subr.bf16.mxu0 %v7846
        %10419 = vmatpush1.bf16.msra.mxu0 %v7845
        %10420 = vmatprep.subr.bf16.mxu0 %v7854
        %10421 = vmatpush1.bf16.msra.mxu0 %v7853
        %10422 = vmatprep.subr.bf16.mxu0 %v7862
        %10423 = vmatpush1.bf16.msra.mxu0 %v7861
        %10424 = vmatprep.subr.bf16.mxu0 %v7870
        %10425 = vmatpush1.bf16.msra.mxu0 %v7869
        %10426 = vmatprep.subr.bf16.mxu0 %v7878
        %10427 = vmatpush1.bf16.msra.mxu0 %v7877
        %10428 = vmatprep.subr.bf16.mxu0 %v7886
        %10429 = vmatpush1.bf16.msra.mxu0 %v7885
        %10430 = vmatprep.subr.bf16.mxu0 %v7894
        %10431 = vmatpush1.bf16.msra.mxu0 %v7893
        %10432 = vmatprep.subr.bf16.mxu0 %v7902
        %10433 = vmatpush1.bf16.msra.mxu0 %v7901
        %10434 = vmatprep.subr.bf16.mxu0 %v7910
        %10435 = vmatpush1.bf16.msra.mxu0 %v7909
        %10436 = vmatprep.subr.bf16.mxu0 %v7918
        %10437 = vmatpush1.bf16.msra.mxu0 %v7917
        %10438 = vmatprep.subr.bf16.mxu0 %v7926
        %10439 = vmatpush1.bf16.msra.mxu0 %v7925
        %10440 = vmatprep.subr.bf16.mxu0 %v7934
        %10441 = vmatpush1.bf16.msra.mxu0 %v7933
        %10442 = vmatprep.subr.bf16.mxu0 %v7942
        %10443 = vmatpush1.bf16.msra.mxu0 %v7941
        %10444 = vmatprep.mubr.bf16.mxu0 %v3066
        %10445 = vmatmul.mubr.bf16.gmra.mrb[0].mxu0 %v3065
        %v10446 = vpop.f32.mrb[0].mxu0
        %v10447 = vadd.f32 %v10406, %v10446
        %v10448 = vpop.f32.mrb[0].mxu0
        %v10449 = vadd.f32 %v10408, %v10448
        %v10450 = vpop.f32.mrb[0].mxu0
        %v10451 = vpop.f32.mrb[0].mxu0
        %10452 = vdwg.mxu0
        %10453 = vmatprep.subr.bf16.mxu0 %v7950
        %10454 = vmatpush1.bf16.msra.mxu0 %v7949
        %10455 = vmatprep.subr.bf16.mxu0 %v7958
        %10456 = vmatpush1.bf16.msra.mxu0 %v7957
        %10457 = vmatprep.subr.bf16.mxu0 %v7966
        %10458 = vmatpush1.bf16.msra.mxu0 %v7965
        %10459 = vmatprep.subr.bf16.mxu0 %v7974
        %10460 = vmatpush1.bf16.msra.mxu0 %v7973
        %10461 = vmatprep.subr.bf16.mxu0 %v7982
        %10462 = vmatpush1.bf16.msra.mxu0 %v7981
        %10463 = vmatprep.subr.bf16.mxu0 %v7990
        %10464 = vmatpush1.bf16.msra.mxu0 %v7989
        %10465 = vmatprep.subr.bf16.mxu0 %v7998
        %10466 = vmatpush1.bf16.msra.mxu0 %v7997
        %10467 = vmatprep.subr.bf16.mxu0 %v8006
        %10468 = vmatpush1.bf16.msra.mxu0 %v8005
        %10469 = vmatprep.subr.bf16.mxu0 %v8014
        %10470 = vmatpush1.bf16.msra.mxu0 %v8013
        %10471 = vmatprep.subr.bf16.mxu0 %v8022
        %10472 = vmatpush1.bf16.msra.mxu0 %v8021
        %10473 = vmatprep.subr.bf16.mxu0 %v8030
        %10474 = vmatpush1.bf16.msra.mxu0 %v8029
        %10475 = vmatprep.subr.bf16.mxu0 %v8038
        %10476 = vmatpush1.bf16.msra.mxu0 %v8037
        %10477 = vmatprep.subr.bf16.mxu0 %v8046
        %10478 = vmatpush1.bf16.msra.mxu0 %v8045
        %10479 = vmatprep.subr.bf16.mxu0 %v8054
        %10480 = vmatpush1.bf16.msra.mxu0 %v8053
        %10481 = vmatprep.subr.bf16.mxu0 %v8062
        %10482 = vmatpush1.bf16.msra.mxu0 %v8061
        %10483 = vmatprep.subr.bf16.mxu0 %v8070
        %10484 = vmatpush1.bf16.msra.mxu0 %v8069
        %10485 = vmatprep.mubr.bf16.mxu0 %v3068
        %10486 = vmatmul.mubr.bf16.gmra.mrb[0].mxu0 %v3067
        %v10487 = vpop.f32.mrb[0].mxu0
        %v10488 = vadd.f32 %v10447, %v10487
        %v10489 = vpop.f32.mrb[0].mxu0
        %v10490 = vadd.f32 %v10449, %v10489
        %v10491 = vpop.f32.mrb[0].mxu0
        %v10492 = vpop.f32.mrb[0].mxu0
        %10493 = vdwg.mxu0
        %10494 = vmatprep.subr.bf16.mxu0 %v8078
        %10495 = vmatpush1.bf16.msra.mxu0 %v8077
        %10496 = vmatprep.subr.bf16.mxu0 %v8086
        %10497 = vmatpush1.bf16.msra.mxu0 %v8085
        %10498 = vmatprep.subr.bf16.mxu0 %v8094
        %10499 = vmatpush1.bf16.msra.mxu0 %v8093
        %10500 = vmatprep.subr.bf16.mxu0 %v8102
        %10501 = vmatpush1.bf16.msra.mxu0 %v8101
        %10502 = vmatprep.subr.bf16.mxu0 %v8110
        %10503 = vmatpush1.bf16.msra.mxu0 %v8109
        %10504 = vmatprep.subr.bf16.mxu0 %v8118
        %10505 = vmatpush1.bf16.msra.mxu0 %v8117
        %10506 = vmatprep.subr.bf16.mxu0 %v8126
        %10507 = vmatpush1.bf16.msra.mxu0 %v8125
        %10508 = vmatprep.subr.bf16.mxu0 %v8134
        %10509 = vmatpush1.bf16.msra.mxu0 %v8133
        %10510 = vmatprep.subr.bf16.mxu0 %v8142
        %10511 = vmatpush1.bf16.msra.mxu0 %v8141
        %10512 = vmatprep.subr.bf16.mxu0 %v8150
        %10513 = vmatpush1.bf16.msra.mxu0 %v8149
        %10514 = vmatprep.subr.bf16.mxu0 %v8158
        %10515 = vmatpush1.bf16.msra.mxu0 %v8157
        %10516 = vmatprep.subr.bf16.mxu0 %v8166
        %10517 = vmatpush1.bf16.msra.mxu0 %v8165
        %10518 = vmatprep.subr.bf16.mxu0 %v8174
        %10519 = vmatpush1.bf16.msra.mxu0 %v8173
        %10520 = vmatprep.subr.bf16.mxu0 %v8182
        %10521 = vmatpush1.bf16.msra.mxu0 %v8181
        %10522 = vmatprep.subr.bf16.mxu0 %v8190
        %10523 = vmatpush1.bf16.msra.mxu0 %v8189
        %10524 = vmatprep.subr.bf16.mxu0 %v8198
        %10525 = vmatpush1.bf16.msra.mxu0 %v8197
        %10526 = vmatprep.mubr.bf16.mxu0 %v3070
        %10527 = vmatmul.mubr.bf16.gmra.mrb[0].mxu0 %v3069
        %v10528 = vpop.f32.mrb[0].mxu0
        %v10529 = vadd.f32 %v10488, %v10528
        %v10530 = vpop.f32.mrb[0].mxu0
        %v10531 = vadd.f32 %v10490, %v10530
        %v10532 = vpop.f32.mrb[0].mxu0
        %v10533 = vpop.f32.mrb[0].mxu0
        %10534 = vdwg.mxu0
        %v10535 = vadd.f32 %v3071, %v9545
        %v10536 = vadd.f32 %v3072, %v9547
        %v10537 = vadd.f32 %v3073, %v9873
        %v10538 = vadd.f32 %v3074, %v9875
        %v10539 = vadd.f32 %v3075, %v10201
        %v10540 = vadd.f32 %v3076, %v10203
        %v10541 = vadd.f32 %v3077, %v10529
        %v10542 = vadd.f32 %v3078, %v10531
        %10543 = vst [vmem:[#allocation2] sm:$0xff] %v10535
        %10544 = vst [vmem:[#allocation2 + $0x8] sm:$0xff] %v10536
        %10545 = vst [vmem:[#allocation2 + $0x10] sm:$0xff] %v10537
        %10546 = vst [vmem:[#allocation2 + $0x18] sm:$0xff] %v10538
        %10547 = vst [vmem:[#allocation2 + $0x20] sm:$0xff] %v10539
        %10548 = vst [vmem:[#allocation2 + $0x28] sm:$0xff] %v10540
        %10549 = vst [vmem:[#allocation2 + $0x30] sm:$0xff] %v10541
        %10550 = vst [vmem:[#allocation2 + $0x38] sm:$0xff] %v10542
        // Predicated region
        $region72: #{diagnosis_forward.1} parent=62 // pred_check
          %p10551 = pneg %p2418
        $region73: #{diagnosis_forward.1} parent=62 // pred_check_branch
          %10553 = sbr.rel (%p10551) target = $region75
        $region74: #{diagnosis_forward.1} parent=62 // pred_region
          %v10554 = vld [vmem:[#allocation2] sm:$0xff]
          %v10555 = vld [vmem:[#allocation2 + $0x8] sm:$0xff]
          %v10556 = vld [vmem:[#allocation2 + $0x10] sm:$0xff]
          %v10557 = vld [vmem:[#allocation2 + $0x18] sm:$0xff]
          %v10558 = vld [vmem:[#allocation2 + $0x20] sm:$0xff]
          %v10559 = vld [vmem:[#allocation2 + $0x28] sm:$0xff]
          %v10560 = vld [vmem:[#allocation2 + $0x30] sm:$0xff]
          %v10561 = vld [vmem:[#allocation2 + $0x38] sm:$0xff]
          %v10562 = vld [vmem:[%s2405] sm:$0xff]
          %v10564 = vlaneseq
          %v10565 = vshrl.u32 %v10564, 7
          %v10566 = vsub.s32 0, %v10565
          %v10567 = vrot.slane %v10562, %v10566
          %v10568 = vlaneseq
          %v10569 = vshrl.u32 %v10568, 7
          %v10570 = vsub.s32 1, %v10569
          %v10571 = vrot.slane %v10562, %v10570
          %v10572 = vlaneseq
          %v10573 = vshrl.u32 %v10572, 7
          %v10574 = vsub.s32 2, %v10573
          %v10575 = vrot.slane %v10562, %v10574
          %v10576 = vlaneseq
          %v10577 = vshrl.u32 %v10576, 7
          %v10578 = vsub.s32 3, %v10577
          %v10579 = vrot.slane %v10562, %v10578
          %v10580 = vlaneseq
          %v10581 = vshrl.u32 %v10580, 7
          %v10582 = vsub.s32 4, %v10581
          %v10583 = vrot.slane %v10562, %v10582
          %v10584 = vlaneseq
          %v10585 = vshrl.u32 %v10584, 7
          %v10586 = vsub.s32 5, %v10585
          %v10587 = vrot.slane %v10562, %v10586
          %v10588 = vlaneseq
          %v10589 = vshrl.u32 %v10588, 7
          %v10590 = vsub.s32 6, %v10589
          %v10591 = vrot.slane %v10562, %v10590
          %v10592 = vlaneseq
          %v10593 = vshrl.u32 %v10592, 7
          %v10594 = vsub.s32 7, %v10593
          %v10595 = vrot.slane %v10562, %v10594
          %v10604 = vadd.f32 %v10554, %v10567
          %v10605 = vadd.f32 %v10555, %v10571
          %v10606 = vadd.f32 %v10556, %v10575
          %v10607 = vadd.f32 %v10557, %v10579
          %v10608 = vadd.f32 %v10558, %v10583
          %v10609 = vadd.f32 %v10559, %v10587
          %v10610 = vadd.f32 %v10560, %v10591
          %v10611 = vadd.f32 %v10561, %v10595
          %v10612 = vmax.f32 %v10604, 0.0
          %v10613 = vmax.f32 %v10605, 0.0
          %v10614 = vmax.f32 %v10606, 0.0
          %v10615 = vmax.f32 %v10607, 0.0
          %v10616 = vmax.f32 %v10608, 0.0
          %v10617 = vmax.f32 %v10609, 0.0
          %v10618 = vmax.f32 %v10610, 0.0
          %v10619 = vmax.f32 %v10611, 0.0
          %v10620 = vpack.c.bf16 %v10612, %v10612
          %v10621 = vpack.c.bf16 %v10613, %v10613
          %v10622 = vpack.c.bf16 %v10614, %v10614
          %v10623 = vpack.c.bf16 %v10615, %v10615
          %v10624 = vpack.c.bf16 %v10616, %v10616
          %v10625 = vpack.c.bf16 %v10617, %v10617
          %v10626 = vpack.c.bf16 %v10618, %v10618
          %v10627 = vpack.c.bf16 %v10619, %v10619
          %v10628 = vld [vmem:[%s2411] sm:$0xf]
          %v10629 = vld [vmem:[%s2411 + $0x4] sm:$0xf]
          %v10630 = vld [vmem:[%s2411 + $0x8] sm:$0xf]
          %v10631 = vld [vmem:[%s2411 + $0xc] sm:$0xf]
          %v10632 = vld [vmem:[%s2411 + $0x10] sm:$0xf]
          %v10633 = vld [vmem:[%s2411 + $0x14] sm:$0xf]
          %v10634 = vld [vmem:[%s2411 + $0x18] sm:$0xf]
          %v10635 = vld [vmem:[%s2411 + $0x1c] sm:$0xf]
          %v10636 = vld [vmem:[%s2411 + $0x20] sm:$0xf]
          %v10637 = vld [vmem:[%s2411 + $0x24] sm:$0xf]
          %v10638 = vld [vmem:[%s2411 + $0x28] sm:$0xf]
          %v10639 = vld [vmem:[%s2411 + $0x2c] sm:$0xf]
          %v10640 = vld [vmem:[%s2411 + $0x30] sm:$0xf]
          %v10641 = vld [vmem:[%s2411 + $0x34] sm:$0xf]
          %v10642 = vld [vmem:[%s2411 + $0x38] sm:$0xf]
          %v10643 = vld [vmem:[%s2411 + $0x3c] sm:$0xf]
          %v10644 = vld [vmem:[%s2411 + $0x40] sm:$0xf]
          %v10645 = vld [vmem:[%s2411 + $0x44] sm:$0xf]
          %v10646 = vld [vmem:[%s2411 + $0x48] sm:$0xf]
          %v10647 = vld [vmem:[%s2411 + $0x4c] sm:$0xf]
          %v10648 = vld [vmem:[%s2411 + $0x50] sm:$0xf]
          %v10649 = vld [vmem:[%s2411 + $0x54] sm:$0xf]
          %v10650 = vld [vmem:[%s2411 + $0x58] sm:$0xf]
          %v10651 = vld [vmem:[%s2411 + $0x5c] sm:$0xf]
          %v10652 = vld [vmem:[%s2411 + $0x60] sm:$0xf]
          %v10653 = vld [vmem:[%s2411 + $0x64] sm:$0xf]
          %v10654 = vld [vmem:[%s2411 + $0x68] sm:$0xf]
          %v10655 = vld [vmem:[%s2411 + $0x6c] sm:$0xf]
          %v10656 = vld [vmem:[%s2411 + $0x70] sm:$0xf]
          %v10657 = vld [vmem:[%s2411 + $0x74] sm:$0xf]
          %v10658 = vld [vmem:[%s2411 + $0x78] sm:$0xf]
          %v10659 = vld [vmem:[%s2411 + $0x7c] sm:$0xf]
          %v10660 = vld [vmem:[%s2411 + $0x80] sm:$0xf]
          %v10661 = vld [vmem:[%s2411 + $0x84] sm:$0xf]
          %v10662 = vld [vmem:[%s2411 + $0x88] sm:$0xf]
          %v10663 = vld [vmem:[%s2411 + $0x8c] sm:$0xf]
          %v10664 = vld [vmem:[%s2411 + $0x90] sm:$0xf]
          %v10665 = vld [vmem:[%s2411 + $0x94] sm:$0xf]
          %v10666 = vld [vmem:[%s2411 + $0x98] sm:$0xf]
          %v10667 = vld [vmem:[%s2411 + $0x9c] sm:$0xf]
          %v10668 = vld [vmem:[%s2411 + $0xa0] sm:$0xf]
          %v10669 = vld [vmem:[%s2411 + $0xa4] sm:$0xf]
          %v10670 = vld [vmem:[%s2411 + $0xa8] sm:$0xf]
          %v10671 = vld [vmem:[%s2411 + $0xac] sm:$0xf]
          %v10672 = vld [vmem:[%s2411 + $0xb0] sm:$0xf]
          %v10673 = vld [vmem:[%s2411 + $0xb4] sm:$0xf]
          %v10674 = vld [vmem:[%s2411 + $0xb8] sm:$0xf]
          %v10675 = vld [vmem:[%s2411 + $0xbc] sm:$0xf]
          %v10676 = vld [vmem:[%s2411 + $0xc0] sm:$0xf]
          %v10677 = vld [vmem:[%s2411 + $0xc4] sm:$0xf]
          %v10678 = vld [vmem:[%s2411 + $0xc8] sm:$0xf]
          %v10679 = vld [vmem:[%s2411 + $0xcc] sm:$0xf]
          %v10680 = vld [vmem:[%s2411 + $0xd0] sm:$0xf]
          %v10681 = vld [vmem:[%s2411 + $0xd4] sm:$0xf]
          %v10682 = vld [vmem:[%s2411 + $0xd8] sm:$0xf]
          %v10683 = vld [vmem:[%s2411 + $0xdc] sm:$0xf]
          %v10684 = vld [vmem:[%s2411 + $0xe0] sm:$0xf]
          %v10685 = vld [vmem:[%s2411 + $0xe4] sm:$0xf]
          %v10686 = vld [vmem:[%s2411 + $0xe8] sm:$0xf]
          %v10687 = vld [vmem:[%s2411 + $0xec] sm:$0xf]
          %v10688 = vld [vmem:[%s2411 + $0xf0] sm:$0xf]
          %v10689 = vld [vmem:[%s2411 + $0xf4] sm:$0xf]
          %v10690 = vld [vmem:[%s2411 + $0xf8] sm:$0xf]
          %v10691 = vld [vmem:[%s2411 + $0xfc] sm:$0xf]
          %v10692 = vld [vmem:[%s2411 + $0x100] sm:$0xf]
          %v10693 = vld [vmem:[%s2411 + $0x104] sm:$0xf]
          %v10694 = vld [vmem:[%s2411 + $0x108] sm:$0xf]
          %v10695 = vld [vmem:[%s2411 + $0x10c] sm:$0xf]
          %v10696 = vld [vmem:[%s2411 + $0x110] sm:$0xf]
          %v10697 = vld [vmem:[%s2411 + $0x114] sm:$0xf]
          %v10698 = vld [vmem:[%s2411 + $0x118] sm:$0xf]
          %v10699 = vld [vmem:[%s2411 + $0x11c] sm:$0xf]
          %v10700 = vld [vmem:[%s2411 + $0x120] sm:$0xf]
          %v10701 = vld [vmem:[%s2411 + $0x124] sm:$0xf]
          %v10702 = vld [vmem:[%s2411 + $0x128] sm:$0xf]
          %v10703 = vld [vmem:[%s2411 + $0x12c] sm:$0xf]
          %v10704 = vld [vmem:[%s2411 + $0x130] sm:$0xf]
          %v10705 = vld [vmem:[%s2411 + $0x134] sm:$0xf]
          %v10706 = vld [vmem:[%s2411 + $0x138] sm:$0xf]
          %v10707 = vld [vmem:[%s2411 + $0x13c] sm:$0xf]
          %v10708 = vld [vmem:[%s2411 + $0x140] sm:$0xf]
          %v10709 = vld [vmem:[%s2411 + $0x144] sm:$0xf]
          %v10710 = vld [vmem:[%s2411 + $0x148] sm:$0xf]
          %v10711 = vld [vmem:[%s2411 + $0x14c] sm:$0xf]
          %v10712 = vld [vmem:[%s2411 + $0x150] sm:$0xf]
          %v10713 = vld [vmem:[%s2411 + $0x154] sm:$0xf]
          %v10714 = vld [vmem:[%s2411 + $0x158] sm:$0xf]
          %v10715 = vld [vmem:[%s2411 + $0x15c] sm:$0xf]
          %v10716 = vld [vmem:[%s2411 + $0x160] sm:$0xf]
          %v10717 = vld [vmem:[%s2411 + $0x164] sm:$0xf]
          %v10718 = vld [vmem:[%s2411 + $0x168] sm:$0xf]
          %v10719 = vld [vmem:[%s2411 + $0x16c] sm:$0xf]
          %v10720 = vld [vmem:[%s2411 + $0x170] sm:$0xf]
          %v10721 = vld [vmem:[%s2411 + $0x174] sm:$0xf]
          %v10722 = vld [vmem:[%s2411 + $0x178] sm:$0xf]
          %v10723 = vld [vmem:[%s2411 + $0x17c] sm:$0xf]
          %v10724 = vld [vmem:[%s2411 + $0x180] sm:$0xf]
          %v10725 = vld [vmem:[%s2411 + $0x184] sm:$0xf]
          %v10726 = vld [vmem:[%s2411 + $0x188] sm:$0xf]
          %v10727 = vld [vmem:[%s2411 + $0x18c] sm:$0xf]
          %v10728 = vld [vmem:[%s2411 + $0x190] sm:$0xf]
          %v10729 = vld [vmem:[%s2411 + $0x194] sm:$0xf]
          %v10730 = vld [vmem:[%s2411 + $0x198] sm:$0xf]
          %v10731 = vld [vmem:[%s2411 + $0x19c] sm:$0xf]
          %v10732 = vld [vmem:[%s2411 + $0x1a0] sm:$0xf]
          %v10733 = vld [vmem:[%s2411 + $0x1a4] sm:$0xf]
          %v10734 = vld [vmem:[%s2411 + $0x1a8] sm:$0xf]
          %v10735 = vld [vmem:[%s2411 + $0x1ac] sm:$0xf]
          %v10736 = vld [vmem:[%s2411 + $0x1b0] sm:$0xf]
          %v10737 = vld [vmem:[%s2411 + $0x1b4] sm:$0xf]
          %v10738 = vld [vmem:[%s2411 + $0x1b8] sm:$0xf]
          %v10739 = vld [vmem:[%s2411 + $0x1bc] sm:$0xf]
          %v10740 = vld [vmem:[%s2411 + $0x1c0] sm:$0xf]
          %v10741 = vld [vmem:[%s2411 + $0x1c4] sm:$0xf]
          %v10742 = vld [vmem:[%s2411 + $0x1c8] sm:$0xf]
          %v10743 = vld [vmem:[%s2411 + $0x1cc] sm:$0xf]
          %v10744 = vld [vmem:[%s2411 + $0x1d0] sm:$0xf]
          %v10745 = vld [vmem:[%s2411 + $0x1d4] sm:$0xf]
          %v10746 = vld [vmem:[%s2411 + $0x1d8] sm:$0xf]
          %v10747 = vld [vmem:[%s2411 + $0x1dc] sm:$0xf]
          %v10748 = vld [vmem:[%s2411 + $0x1e0] sm:$0xf]
          %v10749 = vld [vmem:[%s2411 + $0x1e4] sm:$0xf]
          %v10750 = vld [vmem:[%s2411 + $0x1e8] sm:$0xf]
          %v10751 = vld [vmem:[%s2411 + $0x1ec] sm:$0xf]
          %v10752 = vld [vmem:[%s2411 + $0x1f0] sm:$0xf]
          %v10753 = vld [vmem:[%s2411 + $0x1f4] sm:$0xf]
          %v10754 = vld [vmem:[%s2411 + $0x1f8] sm:$0xf]
          %v10755 = vld [vmem:[%s2411 + $0x1fc] sm:$0xf]
          %v10884 = vunpack.c.l.b16 %v10628
          %v10885 = vunpack.c.l.b16 %v10629
          %v10886 = vunpack.c.l.b16 %v10630
          %v10887 = vunpack.c.l.b16 %v10631
          %v10888 = vunpack.c.l.b16 %v10632
          %v10889 = vunpack.c.l.b16 %v10633
          %v10890 = vunpack.c.l.b16 %v10634
          %v10891 = vunpack.c.l.b16 %v10635
          %v10892 = vunpack.c.l.b16 %v10636
          %v10893 = vunpack.c.l.b16 %v10637
          %v10894 = vunpack.c.l.b16 %v10638
          %v10895 = vunpack.c.l.b16 %v10639
          %v10896 = vunpack.c.l.b16 %v10640
          %v10897 = vunpack.c.l.b16 %v10641
          %v10898 = vunpack.c.l.b16 %v10642
          %v10899 = vunpack.c.l.b16 %v10643
          %v10900 = vunpack.c.l.b16 %v10644
          %v10901 = vunpack.c.l.b16 %v10645
          %v10902 = vunpack.c.l.b16 %v10646
          %v10903 = vunpack.c.l.b16 %v10647
          %v10904 = vunpack.c.l.b16 %v10648
          %v10905 = vunpack.c.l.b16 %v10649
          %v10906 = vunpack.c.l.b16 %v10650
          %v10907 = vunpack.c.l.b16 %v10651
          %v10908 = vunpack.c.l.b16 %v10652
          %v10909 = vunpack.c.l.b16 %v10653
          %v10910 = vunpack.c.l.b16 %v10654
          %v10911 = vunpack.c.l.b16 %v10655
          %v10912 = vunpack.c.l.b16 %v10656
          %v10913 = vunpack.c.l.b16 %v10657
          %v10914 = vunpack.c.l.b16 %v10658
          %v10915 = vunpack.c.l.b16 %v10659
          %v10916 = vunpack.c.l.b16 %v10660
          %v10917 = vunpack.c.l.b16 %v10661
          %v10918 = vunpack.c.l.b16 %v10662
          %v10919 = vunpack.c.l.b16 %v10663
          %v10920 = vunpack.c.l.b16 %v10664
          %v10921 = vunpack.c.l.b16 %v10665
          %v10922 = vunpack.c.l.b16 %v10666
          %v10923 = vunpack.c.l.b16 %v10667
          %v10924 = vunpack.c.l.b16 %v10668
          %v10925 = vunpack.c.l.b16 %v10669
          %v10926 = vunpack.c.l.b16 %v10670
          %v10927 = vunpack.c.l.b16 %v10671
          %v10928 = vunpack.c.l.b16 %v10672
          %v10929 = vunpack.c.l.b16 %v10673
          %v10930 = vunpack.c.l.b16 %v10674
          %v10931 = vunpack.c.l.b16 %v10675
          %v10932 = vunpack.c.l.b16 %v10676
          %v10933 = vunpack.c.l.b16 %v10677
          %v10934 = vunpack.c.l.b16 %v10678
          %v10935 = vunpack.c.l.b16 %v10679
          %v10936 = vunpack.c.l.b16 %v10680
          %v10937 = vunpack.c.l.b16 %v10681
          %v10938 = vunpack.c.l.b16 %v10682
          %v10939 = vunpack.c.l.b16 %v10683
          %v10940 = vunpack.c.l.b16 %v10684
          %v10941 = vunpack.c.l.b16 %v10685
          %v10942 = vunpack.c.l.b16 %v10686
          %v10943 = vunpack.c.l.b16 %v10687
          %v10944 = vunpack.c.l.b16 %v10688
          %v10945 = vunpack.c.l.b16 %v10689
          %v10946 = vunpack.c.l.b16 %v10690
          %v10947 = vunpack.c.l.b16 %v10691
          %v10948 = vunpack.c.l.b16 %v10692
          %v10949 = vunpack.c.l.b16 %v10693
          %v10950 = vunpack.c.l.b16 %v10694
          %v10951 = vunpack.c.l.b16 %v10695
          %v10952 = vunpack.c.l.b16 %v10696
          %v10953 = vunpack.c.l.b16 %v10697
          %v10954 = vunpack.c.l.b16 %v10698
          %v10955 = vunpack.c.l.b16 %v10699
          %v10956 = vunpack.c.l.b16 %v10700
          %v10957 = vunpack.c.l.b16 %v10701
          %v10958 = vunpack.c.l.b16 %v10702
          %v10959 = vunpack.c.l.b16 %v10703
          %v10960 = vunpack.c.l.b16 %v10704
          %v10961 = vunpack.c.l.b16 %v10705
          %v10962 = vunpack.c.l.b16 %v10706
          %v10963 = vunpack.c.l.b16 %v10707
          %v10964 = vunpack.c.l.b16 %v10708
          %v10965 = vunpack.c.l.b16 %v10709
          %v10966 = vunpack.c.l.b16 %v10710
          %v10967 = vunpack.c.l.b16 %v10711
          %v10968 = vunpack.c.l.b16 %v10712
          %v10969 = vunpack.c.l.b16 %v10713
          %v10970 = vunpack.c.l.b16 %v10714
          %v10971 = vunpack.c.l.b16 %v10715
          %v10972 = vunpack.c.l.b16 %v10716
          %v10973 = vunpack.c.l.b16 %v10717
          %v10974 = vunpack.c.l.b16 %v10718
          %v10975 = vunpack.c.l.b16 %v10719
          %v10976 = vunpack.c.l.b16 %v10720
          %v10977 = vunpack.c.l.b16 %v10721
          %v10978 = vunpack.c.l.b16 %v10722
          %v10979 = vunpack.c.l.b16 %v10723
          %v10980 = vunpack.c.l.b16 %v10724
          %v10981 = vunpack.c.l.b16 %v10725
          %v10982 = vunpack.c.l.b16 %v10726
          %v10983 = vunpack.c.l.b16 %v10727
          %v10984 = vunpack.c.l.b16 %v10728
          %v10985 = vunpack.c.l.b16 %v10729
          %v10986 = vunpack.c.l.b16 %v10730
          %v10987 = vunpack.c.l.b16 %v10731
          %v10988 = vunpack.c.l.b16 %v10732
          %v10989 = vunpack.c.l.b16 %v10733
          %v10990 = vunpack.c.l.b16 %v10734
          %v10991 = vunpack.c.l.b16 %v10735
          %v10992 = vunpack.c.l.b16 %v10736
          %v10993 = vunpack.c.l.b16 %v10737
          %v10994 = vunpack.c.l.b16 %v10738
          %v10995 = vunpack.c.l.b16 %v10739
          %v10996 = vunpack.c.l.b16 %v10740
          %v10997 = vunpack.c.l.b16 %v10741
          %v10998 = vunpack.c.l.b16 %v10742
          %v10999 = vunpack.c.l.b16 %v10743
          %v11000 = vunpack.c.l.b16 %v10744
          %v11001 = vunpack.c.l.b16 %v10745
          %v11002 = vunpack.c.l.b16 %v10746
          %v11003 = vunpack.c.l.b16 %v10747
          %v11004 = vunpack.c.l.b16 %v10748
          %v11005 = vunpack.c.l.b16 %v10749
          %v11006 = vunpack.c.l.b16 %v10750
          %v11007 = vunpack.c.l.b16 %v10751
          %v11008 = vunpack.c.l.b16 %v10752
          %v11009 = vunpack.c.l.b16 %v10753
          %v11010 = vunpack.c.l.b16 %v10754
          %v11011 = vunpack.c.l.b16 %v10755
          %v11012 = vpack.c.b16 %v10885, %v10884
          %v11013 = vpack.c.b16 %v10887, %v10886
          %v11014 = vpack.c.b16 %v10889, %v10888
          %v11015 = vpack.c.b16 %v10891, %v10890
          %v11016 = vpack.c.b16 %v10893, %v10892
          %v11017 = vpack.c.b16 %v10895, %v10894
          %v11018 = vpack.c.b16 %v10897, %v10896
          %v11019 = vpack.c.b16 %v10899, %v10898
          %v11020 = vpack.c.b16 %v10901, %v10900
          %v11021 = vpack.c.b16 %v10903, %v10902
          %v11022 = vpack.c.b16 %v10905, %v10904
          %v11023 = vpack.c.b16 %v10907, %v10906
          %v11024 = vpack.c.b16 %v10909, %v10908
          %v11025 = vpack.c.b16 %v10911, %v10910
          %v11026 = vpack.c.b16 %v10913, %v10912
          %v11027 = vpack.c.b16 %v10915, %v10914
          %v11028 = vpack.c.b16 %v10917, %v10916
          %v11029 = vpack.c.b16 %v10919, %v10918
          %v11030 = vpack.c.b16 %v10921, %v10920
          %v11031 = vpack.c.b16 %v10923, %v10922
          %v11032 = vpack.c.b16 %v10925, %v10924
          %v11033 = vpack.c.b16 %v10927, %v10926
          %v11034 = vpack.c.b16 %v10929, %v10928
          %v11035 = vpack.c.b16 %v10931, %v10930
          %v11036 = vpack.c.b16 %v10933, %v10932
          %v11037 = vpack.c.b16 %v10935, %v10934
          %v11038 = vpack.c.b16 %v10937, %v10936
          %v11039 = vpack.c.b16 %v10939, %v10938
          %v11040 = vpack.c.b16 %v10941, %v10940
          %v11041 = vpack.c.b16 %v10943, %v10942
          %v11042 = vpack.c.b16 %v10945, %v10944
          %v11043 = vpack.c.b16 %v10947, %v10946
          %v11044 = vpack.c.b16 %v10949, %v10948
          %v11045 = vpack.c.b16 %v10951, %v10950
          %v11046 = vpack.c.b16 %v10953, %v10952
          %v11047 = vpack.c.b16 %v10955, %v10954
          %v11048 = vpack.c.b16 %v10957, %v10956
          %v11049 = vpack.c.b16 %v10959, %v10958
          %v11050 = vpack.c.b16 %v10961, %v10960
          %v11051 = vpack.c.b16 %v10963, %v10962
          %v11052 = vpack.c.b16 %v10965, %v10964
          %v11053 = vpack.c.b16 %v10967, %v10966
          %v11054 = vpack.c.b16 %v10969, %v10968
          %v11055 = vpack.c.b16 %v10971, %v10970
          %v11056 = vpack.c.b16 %v10973, %v10972
          %v11057 = vpack.c.b16 %v10975, %v10974
          %v11058 = vpack.c.b16 %v10977, %v10976
          %v11059 = vpack.c.b16 %v10979, %v10978
          %v11060 = vpack.c.b16 %v10981, %v10980
          %v11061 = vpack.c.b16 %v10983, %v10982
          %v11062 = vpack.c.b16 %v10985, %v10984
          %v11063 = vpack.c.b16 %v10987, %v10986
          %v11064 = vpack.c.b16 %v10989, %v10988
          %v11065 = vpack.c.b16 %v10991, %v10990
          %v11066 = vpack.c.b16 %v10993, %v10992
          %v11067 = vpack.c.b16 %v10995, %v10994
          %v11068 = vpack.c.b16 %v10997, %v10996
          %v11069 = vpack.c.b16 %v10999, %v10998
          %v11070 = vpack.c.b16 %v11001, %v11000
          %v11071 = vpack.c.b16 %v11003, %v11002
          %v11072 = vpack.c.b16 %v11005, %v11004
          %v11073 = vpack.c.b16 %v11007, %v11006
          %v11074 = vpack.c.b16 %v11009, %v11008
          %v11075 = vpack.c.b16 %v11011, %v11010
          %11140 = vmatprep.subr.bf16.mxu0 0
          %11141 = vmatpush1.bf16.msra.mxu0 %v11012
          %11142 = vmatprep.subr.bf16.mxu0 0
          %11143 = vmatpush1.bf16.msra.mxu0 %v11013
          %11144 = vmatprep.subr.bf16.mxu0 0
          %11145 = vmatpush1.bf16.msra.mxu0 %v11014
          %11146 = vmatprep.subr.bf16.mxu0 0
          %11147 = vmatpush1.bf16.msra.mxu0 %v11015
          %11148 = vmatprep.subr.bf16.mxu0 0
          %11149 = vmatpush1.bf16.msra.mxu0 %v11016
          %11150 = vmatprep.subr.bf16.mxu0 0
          %11151 = vmatpush1.bf16.msra.mxu0 %v11017
          %11152 = vmatprep.subr.bf16.mxu0 0
          %11153 = vmatpush1.bf16.msra.mxu0 %v11018
          %11154 = vmatprep.subr.bf16.mxu0 0
          %11155 = vmatpush1.bf16.msra.mxu0 %v11019
          %11156 = vmatprep.subr.bf16.mxu0 0
          %11157 = vmatpush1.bf16.msra.mxu0 %v11020
          %11158 = vmatprep.subr.bf16.mxu0 0
          %11159 = vmatpush1.bf16.msra.mxu0 %v11021
          %11160 = vmatprep.subr.bf16.mxu0 0
          %11161 = vmatpush1.bf16.msra.mxu0 %v11022
          %11162 = vmatprep.subr.bf16.mxu0 0
          %11163 = vmatpush1.bf16.msra.mxu0 %v11023
          %11164 = vmatprep.subr.bf16.mxu0 0
          %11165 = vmatpush1.bf16.msra.mxu0 %v11024
          %11166 = vmatprep.subr.bf16.mxu0 0
          %11167 = vmatpush1.bf16.msra.mxu0 %v11025
          %11168 = vmatprep.subr.bf16.mxu0 0
          %11169 = vmatpush1.bf16.msra.mxu0 %v11026
          %11170 = vmatprep.subr.bf16.mxu0 0
          %11171 = vmatpush1.bf16.msra.mxu0 %v11027
          %11172 = vmatprep.mubr.bf16.mxu0 %v10621
          %11173 = vmatmul.mubr.bf16.gmra.mrb[0].mxu0 %v10620
          %v11174 = vpop.f32.mrb[0].mxu0
          %v11175 = vadd.f32 0.0, %v11174
          %v11176 = vpop.f32.mrb[0].mxu0
          %v11177 = vpop.f32.mrb[0].mxu0
          %v11178 = vpop.f32.mrb[0].mxu0
          %11179 = vdwg.mxu0
          %11180 = vmatprep.subr.bf16.mxu0 0
          %11181 = vmatpush1.bf16.msra.mxu0 %v11028
          %11182 = vmatprep.subr.bf16.mxu0 0
          %11183 = vmatpush1.bf16.msra.mxu0 %v11029
          %11184 = vmatprep.subr.bf16.mxu0 0
          %11185 = vmatpush1.bf16.msra.mxu0 %v11030
          %11186 = vmatprep.subr.bf16.mxu0 0
          %11187 = vmatpush1.bf16.msra.mxu0 %v11031
          %11188 = vmatprep.subr.bf16.mxu0 0
          %11189 = vmatpush1.bf16.msra.mxu0 %v11032
          %11190 = vmatprep.subr.bf16.mxu0 0
          %11191 = vmatpush1.bf16.msra.mxu0 %v11033
          %11192 = vmatprep.subr.bf16.mxu0 0
          %11193 = vmatpush1.bf16.msra.mxu0 %v11034
          %11194 = vmatprep.subr.bf16.mxu0 0
          %11195 = vmatpush1.bf16.msra.mxu0 %v11035
          %11196 = vmatprep.subr.bf16.mxu0 0
          %11197 = vmatpush1.bf16.msra.mxu0 %v11036
          %11198 = vmatprep.subr.bf16.mxu0 0
          %11199 = vmatpush1.bf16.msra.mxu0 %v11037
          %11200 = vmatprep.subr.bf16.mxu0 0
          %11201 = vmatpush1.bf16.msra.mxu0 %v11038
          %11202 = vmatprep.subr.bf16.mxu0 0
          %11203 = vmatpush1.bf16.msra.mxu0 %v11039
          %11204 = vmatprep.subr.bf16.mxu0 0
          %11205 = vmatpush1.bf16.msra.mxu0 %v11040
          %11206 = vmatprep.subr.bf16.mxu0 0
          %11207 = vmatpush1.bf16.msra.mxu0 %v11041
          %11208 = vmatprep.subr.bf16.mxu0 0
          %11209 = vmatpush1.bf16.msra.mxu0 %v11042
          %11210 = vmatprep.subr.bf16.mxu0 0
          %11211 = vmatpush1.bf16.msra.mxu0 %v11043
          %11212 = vmatprep.mubr.bf16.mxu0 %v10623
          %11213 = vmatmul.mubr.bf16.gmra.mrb[0].mxu0 %v10622
          %v11214 = vpop.f32.mrb[0].mxu0
          %v11215 = vadd.f32 %v11175, %v11214
          %v11216 = vpop.f32.mrb[0].mxu0
          %v11217 = vpop.f32.mrb[0].mxu0
          %v11218 = vpop.f32.mrb[0].mxu0
          %11219 = vdwg.mxu0
          %11220 = vmatprep.subr.bf16.mxu0 0
          %11221 = vmatpush1.bf16.msra.mxu0 %v11044
          %11222 = vmatprep.subr.bf16.mxu0 0
          %11223 = vmatpush1.bf16.msra.mxu0 %v11045
          %11224 = vmatprep.subr.bf16.mxu0 0
          %11225 = vmatpush1.bf16.msra.mxu0 %v11046
          %11226 = vmatprep.subr.bf16.mxu0 0
          %11227 = vmatpush1.bf16.msra.mxu0 %v11047
          %11228 = vmatprep.subr.bf16.mxu0 0
          %11229 = vmatpush1.bf16.msra.mxu0 %v11048
          %11230 = vmatprep.subr.bf16.mxu0 0
          %11231 = vmatpush1.bf16.msra.mxu0 %v11049
          %11232 = vmatprep.subr.bf16.mxu0 0
          %11233 = vmatpush1.bf16.msra.mxu0 %v11050
          %11234 = vmatprep.subr.bf16.mxu0 0
          %11235 = vmatpush1.bf16.msra.mxu0 %v11051
          %11236 = vmatprep.subr.bf16.mxu0 0
          %11237 = vmatpush1.bf16.msra.mxu0 %v11052
          %11238 = vmatprep.subr.bf16.mxu0 0
          %11239 = vmatpush1.bf16.msra.mxu0 %v11053
          %11240 = vmatprep.subr.bf16.mxu0 0
          %11241 = vmatpush1.bf16.msra.mxu0 %v11054
          %11242 = vmatprep.subr.bf16.mxu0 0
          %11243 = vmatpush1.bf16.msra.mxu0 %v11055
          %11244 = vmatprep.subr.bf16.mxu0 0
          %11245 = vmatpush1.bf16.msra.mxu0 %v11056
          %11246 = vmatprep.subr.bf16.mxu0 0
          %11247 = vmatpush1.bf16.msra.mxu0 %v11057
          %11248 = vmatprep.subr.bf16.mxu0 0
          %11249 = vmatpush1.bf16.msra.mxu0 %v11058
          %11250 = vmatprep.subr.bf16.mxu0 0
          %11251 = vmatpush1.bf16.msra.mxu0 %v11059
          %11252 = vmatprep.mubr.bf16.mxu0 %v10625
          %11253 = vmatmul.mubr.bf16.gmra.mrb[0].mxu0 %v10624
          %v11254 = vpop.f32.mrb[0].mxu0
          %v11255 = vadd.f32 %v11215, %v11254
          %v11256 = vpop.f32.mrb[0].mxu0
          %v11257 = vpop.f32.mrb[0].mxu0
          %v11258 = vpop.f32.mrb[0].mxu0
          %11259 = vdwg.mxu0
          %11260 = vmatprep.subr.bf16.mxu0 0
          %11261 = vmatpush1.bf16.msra.mxu0 %v11060
          %11262 = vmatprep.subr.bf16.mxu0 0
          %11263 = vmatpush1.bf16.msra.mxu0 %v11061
          %11264 = vmatprep.subr.bf16.mxu0 0
          %11265 = vmatpush1.bf16.msra.mxu0 %v11062
          %11266 = vmatprep.subr.bf16.mxu0 0
          %11267 = vmatpush1.bf16.msra.mxu0 %v11063
          %11268 = vmatprep.subr.bf16.mxu0 0
          %11269 = vmatpush1.bf16.msra.mxu0 %v11064
          %11270 = vmatprep.subr.bf16.mxu0 0
          %11271 = vmatpush1.bf16.msra.mxu0 %v11065
          %11272 = vmatprep.subr.bf16.mxu0 0
          %11273 = vmatpush1.bf16.msra.mxu0 %v11066
          %11274 = vmatprep.subr.bf16.mxu0 0
          %11275 = vmatpush1.bf16.msra.mxu0 %v11067
          %11276 = vmatprep.subr.bf16.mxu0 0
          %11277 = vmatpush1.bf16.msra.mxu0 %v11068
          %11278 = vmatprep.subr.bf16.mxu0 0
          %11279 = vmatpush1.bf16.msra.mxu0 %v11069
          %11280 = vmatprep.subr.bf16.mxu0 0
          %11281 = vmatpush1.bf16.msra.mxu0 %v11070
          %11282 = vmatprep.subr.bf16.mxu0 0
          %11283 = vmatpush1.bf16.msra.mxu0 %v11071
          %11284 = vmatprep.subr.bf16.mxu0 0
          %11285 = vmatpush1.bf16.msra.mxu0 %v11072
          %11286 = vmatprep.subr.bf16.mxu0 0
          %11287 = vmatpush1.bf16.msra.mxu0 %v11073
          %11288 = vmatprep.subr.bf16.mxu0 0
          %11289 = vmatpush1.bf16.msra.mxu0 %v11074
          %11290 = vmatprep.subr.bf16.mxu0 0
          %11291 = vmatpush1.bf16.msra.mxu0 %v11075
          %11292 = vmatprep.mubr.bf16.mxu0 %v10627
          %11293 = vmatmul.mubr.bf16.gmra.mrb[0].mxu0 %v10626
          %v11294 = vpop.f32.mrb[0].mxu0
          %v11295 = vadd.f32 %v11255, %v11294
          %v11296 = vpop.f32.mrb[0].mxu0
          %v11297 = vpop.f32.mrb[0].mxu0
          %v11298 = vpop.f32.mrb[0].mxu0
          %11299 = vdwg.mxu0
          %11300 = vst [vmem:[%s2416] sm:$0xff] %v11295
        $region75: #{diagnosis_forward.1} parent=62 // pred_fallthru
          _
        %p11301 = scmp.lt.s32.totalorder %s21, 1
        %s11302 = scalar_select %p11301, %s21, 1
        %s11303 = smul.addr %s11302, 8
        %s11304 = scalar_lea.vmem %s6, %s11303
        // Predicated region
        $region76: #{diagnosis_forward.1} parent=62 // pred_check
          %p11305 = pneg %p200
        $region77: #{diagnosis_forward.1} parent=62 // pred_check_branch
          %11307 = sbr.rel (%p11305) target = $region79
        $region78: #{diagnosis_forward.1} parent=62 // pred_region
          _
        $region79: #{diagnosis_forward.1} parent=62 // pred_fallthru
          _
      $region63: #{diagnosis_forward.1} parent=5 // pred_fallthru
        _
      %p11308 = scmp.le.s32.totalorder 2, %s12
      // Predicated region
      $region80: #{diagnosis_forward.1} parent=5 // pred_check
        %p11309 = pneg %p11308
      $region81: #{diagnosis_forward.1} parent=5 // pred_check_branch
        %11311 = sbr.rel (%p11309) target = $region83
      $region82: #{diagnosis_forward.1} parent=5 // pred_region
        %s11312 = ssub.s32 %s12, 2
        // Predicated region
        $region84: #{diagnosis_forward.1} parent=82 // pred_check
          %p11313 = pneg %p206
        $region85: #{diagnosis_forward.1} parent=82 // pred_check_branch
          %11315 = sbr.rel (%p11313) target = $region87
        $region86: #{diagnosis_forward.1} parent=82 // pred_region
          %p11316 = scmp.lt.s32.totalorder %s23, 1
          %s11317 = scalar_select %p11316, %s23, 1
          %s11318 = smul.addr %s11317, 8
          %s11319 = scalar_lea.vmem %s6, %s11318
        $region87: #{diagnosis_forward.1} parent=82 // pred_fallthru
          _
      $region83: #{diagnosis_forward.1} parent=5 // pred_fallthru
        _
    $region6: #{diagnosis_forward.1} parent=1 // loop_footer
      %s16 = sadd.s32 1, %s12
    $region7: #{diagnosis_forward.1} parent=1 // loop_footer_branch
      %11 = sbr.rel target = $region3
    $region8: #{diagnosis_forward.1} parent=1 // loop_exit
      _

</llo_original>
